<compile_context>
chip_gen: v6e
topology: v6e:2x2x1
jax: 0.10.0
libtpu: 0.0.40
codegen_flags: <defaults>
</compile_context>

<pallas_src>
import functools

import jax
import jax.numpy as jnp
from jax.experimental import pallas as pl
from jax.experimental.pallas import tpu as pltpu


def _round_up(x, m):
    return ((x + m - 1) // m) * m


# ----------------------------------------------------------------------------
# Kernel 1: fused conv (ke*ke shifted matmuls over a flattened slab) + bias
# + optional LeakyReLU + optional masked sum / sumsq accumulation for
# InstanceNorm.  Grid = (B, n_hw_tiles); the HW axis tiles the OUTPUT rows.
# ----------------------------------------------------------------------------
def _conv_tap_kernel(*refs, ke, tile, ws, has_bias, do_stats, apply_relu):
    it = iter(refs)
    x_ref = next(it)                        # (1, Lflat, Cp)       compute dtype
    w_ref = next(it)                        # (ke*ke, Cp, Coutp)   compute dtype
    b_ref = next(it) if has_bias else None  # (1, Coutp)           f32
    m_ref = next(it) if do_stats else None  # (tile, 1)            f32 valid mask
    y_ref = next(it)                        # (1, tile, Coutp)     compute dtype
    if do_stats:
        sum_ref = next(it)                  # (1, 1, Coutp)        f32
        ssq_ref = next(it)                  # (1, 1, Coutp)        f32

    t = pl.program_id(1)
    base = pl.multiple_of(t * tile, 8)
    coutp = y_ref.shape[-1]

    acc = jnp.zeros((tile, coutp), jnp.float32)
    for tap in range(ke * ke):
        shift = (tap // ke) * ws + (tap % ke)
        xs = x_ref[0, pl.ds(base + shift, tile), :]          # (tile, Cp)
        acc = acc + jnp.dot(xs, w_ref[tap],
                            preferred_element_type=jnp.float32)

    if has_bias:
        acc = acc + b_ref[...]                               # (1, Coutp) bcast
    if apply_relu:
        acc = jnp.where(acc >= 0.0, acc, 0.2 * acc)          # LeakyReLU(0.2)

    y_ref[0] = acc.astype(y_ref.dtype)

    if do_stats:
        mask = m_ref[...]                                    # (tile, 1) f32
        masked = acc * mask
        s = jnp.sum(masked, axis=0, keepdims=True)           # (1, Coutp)
        ss = jnp.sum(masked * acc, axis=0, keepdims=True)    # masked sum of sq.

        @pl.when(t == 0)
        def _():
            sum_ref[...] = jnp.zeros_like(sum_ref)
            ssq_ref[...] = jnp.zeros_like(ssq_ref)

        sum_ref[0] = sum_ref[0] + s
        ssq_ref[0] = ssq_ref[0] + ss


# ----------------------------------------------------------------------------
# Kernel 2: InstanceNorm (affine=False, eps=1e-5, biased var) + LeakyReLU(0.2)
# applied per HW tile, using the precomputed per-(sample, channel) stats.
# ----------------------------------------------------------------------------
def _instnorm_kernel(y_ref, sum_ref, ssq_ref, o_ref, *, count, eps, do_relu):
    y = y_ref[0].astype(jnp.float32)                         # (tile, Coutp)
    inv_n = 1.0 / count
    mean = sum_ref[0] * inv_n                                # (1, Coutp)
    var = jnp.maximum(ssq_ref[0] * inv_n - mean * mean, 0.0)
    inv_std = jax.lax.rsqrt(var + eps)
    z = (y - mean) * inv_std
    if do_relu:
        z = jnp.where(z >= 0.0, z, 0.2 * z)
    o_ref[0] = z.astype(o_ref.dtype)


# ----------------------------------------------------------------------------
# One conv layer: glue (pad / space-to-depth / channel-pad / flatten) + the
# two Pallas kernels above.
# ----------------------------------------------------------------------------
def conv_layer(x_nhwc, w, b, *, cout, stride, do_norm, do_relu, has_bias,
               compute_dtype, tile_hw=512):
    assert stride in (1, 2)
    B, Hin, Win, Cin = x_nhwc.shape
    k, pad = 4, 1
    xp = jnp.pad(x_nhwc, ((0, 0), (pad, pad), (pad, pad), (0, 0)))

    if stride == 2:
        # Space-to-depth: k=4, s=2 conv  ==  k=2, s=1 conv over 4*Cin channels.
        ke = 2
        Hout = (Hin + 2 * pad - k) // 2 + 1
        Wout = (Win + 2 * pad - k) // 2 + 1
        Hs, Ws = Hout + ke - 1, Wout + ke - 1
        phases = []
        for p in range(2):
            for q in range(2):
                phases.append(xp[:, p:p + 2 * Hs:2, q:q + 2 * Ws:2, :])
        xs = jnp.concatenate(phases, axis=-1)            # (B, Hs, Ws, 4*Cin)
        ce = 4 * Cin
        w2 = w.reshape(cout, Cin, 2, 2, 2, 2)            # (co, ci, a, p, b, q)
        w2 = w2.transpose(2, 4, 3, 5, 1, 0)              # (a, b, p, q, ci, co)
        w2 = w2.reshape(ke * ke, ce, cout)
    else:
        ke = 4
        Hout = Hin + 2 * pad - k + 1
        Wout = Win + 2 * pad - k + 1
        Hs, Ws = Hin + 2 * pad, Win + 2 * pad            # == Hout+3, Wout+3
        xs = xp
        ce = Cin
        w2 = w.transpose(2, 3, 1, 0).reshape(ke * ke, ce, cout)

    cp = _round_up(ce, 128)          # lane-dense contraction dim
    coutp = _round_up(cout, 128)     # lane-dense output dim (incl. Cout=1 head)

    tile = min(_round_up(tile_hw, 8), _round_up(Hout * Ws, 8))
    n_tiles = (Hout * Ws + tile - 1) // tile
    lout_pad = n_tiles * tile
    lflat = lout_pad + (ke - 1) * (Ws + 1)   # covers the largest shifted read

    xf = xs.astype(compute_dtype)
    xf = jnp.pad(xf, ((0, 0), (0, 0), (0, 0), (0, cp - ce)))
    xf = xf.reshape(B, Hs * Ws, cp)
    xf = jnp.pad(xf, ((0, 0), (0, lflat - Hs * Ws), (0, 0)))

    w2 = jnp.pad(w2, ((0, 0), (0, cp - ce), (0, coutp - cout)))
    w2 = w2.astype(compute_dtype)

    inputs = [xf, w2]
    in_specs = [
        pl.BlockSpec((1, lflat, cp), lambda bb, tt: (bb, 0, 0)),
        pl.BlockSpec((ke * ke, cp, coutp), lambda bb, tt: (0, 0, 0)),
    ]
    if has_bias:
        bias = jnp.pad(b.astype(jnp.float32), (0, coutp - cout)).reshape(1, coutp)
        inputs.append(bias)
        in_specs.append(pl.BlockSpec((1, coutp), lambda bb, tt: (0, 0)))
    if do_norm:
        # Valid-row mask for the InstanceNorm stats (flattened rows include
        # ke-1 garbage columns per output row plus a padded tail).
        ridx = jnp.arange(lout_pad, dtype=jnp.int32)
        mask = ((ridx < Hout * Ws) & ((ridx % Ws) < Wout)).astype(jnp.float32)
        inputs.append(mask.reshape(lout_pad, 1))
        in_specs.append(pl.BlockSpec((tile, 1), lambda bb, tt: (tt, 0)))

    y_shape = jax.ShapeDtypeStruct((B, lout_pad, coutp), compute_dtype)
    y_spec = pl.BlockSpec((1, tile, coutp), lambda bb, tt: (bb, tt, 0))
    if do_norm:
        stat_shape = jax.ShapeDtypeStruct((B, 1, coutp), jnp.float32)
        stat_spec = pl.BlockSpec((1, 1, coutp), lambda bb, tt: (bb, 0, 0))
        out_shape = (y_shape, stat_shape, stat_shape)
        out_specs = (y_spec, stat_spec, stat_spec)
    else:
        out_shape = y_shape
        out_specs = y_spec

    itemsize = jnp.dtype(compute_dtype).itemsize
    flops = 2 * B * lout_pad * cp * coutp * ke * ke
    bytes_accessed = (B * lflat * cp + ke * ke * cp * coutp
                      + B * lout_pad * coutp) * itemsize

    kernel = functools.partial(
        _conv_tap_kernel, ke=ke, tile=tile, ws=Ws, has_bias=has_bias,
        do_stats=do_norm, apply_relu=(do_relu and not do_norm))

    conv_out = pl.pallas_call(
        kernel,
        grid=(B, n_tiles),
        in_specs=in_specs,
        out_specs=out_specs,
        out_shape=out_shape,
        compiler_params=pltpu.CompilerParams(
            dimension_semantics=("parallel", "arbitrary" if do_norm else "parallel"),
            vmem_limit_bytes=32 * 1024 * 1024),
        cost_estimate=pl.CostEstimate(flops=flops, transcendentals=0,
                                      bytes_accessed=bytes_accessed),
    )(*inputs)

    if do_norm:
        y, csum, cssq = conv_out
        norm_kernel = functools.partial(
            _instnorm_kernel, count=float(Hout * Wout), eps=1e-5, do_relu=do_relu)
        y = pl.pallas_call(
            norm_kernel,
            grid=(B, n_tiles),
            in_specs=[
                pl.BlockSpec((1, tile, coutp), lambda bb, tt: (bb, tt, 0)),
                pl.BlockSpec((1, 1, coutp), lambda bb, tt: (bb, 0, 0)),
                pl.BlockSpec((1, 1, coutp), lambda bb, tt: (bb, 0, 0)),
            ],
            out_specs=pl.BlockSpec((1, tile, coutp), lambda bb, tt: (bb, tt, 0)),
            out_shape=jax.ShapeDtypeStruct((B, lout_pad, coutp), compute_dtype),
            compiler_params=pltpu.CompilerParams(
                dimension_semantics=("parallel", "parallel"),
                vmem_limit_bytes=32 * 1024 * 1024),
            cost_estimate=pl.CostEstimate(
                flops=6 * B * lout_pad * coutp,
                transcendentals=B * coutp,
                bytes_accessed=2 * B * lout_pad * coutp * itemsize),
        )(y, csum, cssq)
    else:
        y = conv_out

    # Drop garbage columns / padded tail / padded channels.
    y = y[:, :Hout * Ws, :].reshape(B, Hout, Ws, coutp)[:, :, :Wout, :cout]
    return y


# ----------------------------------------------------------------------------
# Discriminator config / params / forward
# ----------------------------------------------------------------------------
def make_layer_configs(input_nc, ndf=64, n_layers=3):
    """Mirrors Discriminator.__init__ (norm_layer=InstanceNorm2d, use_bias=False)."""
    cfgs = []
    # (Cin, Cout, stride, do_norm, do_relu, has_bias)
    cfgs.append((input_nc, ndf, 2, False, True, True))
    nf_mult = 1
    for n in range(1, n_layers):
        nf_mult_prev = nf_mult
        nf_mult = min(2 ** n, 8)
        cfgs.append((ndf * nf_mult_prev, ndf * nf_mult, 2, True, True, False))
    nf_mult_prev = nf_mult
    nf_mult = min(2 ** n_layers, 8)
    cfgs.append((ndf * nf_mult_prev, ndf * nf_mult, 1, True, True, False))
    cfgs.append((ndf * nf_mult, 1, 1, False, False, True))
    return cfgs


def init_params(key, cfgs):
    params = []
    for (cin, cout, _s, _n, _r, has_bias) in cfgs:
        key, kw, kb = jax.random.split(key, 3)
        w = jax.random.normal(kw, (cout, cin, 4, 4), jnp.float32) * 0.1   # OIHW
        b = (jax.random.normal(kb, (cout,), jnp.float32) * 0.1) if has_bias \
            else jnp.zeros((cout,), jnp.float32)
        params.append((w, b))
    return params


def discriminator_forward(x_nchw, params, cfgs, compute_dtype=jnp.bfloat16,
                          tile_hw=512):
    x = jnp.transpose(x_nchw, (0, 2, 3, 1))   # NCHW -> NHWC
    for (cin, cout, stride, do_norm, do_relu, has_bias), (w, b) in zip(cfgs, params):
        x = conv_layer(x, w, b, cout=cout, stride=stride, do_norm=do_norm,
                       do_relu=do_relu, has_bias=has_bias,
                       compute_dtype=compute_dtype, tile_hw=tile_hw)
    return jnp.transpose(x, (0, 3, 1, 2)).astype(jnp.float32)   # back to NCHW


# ----------------------------------------------------------------------------
# Pure-JAX reference with matched casting points (lax.conv), for validation.
# ----------------------------------------------------------------------------
def reference_forward(x_nchw, params, cfgs, compute_dtype):
    x = x_nchw.astype(jnp.float32)
    for (cin, cout, stride, do_norm, do_relu, has_bias), (w, b) in zip(cfgs, params):
        y = jax.lax.conv_general_dilated(
            x.astype(compute_dtype), w.astype(compute_dtype),
            window_strides=(stride, stride), padding=((1, 1), (1, 1)),
            dimension_numbers=("NCHW", "OIHW", "NCHW"),
            preferred_element_type=jnp.float32)
        if has_bias:
            y = y + b.reshape(1, cout, 1, 1)
        if do_norm:
            y = y.astype(compute_dtype).astype(jnp.float32)
            mean = jnp.mean(y, axis=(2, 3), keepdims=True)
            msq = jnp.mean(y * y, axis=(2, 3), keepdims=True)
            var = jnp.maximum(msq - mean * mean, 0.0)
            y = (y - mean) * jax.lax.rsqrt(var + 1e-5)
        if do_relu:
            y = jnp.where(y >= 0.0, y, 0.2 * y)
        x = y.astype(compute_dtype).astype(jnp.float32)
    return x


if __name__ == "__main__":
    # Small shapes: batch=2, input_nc=4, spatial=32 (so the final two stride-1
    # k=4 convs stay non-empty), ndf=8, n_layers=3.  tile_hw=64 exercises the
    # multi-tile HW grid + cross-tile InstanceNorm stat accumulation.
    B, INPUT_NC, H, W = 2, 4, 32, 32
    NDF, N_LAYERS = 8, 3

    key = jax.random.PRNGKey(0)
    kx, kp = jax.random.split(key)
    x = jax.random.normal(kx, (B, INPUT_NC, H, W), jnp.float32)

    cfgs = make_layer_configs(INPUT_NC, ndf=NDF, n_layers=N_LAYERS)
    params = init_params(kp, cfgs)

    # f32 path: tight correctness check of the fused conv / two-pass norm.
    fwd_f32 = jax.jit(lambda xx: discriminator_forward(
        xx, params, cfgs, compute_dtype=jnp.float32, tile_hw=64))
    out_f32 = jax.block_until_ready(fwd_f32(x))
    ref_f32 = jax.block_until_ready(reference_forward(x, params, cfgs, jnp.float32))
    assert out_f32.shape == ref_f32.shape, (out_f32.shape, ref_f32.shape)
    err32 = float(jnp.max(jnp.abs(out_f32 - ref_f32)))
    assert err32 < 2e-3, err32

    # bf16 path (the performance configuration): sanity check vs matched ref.
    fwd_bf16 = jax.jit(lambda xx: discriminator_forward(
        xx, params, cfgs, compute_dtype=jnp.bfloat16, tile_hw=64))
    out_bf16 = jax.block_until_ready(fwd_bf16(x))
    ref_bf16 = jax.block_until_ready(reference_forward(x, params, cfgs, jnp.bfloat16))
    assert out_bf16.shape == ref_bf16.shape, (out_bf16.shape, ref_bf16.shape)
    assert bool(jnp.all(jnp.isfinite(out_bf16)))
    err16 = float(jnp.max(jnp.abs(out_bf16 - ref_bf16)))
    assert err16 < 0.2, err16

    print("KERNEL_OK")
</pallas_src>

<mosaic_0001>
module attributes {stable_mosaic.version = 11 : i64} {
  func.func @_conv_tap_kernel(%arg0: i32, %arg1: i32, %arg2: memref<1x338x128xf32, #tpu.memory_space<vmem>>, %arg3: memref<4x128x128xf32, #tpu.memory_space<vmem>>, %arg4: memref<1x128xf32, #tpu.memory_space<vmem>>, %arg5: memref<1x64x128xf32, #tpu.memory_space<vmem>>) attributes {dimension_semantics = [#tpu.dimension_semantics<parallel>, #tpu.dimension_semantics<parallel>], iteration_bounds = array<i64: 2, 5>, scalar_prefetch = 0 : i64, scratch_operands = 0 : i64, tpu.core_type = #tpu.core_type<tc>, window_params = [{transform_indices = @transform_0, window_bounds = array<i64: 1, 338, 128>}, {pipeline_mode = #tpu.pipeline_mode<synchronous>, transform_indices = @transform_1, window_bounds = array<i64: 4, 128, 128>}, {pipeline_mode = #tpu.pipeline_mode<synchronous>, transform_indices = @transform_2, window_bounds = array<i64: 1, 128>}, {transform_indices = @transform_3, window_bounds = array<i64: 1, 64, 128>}]} {
    %c64_i32 = arith.constant 64 : i32
    %0 = arith.muli %arg1, %c64_i32 : i32
    %1 = tpu.assume_multiple %0, 8 : i32
    %cst = arith.constant 0.000000e+00 : f32
    %2 = vector.broadcast %cst : f32 to vector<64x128xf32>
    %c0_i32 = arith.constant 0 : i32
    %3 = arith.addi %1, %c0_i32 : i32
    %c0 = arith.constant 0 : index
    %4 = arith.index_cast %3 : i32 to index
    %c0_0 = arith.constant 0 : index
    %5 = vector.load %arg2[%c0, %4, %c0_0] : memref<1x338x128xf32, #tpu.memory_space<vmem>>, vector<1x64x128xf32>
    %6 = vector.shape_cast %5 : vector<1x64x128xf32> to vector<64x128xf32>
    %c0_1 = arith.constant 0 : index
    %c0_2 = arith.constant 0 : index
    %c0_3 = arith.constant 0 : index
    %7 = vector.load %arg3[%c0_1, %c0_2, %c0_3] : memref<4x128x128xf32, #tpu.memory_space<vmem>>, vector<1x128x128xf32>
    %8 = vector.shape_cast %7 : vector<1x128x128xf32> to vector<128x128xf32>
    %cst_4 = arith.constant dense<0.000000e+00> : vector<64x128xf32>
    %9 = tpu.matmul %6, %8, %cst_4 {dimension_numbers = #tpu.dot_dimension_numbers<[1], [0], [0], [1], [0, 0, 1, 1], [], []>} : vector<64x128xf32>, vector<128x128xf32>, vector<64x128xf32> -> vector<64x128xf32>
    %10 = arith.addf %2, %9 : vector<64x128xf32>
    %c1_i32 = arith.constant 1 : i32
    %11 = arith.addi %1, %c1_i32 : i32
    %c0_5 = arith.constant 0 : index
    %12 = arith.index_cast %11 : i32 to index
    %c0_6 = arith.constant 0 : index
    %13 = vector.load %arg2[%c0_5, %12, %c0_6] : memref<1x338x128xf32, #tpu.memory_space<vmem>>, vector<1x64x128xf32>
    %14 = vector.shape_cast %13 : vector<1x64x128xf32> to vector<64x128xf32>
    %c1 = arith.constant 1 : index
    %c0_7 = arith.constant 0 : index
    %c0_8 = arith.constant 0 : index
    %15 = vector.load %arg3[%c1, %c0_7, %c0_8] : memref<4x128x128xf32, #tpu.memory_space<vmem>>, vector<1x128x128xf32>
    %16 = vector.shape_cast %15 : vector<1x128x128xf32> to vector<128x128xf32>
    %cst_9 = arith.constant dense<0.000000e+00> : vector<64x128xf32>
    %17 = tpu.matmul %14, %16, %cst_9 {dimension_numbers = #tpu.dot_dimension_numbers<[1], [0], [0], [1], [0, 0, 1, 1], [], []>} : vector<64x128xf32>, vector<128x128xf32>, vector<64x128xf32> -> vector<64x128xf32>
    %18 = arith.addf %10, %17 : vector<64x128xf32>
    %c17_i32 = arith.constant 17 : i32
    %19 = arith.addi %1, %c17_i32 : i32
    %c0_10 = arith.constant 0 : index
    %20 = arith.index_cast %19 : i32 to index
    %c0_11 = arith.constant 0 : index
    %21 = vector.load %arg2[%c0_10, %20, %c0_11] : memref<1x338x128xf32, #tpu.memory_space<vmem>>, vector<1x64x128xf32>
    %22 = vector.shape_cast %21 : vector<1x64x128xf32> to vector<64x128xf32>
    %c2 = arith.constant 2 : index
    %c0_12 = arith.constant 0 : index
    %c0_13 = arith.constant 0 : index
    %23 = vector.load %arg3[%c2, %c0_12, %c0_13] : memref<4x128x128xf32, #tpu.memory_space<vmem>>, vector<1x128x128xf32>
    %24 = vector.shape_cast %23 : vector<1x128x128xf32> to vector<128x128xf32>
    %cst_14 = arith.constant dense<0.000000e+00> : vector<64x128xf32>
    %25 = tpu.matmul %22, %24, %cst_14 {dimension_numbers = #tpu.dot_dimension_numbers<[1], [0], [0], [1], [0, 0, 1, 1], [], []>} : vector<64x128xf32>, vector<128x128xf32>, vector<64x128xf32> -> vector<64x128xf32>
    %26 = arith.addf %18, %25 : vector<64x128xf32>
    %c18_i32 = arith.constant 18 : i32
    %27 = arith.addi %1, %c18_i32 : i32
    %c0_15 = arith.constant 0 : index
    %28 = arith.index_cast %27 : i32 to index
    %c0_16 = arith.constant 0 : index
    %29 = vector.load %arg2[%c0_15, %28, %c0_16] : memref<1x338x128xf32, #tpu.memory_space<vmem>>, vector<1x64x128xf32>
    %30 = vector.shape_cast %29 : vector<1x64x128xf32> to vector<64x128xf32>
    %c3 = arith.constant 3 : index
    %c0_17 = arith.constant 0 : index
    %c0_18 = arith.constant 0 : index
    %31 = vector.load %arg3[%c3, %c0_17, %c0_18] : memref<4x128x128xf32, #tpu.memory_space<vmem>>, vector<1x128x128xf32>
    %32 = vector.shape_cast %31 : vector<1x128x128xf32> to vector<128x128xf32>
    %cst_19 = arith.constant dense<0.000000e+00> : vector<64x128xf32>
    %33 = tpu.matmul %30, %32, %cst_19 {dimension_numbers = #tpu.dot_dimension_numbers<[1], [0], [0], [1], [0, 0, 1, 1], [], []>} : vector<64x128xf32>, vector<128x128xf32>, vector<64x128xf32> -> vector<64x128xf32>
    %34 = arith.addf %26, %33 : vector<64x128xf32>
    %c0_20 = arith.constant 0 : index
    %c0_21 = arith.constant 0 : index
    %35 = vector.load %arg4[%c0_20, %c0_21] : memref<1x128xf32, #tpu.memory_space<vmem>>, vector<1x128xf32>
    %36 = vector.broadcast %35 : vector<1x128xf32> to vector<64x128xf32>
    %37 = arith.addf %34, %36 : vector<64x128xf32>
    %cst_22 = arith.constant 0.000000e+00 : f32
    %38 = vector.broadcast %cst_22 : f32 to vector<64x128xf32>
    %39 = arith.cmpf oge, %37, %38 : vector<64x128xf32>
    %cst_23 = arith.constant 2.000000e-01 : f32
    %40 = vector.broadcast %cst_23 : f32 to vector<64x128xf32>
    %41 = arith.mulf %40, %37 : vector<64x128xf32>
    %42 = arith.select %39, %37, %41 : vector<64x128xi1>, vector<64x128xf32>
    %c0_24 = arith.constant 0 : index
    %c0_25 = arith.constant 0 : index
    %c0_26 = arith.constant 0 : index
    %43 = vector.load %arg5[%c0_24, %c0_25, %c0_26] : memref<1x64x128xf32, #tpu.memory_space<vmem>>, vector<1x64x128xf32>
    %44 = vector.shape_cast %43 : vector<1x64x128xf32> to vector<64x128xf32>
    %45 = vector.shape_cast %42 : vector<64x128xf32> to vector<1x64x128xf32>
    tpu.vector_store %arg5[%c0_24, %c0_25, %c0_26], %45 {strides = array<i32>} : memref<1x64x128xf32, #tpu.memory_space<vmem>>, vector<1x64x128xf32>,
    return
  }
  func.func @transform_0(%arg0: i32, %arg1: i32) -> (i32, i32, i32) {
    %c0_i32 = arith.constant 0 : i32
    %c0_i32_0 = arith.constant 0 : i32
    %c0_i32_1 = arith.constant 0 : i32
    return %arg0, %c0_i32, %c0_i32_0 : i32, i32, i32
  }
  func.func @transform_1(%arg0: i32, %arg1: i32) -> (i32, i32, i32) {
    %c0_i32 = arith.constant 0 : i32
    %c0_i32_0 = arith.constant 0 : i32
    %c0_i32_1 = arith.constant 0 : i32
    %c0_i32_2 = arith.constant 0 : i32
    return %c0_i32, %c0_i32_0, %c0_i32_1 : i32, i32, i32
  }
  func.func @transform_2(%arg0: i32, %arg1: i32) -> (i32, i32) {
    %c0_i32 = arith.constant 0 : i32
    %c0_i32_0 = arith.constant 0 : i32
    %c0_i32_1 = arith.constant 0 : i32
    return %c0_i32, %c0_i32_0 : i32, i32
  }
  func.func @transform_3(%arg0: i32, %arg1: i32) -> (i32, i32, i32) {
    %c0_i32 = arith.constant 0 : i32
    %c0_i32_0 = arith.constant 0 : i32
    return %arg0, %arg1, %c0_i32 : i32, i32, i32
  }
}

module attributes {stable_mosaic.version = 11 : i64} {
  func.func @_conv_tap_kernel(%arg0: i32, %arg1: i32, %arg2: memref<1x138x128xf32, #tpu.memory_space<vmem>>, %arg3: memref<4x128x128xf32, #tpu.memory_space<vmem>>, %arg4: memref<64x1xf32, #tpu.memory_space<vmem>>, %arg5: memref<1x64x128xf32, #tpu.memory_space<vmem>>, %arg6: memref<1x1x128xf32, #tpu.memory_space<vmem>>, %arg7: memref<1x1x128xf32, #tpu.memory_space<vmem>>) attributes {dimension_semantics = [#tpu.dimension_semantics<parallel>, #tpu.dimension_semantics<arbitrary>], iteration_bounds = array<i64: 2, 2>, scalar_prefetch = 0 : i64, scratch_operands = 0 : i64, tpu.core_type = #tpu.core_type<tc>, window_params = [{transform_indices = @transform_0, window_bounds = array<i64: 1, 138, 128>}, {pipeline_mode = #tpu.pipeline_mode<synchronous>, transform_indices = @transform_1, window_bounds = array<i64: 4, 128, 128>}, {transform_indices = @transform_2, window_bounds = array<i64: 64, 1>}, {transform_indices = @transform_3, window_bounds = array<i64: 1, 64, 128>}, {transform_indices = @transform_4, window_bounds = array<i64: 1, 1, 128>}, {transform_indices = @transform_5, window_bounds = array<i64: 1, 1, 128>}]} {
    %c64_i32 = arith.constant 64 : i32
    %0 = arith.muli %arg1, %c64_i32 : i32
    %1 = tpu.assume_multiple %0, 8 : i32
    %cst = arith.constant 0.000000e+00 : f32
    %2 = vector.broadcast %cst : f32 to vector<64x128xf32>
    %c0_i32 = arith.constant 0 : i32
    %3 = arith.addi %1, %c0_i32 : i32
    %c0 = arith.constant 0 : index
    %4 = arith.index_cast %3 : i32 to index
    %c0_0 = arith.constant 0 : index
    %5 = vector.load %arg2[%c0, %4, %c0_0] : memref<1x138x128xf32, #tpu.memory_space<vmem>>, vector<1x64x128xf32>
    %6 = vector.shape_cast %5 : vector<1x64x128xf32> to vector<64x128xf32>
    %c0_1 = arith.constant 0 : index
    %c0_2 = arith.constant 0 : index
    %c0_3 = arith.constant 0 : index
    %7 = vector.load %arg3[%c0_1, %c0_2, %c0_3] : memref<4x128x128xf32, #tpu.memory_space<vmem>>, vector<1x128x128xf32>
    %8 = vector.shape_cast %7 : vector<1x128x128xf32> to vector<128x128xf32>
    %cst_4 = arith.constant dense<0.000000e+00> : vector<64x128xf32>
    %9 = tpu.matmul %6, %8, %cst_4 {dimension_numbers = #tpu.dot_dimension_numbers<[1], [0], [0], [1], [0, 0, 1, 1], [], []>} : vector<64x128xf32>, vector<128x128xf32>, vector<64x128xf32> -> vector<64x128xf32>
    %10 = arith.addf %2, %9 : vector<64x128xf32>
    %c1_i32 = arith.constant 1 : i32
    %11 = arith.addi %1, %c1_i32 : i32
    %c0_5 = arith.constant 0 : index
    %12 = arith.index_cast %11 : i32 to index
    %c0_6 = arith.constant 0 : index
    %13 = vector.load %arg2[%c0_5, %12, %c0_6] : memref<1x138x128xf32, #tpu.memory_space<vmem>>, vector<1x64x128xf32>
    %14 = vector.shape_cast %13 : vector<1x64x128xf32> to vector<64x128xf32>
    %c1 = arith.constant 1 : index
    %c0_7 = arith.constant 0 : index
    %c0_8 = arith.constant 0 : index
    %15 = vector.load %arg3[%c1, %c0_7, %c0_8] : memref<4x128x128xf32, #tpu.memory_space<vmem>>, vector<1x128x128xf32>
    %16 = vector.shape_cast %15 : vector<1x128x128xf32> to vector<128x128xf32>
    %cst_9 = arith.constant dense<0.000000e+00> : vector<64x128xf32>
    %17 = tpu.matmul %14, %16, %cst_9 {dimension_numbers = #tpu.dot_dimension_numbers<[1], [0], [0], [1], [0, 0, 1, 1], [], []>} : vector<64x128xf32>, vector<128x128xf32>, vector<64x128xf32> -> vector<64x128xf32>
    %18 = arith.addf %10, %17 : vector<64x128xf32>
    %c9_i32 = arith.constant 9 : i32
    %19 = arith.addi %1, %c9_i32 : i32
    %c0_10 = arith.constant 0 : index
    %20 = arith.index_cast %19 : i32 to index
    %c0_11 = arith.constant 0 : index
    %21 = vector.load %arg2[%c0_10, %20, %c0_11] : memref<1x138x128xf32, #tpu.memory_space<vmem>>, vector<1x64x128xf32>
    %22 = vector.shape_cast %21 : vector<1x64x128xf32> to vector<64x128xf32>
    %c2 = arith.constant 2 : index
    %c0_12 = arith.constant 0 : index
    %c0_13 = arith.constant 0 : index
    %23 = vector.load %arg3[%c2, %c0_12, %c0_13] : memref<4x128x128xf32, #tpu.memory_space<vmem>>, vector<1x128x128xf32>
    %24 = vector.shape_cast %23 : vector<1x128x128xf32> to vector<128x128xf32>
    %cst_14 = arith.constant dense<0.000000e+00> : vector<64x128xf32>
    %25 = tpu.matmul %22, %24, %cst_14 {dimension_numbers = #tpu.dot_dimension_numbers<[1], [0], [0], [1], [0, 0, 1, 1], [], []>} : vector<64x128xf32>, vector<128x128xf32>, vector<64x128xf32> -> vector<64x128xf32>
    %26 = arith.addf %18, %25 : vector<64x128xf32>
    %c10_i32 = arith.constant 10 : i32
    %27 = arith.addi %1, %c10_i32 : i32
    %c0_15 = arith.constant 0 : index
    %28 = arith.index_cast %27 : i32 to index
    %c0_16 = arith.constant 0 : index
    %29 = vector.load %arg2[%c0_15, %28, %c0_16] : memref<1x138x128xf32, #tpu.memory_space<vmem>>, vector<1x64x128xf32>
    %30 = vector.shape_cast %29 : vector<1x64x128xf32> to vector<64x128xf32>
    %c3 = arith.constant 3 : index
    %c0_17 = arith.constant 0 : index
    %c0_18 = arith.constant 0 : index
    %31 = vector.load %arg3[%c3, %c0_17, %c0_18] : memref<4x128x128xf32, #tpu.memory_space<vmem>>, vector<1x128x128xf32>
    %32 = vector.shape_cast %31 : vector<1x128x128xf32> to vector<128x128xf32>
    %cst_19 = arith.constant dense<0.000000e+00> : vector<64x128xf32>
    %33 = tpu.matmul %30, %32, %cst_19 {dimension_numbers = #tpu.dot_dimension_numbers<[1], [0], [0], [1], [0, 0, 1, 1], [], []>} : vector<64x128xf32>, vector<128x128xf32>, vector<64x128xf32> -> vector<64x128xf32>
    %34 = arith.addf %26, %33 : vector<64x128xf32>
    %c0_20 = arith.constant 0 : index
    %c0_21 = arith.constant 0 : index
    %c0_22 = arith.constant 0 : index
    %35 = vector.load %arg5[%c0_20, %c0_21, %c0_22] : memref<1x64x128xf32, #tpu.memory_space<vmem>>, vector<1x64x128xf32>
    %36 = vector.shape_cast %35 : vector<1x64x128xf32> to vector<64x128xf32>
    %37 = vector.shape_cast %34 : vector<64x128xf32> to vector<1x64x128xf32>
    tpu.vector_store %arg5[%c0_20, %c0_21, %c0_22], %37 {strides = array<i32>} : memref<1x64x128xf32, #tpu.memory_space<vmem>>, vector<1x64x128xf32>,
    %c0_23 = arith.constant 0 : index
    %c0_24 = arith.constant 0 : index
    %38 = vector.load %arg4[%c0_23, %c0_24] : memref<64x1xf32, #tpu.memory_space<vmem>>, vector<64x1xf32>
    %39 = vector.broadcast %38 : vector<64x1xf32> to vector<64x128xf32>
    %40 = arith.mulf %34, %39 : vector<64x128xf32>
    %cst_25 = arith.constant dense<0.000000e+00> : vector<128xf32>
    %41 = vector.multi_reduction <add>, %40, %cst_25 [0] : vector<64x128xf32> to vector<128xf32>
    %42 = vector.shape_cast %41 : vector<128xf32> to vector<1x128xf32>
    %43 = arith.mulf %40, %34 : vector<64x128xf32>
    %cst_26 = arith.constant dense<0.000000e+00> : vector<128xf32>
    %44 = vector.multi_reduction <add>, %43, %cst_26 [0] : vector<64x128xf32> to vector<128xf32>
    %45 = vector.shape_cast %44 : vector<128xf32> to vector<1x128xf32>
    %c0_i32_27 = arith.constant 0 : i32
    %46 = arith.cmpi eq, %arg1, %c0_i32_27 : i32
    %47 = arith.extui %46 : i1 to i32
    %c0_i32_28 = arith.constant 0 : i32
    %48 = arith.cmpi ne, %47, %c0_i32_28 : i32
    scf.if %48 {
      %cst_41 = arith.constant 0.000000e+00 : f32
      %61 = vector.broadcast %cst_41 : f32 to vector<1x1x128xf32>
      %c0_42 = arith.constant 0 : index
      %c0_43 = arith.constant 0 : index
      %c0_44 = arith.constant 0 : index
      %62 = vector.load %arg6[%c0_42, %c0_43, %c0_44] : memref<1x1x128xf32, #tpu.memory_space<vmem>>, vector<1x1x128xf32>
      tpu.vector_store %arg6[%c0_42, %c0_43, %c0_44], %61 {strides = array<i32>} : memref<1x1x128xf32, #tpu.memory_space<vmem>>, vector<1x1x128xf32>,
      %cst_45 = arith.constant 0.000000e+00 : f32
      %63 = vector.broadcast %cst_45 : f32 to vector<1x1x128xf32>
      %c0_46 = arith.constant 0 : index
      %c0_47 = arith.constant 0 : index
      %c0_48 = arith.constant 0 : index
      %64 = vector.load %arg7[%c0_46, %c0_47, %c0_48] : memref<1x1x128xf32, #tpu.memory_space<vmem>>, vector<1x1x128xf32>
      tpu.vector_store %arg7[%c0_46, %c0_47, %c0_48], %63 {strides = array<i32>} : memref<1x1x128xf32, #tpu.memory_space<vmem>>, vector<1x1x128xf32>,
    } else {
    }
    %c0_29 = arith.constant 0 : index
    %c0_30 = arith.constant 0 : index
    %c0_31 = arith.constant 0 : index
    %49 = vector.load %arg6[%c0_29, %c0_30, %c0_31] : memref<1x1x128xf32, #tpu.memory_space<vmem>>, vector<1x1x128xf32>
    %50 = vector.shape_cast %49 : vector<1x1x128xf32> to vector<1x128xf32>
    %51 = arith.addf %50, %42 : vector<1x128xf32>
    %c0_32 = arith.constant 0 : index
    %c0_33 = arith.constant 0 : index
    %c0_34 = arith.constant 0 : index
    %52 = vector.load %arg6[%c0_32, %c0_33, %c0_34] : memref<1x1x128xf32, #tpu.memory_space<vmem>>, vector<1x1x128xf32>
    %53 = vector.shape_cast %52 : vector<1x1x128xf32> to vector<1x128xf32>
    %54 = vector.shape_cast %51 : vector<1x128xf32> to vector<1x1x128xf32>
    tpu.vector_store %arg6[%c0_32, %c0_33, %c0_34], %54 {strides = array<i32>} : memref<1x1x128xf32, #tpu.memory_space<vmem>>, vector<1x1x128xf32>,
    %c0_35 = arith.constant 0 : index
    %c0_36 = arith.constant 0 : index
    %c0_37 = arith.constant 0 : index
    %55 = vector.load %arg7[%c0_35, %c0_36, %c0_37] : memref<1x1x128xf32, #tpu.memory_space<vmem>>, vector<1x1x128xf32>
    %56 = vector.shape_cast %55 : vector<1x1x128xf32> to vector<1x128xf32>
    %57 = arith.addf %56, %45 : vector<1x128xf32>
    %c0_38 = arith.constant 0 : index
    %c0_39 = arith.constant 0 : index
    %c0_40 = arith.constant 0 : index
    %58 = vector.load %arg7[%c0_38, %c0_39, %c0_40] : memref<1x1x128xf32, #tpu.memory_space<vmem>>, vector<1x1x128xf32>
    %59 = vector.shape_cast %58 : vector<1x1x128xf32> to vector<1x128xf32>
    %60 = vector.shape_cast %57 : vector<1x128xf32> to vector<1x1x128xf32>
    tpu.vector_store %arg7[%c0_38, %c0_39, %c0_40], %60 {strides = array<i32>} : memref<1x1x128xf32, #tpu.memory_space<vmem>>, vector<1x1x128xf32>,
    return
  }
  func.func @transform_0(%arg0: i32, %arg1: i32) -> (i32, i32, i32) {
    %c0_i32 = arith.constant 0 : i32
    %c0_i32_0 = arith.constant 0 : i32
    %c0_i32_1 = arith.constant 0 : i32
    return %arg0, %c0_i32, %c0_i32_0 : i32, i32, i32
  }
  func.func @transform_1(%arg0: i32, %arg1: i32) -> (i32, i32, i32) {
    %c0_i32 = arith.constant 0 : i32
    %c0_i32_0 = arith.constant 0 : i32
    %c0_i32_1 = arith.constant 0 : i32
    %c0_i32_2 = arith.constant 0 : i32
    return %c0_i32, %c0_i32_0, %c0_i32_1 : i32, i32, i32
  }
  func.func @transform_2(%arg0: i32, %arg1: i32) -> (i32, i32) {
    %c0_i32 = arith.constant 0 : i32
    %c0_i32_0 = arith.constant 0 : i32
    return %arg1, %c0_i32 : i32, i32
  }
  func.func @transform_3(%arg0: i32, %arg1: i32) -> (i32, i32, i32) {
    %c0_i32 = arith.constant 0 : i32
    %c0_i32_0 = arith.constant 0 : i32
    return %arg0, %arg1, %c0_i32 : i32, i32, i32
  }
  func.func @transform_4(%arg0: i32, %arg1: i32) -> (i32, i32, i32) {
    %c0_i32 = arith.constant 0 : i32
    %c0_i32_0 = arith.constant 0 : i32
    %c0_i32_1 = arith.constant 0 : i32
    return %arg0, %c0_i32, %c0_i32_0 : i32, i32, i32
  }
  func.func @transform_5(%arg0: i32, %arg1: i32) -> (i32, i32, i32) {
    %c0_i32 = arith.constant 0 : i32
    %c0_i32_0 = arith.constant 0 : i32
    %c0_i32_1 = arith.constant 0 : i32
    return %arg0, %c0_i32, %c0_i32_0 : i32, i32, i32
  }
}

module attributes {stable_mosaic.version = 11 : i64} {
  func.func @_instnorm_kernel(%arg0: i32, %arg1: i32, %arg2: memref<1x64x128xf32, #tpu.memory_space<vmem>>, %arg3: memref<1x1x128xf32, #tpu.memory_space<vmem>>, %arg4: memref<1x1x128xf32, #tpu.memory_space<vmem>>, %arg5: memref<1x64x128xf32, #tpu.memory_space<vmem>>) attributes {dimension_semantics = [#tpu.dimension_semantics<parallel>, #tpu.dimension_semantics<parallel>], iteration_bounds = array<i64: 2, 2>, scalar_prefetch = 0 : i64, scratch_operands = 0 : i64, tpu.core_type = #tpu.core_type<tc>, window_params = [{transform_indices = @transform_0, window_bounds = array<i64: 1, 64, 128>}, {transform_indices = @transform_1, window_bounds = array<i64: 1, 1, 128>}, {transform_indices = @transform_2, window_bounds = array<i64: 1, 1, 128>}, {transform_indices = @transform_3, window_bounds = array<i64: 1, 64, 128>}]} {
    %c0 = arith.constant 0 : index
    %c0_0 = arith.constant 0 : index
    %c0_1 = arith.constant 0 : index
    %0 = vector.load %arg2[%c0, %c0_0, %c0_1] : memref<1x64x128xf32, #tpu.memory_space<vmem>>, vector<1x64x128xf32>
    %1 = vector.shape_cast %0 : vector<1x64x128xf32> to vector<64x128xf32>
    %c0_2 = arith.constant 0 : index
    %c0_3 = arith.constant 0 : index
    %c0_4 = arith.constant 0 : index
    %2 = vector.load %arg3[%c0_2, %c0_3, %c0_4] : memref<1x1x128xf32, #tpu.memory_space<vmem>>, vector<1x1x128xf32>
    %3 = vector.shape_cast %2 : vector<1x1x128xf32> to vector<1x128xf32>
    %cst = arith.constant 1.562500e-02 : f32
    %4 = vector.broadcast %cst : f32 to vector<1x128xf32>
    %5 = arith.mulf %3, %4 : vector<1x128xf32>
    %c0_5 = arith.constant 0 : index
    %c0_6 = arith.constant 0 : index
    %c0_7 = arith.constant 0 : index
    %6 = vector.load %arg4[%c0_5, %c0_6, %c0_7] : memref<1x1x128xf32, #tpu.memory_space<vmem>>, vector<1x1x128xf32>
    %7 = vector.shape_cast %6 : vector<1x1x128xf32> to vector<1x128xf32>
    %cst_8 = arith.constant 1.562500e-02 : f32
    %8 = vector.broadcast %cst_8 : f32 to vector<1x128xf32>
    %9 = arith.mulf %7, %8 : vector<1x128xf32>
    %10 = arith.mulf %5, %5 : vector<1x128xf32>
    %11 = arith.subf %9, %10 : vector<1x128xf32>
    %cst_9 = arith.constant 0.000000e+00 : f32
    %12 = vector.broadcast %cst_9 : f32 to vector<1x128xf32>
    %13 = arith.maximumf %11, %12 : vector<1x128xf32>
    %cst_10 = arith.constant 9.99999974E-6 : f32
    %14 = vector.broadcast %cst_10 : f32 to vector<1x128xf32>
    %15 = arith.addf %13, %14 : vector<1x128xf32>
    %16 = math.rsqrt %15 : vector<1x128xf32>
    %17 = vector.broadcast %5 : vector<1x128xf32> to vector<64x128xf32>
    %18 = arith.subf %1, %17 : vector<64x128xf32>
    %19 = vector.broadcast %16 : vector<1x128xf32> to vector<64x128xf32>
    %20 = arith.mulf %18, %19 : vector<64x128xf32>
    %cst_11 = arith.constant 0.000000e+00 : f32
    %21 = vector.broadcast %cst_11 : f32 to vector<64x128xf32>
    %22 = arith.cmpf oge, %20, %21 : vector<64x128xf32>
    %cst_12 = arith.constant 2.000000e-01 : f32
    %23 = vector.broadcast %cst_12 : f32 to vector<64x128xf32>
    %24 = arith.mulf %23, %20 : vector<64x128xf32>
    %25 = arith.select %22, %20, %24 : vector<64x128xi1>, vector<64x128xf32>
    %c0_13 = arith.constant 0 : index
    %c0_14 = arith.constant 0 : index
    %c0_15 = arith.constant 0 : index
    %26 = vector.load %arg5[%c0_13, %c0_14, %c0_15] : memref<1x64x128xf32, #tpu.memory_space<vmem>>, vector<1x64x128xf32>
    %27 = vector.shape_cast %26 : vector<1x64x128xf32> to vector<64x128xf32>
    %28 = vector.shape_cast %25 : vector<64x128xf32> to vector<1x64x128xf32>
    tpu.vector_store %arg5[%c0_13, %c0_14, %c0_15], %28 {strides = array<i32>} : memref<1x64x128xf32, #tpu.memory_space<vmem>>, vector<1x64x128xf32>,
    return
  }
  func.func @transform_0(%arg0: i32, %arg1: i32) -> (i32, i32, i32) {
    %c0_i32 = arith.constant 0 : i32
    %c0_i32_0 = arith.constant 0 : i32
    return %arg0, %arg1, %c0_i32 : i32, i32, i32
  }
  func.func @transform_1(%arg0: i32, %arg1: i32) -> (i32, i32, i32) {
    %c0_i32 = arith.constant 0 : i32
    %c0_i32_0 = arith.constant 0 : i32
    %c0_i32_1 = arith.constant 0 : i32
    return %arg0, %c0_i32, %c0_i32_0 : i32, i32, i32
  }
  func.func @transform_2(%arg0: i32, %arg1: i32) -> (i32, i32, i32) {
    %c0_i32 = arith.constant 0 : i32
    %c0_i32_0 = arith.constant 0 : i32
    %c0_i32_1 = arith.constant 0 : i32
    return %arg0, %c0_i32, %c0_i32_0 : i32, i32, i32
  }
  func.func @transform_3(%arg0: i32, %arg1: i32) -> (i32, i32, i32) {
    %c0_i32 = arith.constant 0 : i32
    %c0_i32_0 = arith.constant 0 : i32
    return %arg0, %arg1, %c0_i32 : i32, i32, i32
  }
}

module attributes {stable_mosaic.version = 11 : i64} {
  func.func @_instnorm_kernel(%arg0: i32, %arg1: i32, %arg2: memref<1x24x128xf32, #tpu.memory_space<vmem>>, %arg3: memref<1x1x128xf32, #tpu.memory_space<vmem>>, %arg4: memref<1x1x128xf32, #tpu.memory_space<vmem>>, %arg5: memref<1x24x128xf32, #tpu.memory_space<vmem>>) attributes {dimension_semantics = [#tpu.dimension_semantics<parallel>, #tpu.dimension_semantics<parallel>], iteration_bounds = array<i64: 2, 1>, scalar_prefetch = 0 : i64, scratch_operands = 0 : i64, tpu.core_type = #tpu.core_type<tc>, window_params = [{transform_indices = @transform_0, window_bounds = array<i64: 1, 24, 128>}, {transform_indices = @transform_1, window_bounds = array<i64: 1, 1, 128>}, {transform_indices = @transform_2, window_bounds = array<i64: 1, 1, 128>}, {transform_indices = @transform_3, window_bounds = array<i64: 1, 24, 128>}]} {
    %c0 = arith.constant 0 : index
    %c0_0 = arith.constant 0 : index
    %c0_1 = arith.constant 0 : index
    %0 = vector.load %arg2[%c0, %c0_0, %c0_1] : memref<1x24x128xf32, #tpu.memory_space<vmem>>, vector<1x24x128xf32>
    %1 = vector.shape_cast %0 : vector<1x24x128xf32> to vector<24x128xf32>
    %c0_2 = arith.constant 0 : index
    %c0_3 = arith.constant 0 : index
    %c0_4 = arith.constant 0 : index
    %2 = vector.load %arg3[%c0_2, %c0_3, %c0_4] : memref<1x1x128xf32, #tpu.memory_space<vmem>>, vector<1x1x128xf32>
    %3 = vector.shape_cast %2 : vector<1x1x128xf32> to vector<1x128xf32>
    %cst = arith.constant 6.250000e-02 : f32
    %4 = vector.broadcast %cst : f32 to vector<1x128xf32>
    %5 = arith.mulf %3, %4 : vector<1x128xf32>
    %c0_5 = arith.constant 0 : index
    %c0_6 = arith.constant 0 : index
    %c0_7 = arith.constant 0 : index
    %6 = vector.load %arg4[%c0_5, %c0_6, %c0_7] : memref<1x1x128xf32, #tpu.memory_space<vmem>>, vector<1x1x128xf32>
    %7 = vector.shape_cast %6 : vector<1x1x128xf32> to vector<1x128xf32>
    %cst_8 = arith.constant 6.250000e-02 : f32
    %8 = vector.broadcast %cst_8 : f32 to vector<1x128xf32>
    %9 = arith.mulf %7, %8 : vector<1x128xf32>
    %10 = arith.mulf %5, %5 : vector<1x128xf32>
    %11 = arith.subf %9, %10 : vector<1x128xf32>
    %cst_9 = arith.constant 0.000000e+00 : f32
    %12 = vector.broadcast %cst_9 : f32 to vector<1x128xf32>
    %13 = arith.maximumf %11, %12 : vector<1x128xf32>
    %cst_10 = arith.constant 9.99999974E-6 : f32
    %14 = vector.broadcast %cst_10 : f32 to vector<1x128xf32>
    %15 = arith.addf %13, %14 : vector<1x128xf32>
    %16 = math.rsqrt %15 : vector<1x128xf32>
    %17 = vector.broadcast %5 : vector<1x128xf32> to vector<24x128xf32>
    %18 = arith.subf %1, %17 : vector<24x128xf32>
    %19 = vector.broadcast %16 : vector<1x128xf32> to vector<24x128xf32>
    %20 = arith.mulf %18, %19 : vector<24x128xf32>
    %cst_11 = arith.constant 0.000000e+00 : f32
    %21 = vector.broadcast %cst_11 : f32 to vector<24x128xf32>
    %22 = arith.cmpf oge, %20, %21 : vector<24x128xf32>
    %cst_12 = arith.constant 2.000000e-01 : f32
    %23 = vector.broadcast %cst_12 : f32 to vector<24x128xf32>
    %24 = arith.mulf %23, %20 : vector<24x128xf32>
    %25 = arith.select %22, %20, %24 : vector<24x128xi1>, vector<24x128xf32>
    %c0_13 = arith.constant 0 : index
    %c0_14 = arith.constant 0 : index
    %c0_15 = arith.constant 0 : index
    %26 = vector.load %arg5[%c0_13, %c0_14, %c0_15] : memref<1x24x128xf32, #tpu.memory_space<vmem>>, vector<1x24x128xf32>
    %27 = vector.shape_cast %26 : vector<1x24x128xf32> to vector<24x128xf32>
    %28 = vector.shape_cast %25 : vector<24x128xf32> to vector<1x24x128xf32>
    tpu.vector_store %arg5[%c0_13, %c0_14, %c0_15], %28 {strides = array<i32>} : memref<1x24x128xf32, #tpu.memory_space<vmem>>, vector<1x24x128xf32>,
    return
  }
  func.func @transform_0(%arg0: i32, %arg1: i32) -> (i32, i32, i32) {
    %c0_i32 = arith.constant 0 : i32
    %c0_i32_0 = arith.constant 0 : i32
    return %arg0, %arg1, %c0_i32 : i32, i32, i32
  }
  func.func @transform_1(%arg0: i32, %arg1: i32) -> (i32, i32, i32) {
    %c0_i32 = arith.constant 0 : i32
    %c0_i32_0 = arith.constant 0 : i32
    %c0_i32_1 = arith.constant 0 : i32
    return %arg0, %c0_i32, %c0_i32_0 : i32, i32, i32
  }
  func.func @transform_2(%arg0: i32, %arg1: i32) -> (i32, i32, i32) {
    %c0_i32 = arith.constant 0 : i32
    %c0_i32_0 = arith.constant 0 : i32
    %c0_i32_1 = arith.constant 0 : i32
    return %arg0, %c0_i32, %c0_i32_0 : i32, i32, i32
  }
  func.func @transform_3(%arg0: i32, %arg1: i32) -> (i32, i32, i32) {
    %c0_i32 = arith.constant 0 : i32
    %c0_i32_0 = arith.constant 0 : i32
    return %arg0, %arg1, %c0_i32 : i32, i32, i32
  }
}

module attributes {stable_mosaic.version = 11 : i64} {
  func.func @_conv_tap_kernel(%arg0: i32, %arg1: i32, %arg2: memref<1x30x128xf32, #tpu.memory_space<vmem>>, %arg3: memref<4x128x128xf32, #tpu.memory_space<vmem>>, %arg4: memref<24x1xf32, #tpu.memory_space<vmem>>, %arg5: memref<1x24x128xf32, #tpu.memory_space<vmem>>, %arg6: memref<1x1x128xf32, #tpu.memory_space<vmem>>, %arg7: memref<1x1x128xf32, #tpu.memory_space<vmem>>) attributes {dimension_semantics = [#tpu.dimension_semantics<parallel>, #tpu.dimension_semantics<arbitrary>], iteration_bounds = array<i64: 2, 1>, scalar_prefetch = 0 : i64, scratch_operands = 0 : i64, tpu.core_type = #tpu.core_type<tc>, window_params = [{transform_indices = @transform_0, window_bounds = array<i64: 1, 30, 128>}, {pipeline_mode = #tpu.pipeline_mode<synchronous>, transform_indices = @transform_1, window_bounds = array<i64: 4, 128, 128>}, {transform_indices = @transform_2, window_bounds = array<i64: 24, 1>}, {transform_indices = @transform_3, window_bounds = array<i64: 1, 24, 128>}, {transform_indices = @transform_4, window_bounds = array<i64: 1, 1, 128>}, {transform_indices = @transform_5, window_bounds = array<i64: 1, 1, 128>}]} {
    %c24_i32 = arith.constant 24 : i32
    %0 = arith.muli %arg1, %c24_i32 : i32
    %1 = tpu.assume_multiple %0, 8 : i32
    %cst = arith.constant 0.000000e+00 : f32
    %2 = vector.broadcast %cst : f32 to vector<24x128xf32>
    %c0_i32 = arith.constant 0 : i32
    %3 = arith.addi %1, %c0_i32 : i32
    %c0 = arith.constant 0 : index
    %4 = arith.index_cast %3 : i32 to index
    %c0_0 = arith.constant 0 : index
    %5 = vector.load %arg2[%c0, %4, %c0_0] : memref<1x30x128xf32, #tpu.memory_space<vmem>>, vector<1x24x128xf32>
    %6 = vector.shape_cast %5 : vector<1x24x128xf32> to vector<24x128xf32>
    %c0_1 = arith.constant 0 : index
    %c0_2 = arith.constant 0 : index
    %c0_3 = arith.constant 0 : index
    %7 = vector.load %arg3[%c0_1, %c0_2, %c0_3] : memref<4x128x128xf32, #tpu.memory_space<vmem>>, vector<1x128x128xf32>
    %8 = vector.shape_cast %7 : vector<1x128x128xf32> to vector<128x128xf32>
    %cst_4 = arith.constant dense<0.000000e+00> : vector<24x128xf32>
    %9 = tpu.matmul %6, %8, %cst_4 {dimension_numbers = #tpu.dot_dimension_numbers<[1], [0], [0], [1], [0, 0, 1, 1], [], []>} : vector<24x128xf32>, vector<128x128xf32>, vector<24x128xf32> -> vector<24x128xf32>
    %10 = arith.addf %2, %9 : vector<24x128xf32>
    %c1_i32 = arith.constant 1 : i32
    %11 = arith.addi %1, %c1_i32 : i32
    %c0_5 = arith.constant 0 : index
    %12 = arith.index_cast %11 : i32 to index
    %c0_6 = arith.constant 0 : index
    %13 = vector.load %arg2[%c0_5, %12, %c0_6] : memref<1x30x128xf32, #tpu.memory_space<vmem>>, vector<1x24x128xf32>
    %14 = vector.shape_cast %13 : vector<1x24x128xf32> to vector<24x128xf32>
    %c1 = arith.constant 1 : index
    %c0_7 = arith.constant 0 : index
    %c0_8 = arith.constant 0 : index
    %15 = vector.load %arg3[%c1, %c0_7, %c0_8] : memref<4x128x128xf32, #tpu.memory_space<vmem>>, vector<1x128x128xf32>
    %16 = vector.shape_cast %15 : vector<1x128x128xf32> to vector<128x128xf32>
    %cst_9 = arith.constant dense<0.000000e+00> : vector<24x128xf32>
    %17 = tpu.matmul %14, %16, %cst_9 {dimension_numbers = #tpu.dot_dimension_numbers<[1], [0], [0], [1], [0, 0, 1, 1], [], []>} : vector<24x128xf32>, vector<128x128xf32>, vector<24x128xf32> -> vector<24x128xf32>
    %18 = arith.addf %10, %17 : vector<24x128xf32>
    %c5_i32 = arith.constant 5 : i32
    %19 = arith.addi %1, %c5_i32 : i32
    %c0_10 = arith.constant 0 : index
    %20 = arith.index_cast %19 : i32 to index
    %c0_11 = arith.constant 0 : index
    %21 = vector.load %arg2[%c0_10, %20, %c0_11] : memref<1x30x128xf32, #tpu.memory_space<vmem>>, vector<1x24x128xf32>
    %22 = vector.shape_cast %21 : vector<1x24x128xf32> to vector<24x128xf32>
    %c2 = arith.constant 2 : index
    %c0_12 = arith.constant 0 : index
    %c0_13 = arith.constant 0 : index
    %23 = vector.load %arg3[%c2, %c0_12, %c0_13] : memref<4x128x128xf32, #tpu.memory_space<vmem>>, vector<1x128x128xf32>
    %24 = vector.shape_cast %23 : vector<1x128x128xf32> to vector<128x128xf32>
    %cst_14 = arith.constant dense<0.000000e+00> : vector<24x128xf32>
    %25 = tpu.matmul %22, %24, %cst_14 {dimension_numbers = #tpu.dot_dimension_numbers<[1], [0], [0], [1], [0, 0, 1, 1], [], []>} : vector<24x128xf32>, vector<128x128xf32>, vector<24x128xf32> -> vector<24x128xf32>
    %26 = arith.addf %18, %25 : vector<24x128xf32>
    %c6_i32 = arith.constant 6 : i32
    %27 = arith.addi %1, %c6_i32 : i32
    %c0_15 = arith.constant 0 : index
    %28 = arith.index_cast %27 : i32 to index
    %c0_16 = arith.constant 0 : index
    %29 = vector.load %arg2[%c0_15, %28, %c0_16] : memref<1x30x128xf32, #tpu.memory_space<vmem>>, vector<1x24x128xf32>
    %30 = vector.shape_cast %29 : vector<1x24x128xf32> to vector<24x128xf32>
    %c3 = arith.constant 3 : index
    %c0_17 = arith.constant 0 : index
    %c0_18 = arith.constant 0 : index
    %31 = vector.load %arg3[%c3, %c0_17, %c0_18] : memref<4x128x128xf32, #tpu.memory_space<vmem>>, vector<1x128x128xf32>
    %32 = vector.shape_cast %31 : vector<1x128x128xf32> to vector<128x128xf32>
    %cst_19 = arith.constant dense<0.000000e+00> : vector<24x128xf32>
    %33 = tpu.matmul %30, %32, %cst_19 {dimension_numbers = #tpu.dot_dimension_numbers<[1], [0], [0], [1], [0, 0, 1, 1], [], []>} : vector<24x128xf32>, vector<128x128xf32>, vector<24x128xf32> -> vector<24x128xf32>
    %34 = arith.addf %26, %33 : vector<24x128xf32>
    %c0_20 = arith.constant 0 : index
    %c0_21 = arith.constant 0 : index
    %c0_22 = arith.constant 0 : index
    %35 = vector.load %arg5[%c0_20, %c0_21, %c0_22] : memref<1x24x128xf32, #tpu.memory_space<vmem>>, vector<1x24x128xf32>
    %36 = vector.shape_cast %35 : vector<1x24x128xf32> to vector<24x128xf32>
    %37 = vector.shape_cast %34 : vector<24x128xf32> to vector<1x24x128xf32>
    tpu.vector_store %arg5[%c0_20, %c0_21, %c0_22], %37 {strides = array<i32>} : memref<1x24x128xf32, #tpu.memory_space<vmem>>, vector<1x24x128xf32>,
    %c0_23 = arith.constant 0 : index
    %c0_24 = arith.constant 0 : index
    %38 = vector.load %arg4[%c0_23, %c0_24] : memref<24x1xf32, #tpu.memory_space<vmem>>, vector<24x1xf32>
    %39 = vector.broadcast %38 : vector<24x1xf32> to vector<24x128xf32>
    %40 = arith.mulf %34, %39 : vector<24x128xf32>
    %cst_25 = arith.constant dense<0.000000e+00> : vector<128xf32>
    %41 = vector.multi_reduction <add>, %40, %cst_25 [0] : vector<24x128xf32> to vector<128xf32>
    %42 = vector.shape_cast %41 : vector<128xf32> to vector<1x128xf32>
    %43 = arith.mulf %40, %34 : vector<24x128xf32>
    %cst_26 = arith.constant dense<0.000000e+00> : vector<128xf32>
    %44 = vector.multi_reduction <add>, %43, %cst_26 [0] : vector<24x128xf32> to vector<128xf32>
    %45 = vector.shape_cast %44 : vector<128xf32> to vector<1x128xf32>
    %c0_i32_27 = arith.constant 0 : i32
    %46 = arith.cmpi eq, %arg1, %c0_i32_27 : i32
    %47 = arith.extui %46 : i1 to i32
    %c0_i32_28 = arith.constant 0 : i32
    %48 = arith.cmpi ne, %47, %c0_i32_28 : i32
    scf.if %48 {
      %cst_41 = arith.constant 0.000000e+00 : f32
      %61 = vector.broadcast %cst_41 : f32 to vector<1x1x128xf32>
      %c0_42 = arith.constant 0 : index
      %c0_43 = arith.constant 0 : index
      %c0_44 = arith.constant 0 : index
      %62 = vector.load %arg6[%c0_42, %c0_43, %c0_44] : memref<1x1x128xf32, #tpu.memory_space<vmem>>, vector<1x1x128xf32>
      tpu.vector_store %arg6[%c0_42, %c0_43, %c0_44], %61 {strides = array<i32>} : memref<1x1x128xf32, #tpu.memory_space<vmem>>, vector<1x1x128xf32>,
      %cst_45 = arith.constant 0.000000e+00 : f32
      %63 = vector.broadcast %cst_45 : f32 to vector<1x1x128xf32>
      %c0_46 = arith.constant 0 : index
      %c0_47 = arith.constant 0 : index
      %c0_48 = arith.constant 0 : index
      %64 = vector.load %arg7[%c0_46, %c0_47, %c0_48] : memref<1x1x128xf32, #tpu.memory_space<vmem>>, vector<1x1x128xf32>
      tpu.vector_store %arg7[%c0_46, %c0_47, %c0_48], %63 {strides = array<i32>} : memref<1x1x128xf32, #tpu.memory_space<vmem>>, vector<1x1x128xf32>,
    } else {
    }
    %c0_29 = arith.constant 0 : index
    %c0_30 = arith.constant 0 : index
    %c0_31 = arith.constant 0 : index
    %49 = vector.load %arg6[%c0_29, %c0_30, %c0_31] : memref<1x1x128xf32, #tpu.memory_space<vmem>>, vector<1x1x128xf32>
    %50 = vector.shape_cast %49 : vector<1x1x128xf32> to vector<1x128xf32>
    %51 = arith.addf %50, %42 : vector<1x128xf32>
    %c0_32 = arith.constant 0 : index
    %c0_33 = arith.constant 0 : index
    %c0_34 = arith.constant 0 : index
    %52 = vector.load %arg6[%c0_32, %c0_33, %c0_34] : memref<1x1x128xf32, #tpu.memory_space<vmem>>, vector<1x1x128xf32>
    %53 = vector.shape_cast %52 : vector<1x1x128xf32> to vector<1x128xf32>
    %54 = vector.shape_cast %51 : vector<1x128xf32> to vector<1x1x128xf32>
    tpu.vector_store %arg6[%c0_32, %c0_33, %c0_34], %54 {strides = array<i32>} : memref<1x1x128xf32, #tpu.memory_space<vmem>>, vector<1x1x128xf32>,
    %c0_35 = arith.constant 0 : index
    %c0_36 = arith.constant 0 : index
    %c0_37 = arith.constant 0 : index
    %55 = vector.load %arg7[%c0_35, %c0_36, %c0_37] : memref<1x1x128xf32, #tpu.memory_space<vmem>>, vector<1x1x128xf32>
    %56 = vector.shape_cast %55 : vector<1x1x128xf32> to vector<1x128xf32>
    %57 = arith.addf %56, %45 : vector<1x128xf32>
    %c0_38 = arith.constant 0 : index
    %c0_39 = arith.constant 0 : index
    %c0_40 = arith.constant 0 : index
    %58 = vector.load %arg7[%c0_38, %c0_39, %c0_40] : memref<1x1x128xf32, #tpu.memory_space<vmem>>, vector<1x1x128xf32>
    %59 = vector.shape_cast %58 : vector<1x1x128xf32> to vector<1x128xf32>
    %60 = vector.shape_cast %57 : vector<1x128xf32> to vector<1x1x128xf32>
    tpu.vector_store %arg7[%c0_38, %c0_39, %c0_40], %60 {strides = array<i32>} : memref<1x1x128xf32, #tpu.memory_space<vmem>>, vector<1x1x128xf32>,
    return
  }
  func.func @transform_0(%arg0: i32, %arg1: i32) -> (i32, i32, i32) {
    %c0_i32 = arith.constant 0 : i32
    %c0_i32_0 = arith.constant 0 : i32
    %c0_i32_1 = arith.constant 0 : i32
    return %arg0, %c0_i32, %c0_i32_0 : i32, i32, i32
  }
  func.func @transform_1(%arg0: i32, %arg1: i32) -> (i32, i32, i32) {
    %c0_i32 = arith.constant 0 : i32
    %c0_i32_0 = arith.constant 0 : i32
    %c0_i32_1 = arith.constant 0 : i32
    %c0_i32_2 = arith.constant 0 : i32
    return %c0_i32, %c0_i32_0, %c0_i32_1 : i32, i32, i32
  }
  func.func @transform_2(%arg0: i32, %arg1: i32) -> (i32, i32) {
    %c0_i32 = arith.constant 0 : i32
    %c0_i32_0 = arith.constant 0 : i32
    return %arg1, %c0_i32 : i32, i32
  }
  func.func @transform_3(%arg0: i32, %arg1: i32) -> (i32, i32, i32) {
    %c0_i32 = arith.constant 0 : i32
    %c0_i32_0 = arith.constant 0 : i32
    return %arg0, %arg1, %c0_i32 : i32, i32, i32
  }
  func.func @transform_4(%arg0: i32, %arg1: i32) -> (i32, i32, i32) {
    %c0_i32 = arith.constant 0 : i32
    %c0_i32_0 = arith.constant 0 : i32
    %c0_i32_1 = arith.constant 0 : i32
    return %arg0, %c0_i32, %c0_i32_0 : i32, i32, i32
  }
  func.func @transform_5(%arg0: i32, %arg1: i32) -> (i32, i32, i32) {
    %c0_i32 = arith.constant 0 : i32
    %c0_i32_0 = arith.constant 0 : i32
    %c0_i32_1 = arith.constant 0 : i32
    return %arg0, %c0_i32, %c0_i32_0 : i32, i32, i32
  }
}

module attributes {stable_mosaic.version = 11 : i64} {
  func.func @_conv_tap_kernel(%arg0: i32, %arg1: i32, %arg2: memref<1x45x128xf32, #tpu.memory_space<vmem>>, %arg3: memref<16x128x128xf32, #tpu.memory_space<vmem>>, %arg4: memref<24x1xf32, #tpu.memory_space<vmem>>, %arg5: memref<1x24x128xf32, #tpu.memory_space<vmem>>, %arg6: memref<1x1x128xf32, #tpu.memory_space<vmem>>, %arg7: memref<1x1x128xf32, #tpu.memory_space<vmem>>) attributes {dimension_semantics = [#tpu.dimension_semantics<parallel>, #tpu.dimension_semantics<arbitrary>], iteration_bounds = array<i64: 2, 1>, scalar_prefetch = 0 : i64, scratch_operands = 0 : i64, tpu.core_type = #tpu.core_type<tc>, window_params = [{transform_indices = @transform_0, window_bounds = array<i64: 1, 45, 128>}, {pipeline_mode = #tpu.pipeline_mode<synchronous>, transform_indices = @transform_1, window_bounds = array<i64: 16, 128, 128>}, {transform_indices = @transform_2, window_bounds = array<i64: 24, 1>}, {transform_indices = @transform_3, window_bounds = array<i64: 1, 24, 128>}, {transform_indices = @transform_4, window_bounds = array<i64: 1, 1, 128>}, {transform_indices = @transform_5, window_bounds = array<i64: 1, 1, 128>}]} {
    %c24_i32 = arith.constant 24 : i32
    %0 = arith.muli %arg1, %c24_i32 : i32
    %1 = tpu.assume_multiple %0, 8 : i32
    %cst = arith.constant 0.000000e+00 : f32
    %2 = vector.broadcast %cst : f32 to vector<24x128xf32>
    %c0_i32 = arith.constant 0 : i32
    %3 = arith.addi %1, %c0_i32 : i32
    %c0 = arith.constant 0 : index
    %4 = arith.index_cast %3 : i32 to index
    %c0_0 = arith.constant 0 : index
    %5 = vector.load %arg2[%c0, %4, %c0_0] : memref<1x45x128xf32, #tpu.memory_space<vmem>>, vector<1x24x128xf32>
    %6 = vector.shape_cast %5 : vector<1x24x128xf32> to vector<24x128xf32>
    %c0_1 = arith.constant 0 : index
    %c0_2 = arith.constant 0 : index
    %c0_3 = arith.constant 0 : index
    %7 = vector.load %arg3[%c0_1, %c0_2, %c0_3] : memref<16x128x128xf32, #tpu.memory_space<vmem>>, vector<1x128x128xf32>
    %8 = vector.shape_cast %7 : vector<1x128x128xf32> to vector<128x128xf32>
    %cst_4 = arith.constant dense<0.000000e+00> : vector<24x128xf32>
    %9 = tpu.matmul %6, %8, %cst_4 {dimension_numbers = #tpu.dot_dimension_numbers<[1], [0], [0], [1], [0, 0, 1, 1], [], []>} : vector<24x128xf32>, vector<128x128xf32>, vector<24x128xf32> -> vector<24x128xf32>
    %10 = arith.addf %2, %9 : vector<24x128xf32>
    %c1_i32 = arith.constant 1 : i32
    %11 = arith.addi %1, %c1_i32 : i32
    %c0_5 = arith.constant 0 : index
    %12 = arith.index_cast %11 : i32 to index
    %c0_6 = arith.constant 0 : index
    %13 = vector.load %arg2[%c0_5, %12, %c0_6] : memref<1x45x128xf32, #tpu.memory_space<vmem>>, vector<1x24x128xf32>
    %14 = vector.shape_cast %13 : vector<1x24x128xf32> to vector<24x128xf32>
    %c1 = arith.constant 1 : index
    %c0_7 = arith.constant 0 : index
    %c0_8 = arith.constant 0 : index
    %15 = vector.load %arg3[%c1, %c0_7, %c0_8] : memref<16x128x128xf32, #tpu.memory_space<vmem>>, vector<1x128x128xf32>
    %16 = vector.shape_cast %15 : vector<1x128x128xf32> to vector<128x128xf32>
    %cst_9 = arith.constant dense<0.000000e+00> : vector<24x128xf32>
    %17 = tpu.matmul %14, %16, %cst_9 {dimension_numbers = #tpu.dot_dimension_numbers<[1], [0], [0], [1], [0, 0, 1, 1], [], []>} : vector<24x128xf32>, vector<128x128xf32>, vector<24x128xf32> -> vector<24x128xf32>
    %18 = arith.addf %10, %17 : vector<24x128xf32>
    %c2_i32 = arith.constant 2 : i32
    %19 = arith.addi %1, %c2_i32 : i32
    %c0_10 = arith.constant 0 : index
    %20 = arith.index_cast %19 : i32 to index
    %c0_11 = arith.constant 0 : index
    %21 = vector.load %arg2[%c0_10, %20, %c0_11] : memref<1x45x128xf32, #tpu.memory_space<vmem>>, vector<1x24x128xf32>
    %22 = vector.shape_cast %21 : vector<1x24x128xf32> to vector<24x128xf32>
    %c2 = arith.constant 2 : index
    %c0_12 = arith.constant 0 : index
    %c0_13 = arith.constant 0 : index
    %23 = vector.load %arg3[%c2, %c0_12, %c0_13] : memref<16x128x128xf32, #tpu.memory_space<vmem>>, vector<1x128x128xf32>
    %24 = vector.shape_cast %23 : vector<1x128x128xf32> to vector<128x128xf32>
    %cst_14 = arith.constant dense<0.000000e+00> : vector<24x128xf32>
    %25 = tpu.matmul %22, %24, %cst_14 {dimension_numbers = #tpu.dot_dimension_numbers<[1], [0], [0], [1], [0, 0, 1, 1], [], []>} : vector<24x128xf32>, vector<128x128xf32>, vector<24x128xf32> -> vector<24x128xf32>
    %26 = arith.addf %18, %25 : vector<24x128xf32>
    %c3_i32 = arith.constant 3 : i32
    %27 = arith.addi %1, %c3_i32 : i32
    %c0_15 = arith.constant 0 : index
    %28 = arith.index_cast %27 : i32 to index
    %c0_16 = arith.constant 0 : index
    %29 = vector.load %arg2[%c0_15, %28, %c0_16] : memref<1x45x128xf32, #tpu.memory_space<vmem>>, vector<1x24x128xf32>
    %30 = vector.shape_cast %29 : vector<1x24x128xf32> to vector<24x128xf32>
    %c3 = arith.constant 3 : index
    %c0_17 = arith.constant 0 : index
    %c0_18 = arith.constant 0 : index
    %31 = vector.load %arg3[%c3, %c0_17, %c0_18] : memref<16x128x128xf32, #tpu.memory_space<vmem>>, vector<1x128x128xf32>
    %32 = vector.shape_cast %31 : vector<1x128x128xf32> to vector<128x128xf32>
    %cst_19 = arith.constant dense<0.000000e+00> : vector<24x128xf32>
    %33 = tpu.matmul %30, %32, %cst_19 {dimension_numbers = #tpu.dot_dimension_numbers<[1], [0], [0], [1], [0, 0, 1, 1], [], []>} : vector<24x128xf32>, vector<128x128xf32>, vector<24x128xf32> -> vector<24x128xf32>
    %34 = arith.addf %26, %33 : vector<24x128xf32>
    %c6_i32 = arith.constant 6 : i32
    %35 = arith.addi %1, %c6_i32 : i32
    %c0_20 = arith.constant 0 : index
    %36 = arith.index_cast %35 : i32 to index
    %c0_21 = arith.constant 0 : index
    %37 = vector.load %arg2[%c0_20, %36, %c0_21] : memref<1x45x128xf32, #tpu.memory_space<vmem>>, vector<1x24x128xf32>
    %38 = vector.shape_cast %37 : vector<1x24x128xf32> to vector<24x128xf32>
    %c4 = arith.constant 4 : index
    %c0_22 = arith.constant 0 : index
    %c0_23 = arith.constant 0 : index
    %39 = vector.load %arg3[%c4, %c0_22, %c0_23] : memref<16x128x128xf32, #tpu.memory_space<vmem>>, vector<1x128x128xf32>
    %40 = vector.shape_cast %39 : vector<1x128x128xf32> to vector<128x128xf32>
    %cst_24 = arith.constant dense<0.000000e+00> : vector<24x128xf32>
    %41 = tpu.matmul %38, %40, %cst_24 {dimension_numbers = #tpu.dot_dimension_numbers<[1], [0], [0], [1], [0, 0, 1, 1], [], []>} : vector<24x128xf32>, vector<128x128xf32>, vector<24x128xf32> -> vector<24x128xf32>
    %42 = arith.addf %34, %41 : vector<24x128xf32>
    %c7_i32 = arith.constant 7 : i32
    %43 = arith.addi %1, %c7_i32 : i32
    %c0_25 = arith.constant 0 : index
    %44 = arith.index_cast %43 : i32 to index
    %c0_26 = arith.constant 0 : index
    %45 = vector.load %arg2[%c0_25, %44, %c0_26] : memref<1x45x128xf32, #tpu.memory_space<vmem>>, vector<1x24x128xf32>
    %46 = vector.shape_cast %45 : vector<1x24x128xf32> to vector<24x128xf32>
    %c5 = arith.constant 5 : index
    %c0_27 = arith.constant 0 : index
    %c0_28 = arith.constant 0 : index
    %47 = vector.load %arg3[%c5, %c0_27, %c0_28] : memref<16x128x128xf32, #tpu.memory_space<vmem>>, vector<1x128x128xf32>
    %48 = vector.shape_cast %47 : vector<1x128x128xf32> to vector<128x128xf32>
    %cst_29 = arith.constant dense<0.000000e+00> : vector<24x128xf32>
    %49 = tpu.matmul %46, %48, %cst_29 {dimension_numbers = #tpu.dot_dimension_numbers<[1], [0], [0], [1], [0, 0, 1, 1], [], []>} : vector<24x128xf32>, vector<128x128xf32>, vector<24x128xf32> -> vector<24x128xf32>
    %50 = arith.addf %42, %49 : vector<24x128xf32>
    %c8_i32 = arith.constant 8 : i32
    %51 = arith.addi %1, %c8_i32 : i32
    %c0_30 = arith.constant 0 : index
    %52 = arith.index_cast %51 : i32 to index
    %c0_31 = arith.constant 0 : index
    %53 = vector.load %arg2[%c0_30, %52, %c0_31] : memref<1x45x128xf32, #tpu.memory_space<vmem>>, vector<1x24x128xf32>
    %54 = vector.shape_cast %53 : vector<1x24x128xf32> to vector<24x128xf32>
    %c6 = arith.constant 6 : index
    %c0_32 = arith.constant 0 : index
    %c0_33 = arith.constant 0 : index
    %55 = vector.load %arg3[%c6, %c0_32, %c0_33] : memref<16x128x128xf32, #tpu.memory_space<vmem>>, vector<1x128x128xf32>
    %56 = vector.shape_cast %55 : vector<1x128x128xf32> to vector<128x128xf32>
    %cst_34 = arith.constant dense<0.000000e+00> : vector<24x128xf32>
    %57 = tpu.matmul %54, %56, %cst_34 {dimension_numbers = #tpu.dot_dimension_numbers<[1], [0], [0], [1], [0, 0, 1, 1], [], []>} : vector<24x128xf32>, vector<128x128xf32>, vector<24x128xf32> -> vector<24x128xf32>
    %58 = arith.addf %50, %57 : vector<24x128xf32>
    %c9_i32 = arith.constant 9 : i32
    %59 = arith.addi %1, %c9_i32 : i32
    %c0_35 = arith.constant 0 : index
    %60 = arith.index_cast %59 : i32 to index
    %c0_36 = arith.constant 0 : index
    %61 = vector.load %arg2[%c0_35, %60, %c0_36] : memref<1x45x128xf32, #tpu.memory_space<vmem>>, vector<1x24x128xf32>
    %62 = vector.shape_cast %61 : vector<1x24x128xf32> to vector<24x128xf32>
    %c7 = arith.constant 7 : index
    %c0_37 = arith.constant 0 : index
    %c0_38 = arith.constant 0 : index
    %63 = vector.load %arg3[%c7, %c0_37, %c0_38] : memref<16x128x128xf32, #tpu.memory_space<vmem>>, vector<1x128x128xf32>
    %64 = vector.shape_cast %63 : vector<1x128x128xf32> to vector<128x128xf32>
    %cst_39 = arith.constant dense<0.000000e+00> : vector<24x128xf32>
    %65 = tpu.matmul %62, %64, %cst_39 {dimension_numbers = #tpu.dot_dimension_numbers<[1], [0], [0], [1], [0, 0, 1, 1], [], []>} : vector<24x128xf32>, vector<128x128xf32>, vector<24x128xf32> -> vector<24x128xf32>
    %66 = arith.addf %58, %65 : vector<24x128xf32>
    %c12_i32 = arith.constant 12 : i32
    %67 = arith.addi %1, %c12_i32 : i32
    %c0_40 = arith.constant 0 : index
    %68 = arith.index_cast %67 : i32 to index
    %c0_41 = arith.constant 0 : index
    %69 = vector.load %arg2[%c0_40, %68, %c0_41] : memref<1x45x128xf32, #tpu.memory_space<vmem>>, vector<1x24x128xf32>
    %70 = vector.shape_cast %69 : vector<1x24x128xf32> to vector<24x128xf32>
    %c8 = arith.constant 8 : index
    %c0_42 = arith.constant 0 : index
    %c0_43 = arith.constant 0 : index
    %71 = vector.load %arg3[%c8, %c0_42, %c0_43] : memref<16x128x128xf32, #tpu.memory_space<vmem>>, vector<1x128x128xf32>
    %72 = vector.shape_cast %71 : vector<1x128x128xf32> to vector<128x128xf32>
    %cst_44 = arith.constant dense<0.000000e+00> : vector<24x128xf32>
    %73 = tpu.matmul %70, %72, %cst_44 {dimension_numbers = #tpu.dot_dimension_numbers<[1], [0], [0], [1], [0, 0, 1, 1], [], []>} : vector<24x128xf32>, vector<128x128xf32>, vector<24x128xf32> -> vector<24x128xf32>
    %74 = arith.addf %66, %73 : vector<24x128xf32>
    %c13_i32 = arith.constant 13 : i32
    %75 = arith.addi %1, %c13_i32 : i32
    %c0_45 = arith.constant 0 : index
    %76 = arith.index_cast %75 : i32 to index
    %c0_46 = arith.constant 0 : index
    %77 = vector.load %arg2[%c0_45, %76, %c0_46] : memref<1x45x128xf32, #tpu.memory_space<vmem>>, vector<1x24x128xf32>
    %78 = vector.shape_cast %77 : vector<1x24x128xf32> to vector<24x128xf32>
    %c9 = arith.constant 9 : index
    %c0_47 = arith.constant 0 : index
    %c0_48 = arith.constant 0 : index
    %79 = vector.load %arg3[%c9, %c0_47, %c0_48] : memref<16x128x128xf32, #tpu.memory_space<vmem>>, vector<1x128x128xf32>
    %80 = vector.shape_cast %79 : vector<1x128x128xf32> to vector<128x128xf32>
    %cst_49 = arith.constant dense<0.000000e+00> : vector<24x128xf32>
    %81 = tpu.matmul %78, %80, %cst_49 {dimension_numbers = #tpu.dot_dimension_numbers<[1], [0], [0], [1], [0, 0, 1, 1], [], []>} : vector<24x128xf32>, vector<128x128xf32>, vector<24x128xf32> -> vector<24x128xf32>
    %82 = arith.addf %74, %81 : vector<24x128xf32>
    %c14_i32 = arith.constant 14 : i32
    %83 = arith.addi %1, %c14_i32 : i32
    %c0_50 = arith.constant 0 : index
    %84 = arith.index_cast %83 : i32 to index
    %c0_51 = arith.constant 0 : index
    %85 = vector.load %arg2[%c0_50, %84, %c0_51] : memref<1x45x128xf32, #tpu.memory_space<vmem>>, vector<1x24x128xf32>
    %86 = vector.shape_cast %85 : vector<1x24x128xf32> to vector<24x128xf32>
    %c10 = arith.constant 10 : index
    %c0_52 = arith.constant 0 : index
    %c0_53 = arith.constant 0 : index
    %87 = vector.load %arg3[%c10, %c0_52, %c0_53] : memref<16x128x128xf32, #tpu.memory_space<vmem>>, vector<1x128x128xf32>
    %88 = vector.shape_cast %87 : vector<1x128x128xf32> to vector<128x128xf32>
    %cst_54 = arith.constant dense<0.000000e+00> : vector<24x128xf32>
    %89 = tpu.matmul %86, %88, %cst_54 {dimension_numbers = #tpu.dot_dimension_numbers<[1], [0], [0], [1], [0, 0, 1, 1], [], []>} : vector<24x128xf32>, vector<128x128xf32>, vector<24x128xf32> -> vector<24x128xf32>
    %90 = arith.addf %82, %89 : vector<24x128xf32>
    %c15_i32 = arith.constant 15 : i32
    %91 = arith.addi %1, %c15_i32 : i32
    %c0_55 = arith.constant 0 : index
    %92 = arith.index_cast %91 : i32 to index
    %c0_56 = arith.constant 0 : index
    %93 = vector.load %arg2[%c0_55, %92, %c0_56] : memref<1x45x128xf32, #tpu.memory_space<vmem>>, vector<1x24x128xf32>
    %94 = vector.shape_cast %93 : vector<1x24x128xf32> to vector<24x128xf32>
    %c11 = arith.constant 11 : index
    %c0_57 = arith.constant 0 : index
    %c0_58 = arith.constant 0 : index
    %95 = vector.load %arg3[%c11, %c0_57, %c0_58] : memref<16x128x128xf32, #tpu.memory_space<vmem>>, vector<1x128x128xf32>
    %96 = vector.shape_cast %95 : vector<1x128x128xf32> to vector<128x128xf32>
    %cst_59 = arith.constant dense<0.000000e+00> : vector<24x128xf32>
    %97 = tpu.matmul %94, %96, %cst_59 {dimension_numbers = #tpu.dot_dimension_numbers<[1], [0], [0], [1], [0, 0, 1, 1], [], []>} : vector<24x128xf32>, vector<128x128xf32>, vector<24x128xf32> -> vector<24x128xf32>
    %98 = arith.addf %90, %97 : vector<24x128xf32>
    %c18_i32 = arith.constant 18 : i32
    %99 = arith.addi %1, %c18_i32 : i32
    %c0_60 = arith.constant 0 : index
    %100 = arith.index_cast %99 : i32 to index
    %c0_61 = arith.constant 0 : index
    %101 = vector.load %arg2[%c0_60, %100, %c0_61] : memref<1x45x128xf32, #tpu.memory_space<vmem>>, vector<1x24x128xf32>
    %102 = vector.shape_cast %101 : vector<1x24x128xf32> to vector<24x128xf32>
    %c12 = arith.constant 12 : index
    %c0_62 = arith.constant 0 : index
    %c0_63 = arith.constant 0 : index
    %103 = vector.load %arg3[%c12, %c0_62, %c0_63] : memref<16x128x128xf32, #tpu.memory_space<vmem>>, vector<1x128x128xf32>
    %104 = vector.shape_cast %103 : vector<1x128x128xf32> to vector<128x128xf32>
    %cst_64 = arith.constant dense<0.000000e+00> : vector<24x128xf32>
    %105 = tpu.matmul %102, %104, %cst_64 {dimension_numbers = #tpu.dot_dimension_numbers<[1], [0], [0], [1], [0, 0, 1, 1], [], []>} : vector<24x128xf32>, vector<128x128xf32>, vector<24x128xf32> -> vector<24x128xf32>
    %106 = arith.addf %98, %105 : vector<24x128xf32>
    %c19_i32 = arith.constant 19 : i32
    %107 = arith.addi %1, %c19_i32 : i32
    %c0_65 = arith.constant 0 : index
    %108 = arith.index_cast %107 : i32 to index
    %c0_66 = arith.constant 0 : index
    %109 = vector.load %arg2[%c0_65, %108, %c0_66] : memref<1x45x128xf32, #tpu.memory_space<vmem>>, vector<1x24x128xf32>
    %110 = vector.shape_cast %109 : vector<1x24x128xf32> to vector<24x128xf32>
    %c13 = arith.constant 13 : index
    %c0_67 = arith.constant 0 : index
    %c0_68 = arith.constant 0 : index
    %111 = vector.load %arg3[%c13, %c0_67, %c0_68] : memref<16x128x128xf32, #tpu.memory_space<vmem>>, vector<1x128x128xf32>
    %112 = vector.shape_cast %111 : vector<1x128x128xf32> to vector<128x128xf32>
    %cst_69 = arith.constant dense<0.000000e+00> : vector<24x128xf32>
    %113 = tpu.matmul %110, %112, %cst_69 {dimension_numbers = #tpu.dot_dimension_numbers<[1], [0], [0], [1], [0, 0, 1, 1], [], []>} : vector<24x128xf32>, vector<128x128xf32>, vector<24x128xf32> -> vector<24x128xf32>
    %114 = arith.addf %106, %113 : vector<24x128xf32>
    %c20_i32 = arith.constant 20 : i32
    %115 = arith.addi %1, %c20_i32 : i32
    %c0_70 = arith.constant 0 : index
    %116 = arith.index_cast %115 : i32 to index
    %c0_71 = arith.constant 0 : index
    %117 = vector.load %arg2[%c0_70, %116, %c0_71] : memref<1x45x128xf32, #tpu.memory_space<vmem>>, vector<1x24x128xf32>
    %118 = vector.shape_cast %117 : vector<1x24x128xf32> to vector<24x128xf32>
    %c14 = arith.constant 14 : index
    %c0_72 = arith.constant 0 : index
    %c0_73 = arith.constant 0 : index
    %119 = vector.load %arg3[%c14, %c0_72, %c0_73] : memref<16x128x128xf32, #tpu.memory_space<vmem>>, vector<1x128x128xf32>
    %120 = vector.shape_cast %119 : vector<1x128x128xf32> to vector<128x128xf32>
    %cst_74 = arith.constant dense<0.000000e+00> : vector<24x128xf32>
    %121 = tpu.matmul %118, %120, %cst_74 {dimension_numbers = #tpu.dot_dimension_numbers<[1], [0], [0], [1], [0, 0, 1, 1], [], []>} : vector<24x128xf32>, vector<128x128xf32>, vector<24x128xf32> -> vector<24x128xf32>
    %122 = arith.addf %114, %121 : vector<24x128xf32>
    %c21_i32 = arith.constant 21 : i32
    %123 = arith.addi %1, %c21_i32 : i32
    %c0_75 = arith.constant 0 : index
    %124 = arith.index_cast %123 : i32 to index
    %c0_76 = arith.constant 0 : index
    %125 = vector.load %arg2[%c0_75, %124, %c0_76] : memref<1x45x128xf32, #tpu.memory_space<vmem>>, vector<1x24x128xf32>
    %126 = vector.shape_cast %125 : vector<1x24x128xf32> to vector<24x128xf32>
    %c15 = arith.constant 15 : index
    %c0_77 = arith.constant 0 : index
    %c0_78 = arith.constant 0 : index
    %127 = vector.load %arg3[%c15, %c0_77, %c0_78] : memref<16x128x128xf32, #tpu.memory_space<vmem>>, vector<1x128x128xf32>
    %128 = vector.shape_cast %127 : vector<1x128x128xf32> to vector<128x128xf32>
    %cst_79 = arith.constant dense<0.000000e+00> : vector<24x128xf32>
    %129 = tpu.matmul %126, %128, %cst_79 {dimension_numbers = #tpu.dot_dimension_numbers<[1], [0], [0], [1], [0, 0, 1, 1], [], []>} : vector<24x128xf32>, vector<128x128xf32>, vector<24x128xf32> -> vector<24x128xf32>
    %130 = arith.addf %122, %129 : vector<24x128xf32>
    %c0_80 = arith.constant 0 : index
    %c0_81 = arith.constant 0 : index
    %c0_82 = arith.constant 0 : index
    %131 = vector.load %arg5[%c0_80, %c0_81, %c0_82] : memref<1x24x128xf32, #tpu.memory_space<vmem>>, vector<1x24x128xf32>
    %132 = vector.shape_cast %131 : vector<1x24x128xf32> to vector<24x128xf32>
    %133 = vector.shape_cast %130 : vector<24x128xf32> to vector<1x24x128xf32>
    tpu.vector_store %arg5[%c0_80, %c0_81, %c0_82], %133 {strides = array<i32>} : memref<1x24x128xf32, #tpu.memory_space<vmem>>, vector<1x24x128xf32>,
    %c0_83 = arith.constant 0 : index
    %c0_84 = arith.constant 0 : index
    %134 = vector.load %arg4[%c0_83, %c0_84] : memref<24x1xf32, #tpu.memory_space<vmem>>, vector<24x1xf32>
    %135 = vector.broadcast %134 : vector<24x1xf32> to vector<24x128xf32>
    %136 = arith.mulf %130, %135 : vector<24x128xf32>
    %cst_85 = arith.constant dense<0.000000e+00> : vector<128xf32>
    %137 = vector.multi_reduction <add>, %136, %cst_85 [0] : vector<24x128xf32> to vector<128xf32>
    %138 = vector.shape_cast %137 : vector<128xf32> to vector<1x128xf32>
    %139 = arith.mulf %136, %130 : vector<24x128xf32>
    %cst_86 = arith.constant dense<0.000000e+00> : vector<128xf32>
    %140 = vector.multi_reduction <add>, %139, %cst_86 [0] : vector<24x128xf32> to vector<128xf32>
    %141 = vector.shape_cast %140 : vector<128xf32> to vector<1x128xf32>
    %c0_i32_87 = arith.constant 0 : i32
    %142 = arith.cmpi eq, %arg1, %c0_i32_87 : i32
    %143 = arith.extui %142 : i1 to i32
    %c0_i32_88 = arith.constant 0 : i32
    %144 = arith.cmpi ne, %143, %c0_i32_88 : i32
    scf.if %144 {
      %cst_101 = arith.constant 0.000000e+00 : f32
      %157 = vector.broadcast %cst_101 : f32 to vector<1x1x128xf32>
      %c0_102 = arith.constant 0 : index
      %c0_103 = arith.constant 0 : index
      %c0_104 = arith.constant 0 : index
      %158 = vector.load %arg6[%c0_102, %c0_103, %c0_104] : memref<1x1x128xf32, #tpu.memory_space<vmem>>, vector<1x1x128xf32>
      tpu.vector_store %arg6[%c0_102, %c0_103, %c0_104], %157 {strides = array<i32>} : memref<1x1x128xf32, #tpu.memory_space<vmem>>, vector<1x1x128xf32>,
      %cst_105 = arith.constant 0.000000e+00 : f32
      %159 = vector.broadcast %cst_105 : f32 to vector<1x1x128xf32>
      %c0_106 = arith.constant 0 : index
      %c0_107 = arith.constant 0 : index
      %c0_108 = arith.constant 0 : index
      %160 = vector.load %arg7[%c0_106, %c0_107, %c0_108] : memref<1x1x128xf32, #tpu.memory_space<vmem>>, vector<1x1x128xf32>
      tpu.vector_store %arg7[%c0_106, %c0_107, %c0_108], %159 {strides = array<i32>} : memref<1x1x128xf32, #tpu.memory_space<vmem>>, vector<1x1x128xf32>,
    } else {
    }
    %c0_89 = arith.constant 0 : index
    %c0_90 = arith.constant 0 : index
    %c0_91 = arith.constant 0 : index
    %145 = vector.load %arg6[%c0_89, %c0_90, %c0_91] : memref<1x1x128xf32, #tpu.memory_space<vmem>>, vector<1x1x128xf32>
    %146 = vector.shape_cast %145 : vector<1x1x128xf32> to vector<1x128xf32>
    %147 = arith.addf %146, %138 : vector<1x128xf32>
    %c0_92 = arith.constant 0 : index
    %c0_93 = arith.constant 0 : index
    %c0_94 = arith.constant 0 : index
    %148 = vector.load %arg6[%c0_92, %c0_93, %c0_94] : memref<1x1x128xf32, #tpu.memory_space<vmem>>, vector<1x1x128xf32>
    %149 = vector.shape_cast %148 : vector<1x1x128xf32> to vector<1x128xf32>
    %150 = vector.shape_cast %147 : vector<1x128xf32> to vector<1x1x128xf32>
    tpu.vector_store %arg6[%c0_92, %c0_93, %c0_94], %150 {strides = array<i32>} : memref<1x1x128xf32, #tpu.memory_space<vmem>>, vector<1x1x128xf32>,
    %c0_95 = arith.constant 0 : index
    %c0_96 = arith.constant 0 : index
    %c0_97 = arith.constant 0 : index
    %151 = vector.load %arg7[%c0_95, %c0_96, %c0_97] : memref<1x1x128xf32, #tpu.memory_space<vmem>>, vector<1x1x128xf32>
    %152 = vector.shape_cast %151 : vector<1x1x128xf32> to vector<1x128xf32>
    %153 = arith.addf %152, %141 : vector<1x128xf32>
    %c0_98 = arith.constant 0 : index
    %c0_99 = arith.constant 0 : index
    %c0_100 = arith.constant 0 : index
    %154 = vector.load %arg7[%c0_98, %c0_99, %c0_100] : memref<1x1x128xf32, #tpu.memory_space<vmem>>, vector<1x1x128xf32>
    %155 = vector.shape_cast %154 : vector<1x1x128xf32> to vector<1x128xf32>
    %156 = vector.shape_cast %153 : vector<1x128xf32> to vector<1x1x128xf32>
    tpu.vector_store %arg7[%c0_98, %c0_99, %c0_100], %156 {strides = array<i32>} : memref<1x1x128xf32, #tpu.memory_space<vmem>>, vector<1x1x128xf32>,
    return
  }
  func.func @transform_0(%arg0: i32, %arg1: i32) -> (i32, i32, i32) {
    %c0_i32 = arith.constant 0 : i32
    %c0_i32_0 = arith.constant 0 : i32
    %c0_i32_1 = arith.constant 0 : i32
    return %arg0, %c0_i32, %c0_i32_0 : i32, i32, i32
  }
  func.func @transform_1(%arg0: i32, %arg1: i32) -> (i32, i32, i32) {
    %c0_i32 = arith.constant 0 : i32
    %c0_i32_0 = arith.constant 0 : i32
    %c0_i32_1 = arith.constant 0 : i32
    %c0_i32_2 = arith.constant 0 : i32
    return %c0_i32, %c0_i32_0, %c0_i32_1 : i32, i32, i32
  }
  func.func @transform_2(%arg0: i32, %arg1: i32) -> (i32, i32) {
    %c0_i32 = arith.constant 0 : i32
    %c0_i32_0 = arith.constant 0 : i32
    return %arg1, %c0_i32 : i32, i32
  }
  func.func @transform_3(%arg0: i32, %arg1: i32) -> (i32, i32, i32) {
    %c0_i32 = arith.constant 0 : i32
    %c0_i32_0 = arith.constant 0 : i32
    return %arg0, %arg1, %c0_i32 : i32, i32, i32
  }
  func.func @transform_4(%arg0: i32, %arg1: i32) -> (i32, i32, i32) {
    %c0_i32 = arith.constant 0 : i32
    %c0_i32_0 = arith.constant 0 : i32
    %c0_i32_1 = arith.constant 0 : i32
    return %arg0, %c0_i32, %c0_i32_0 : i32, i32, i32
  }
  func.func @transform_5(%arg0: i32, %arg1: i32) -> (i32, i32, i32) {
    %c0_i32 = arith.constant 0 : i32
    %c0_i32_0 = arith.constant 0 : i32
    %c0_i32_1 = arith.constant 0 : i32
    return %arg0, %c0_i32, %c0_i32_0 : i32, i32, i32
  }
}

module attributes {stable_mosaic.version = 11 : i64} {
  func.func @_conv_tap_kernel(%arg0: i32, %arg1: i32, %arg2: memref<1x34x128xf32, #tpu.memory_space<vmem>>, %arg3: memref<16x128x128xf32, #tpu.memory_space<vmem>>, %arg4: memref<1x128xf32, #tpu.memory_space<vmem>>, %arg5: memref<1x16x128xf32, #tpu.memory_space<vmem>>) attributes {dimension_semantics = [#tpu.dimension_semantics<parallel>, #tpu.dimension_semantics<parallel>], iteration_bounds = array<i64: 2, 1>, scalar_prefetch = 0 : i64, scratch_operands = 0 : i64, tpu.core_type = #tpu.core_type<tc>, window_params = [{transform_indices = @transform_0, window_bounds = array<i64: 1, 34, 128>}, {pipeline_mode = #tpu.pipeline_mode<synchronous>, transform_indices = @transform_1, window_bounds = array<i64: 16, 128, 128>}, {pipeline_mode = #tpu.pipeline_mode<synchronous>, transform_indices = @transform_2, window_bounds = array<i64: 1, 128>}, {transform_indices = @transform_3, window_bounds = array<i64: 1, 16, 128>}]} {
    %c16_i32 = arith.constant 16 : i32
    %0 = arith.muli %arg1, %c16_i32 : i32
    %1 = tpu.assume_multiple %0, 8 : i32
    %cst = arith.constant 0.000000e+00 : f32
    %2 = vector.broadcast %cst : f32 to vector<16x128xf32>
    %c0_i32 = arith.constant 0 : i32
    %3 = arith.addi %1, %c0_i32 : i32
    %c0 = arith.constant 0 : index
    %4 = arith.index_cast %3 : i32 to index
    %c0_0 = arith.constant 0 : index
    %5 = vector.load %arg2[%c0, %4, %c0_0] : memref<1x34x128xf32, #tpu.memory_space<vmem>>, vector<1x16x128xf32>
    %6 = vector.shape_cast %5 : vector<1x16x128xf32> to vector<16x128xf32>
    %c0_1 = arith.constant 0 : index
    %c0_2 = arith.constant 0 : index
    %c0_3 = arith.constant 0 : index
    %7 = vector.load %arg3[%c0_1, %c0_2, %c0_3] : memref<16x128x128xf32, #tpu.memory_space<vmem>>, vector<1x128x128xf32>
    %8 = vector.shape_cast %7 : vector<1x128x128xf32> to vector<128x128xf32>
    %cst_4 = arith.constant dense<0.000000e+00> : vector<16x128xf32>
    %9 = tpu.matmul %6, %8, %cst_4 {dimension_numbers = #tpu.dot_dimension_numbers<[1], [0], [0], [1], [0, 0, 1, 1], [], []>} : vector<16x128xf32>, vector<128x128xf32>, vector<16x128xf32> -> vector<16x128xf32>
    %10 = arith.addf %2, %9 : vector<16x128xf32>
    %c1_i32 = arith.constant 1 : i32
    %11 = arith.addi %1, %c1_i32 : i32
    %c0_5 = arith.constant 0 : index
    %12 = arith.index_cast %11 : i32 to index
    %c0_6 = arith.constant 0 : index
    %13 = vector.load %arg2[%c0_5, %12, %c0_6] : memref<1x34x128xf32, #tpu.memory_space<vmem>>, vector<1x16x128xf32>
    %14 = vector.shape_cast %13 : vector<1x16x128xf32> to vector<16x128xf32>
    %c1 = arith.constant 1 : index
    %c0_7 = arith.constant 0 : index
    %c0_8 = arith.constant 0 : index
    %15 = vector.load %arg3[%c1, %c0_7, %c0_8] : memref<16x128x128xf32, #tpu.memory_space<vmem>>, vector<1x128x128xf32>
    %16 = vector.shape_cast %15 : vector<1x128x128xf32> to vector<128x128xf32>
    %cst_9 = arith.constant dense<0.000000e+00> : vector<16x128xf32>
    %17 = tpu.matmul %14, %16, %cst_9 {dimension_numbers = #tpu.dot_dimension_numbers<[1], [0], [0], [1], [0, 0, 1, 1], [], []>} : vector<16x128xf32>, vector<128x128xf32>, vector<16x128xf32> -> vector<16x128xf32>
    %18 = arith.addf %10, %17 : vector<16x128xf32>
    %c2_i32 = arith.constant 2 : i32
    %19 = arith.addi %1, %c2_i32 : i32
    %c0_10 = arith.constant 0 : index
    %20 = arith.index_cast %19 : i32 to index
    %c0_11 = arith.constant 0 : index
    %21 = vector.load %arg2[%c0_10, %20, %c0_11] : memref<1x34x128xf32, #tpu.memory_space<vmem>>, vector<1x16x128xf32>
    %22 = vector.shape_cast %21 : vector<1x16x128xf32> to vector<16x128xf32>
    %c2 = arith.constant 2 : index
    %c0_12 = arith.constant 0 : index
    %c0_13 = arith.constant 0 : index
    %23 = vector.load %arg3[%c2, %c0_12, %c0_13] : memref<16x128x128xf32, #tpu.memory_space<vmem>>, vector<1x128x128xf32>
    %24 = vector.shape_cast %23 : vector<1x128x128xf32> to vector<128x128xf32>
    %cst_14 = arith.constant dense<0.000000e+00> : vector<16x128xf32>
    %25 = tpu.matmul %22, %24, %cst_14 {dimension_numbers = #tpu.dot_dimension_numbers<[1], [0], [0], [1], [0, 0, 1, 1], [], []>} : vector<16x128xf32>, vector<128x128xf32>, vector<16x128xf32> -> vector<16x128xf32>
    %26 = arith.addf %18, %25 : vector<16x128xf32>
    %c3_i32 = arith.constant 3 : i32
    %27 = arith.addi %1, %c3_i32 : i32
    %c0_15 = arith.constant 0 : index
    %28 = arith.index_cast %27 : i32 to index
    %c0_16 = arith.constant 0 : index
    %29 = vector.load %arg2[%c0_15, %28, %c0_16] : memref<1x34x128xf32, #tpu.memory_space<vmem>>, vector<1x16x128xf32>
    %30 = vector.shape_cast %29 : vector<1x16x128xf32> to vector<16x128xf32>
    %c3 = arith.constant 3 : index
    %c0_17 = arith.constant 0 : index
    %c0_18 = arith.constant 0 : index
    %31 = vector.load %arg3[%c3, %c0_17, %c0_18] : memref<16x128x128xf32, #tpu.memory_space<vmem>>, vector<1x128x128xf32>
    %32 = vector.shape_cast %31 : vector<1x128x128xf32> to vector<128x128xf32>
    %cst_19 = arith.constant dense<0.000000e+00> : vector<16x128xf32>
    %33 = tpu.matmul %30, %32, %cst_19 {dimension_numbers = #tpu.dot_dimension_numbers<[1], [0], [0], [1], [0, 0, 1, 1], [], []>} : vector<16x128xf32>, vector<128x128xf32>, vector<16x128xf32> -> vector<16x128xf32>
    %34 = arith.addf %26, %33 : vector<16x128xf32>
    %c5_i32 = arith.constant 5 : i32
    %35 = arith.addi %1, %c5_i32 : i32
    %c0_20 = arith.constant 0 : index
    %36 = arith.index_cast %35 : i32 to index
    %c0_21 = arith.constant 0 : index
    %37 = vector.load %arg2[%c0_20, %36, %c0_21] : memref<1x34x128xf32, #tpu.memory_space<vmem>>, vector<1x16x128xf32>
    %38 = vector.shape_cast %37 : vector<1x16x128xf32> to vector<16x128xf32>
    %c4 = arith.constant 4 : index
    %c0_22 = arith.constant 0 : index
    %c0_23 = arith.constant 0 : index
    %39 = vector.load %arg3[%c4, %c0_22, %c0_23] : memref<16x128x128xf32, #tpu.memory_space<vmem>>, vector<1x128x128xf32>
    %40 = vector.shape_cast %39 : vector<1x128x128xf32> to vector<128x128xf32>
    %cst_24 = arith.constant dense<0.000000e+00> : vector<16x128xf32>
    %41 = tpu.matmul %38, %40, %cst_24 {dimension_numbers = #tpu.dot_dimension_numbers<[1], [0], [0], [1], [0, 0, 1, 1], [], []>} : vector<16x128xf32>, vector<128x128xf32>, vector<16x128xf32> -> vector<16x128xf32>
    %42 = arith.addf %34, %41 : vector<16x128xf32>
    %c6_i32 = arith.constant 6 : i32
    %43 = arith.addi %1, %c6_i32 : i32
    %c0_25 = arith.constant 0 : index
    %44 = arith.index_cast %43 : i32 to index
    %c0_26 = arith.constant 0 : index
    %45 = vector.load %arg2[%c0_25, %44, %c0_26] : memref<1x34x128xf32, #tpu.memory_space<vmem>>, vector<1x16x128xf32>
    %46 = vector.shape_cast %45 : vector<1x16x128xf32> to vector<16x128xf32>
    %c5 = arith.constant 5 : index
    %c0_27 = arith.constant 0 : index
    %c0_28 = arith.constant 0 : index
    %47 = vector.load %arg3[%c5, %c0_27, %c0_28] : memref<16x128x128xf32, #tpu.memory_space<vmem>>, vector<1x128x128xf32>
    %48 = vector.shape_cast %47 : vector<1x128x128xf32> to vector<128x128xf32>
    %cst_29 = arith.constant dense<0.000000e+00> : vector<16x128xf32>
    %49 = tpu.matmul %46, %48, %cst_29 {dimension_numbers = #tpu.dot_dimension_numbers<[1], [0], [0], [1], [0, 0, 1, 1], [], []>} : vector<16x128xf32>, vector<128x128xf32>, vector<16x128xf32> -> vector<16x128xf32>
    %50 = arith.addf %42, %49 : vector<16x128xf32>
    %c7_i32 = arith.constant 7 : i32
    %51 = arith.addi %1, %c7_i32 : i32
    %c0_30 = arith.constant 0 : index
    %52 = arith.index_cast %51 : i32 to index
    %c0_31 = arith.constant 0 : index
    %53 = vector.load %arg2[%c0_30, %52, %c0_31] : memref<1x34x128xf32, #tpu.memory_space<vmem>>, vector<1x16x128xf32>
    %54 = vector.shape_cast %53 : vector<1x16x128xf32> to vector<16x128xf32>
    %c6 = arith.constant 6 : index
    %c0_32 = arith.constant 0 : index
    %c0_33 = arith.constant 0 : index
    %55 = vector.load %arg3[%c6, %c0_32, %c0_33] : memref<16x128x128xf32, #tpu.memory_space<vmem>>, vector<1x128x128xf32>
    %56 = vector.shape_cast %55 : vector<1x128x128xf32> to vector<128x128xf32>
    %cst_34 = arith.constant dense<0.000000e+00> : vector<16x128xf32>
    %57 = tpu.matmul %54, %56, %cst_34 {dimension_numbers = #tpu.dot_dimension_numbers<[1], [0], [0], [1], [0, 0, 1, 1], [], []>} : vector<16x128xf32>, vector<128x128xf32>, vector<16x128xf32> -> vector<16x128xf32>
    %58 = arith.addf %50, %57 : vector<16x128xf32>
    %c8_i32 = arith.constant 8 : i32
    %59 = arith.addi %1, %c8_i32 : i32
    %c0_35 = arith.constant 0 : index
    %60 = arith.index_cast %59 : i32 to index
    %c0_36 = arith.constant 0 : index
    %61 = vector.load %arg2[%c0_35, %60, %c0_36] : memref<1x34x128xf32, #tpu.memory_space<vmem>>, vector<1x16x128xf32>
    %62 = vector.shape_cast %61 : vector<1x16x128xf32> to vector<16x128xf32>
    %c7 = arith.constant 7 : index
    %c0_37 = arith.constant 0 : index
    %c0_38 = arith.constant 0 : index
    %63 = vector.load %arg3[%c7, %c0_37, %c0_38] : memref<16x128x128xf32, #tpu.memory_space<vmem>>, vector<1x128x128xf32>
    %64 = vector.shape_cast %63 : vector<1x128x128xf32> to vector<128x128xf32>
    %cst_39 = arith.constant dense<0.000000e+00> : vector<16x128xf32>
    %65 = tpu.matmul %62, %64, %cst_39 {dimension_numbers = #tpu.dot_dimension_numbers<[1], [0], [0], [1], [0, 0, 1, 1], [], []>} : vector<16x128xf32>, vector<128x128xf32>, vector<16x128xf32> -> vector<16x128xf32>
    %66 = arith.addf %58, %65 : vector<16x128xf32>
    %c10_i32 = arith.constant 10 : i32
    %67 = arith.addi %1, %c10_i32 : i32
    %c0_40 = arith.constant 0 : index
    %68 = arith.index_cast %67 : i32 to index
    %c0_41 = arith.constant 0 : index
    %69 = vector.load %arg2[%c0_40, %68, %c0_41] : memref<1x34x128xf32, #tpu.memory_space<vmem>>, vector<1x16x128xf32>
    %70 = vector.shape_cast %69 : vector<1x16x128xf32> to vector<16x128xf32>
    %c8 = arith.constant 8 : index
    %c0_42 = arith.constant 0 : index
    %c0_43 = arith.constant 0 : index
    %71 = vector.load %arg3[%c8, %c0_42, %c0_43] : memref<16x128x128xf32, #tpu.memory_space<vmem>>, vector<1x128x128xf32>
    %72 = vector.shape_cast %71 : vector<1x128x128xf32> to vector<128x128xf32>
    %cst_44 = arith.constant dense<0.000000e+00> : vector<16x128xf32>
    %73 = tpu.matmul %70, %72, %cst_44 {dimension_numbers = #tpu.dot_dimension_numbers<[1], [0], [0], [1], [0, 0, 1, 1], [], []>} : vector<16x128xf32>, vector<128x128xf32>, vector<16x128xf32> -> vector<16x128xf32>
    %74 = arith.addf %66, %73 : vector<16x128xf32>
    %c11_i32 = arith.constant 11 : i32
    %75 = arith.addi %1, %c11_i32 : i32
    %c0_45 = arith.constant 0 : index
    %76 = arith.index_cast %75 : i32 to index
    %c0_46 = arith.constant 0 : index
    %77 = vector.load %arg2[%c0_45, %76, %c0_46] : memref<1x34x128xf32, #tpu.memory_space<vmem>>, vector<1x16x128xf32>
    %78 = vector.shape_cast %77 : vector<1x16x128xf32> to vector<16x128xf32>
    %c9 = arith.constant 9 : index
    %c0_47 = arith.constant 0 : index
    %c0_48 = arith.constant 0 : index
    %79 = vector.load %arg3[%c9, %c0_47, %c0_48] : memref<16x128x128xf32, #tpu.memory_space<vmem>>, vector<1x128x128xf32>
    %80 = vector.shape_cast %79 : vector<1x128x128xf32> to vector<128x128xf32>
    %cst_49 = arith.constant dense<0.000000e+00> : vector<16x128xf32>
    %81 = tpu.matmul %78, %80, %cst_49 {dimension_numbers = #tpu.dot_dimension_numbers<[1], [0], [0], [1], [0, 0, 1, 1], [], []>} : vector<16x128xf32>, vector<128x128xf32>, vector<16x128xf32> -> vector<16x128xf32>
    %82 = arith.addf %74, %81 : vector<16x128xf32>
    %c12_i32 = arith.constant 12 : i32
    %83 = arith.addi %1, %c12_i32 : i32
    %c0_50 = arith.constant 0 : index
    %84 = arith.index_cast %83 : i32 to index
    %c0_51 = arith.constant 0 : index
    %85 = vector.load %arg2[%c0_50, %84, %c0_51] : memref<1x34x128xf32, #tpu.memory_space<vmem>>, vector<1x16x128xf32>
    %86 = vector.shape_cast %85 : vector<1x16x128xf32> to vector<16x128xf32>
    %c10 = arith.constant 10 : index
    %c0_52 = arith.constant 0 : index
    %c0_53 = arith.constant 0 : index
    %87 = vector.load %arg3[%c10, %c0_52, %c0_53] : memref<16x128x128xf32, #tpu.memory_space<vmem>>, vector<1x128x128xf32>
    %88 = vector.shape_cast %87 : vector<1x128x128xf32> to vector<128x128xf32>
    %cst_54 = arith.constant dense<0.000000e+00> : vector<16x128xf32>
    %89 = tpu.matmul %86, %88, %cst_54 {dimension_numbers = #tpu.dot_dimension_numbers<[1], [0], [0], [1], [0, 0, 1, 1], [], []>} : vector<16x128xf32>, vector<128x128xf32>, vector<16x128xf32> -> vector<16x128xf32>
    %90 = arith.addf %82, %89 : vector<16x128xf32>
    %c13_i32 = arith.constant 13 : i32
    %91 = arith.addi %1, %c13_i32 : i32
    %c0_55 = arith.constant 0 : index
    %92 = arith.index_cast %91 : i32 to index
    %c0_56 = arith.constant 0 : index
    %93 = vector.load %arg2[%c0_55, %92, %c0_56] : memref<1x34x128xf32, #tpu.memory_space<vmem>>, vector<1x16x128xf32>
    %94 = vector.shape_cast %93 : vector<1x16x128xf32> to vector<16x128xf32>
    %c11 = arith.constant 11 : index
    %c0_57 = arith.constant 0 : index
    %c0_58 = arith.constant 0 : index
    %95 = vector.load %arg3[%c11, %c0_57, %c0_58] : memref<16x128x128xf32, #tpu.memory_space<vmem>>, vector<1x128x128xf32>
    %96 = vector.shape_cast %95 : vector<1x128x128xf32> to vector<128x128xf32>
    %cst_59 = arith.constant dense<0.000000e+00> : vector<16x128xf32>
    %97 = tpu.matmul %94, %96, %cst_59 {dimension_numbers = #tpu.dot_dimension_numbers<[1], [0], [0], [1], [0, 0, 1, 1], [], []>} : vector<16x128xf32>, vector<128x128xf32>, vector<16x128xf32> -> vector<16x128xf32>
    %98 = arith.addf %90, %97 : vector<16x128xf32>
    %c15_i32 = arith.constant 15 : i32
    %99 = arith.addi %1, %c15_i32 : i32
    %c0_60 = arith.constant 0 : index
    %100 = arith.index_cast %99 : i32 to index
    %c0_61 = arith.constant 0 : index
    %101 = vector.load %arg2[%c0_60, %100, %c0_61] : memref<1x34x128xf32, #tpu.memory_space<vmem>>, vector<1x16x128xf32>
    %102 = vector.shape_cast %101 : vector<1x16x128xf32> to vector<16x128xf32>
    %c12 = arith.constant 12 : index
    %c0_62 = arith.constant 0 : index
    %c0_63 = arith.constant 0 : index
    %103 = vector.load %arg3[%c12, %c0_62, %c0_63] : memref<16x128x128xf32, #tpu.memory_space<vmem>>, vector<1x128x128xf32>
    %104 = vector.shape_cast %103 : vector<1x128x128xf32> to vector<128x128xf32>
    %cst_64 = arith.constant dense<0.000000e+00> : vector<16x128xf32>
    %105 = tpu.matmul %102, %104, %cst_64 {dimension_numbers = #tpu.dot_dimension_numbers<[1], [0], [0], [1], [0, 0, 1, 1], [], []>} : vector<16x128xf32>, vector<128x128xf32>, vector<16x128xf32> -> vector<16x128xf32>
    %106 = arith.addf %98, %105 : vector<16x128xf32>
    %c16_i32_65 = arith.constant 16 : i32
    %107 = arith.addi %1, %c16_i32_65 : i32
    %c0_66 = arith.constant 0 : index
    %108 = arith.index_cast %107 : i32 to index
    %c0_67 = arith.constant 0 : index
    %109 = vector.load %arg2[%c0_66, %108, %c0_67] : memref<1x34x128xf32, #tpu.memory_space<vmem>>, vector<1x16x128xf32>
    %110 = vector.shape_cast %109 : vector<1x16x128xf32> to vector<16x128xf32>
    %c13 = arith.constant 13 : index
    %c0_68 = arith.constant 0 : index
    %c0_69 = arith.constant 0 : index
    %111 = vector.load %arg3[%c13, %c0_68, %c0_69] : memref<16x128x128xf32, #tpu.memory_space<vmem>>, vector<1x128x128xf32>
    %112 = vector.shape_cast %111 : vector<1x128x128xf32> to vector<128x128xf32>
    %cst_70 = arith.constant dense<0.000000e+00> : vector<16x128xf32>
    %113 = tpu.matmul %110, %112, %cst_70 {dimension_numbers = #tpu.dot_dimension_numbers<[1], [0], [0], [1], [0, 0, 1, 1], [], []>} : vector<16x128xf32>, vector<128x128xf32>, vector<16x128xf32> -> vector<16x128xf32>
    %114 = arith.addf %106, %113 : vector<16x128xf32>
    %c17_i32 = arith.constant 17 : i32
    %115 = arith.addi %1, %c17_i32 : i32
    %c0_71 = arith.constant 0 : index
    %116 = arith.index_cast %115 : i32 to index
    %c0_72 = arith.constant 0 : index
    %117 = vector.load %arg2[%c0_71, %116, %c0_72] : memref<1x34x128xf32, #tpu.memory_space<vmem>>, vector<1x16x128xf32>
    %118 = vector.shape_cast %117 : vector<1x16x128xf32> to vector<16x128xf32>
    %c14 = arith.constant 14 : index
    %c0_73 = arith.constant 0 : index
    %c0_74 = arith.constant 0 : index
    %119 = vector.load %arg3[%c14, %c0_73, %c0_74] : memref<16x128x128xf32, #tpu.memory_space<vmem>>, vector<1x128x128xf32>
    %120 = vector.shape_cast %119 : vector<1x128x128xf32> to vector<128x128xf32>
    %cst_75 = arith.constant dense<0.000000e+00> : vector<16x128xf32>
    %121 = tpu.matmul %118, %120, %cst_75 {dimension_numbers = #tpu.dot_dimension_numbers<[1], [0], [0], [1], [0, 0, 1, 1], [], []>} : vector<16x128xf32>, vector<128x128xf32>, vector<16x128xf32> -> vector<16x128xf32>
    %122 = arith.addf %114, %121 : vector<16x128xf32>
    %c18_i32 = arith.constant 18 : i32
    %123 = arith.addi %1, %c18_i32 : i32
    %c0_76 = arith.constant 0 : index
    %124 = arith.index_cast %123 : i32 to index
    %c0_77 = arith.constant 0 : index
    %125 = vector.load %arg2[%c0_76, %124, %c0_77] : memref<1x34x128xf32, #tpu.memory_space<vmem>>, vector<1x16x128xf32>
    %126 = vector.shape_cast %125 : vector<1x16x128xf32> to vector<16x128xf32>
    %c15 = arith.constant 15 : index
    %c0_78 = arith.constant 0 : index
    %c0_79 = arith.constant 0 : index
    %127 = vector.load %arg3[%c15, %c0_78, %c0_79] : memref<16x128x128xf32, #tpu.memory_space<vmem>>, vector<1x128x128xf32>
    %128 = vector.shape_cast %127 : vector<1x128x128xf32> to vector<128x128xf32>
    %cst_80 = arith.constant dense<0.000000e+00> : vector<16x128xf32>
    %129 = tpu.matmul %126, %128, %cst_80 {dimension_numbers = #tpu.dot_dimension_numbers<[1], [0], [0], [1], [0, 0, 1, 1], [], []>} : vector<16x128xf32>, vector<128x128xf32>, vector<16x128xf32> -> vector<16x128xf32>
    %130 = arith.addf %122, %129 : vector<16x128xf32>
    %c0_81 = arith.constant 0 : index
    %c0_82 = arith.constant 0 : index
    %131 = vector.load %arg4[%c0_81, %c0_82] : memref<1x128xf32, #tpu.memory_space<vmem>>, vector<1x128xf32>
    %132 = vector.broadcast %131 : vector<1x128xf32> to vector<16x128xf32>
    %133 = arith.addf %130, %132 : vector<16x128xf32>
    %c0_83 = arith.constant 0 : index
    %c0_84 = arith.constant 0 : index
    %c0_85 = arith.constant 0 : index
    %134 = vector.load %arg5[%c0_83, %c0_84, %c0_85] : memref<1x16x128xf32, #tpu.memory_space<vmem>>, vector<1x16x128xf32>
    %135 = vector.shape_cast %134 : vector<1x16x128xf32> to vector<16x128xf32>
    %136 = vector.shape_cast %133 : vector<16x128xf32> to vector<1x16x128xf32>
    tpu.vector_store %arg5[%c0_83, %c0_84, %c0_85], %136 {strides = array<i32>} : memref<1x16x128xf32, #tpu.memory_space<vmem>>, vector<1x16x128xf32>,
    return
  }
  func.func @transform_0(%arg0: i32, %arg1: i32) -> (i32, i32, i32) {
    %c0_i32 = arith.constant 0 : i32
    %c0_i32_0 = arith.constant 0 : i32
    %c0_i32_1 = arith.constant 0 : i32
    return %arg0, %c0_i32, %c0_i32_0 : i32, i32, i32
  }
  func.func @transform_1(%arg0: i32, %arg1: i32) -> (i32, i32, i32) {
    %c0_i32 = arith.constant 0 : i32
    %c0_i32_0 = arith.constant 0 : i32
    %c0_i32_1 = arith.constant 0 : i32
    %c0_i32_2 = arith.constant 0 : i32
    return %c0_i32, %c0_i32_0, %c0_i32_1 : i32, i32, i32
  }
  func.func @transform_2(%arg0: i32, %arg1: i32) -> (i32, i32) {
    %c0_i32 = arith.constant 0 : i32
    %c0_i32_0 = arith.constant 0 : i32
    %c0_i32_1 = arith.constant 0 : i32
    return %c0_i32, %c0_i32_0 : i32, i32
  }
  func.func @transform_3(%arg0: i32, %arg1: i32) -> (i32, i32, i32) {
    %c0_i32 = arith.constant 0 : i32
    %c0_i32_0 = arith.constant 0 : i32
    return %arg0, %arg1, %c0_i32 : i32, i32, i32
  }
}

module attributes {stable_mosaic.version = 11 : i64} {
  func.func @_instnorm_kernel(%arg0: i32, %arg1: i32, %arg2: memref<1x24x128xf32, #tpu.memory_space<vmem>>, %arg3: memref<1x1x128xf32, #tpu.memory_space<vmem>>, %arg4: memref<1x1x128xf32, #tpu.memory_space<vmem>>, %arg5: memref<1x24x128xf32, #tpu.memory_space<vmem>>) attributes {dimension_semantics = [#tpu.dimension_semantics<parallel>, #tpu.dimension_semantics<parallel>], iteration_bounds = array<i64: 2, 1>, scalar_prefetch = 0 : i64, scratch_operands = 0 : i64, tpu.core_type = #tpu.core_type<tc>, window_params = [{transform_indices = @transform_0, window_bounds = array<i64: 1, 24, 128>}, {transform_indices = @transform_1, window_bounds = array<i64: 1, 1, 128>}, {transform_indices = @transform_2, window_bounds = array<i64: 1, 1, 128>}, {transform_indices = @transform_3, window_bounds = array<i64: 1, 24, 128>}]} {
    %c0 = arith.constant 0 : index
    %c0_0 = arith.constant 0 : index
    %c0_1 = arith.constant 0 : index
    %0 = vector.load %arg2[%c0, %c0_0, %c0_1] : memref<1x24x128xf32, #tpu.memory_space<vmem>>, vector<1x24x128xf32>
    %1 = vector.shape_cast %0 : vector<1x24x128xf32> to vector<24x128xf32>
    %c0_2 = arith.constant 0 : index
    %c0_3 = arith.constant 0 : index
    %c0_4 = arith.constant 0 : index
    %2 = vector.load %arg3[%c0_2, %c0_3, %c0_4] : memref<1x1x128xf32, #tpu.memory_space<vmem>>, vector<1x1x128xf32>
    %3 = vector.shape_cast %2 : vector<1x1x128xf32> to vector<1x128xf32>
    %cst = arith.constant 0.111111112 : f32
    %4 = vector.broadcast %cst : f32 to vector<1x128xf32>
    %5 = arith.mulf %3, %4 : vector<1x128xf32>
    %c0_5 = arith.constant 0 : index
    %c0_6 = arith.constant 0 : index
    %c0_7 = arith.constant 0 : index
    %6 = vector.load %arg4[%c0_5, %c0_6, %c0_7] : memref<1x1x128xf32, #tpu.memory_space<vmem>>, vector<1x1x128xf32>
    %7 = vector.shape_cast %6 : vector<1x1x128xf32> to vector<1x128xf32>
    %cst_8 = arith.constant 0.111111112 : f32
    %8 = vector.broadcast %cst_8 : f32 to vector<1x128xf32>
    %9 = arith.mulf %7, %8 : vector<1x128xf32>
    %10 = arith.mulf %5, %5 : vector<1x128xf32>
    %11 = arith.subf %9, %10 : vector<1x128xf32>
    %cst_9 = arith.constant 0.000000e+00 : f32
    %12 = vector.broadcast %cst_9 : f32 to vector<1x128xf32>
    %13 = arith.maximumf %11, %12 : vector<1x128xf32>
    %cst_10 = arith.constant 9.99999974E-6 : f32
    %14 = vector.broadcast %cst_10 : f32 to vector<1x128xf32>
    %15 = arith.addf %13, %14 : vector<1x128xf32>
    %16 = math.rsqrt %15 : vector<1x128xf32>
    %17 = vector.broadcast %5 : vector<1x128xf32> to vector<24x128xf32>
    %18 = arith.subf %1, %17 : vector<24x128xf32>
    %19 = vector.broadcast %16 : vector<1x128xf32> to vector<24x128xf32>
    %20 = arith.mulf %18, %19 : vector<24x128xf32>
    %cst_11 = arith.constant 0.000000e+00 : f32
    %21 = vector.broadcast %cst_11 : f32 to vector<24x128xf32>
    %22 = arith.cmpf oge, %20, %21 : vector<24x128xf32>
    %cst_12 = arith.constant 2.000000e-01 : f32
    %23 = vector.broadcast %cst_12 : f32 to vector<24x128xf32>
    %24 = arith.mulf %23, %20 : vector<24x128xf32>
    %25 = arith.select %22, %20, %24 : vector<24x128xi1>, vector<24x128xf32>
    %c0_13 = arith.constant 0 : index
    %c0_14 = arith.constant 0 : index
    %c0_15 = arith.constant 0 : index
    %26 = vector.load %arg5[%c0_13, %c0_14, %c0_15] : memref<1x24x128xf32, #tpu.memory_space<vmem>>, vector<1x24x128xf32>
    %27 = vector.shape_cast %26 : vector<1x24x128xf32> to vector<24x128xf32>
    %28 = vector.shape_cast %25 : vector<24x128xf32> to vector<1x24x128xf32>
    tpu.vector_store %arg5[%c0_13, %c0_14, %c0_15], %28 {strides = array<i32>} : memref<1x24x128xf32, #tpu.memory_space<vmem>>, vector<1x24x128xf32>,
    return
  }
  func.func @transform_0(%arg0: i32, %arg1: i32) -> (i32, i32, i32) {
    %c0_i32 = arith.constant 0 : i32
    %c0_i32_0 = arith.constant 0 : i32
    return %arg0, %arg1, %c0_i32 : i32, i32, i32
  }
  func.func @transform_1(%arg0: i32, %arg1: i32) -> (i32, i32, i32) {
    %c0_i32 = arith.constant 0 : i32
    %c0_i32_0 = arith.constant 0 : i32
    %c0_i32_1 = arith.constant 0 : i32
    return %arg0, %c0_i32, %c0_i32_0 : i32, i32, i32
  }
  func.func @transform_2(%arg0: i32, %arg1: i32) -> (i32, i32, i32) {
    %c0_i32 = arith.constant 0 : i32
    %c0_i32_0 = arith.constant 0 : i32
    %c0_i32_1 = arith.constant 0 : i32
    return %arg0, %c0_i32, %c0_i32_0 : i32, i32, i32
  }
  func.func @transform_3(%arg0: i32, %arg1: i32) -> (i32, i32, i32) {
    %c0_i32 = arith.constant 0 : i32
    %c0_i32_0 = arith.constant 0 : i32
    return %arg0, %arg1, %c0_i32 : i32, i32, i32
  }
}

</mosaic_0001>

<llo_original>
// kernel: _lambda_.8
$region0: #{_lambda_.8}
  #allocation0 [shape = 'u32[]', space=smem, size = 0x4, offset = 0x4, fixed_abs, tag = 'smem constant byte address 0x4 - core index']
  #allocation1 [shape = 'u32[144,128]{1,0:T(1,128)}', space=vmem, size = 0x12000, scoped, tag = 'internal scratch']
  %s0 = inlined_call_operand.vmem [shape: f32[2,338,128], index: 0, kind: input, shape index: {}]
  %s1 = inlined_call_operand.vmem [shape: f32[4,128,128], index: 1, kind: input, shape index: {}]
  %s2 = inlined_call_operand.vmem [shape: f32[1,128], index: 2, kind: input, shape index: {}]
  %s3 = inlined_call_operand.vmem [shape: f32[2,320,128], index: 3, kind: output, shape index: {}]
  %s4 = sld [smem:[#allocation0]]
  $region45: #{_lambda_.8} parent=0
    _
  %s6 = ssub.s32 1, %s4
  %s7 = scalar_select 0, %s6, %s4
  loop: start=0, step=1, limit=12
  $region2: #{_lambda_.8} parent=0 // loop_pre_header
    _
  $region3: #{_lambda_.8} parent=0 // loop_header
    %s9 = sphi 0, %s13
    %p10 = scmp.ge.s32.totalorder %s9, 12
    %s16 = sphi 0, %s28
    %s17 = sphi 0, %s24
    %s18 = sphi 0, %s16
    %s19 = sphi 0, %s17
    %s20 = sphi 0, %s18
    %s21 = sphi 0, %s19
    %s31 = sphi 0, %s33
    %s34 = sphi 0, %s31
    %s35 = sphi 0, %s34
    %s51 = sphi 0, %s35
    %s55 = sphi 0, %s55
    %s57 = sphi 0, %s55
    %s58 = sphi 0, %s57
    %s72 = sphi 0, %s58
    %s76 = sphi 0, %s76
    %s78 = sphi 0, %s76
    %s79 = sphi 0, %s78
    %s93 = sphi 0, %s79
    %s101 = sphi 0, %s103
    %s104 = sphi 0, %s101
    %s105 = sphi 0, %s104
    %s121 = sphi 0, %s105
  $region4: #{_lambda_.8} parent=0 // loop_header_branch
    %12 = sbr.rel (%p10) target = $region8
  $region5: #{_lambda_.8} parent=0 // loop_body
    %s14 = ssub.s32 %s9, 1
    %s15 = ssub.s32 %s9, 2
    %s22 = sadd.s32 1, %s17
    %p23 = scmp.ge.s32.totalorder %s22, 5
    %s24 = scalar_select %p23, 0, %s22
    %s25 = sadd.s32 1, %s16
    %s26 = scalar_select %p23, %s25, %s16
    %p27 = scmp.ge.s32.totalorder %s26, 2
    %s28 = scalar_select %p27, 0, %s26
    %s29 = ssub.s32 %s16, %s28
    %p30 = scmp.eq.s32.totalorder %s29, 0
    %s32 = sadd.s32 %s31, 1
    %s33 = scalar_select %p30, %s31, %s32
    %p36 = pneg %p30
    %p37 = scmp.eq.s32.totalorder %s9, 9
    %p38 = por %p36, %p37
    %p39 = scmp.ne.s32.totalorder %s31, %s34
    %p40 = scmp.eq.s32.totalorder %s9, 0
    %p41 = por %p39, %p40
    %p42 = scmp.ne.s32.totalorder %s31, %s34
    %p43 = scmp.eq.s32.totalorder %s14, 9
    %p44 = por %p42, %p43
    %p45 = scmp.ne.s32.totalorder %s34, %s35
    %p46 = scmp.eq.s32.totalorder %s14, 0
    %p47 = por %p45, %p46
    %p48 = scmp.ne.s32.totalorder %s34, %s35
    %p49 = scmp.eq.s32.totalorder %s15, 9
    %p50 = por %p48, %p49
    %p52 = scmp.ne.s32.totalorder %s35, %s51
    %p53 = scmp.eq.s32.totalorder %s15, 0
    %p54 = por %p52, %p53
    %s56 = sadd.s32 %s55, 1
    %p59 = scmp.eq.s32.totalorder %s9, 9
    %p60 = scmp.ne.s32.totalorder %s55, %s57
    %p61 = scmp.eq.s32.totalorder %s9, 0
    %p62 = por %p60, %p61
    %p63 = scmp.ne.s32.totalorder %s55, %s57
    %p64 = scmp.eq.s32.totalorder %s14, 9
    %p65 = por %p63, %p64
    %p66 = scmp.ne.s32.totalorder %s57, %s58
    %p67 = scmp.eq.s32.totalorder %s14, 0
    %p68 = por %p66, %p67
    %p69 = scmp.ne.s32.totalorder %s57, %s58
    %p70 = scmp.eq.s32.totalorder %s15, 9
    %p71 = por %p69, %p70
    %p73 = scmp.ne.s32.totalorder %s58, %s72
    %p74 = scmp.eq.s32.totalorder %s15, 0
    %p75 = por %p73, %p74
    %s77 = sadd.s32 %s76, 1
    %p80 = scmp.eq.s32.totalorder %s9, 9
    %p81 = scmp.ne.s32.totalorder %s76, %s78
    %p82 = scmp.eq.s32.totalorder %s9, 0
    %p83 = por %p81, %p82
    %p84 = scmp.ne.s32.totalorder %s76, %s78
    %p85 = scmp.eq.s32.totalorder %s14, 9
    %p86 = por %p84, %p85
    %p87 = scmp.ne.s32.totalorder %s78, %s79
    %p88 = scmp.eq.s32.totalorder %s14, 0
    %p89 = por %p87, %p88
    %p90 = scmp.ne.s32.totalorder %s78, %s79
    %p91 = scmp.eq.s32.totalorder %s15, 9
    %p92 = por %p90, %p91
    %p94 = scmp.ne.s32.totalorder %s79, %s93
    %p95 = scmp.eq.s32.totalorder %s15, 0
    %p96 = por %p94, %p95
    %s97 = ssub.s32 %s16, %s28
    %s98 = ssub.s32 %s17, %s24
    %s99 = sor.u32 %s97, %s98
    %p100 = scmp.eq.s32.totalorder %s99, 0
    %s102 = sadd.s32 %s101, 1
    %s103 = scalar_select %p100, %s101, %s102
    %p106 = pneg %p100
    %p107 = scmp.eq.s32.totalorder %s9, 9
    %p108 = por %p106, %p107
    %p109 = scmp.ne.s32.totalorder %s101, %s104
    %p110 = scmp.eq.s32.totalorder %s9, 0
    %p111 = por %p109, %p110
    %p112 = scmp.ne.s32.totalorder %s101, %s104
    %p113 = scmp.eq.s32.totalorder %s14, 9
    %p114 = por %p112, %p113
    %p115 = scmp.ne.s32.totalorder %s104, %s105
    %p116 = scmp.eq.s32.totalorder %s14, 0
    %p117 = por %p115, %p116
    %p118 = scmp.ne.s32.totalorder %s104, %s105
    %p119 = scmp.eq.s32.totalorder %s15, 9
    %p120 = por %p118, %p119
    %p122 = scmp.ne.s32.totalorder %s105, %s121
    %p123 = scmp.eq.s32.totalorder %s15, 0
    %p124 = por %p122, %p123
    %p125 = scmp.le.s32.totalorder 1, %s9
    %p126 = scmp.lt.s32.totalorder %s9, 11
    %p127 = pnand %p125, %p126
    %p128 = pneg %p127
    // Predicated region
    $region9: #{_lambda_.8} parent=5 // pred_check
      _
    $region10: #{_lambda_.8} parent=5 // pred_check_branch
      %130 = sbr.rel (%p127) target = $region12
    $region11: #{_lambda_.8} parent=5 // pred_region
      %s131 = ssub.s32 %s9, 1
      // Predicated region
      $region13: #{_lambda_.8} parent=11 // pred_check
        %p132 = pneg %p68
      $region14: #{_lambda_.8} parent=11 // pred_check_branch
        %134 = sbr.rel (%p132) target = $region16
      $region15: #{_lambda_.8} parent=11 // pred_region
        _
      $region16: #{_lambda_.8} parent=11 // pred_fallthru
        _
      // Predicated region
      $region17: #{_lambda_.8} parent=11 // pred_check
        %p135 = pneg %p89
      $region18: #{_lambda_.8} parent=11 // pred_check_branch
        %137 = sbr.rel (%p135) target = $region20
      $region19: #{_lambda_.8} parent=11 // pred_region
        _
      $region20: #{_lambda_.8} parent=11 // pred_fallthru
        _
    $region12: #{_lambda_.8} parent=5 // pred_fallthru
      _
    %p138 = scmp.lt.s32.totalorder %s9, 10
    // Predicated region
    $region21: #{_lambda_.8} parent=5 // pred_check
      %p139 = pneg %p138
    $region22: #{_lambda_.8} parent=5 // pred_check_branch
      %141 = sbr.rel (%p139) target = $region24
    $region23: #{_lambda_.8} parent=5 // pred_region
      // Predicated region
      $region25: #{_lambda_.8} parent=23 // pred_check
        %p142 = pneg %p41
      $region26: #{_lambda_.8} parent=23 // pred_check_branch
        %144 = sbr.rel (%p142) target = $region28
      $region27: #{_lambda_.8} parent=23 // pred_region
        %p145 = scmp.lt.s32.totalorder %s16, 1
        %s146 = scalar_select %p145, %s16, 1
        %s147 = smul.addr %s146, 43
        %s148 = smul.addr %s147, 8
        %s149 = scalar_lea.vmem %s0, %s148
      $region28: #{_lambda_.8} parent=23 // pred_fallthru
        _
    $region24: #{_lambda_.8} parent=5 // pred_fallthru
      _
    %p150 = scmp.le.s32.totalorder 1, %s9
    %p151 = scmp.lt.s32.totalorder %s9, 11
    %p152 = pnand %p150, %p151
    %p153 = pneg %p152
    // Predicated region
    $region29: #{_lambda_.8} parent=5 // pred_check
      _
    $region30: #{_lambda_.8} parent=5 // pred_check_branch
      %155 = sbr.rel (%p152) target = $region32
    $region31: #{_lambda_.8} parent=5 // pred_region
      %s156 = ssub.s32 %s9, 1
      %p157 = scmp.lt.s32.totalorder %s18, 1
      %s158 = scalar_select %p157, %s18, 1
      %s159 = smul.addr %s158, 43
      %s160 = smul.addr %s159, 8
      %s161 = scalar_lea.vmem %s0, %s160
      %p162 = pneg %p47
      %p163 = pneg %p44
      %p164 = pneg %p68
      %p165 = pneg %p65
      %p166 = pneg %p89
      %p167 = pneg %p86
      %p168 = pneg %p117
      %p169 = pneg %p114
      %s170 = smul.u32 8, %s19
      %p171 = scmp.lt.s32.totalorder %s18, 1
      %s172 = scalar_select %p171, %s18, 1
      %p173 = scmp.lt.s32.totalorder %s170, 39
      %s174 = scalar_select %p173, %s170, 39
      %s175 = smul.addr %s172, 40
      %s176 = sadd.s32 %s174, %s175
      %s177 = smul.addr %s176, 8
      %s178 = scalar_lea.vmem %s3, %s177
      %p179 = scmp.lt.s32.totalorder %s18, 1
      %s180 = scalar_select %p179, %s18, 1
      %s181 = smul.addr %s180, 43
      %s182 = smul.addr %s181, 8
      %s183 = scalar_lea.vmem %s0, %s182
      %s184 = smul.u32 8, %s19
      %p185 = scmp.lt.s32.totalorder %s18, 1
      %s186 = scalar_select %p185, %s18, 1
      %p187 = scmp.lt.s32.totalorder %s184, 39
      %s188 = scalar_select %p187, %s184, 39
      %s189 = smul.addr %s186, 40
      %s190 = sadd.s32 %s188, %s189
      %s191 = smul.addr %s190, 8
      %s192 = scalar_lea.vmem %s3, %s191
      %s193 = smul.u32 8, %s19
      %s194 = smul.u32 %s19, 64
      %s195 = scalar_lea.vmem %s183, %s194
      %v196 = vld [vmem:[%s195] sm:$0xff]
      %v197 = vld [vmem:[%s195 + $0x8] sm:$0xff]
      %v198 = vld [vmem:[%s195 + $0x10] sm:$0xff]
      %v199 = vld [vmem:[%s195 + $0x18] sm:$0xff]
      %v200 = vld [vmem:[%s195 + $0x20] sm:$0xff]
      %v201 = vld [vmem:[%s195 + $0x28] sm:$0xff]
      %v202 = vld [vmem:[%s195 + $0x30] sm:$0xff]
      %v203 = vld [vmem:[%s195 + $0x38] sm:$0xff]
      %v204 = vld [vmem:[%s1] sm:$0xff]
      %v205 = vld [vmem:[%s1 + $0x8] sm:$0xff]
      %v206 = vld [vmem:[%s1 + $0x10] sm:$0xff]
      %v207 = vld [vmem:[%s1 + $0x18] sm:$0xff]
      %v208 = vld [vmem:[%s1 + $0x20] sm:$0xff]
      %v209 = vld [vmem:[%s1 + $0x28] sm:$0xff]
      %v210 = vld [vmem:[%s1 + $0x30] sm:$0xff]
      %v211 = vld [vmem:[%s1 + $0x38] sm:$0xff]
      %v212 = vld [vmem:[%s1 + $0x40] sm:$0xff]
      %v213 = vld [vmem:[%s1 + $0x48] sm:$0xff]
      %v214 = vld [vmem:[%s1 + $0x50] sm:$0xff]
      %v215 = vld [vmem:[%s1 + $0x58] sm:$0xff]
      %v216 = vld [vmem:[%s1 + $0x60] sm:$0xff]
      %v217 = vld [vmem:[%s1 + $0x68] sm:$0xff]
      %v218 = vld [vmem:[%s1 + $0x70] sm:$0xff]
      %v219 = vld [vmem:[%s1 + $0x78] sm:$0xff]
      %s220 = sadd.s32 %s194, 1
      %s221 = scalar_lea.vmem %s183, %s220
      %v222 = vld [vmem:[%s221] sm:$0xff]
      %v223 = vld [vmem:[%s221 + $0x8] sm:$0xff]
      %v224 = vld [vmem:[%s221 + $0x10] sm:$0xff]
      %v225 = vld [vmem:[%s221 + $0x18] sm:$0xff]
      %v226 = vld [vmem:[%s221 + $0x20] sm:$0xff]
      %v227 = vld [vmem:[%s221 + $0x28] sm:$0xff]
      %v228 = vld [vmem:[%s221 + $0x30] sm:$0xff]
      %v229 = vld [vmem:[%s221 + $0x38] sm:$0xff]
      %s230 = scalar_lea.vmem %s1, 128
      %v231 = vld [vmem:[%s230] sm:$0xff]
      %v232 = vld [vmem:[%s230 + $0x8] sm:$0xff]
      %v233 = vld [vmem:[%s230 + $0x10] sm:$0xff]
      %v234 = vld [vmem:[%s230 + $0x18] sm:$0xff]
      %v235 = vld [vmem:[%s230 + $0x20] sm:$0xff]
      %v236 = vld [vmem:[%s230 + $0x28] sm:$0xff]
      %v237 = vld [vmem:[%s230 + $0x30] sm:$0xff]
      %v238 = vld [vmem:[%s230 + $0x38] sm:$0xff]
      %v239 = vld [vmem:[%s230 + $0x40] sm:$0xff]
      %v240 = vld [vmem:[%s230 + $0x48] sm:$0xff]
      %v241 = vld [vmem:[%s230 + $0x50] sm:$0xff]
      %v242 = vld [vmem:[%s230 + $0x58] sm:$0xff]
      %v243 = vld [vmem:[%s230 + $0x60] sm:$0xff]
      %v244 = vld [vmem:[%s230 + $0x68] sm:$0xff]
      %v245 = vld [vmem:[%s230 + $0x70] sm:$0xff]
      %v246 = vld [vmem:[%s230 + $0x78] sm:$0xff]
      %247 = vmatprep.subr.mxu0 0.0
      %248 = vmatpush1.msra.mxu0 %v246
      %249 = vmatprep.subr.mxu0 0.0
      %250 = vmatpush1.msra.mxu0 %v245
      %251 = vmatprep.subr.mxu0 0.0
      %252 = vmatpush1.msra.mxu0 %v244
      %253 = vmatprep.subr.mxu0 0.0
      %254 = vmatpush1.msra.mxu0 %v243
      %255 = vmatprep.subr.mxu0 0.0
      %256 = vmatpush1.msra.mxu0 %v242
      %257 = vmatprep.subr.mxu0 0.0
      %258 = vmatpush1.msra.mxu0 %v241
      %259 = vmatprep.subr.mxu0 0.0
      %260 = vmatpush1.msra.mxu0 %v240
      %261 = vmatprep.subr.mxu0 0.0
      %262 = vmatpush1.msra.mxu0 %v239
      %263 = vmatprep.subr.mxu0 0.0
      %264 = vmatpush1.msra.mxu0 %v238
      %265 = vmatprep.subr.mxu0 0.0
      %266 = vmatpush1.msra.mxu0 %v237
      %267 = vmatprep.subr.mxu0 0.0
      %268 = vmatpush1.msra.mxu0 %v236
      %269 = vmatprep.subr.mxu0 0.0
      %270 = vmatpush1.msra.mxu0 %v235
      %271 = vmatprep.subr.mxu0 0.0
      %272 = vmatpush1.msra.mxu0 %v234
      %273 = vmatprep.subr.mxu0 0.0
      %274 = vmatpush1.msra.mxu0 %v233
      %275 = vmatprep.subr.mxu0 0.0
      %276 = vmatpush1.msra.mxu0 %v232
      %277 = vmatprep.subr.mxu0 0.0
      %278 = vmatpush1.msra.mxu0 %v231
      %279 = vmatprep.subr.mxu0 0.0
      %280 = vmatpush2.msra.mxu0 0.0
      %281 = vmatprep.subr.mxu0 0.0
      %282 = vmatpush2.msra.mxu0 0.0
      %283 = vmatprep.subr.mxu0 0.0
      %284 = vmatpush2.msra.mxu0 0.0
      %285 = vmatprep.subr.mxu0 0.0
      %286 = vmatpush2.msra.mxu0 0.0
      %287 = vmatprep.subr.mxu0 0.0
      %288 = vmatpush2.msra.mxu0 0.0
      %289 = vmatprep.subr.mxu0 0.0
      %290 = vmatpush2.msra.mxu0 0.0
      %291 = vmatprep.subr.mxu0 0.0
      %292 = vmatpush2.msra.mxu0 0.0
      %293 = vmatprep.subr.mxu0 0.0
      %294 = vmatpush2.msra.mxu0 0.0
      %295 = vmatprep.subr.mxu0 0.0
      %296 = vmatpush2.msra.mxu0 0.0
      %297 = vmatprep.subr.mxu0 0.0
      %298 = vmatpush2.msra.mxu0 0.0
      %299 = vmatprep.subr.mxu0 0.0
      %300 = vmatpush2.msra.mxu0 0.0
      %301 = vmatprep.subr.mxu0 0.0
      %302 = vmatpush2.msra.mxu0 0.0
      %303 = vmatprep.subr.mxu0 0.0
      %304 = vmatpush2.msra.mxu0 0.0
      %305 = vmatprep.subr.mxu0 0.0
      %306 = vmatpush2.msra.mxu0 0.0
      %307 = vmatprep.subr.mxu0 0.0
      %308 = vmatpush2.msra.mxu0 0.0
      %309 = vmatprep.subr.mxu0 0.0
      %310 = vmatpush2.msra.mxu0 0.0
      %311 = vmatprep.mubr.f32.mxu0 0.0
      %312 = vmatmul.mubr.f32.gmra.mxu0 %v222
      %v313 = vpop.f32.mrf.mxu0
      %v314 = vadd.f32 0.0, %v313
      %v315 = vpop.f32.mrf.mxu0
      %316 = vmatprep.mubr.f32.mxu0 0.0
      %317 = vmatmul.mubr.f32.gmra.mxu0 %v223
      %v318 = vpop.f32.mrf.mxu0
      %v319 = vadd.f32 0.0, %v318
      %v320 = vpop.f32.mrf.mxu0
      %321 = vmatprep.mubr.f32.mxu0 0.0
      %322 = vmatmul.mubr.f32.gmra.mxu0 %v224
      %v323 = vpop.f32.mrf.mxu0
      %v324 = vadd.f32 0.0, %v323
      %v325 = vpop.f32.mrf.mxu0
      %326 = vmatprep.mubr.f32.mxu0 0.0
      %327 = vmatmul.mubr.f32.gmra.mxu0 %v225
      %v328 = vpop.f32.mrf.mxu0
      %v329 = vadd.f32 0.0, %v328
      %v330 = vpop.f32.mrf.mxu0
      %331 = vmatprep.mubr.f32.mxu0 0.0
      %332 = vmatmul.mubr.f32.gmra.mxu0 %v226
      %v333 = vpop.f32.mrf.mxu0
      %v334 = vadd.f32 0.0, %v333
      %v335 = vpop.f32.mrf.mxu0
      %336 = vmatprep.mubr.f32.mxu0 0.0
      %337 = vmatmul.mubr.f32.gmra.mxu0 %v227
      %v338 = vpop.f32.mrf.mxu0
      %v339 = vadd.f32 0.0, %v338
      %v340 = vpop.f32.mrf.mxu0
      %341 = vmatprep.mubr.f32.mxu0 0.0
      %342 = vmatmul.mubr.f32.gmra.mxu0 %v228
      %v343 = vpop.f32.mrf.mxu0
      %v344 = vadd.f32 0.0, %v343
      %v345 = vpop.f32.mrf.mxu0
      %346 = vmatprep.mubr.f32.mxu0 0.0
      %347 = vmatmul.mubr.f32.gmra.mxu0 %v229
      %v348 = vpop.f32.mrf.mxu0
      %v349 = vadd.f32 0.0, %v348
      %v350 = vpop.f32.mrf.mxu0
      %351 = vdwg.mxu0
      %352 = vmatprep.subr.mxu0 0.0
      %353 = vmatpush1.msra.mxu0 %v219
      %354 = vmatprep.subr.mxu0 0.0
      %355 = vmatpush1.msra.mxu0 %v218
      %356 = vmatprep.subr.mxu0 0.0
      %357 = vmatpush1.msra.mxu0 %v217
      %358 = vmatprep.subr.mxu0 0.0
      %359 = vmatpush1.msra.mxu0 %v216
      %360 = vmatprep.subr.mxu0 0.0
      %361 = vmatpush1.msra.mxu0 %v215
      %362 = vmatprep.subr.mxu0 0.0
      %363 = vmatpush1.msra.mxu0 %v214
      %364 = vmatprep.subr.mxu0 0.0
      %365 = vmatpush1.msra.mxu0 %v213
      %366 = vmatprep.subr.mxu0 0.0
      %367 = vmatpush1.msra.mxu0 %v212
      %368 = vmatprep.subr.mxu0 0.0
      %369 = vmatpush1.msra.mxu0 %v211
      %370 = vmatprep.subr.mxu0 0.0
      %371 = vmatpush1.msra.mxu0 %v210
      %372 = vmatprep.subr.mxu0 0.0
      %373 = vmatpush1.msra.mxu0 %v209
      %374 = vmatprep.subr.mxu0 0.0
      %375 = vmatpush1.msra.mxu0 %v208
      %376 = vmatprep.subr.mxu0 0.0
      %377 = vmatpush1.msra.mxu0 %v207
      %378 = vmatprep.subr.mxu0 0.0
      %379 = vmatpush1.msra.mxu0 %v206
      %380 = vmatprep.subr.mxu0 0.0
      %381 = vmatpush1.msra.mxu0 %v205
      %382 = vmatprep.subr.mxu0 0.0
      %383 = vmatpush1.msra.mxu0 %v204
      %384 = vmatprep.subr.mxu0 0.0
      %385 = vmatpush2.msra.mxu0 0.0
      %386 = vmatprep.subr.mxu0 0.0
      %387 = vmatpush2.msra.mxu0 0.0
      %388 = vmatprep.subr.mxu0 0.0
      %389 = vmatpush2.msra.mxu0 0.0
      %390 = vmatprep.subr.mxu0 0.0
      %391 = vmatpush2.msra.mxu0 0.0
      %392 = vmatprep.subr.mxu0 0.0
      %393 = vmatpush2.msra.mxu0 0.0
      %394 = vmatprep.subr.mxu0 0.0
      %395 = vmatpush2.msra.mxu0 0.0
      %396 = vmatprep.subr.mxu0 0.0
      %397 = vmatpush2.msra.mxu0 0.0
      %398 = vmatprep.subr.mxu0 0.0
      %399 = vmatpush2.msra.mxu0 0.0
      %400 = vmatprep.subr.mxu0 0.0
      %401 = vmatpush2.msra.mxu0 0.0
      %402 = vmatprep.subr.mxu0 0.0
      %403 = vmatpush2.msra.mxu0 0.0
      %404 = vmatprep.subr.mxu0 0.0
      %405 = vmatpush2.msra.mxu0 0.0
      %406 = vmatprep.subr.mxu0 0.0
      %407 = vmatpush2.msra.mxu0 0.0
      %408 = vmatprep.subr.mxu0 0.0
      %409 = vmatpush2.msra.mxu0 0.0
      %410 = vmatprep.subr.mxu0 0.0
      %411 = vmatpush2.msra.mxu0 0.0
      %412 = vmatprep.subr.mxu0 0.0
      %413 = vmatpush2.msra.mxu0 0.0
      %414 = vmatprep.subr.mxu0 0.0
      %415 = vmatpush2.msra.mxu0 0.0
      %416 = vmatprep.mubr.f32.mxu0 0.0
      %417 = vmatmul.mubr.f32.gmra.mxu0 %v196
      %v418 = vpop.f32.mrf.mxu0
      %v419 = vadd.f32 %v314, %v418
      %v420 = vpop.f32.mrf.mxu0
      %421 = vmatprep.mubr.f32.mxu0 0.0
      %422 = vmatmul.mubr.f32.gmra.mxu0 %v197
      %v423 = vpop.f32.mrf.mxu0
      %v424 = vadd.f32 %v319, %v423
      %v425 = vpop.f32.mrf.mxu0
      %426 = vmatprep.mubr.f32.mxu0 0.0
      %427 = vmatmul.mubr.f32.gmra.mxu0 %v198
      %v428 = vpop.f32.mrf.mxu0
      %v429 = vadd.f32 %v324, %v428
      %v430 = vpop.f32.mrf.mxu0
      %431 = vmatprep.mubr.f32.mxu0 0.0
      %432 = vmatmul.mubr.f32.gmra.mxu0 %v199
      %v433 = vpop.f32.mrf.mxu0
      %v434 = vadd.f32 %v329, %v433
      %v435 = vpop.f32.mrf.mxu0
      %436 = vmatprep.mubr.f32.mxu0 0.0
      %437 = vmatmul.mubr.f32.gmra.mxu0 %v200
      %v438 = vpop.f32.mrf.mxu0
      %v439 = vadd.f32 %v334, %v438
      %v440 = vpop.f32.mrf.mxu0
      %441 = vmatprep.mubr.f32.mxu0 0.0
      %442 = vmatmul.mubr.f32.gmra.mxu0 %v201
      %v443 = vpop.f32.mrf.mxu0
      %v444 = vadd.f32 %v339, %v443
      %v445 = vpop.f32.mrf.mxu0
      %446 = vmatprep.mubr.f32.mxu0 0.0
      %447 = vmatmul.mubr.f32.gmra.mxu0 %v202
      %v448 = vpop.f32.mrf.mxu0
      %v449 = vadd.f32 %v344, %v448
      %v450 = vpop.f32.mrf.mxu0
      %451 = vmatprep.mubr.f32.mxu0 0.0
      %452 = vmatmul.mubr.f32.gmra.mxu0 %v203
      %v453 = vpop.f32.mrf.mxu0
      %v454 = vadd.f32 %v349, %v453
      %v455 = vpop.f32.mrf.mxu0
      %456 = vdwg.mxu0
      %s457 = sadd.s32 %s194, 17
      %s458 = scalar_lea.vmem %s183, %s457
      %v459 = vld [vmem:[%s458] sm:$0xff]
      %v460 = vld [vmem:[%s458 + $0x8] sm:$0xff]
      %v461 = vld [vmem:[%s458 + $0x10] sm:$0xff]
      %v462 = vld [vmem:[%s458 + $0x18] sm:$0xff]
      %v463 = vld [vmem:[%s458 + $0x20] sm:$0xff]
      %v464 = vld [vmem:[%s458 + $0x28] sm:$0xff]
      %v465 = vld [vmem:[%s458 + $0x30] sm:$0xff]
      %v466 = vld [vmem:[%s458 + $0x38] sm:$0xff]
      %s467 = scalar_lea.vmem %s1, 256
      %v468 = vld [vmem:[%s467] sm:$0xff]
      %v469 = vld [vmem:[%s467 + $0x8] sm:$0xff]
      %v470 = vld [vmem:[%s467 + $0x10] sm:$0xff]
      %v471 = vld [vmem:[%s467 + $0x18] sm:$0xff]
      %v472 = vld [vmem:[%s467 + $0x20] sm:$0xff]
      %v473 = vld [vmem:[%s467 + $0x28] sm:$0xff]
      %v474 = vld [vmem:[%s467 + $0x30] sm:$0xff]
      %v475 = vld [vmem:[%s467 + $0x38] sm:$0xff]
      %v476 = vld [vmem:[%s467 + $0x40] sm:$0xff]
      %v477 = vld [vmem:[%s467 + $0x48] sm:$0xff]
      %v478 = vld [vmem:[%s467 + $0x50] sm:$0xff]
      %v479 = vld [vmem:[%s467 + $0x58] sm:$0xff]
      %v480 = vld [vmem:[%s467 + $0x60] sm:$0xff]
      %v481 = vld [vmem:[%s467 + $0x68] sm:$0xff]
      %v482 = vld [vmem:[%s467 + $0x70] sm:$0xff]
      %v483 = vld [vmem:[%s467 + $0x78] sm:$0xff]
      %484 = vmatprep.subr.mxu0 0.0
      %485 = vmatpush1.msra.mxu0 %v483
      %486 = vmatprep.subr.mxu0 0.0
      %487 = vmatpush1.msra.mxu0 %v482
      %488 = vmatprep.subr.mxu0 0.0
      %489 = vmatpush1.msra.mxu0 %v481
      %490 = vmatprep.subr.mxu0 0.0
      %491 = vmatpush1.msra.mxu0 %v480
      %492 = vmatprep.subr.mxu0 0.0
      %493 = vmatpush1.msra.mxu0 %v479
      %494 = vmatprep.subr.mxu0 0.0
      %495 = vmatpush1.msra.mxu0 %v478
      %496 = vmatprep.subr.mxu0 0.0
      %497 = vmatpush1.msra.mxu0 %v477
      %498 = vmatprep.subr.mxu0 0.0
      %499 = vmatpush1.msra.mxu0 %v476
      %500 = vmatprep.subr.mxu0 0.0
      %501 = vmatpush1.msra.mxu0 %v475
      %502 = vmatprep.subr.mxu0 0.0
      %503 = vmatpush1.msra.mxu0 %v474
      %504 = vmatprep.subr.mxu0 0.0
      %505 = vmatpush1.msra.mxu0 %v473
      %506 = vmatprep.subr.mxu0 0.0
      %507 = vmatpush1.msra.mxu0 %v472
      %508 = vmatprep.subr.mxu0 0.0
      %509 = vmatpush1.msra.mxu0 %v471
      %510 = vmatprep.subr.mxu0 0.0
      %511 = vmatpush1.msra.mxu0 %v470
      %512 = vmatprep.subr.mxu0 0.0
      %513 = vmatpush1.msra.mxu0 %v469
      %514 = vmatprep.subr.mxu0 0.0
      %515 = vmatpush1.msra.mxu0 %v468
      %516 = vmatprep.subr.mxu0 0.0
      %517 = vmatpush2.msra.mxu0 0.0
      %518 = vmatprep.subr.mxu0 0.0
      %519 = vmatpush2.msra.mxu0 0.0
      %520 = vmatprep.subr.mxu0 0.0
      %521 = vmatpush2.msra.mxu0 0.0
      %522 = vmatprep.subr.mxu0 0.0
      %523 = vmatpush2.msra.mxu0 0.0
      %524 = vmatprep.subr.mxu0 0.0
      %525 = vmatpush2.msra.mxu0 0.0
      %526 = vmatprep.subr.mxu0 0.0
      %527 = vmatpush2.msra.mxu0 0.0
      %528 = vmatprep.subr.mxu0 0.0
      %529 = vmatpush2.msra.mxu0 0.0
      %530 = vmatprep.subr.mxu0 0.0
      %531 = vmatpush2.msra.mxu0 0.0
      %532 = vmatprep.subr.mxu0 0.0
      %533 = vmatpush2.msra.mxu0 0.0
      %534 = vmatprep.subr.mxu0 0.0
      %535 = vmatpush2.msra.mxu0 0.0
      %536 = vmatprep.subr.mxu0 0.0
      %537 = vmatpush2.msra.mxu0 0.0
      %538 = vmatprep.subr.mxu0 0.0
      %539 = vmatpush2.msra.mxu0 0.0
      %540 = vmatprep.subr.mxu0 0.0
      %541 = vmatpush2.msra.mxu0 0.0
      %542 = vmatprep.subr.mxu0 0.0
      %543 = vmatpush2.msra.mxu0 0.0
      %544 = vmatprep.subr.mxu0 0.0
      %545 = vmatpush2.msra.mxu0 0.0
      %546 = vmatprep.subr.mxu0 0.0
      %547 = vmatpush2.msra.mxu0 0.0
      %548 = vmatprep.mubr.f32.mxu0 0.0
      %549 = vmatmul.mubr.f32.gmra.mxu0 %v459
      %v550 = vpop.f32.mrf.mxu0
      %v551 = vadd.f32 0.0, %v550
      %v552 = vpop.f32.mrf.mxu0
      %553 = vmatprep.mubr.f32.mxu0 0.0
      %554 = vmatmul.mubr.f32.gmra.mxu0 %v460
      %v555 = vpop.f32.mrf.mxu0
      %v556 = vadd.f32 0.0, %v555
      %v557 = vpop.f32.mrf.mxu0
      %558 = vmatprep.mubr.f32.mxu0 0.0
      %559 = vmatmul.mubr.f32.gmra.mxu0 %v461
      %v560 = vpop.f32.mrf.mxu0
      %v561 = vadd.f32 0.0, %v560
      %v562 = vpop.f32.mrf.mxu0
      %563 = vmatprep.mubr.f32.mxu0 0.0
      %564 = vmatmul.mubr.f32.gmra.mxu0 %v462
      %v565 = vpop.f32.mrf.mxu0
      %v566 = vadd.f32 0.0, %v565
      %v567 = vpop.f32.mrf.mxu0
      %568 = vmatprep.mubr.f32.mxu0 0.0
      %569 = vmatmul.mubr.f32.gmra.mxu0 %v463
      %v570 = vpop.f32.mrf.mxu0
      %v571 = vadd.f32 0.0, %v570
      %v572 = vpop.f32.mrf.mxu0
      %573 = vmatprep.mubr.f32.mxu0 0.0
      %574 = vmatmul.mubr.f32.gmra.mxu0 %v464
      %v575 = vpop.f32.mrf.mxu0
      %v576 = vadd.f32 0.0, %v575
      %v577 = vpop.f32.mrf.mxu0
      %578 = vmatprep.mubr.f32.mxu0 0.0
      %579 = vmatmul.mubr.f32.gmra.mxu0 %v465
      %v580 = vpop.f32.mrf.mxu0
      %v581 = vadd.f32 0.0, %v580
      %v582 = vpop.f32.mrf.mxu0
      %583 = vmatprep.mubr.f32.mxu0 0.0
      %584 = vmatmul.mubr.f32.gmra.mxu0 %v466
      %v585 = vpop.f32.mrf.mxu0
      %v586 = vadd.f32 0.0, %v585
      %v587 = vpop.f32.mrf.mxu0
      %588 = vdwg.mxu0
      %v589 = vadd.f32 %v419, %v551
      %v590 = vadd.f32 %v424, %v556
      %v591 = vadd.f32 %v429, %v561
      %v592 = vadd.f32 %v434, %v566
      %v593 = vadd.f32 %v439, %v571
      %v594 = vadd.f32 %v444, %v576
      %v595 = vadd.f32 %v449, %v581
      %v596 = vadd.f32 %v454, %v586
      %s597 = sadd.s32 %s194, 18
      %s598 = scalar_lea.vmem %s183, %s597
      %v599 = vld [vmem:[%s598] sm:$0xff]
      %v600 = vld [vmem:[%s598 + $0x8] sm:$0xff]
      %v601 = vld [vmem:[%s598 + $0x10] sm:$0xff]
      %v602 = vld [vmem:[%s598 + $0x18] sm:$0xff]
      %v603 = vld [vmem:[%s598 + $0x20] sm:$0xff]
      %v604 = vld [vmem:[%s598 + $0x28] sm:$0xff]
      %v605 = vld [vmem:[%s598 + $0x30] sm:$0xff]
      %v606 = vld [vmem:[%s598 + $0x38] sm:$0xff]
      %s607 = scalar_lea.vmem %s1, 384
      %v608 = vld [vmem:[%s607] sm:$0xff]
      %v609 = vld [vmem:[%s607 + $0x8] sm:$0xff]
      %v610 = vld [vmem:[%s607 + $0x10] sm:$0xff]
      %v611 = vld [vmem:[%s607 + $0x18] sm:$0xff]
      %v612 = vld [vmem:[%s607 + $0x20] sm:$0xff]
      %v613 = vld [vmem:[%s607 + $0x28] sm:$0xff]
      %v614 = vld [vmem:[%s607 + $0x30] sm:$0xff]
      %v615 = vld [vmem:[%s607 + $0x38] sm:$0xff]
      %v616 = vld [vmem:[%s607 + $0x40] sm:$0xff]
      %v617 = vld [vmem:[%s607 + $0x48] sm:$0xff]
      %v618 = vld [vmem:[%s607 + $0x50] sm:$0xff]
      %v619 = vld [vmem:[%s607 + $0x58] sm:$0xff]
      %v620 = vld [vmem:[%s607 + $0x60] sm:$0xff]
      %v621 = vld [vmem:[%s607 + $0x68] sm:$0xff]
      %v622 = vld [vmem:[%s607 + $0x70] sm:$0xff]
      %v623 = vld [vmem:[%s607 + $0x78] sm:$0xff]
      %624 = vmatprep.subr.mxu0 0.0
      %625 = vmatpush1.msra.mxu0 %v623
      %626 = vmatprep.subr.mxu0 0.0
      %627 = vmatpush1.msra.mxu0 %v622
      %628 = vmatprep.subr.mxu0 0.0
      %629 = vmatpush1.msra.mxu0 %v621
      %630 = vmatprep.subr.mxu0 0.0
      %631 = vmatpush1.msra.mxu0 %v620
      %632 = vmatprep.subr.mxu0 0.0
      %633 = vmatpush1.msra.mxu0 %v619
      %634 = vmatprep.subr.mxu0 0.0
      %635 = vmatpush1.msra.mxu0 %v618
      %636 = vmatprep.subr.mxu0 0.0
      %637 = vmatpush1.msra.mxu0 %v617
      %638 = vmatprep.subr.mxu0 0.0
      %639 = vmatpush1.msra.mxu0 %v616
      %640 = vmatprep.subr.mxu0 0.0
      %641 = vmatpush1.msra.mxu0 %v615
      %642 = vmatprep.subr.mxu0 0.0
      %643 = vmatpush1.msra.mxu0 %v614
      %644 = vmatprep.subr.mxu0 0.0
      %645 = vmatpush1.msra.mxu0 %v613
      %646 = vmatprep.subr.mxu0 0.0
      %647 = vmatpush1.msra.mxu0 %v612
      %648 = vmatprep.subr.mxu0 0.0
      %649 = vmatpush1.msra.mxu0 %v611
      %650 = vmatprep.subr.mxu0 0.0
      %651 = vmatpush1.msra.mxu0 %v610
      %652 = vmatprep.subr.mxu0 0.0
      %653 = vmatpush1.msra.mxu0 %v609
      %654 = vmatprep.subr.mxu0 0.0
      %655 = vmatpush1.msra.mxu0 %v608
      %656 = vmatprep.subr.mxu0 0.0
      %657 = vmatpush2.msra.mxu0 0.0
      %658 = vmatprep.subr.mxu0 0.0
      %659 = vmatpush2.msra.mxu0 0.0
      %660 = vmatprep.subr.mxu0 0.0
      %661 = vmatpush2.msra.mxu0 0.0
      %662 = vmatprep.subr.mxu0 0.0
      %663 = vmatpush2.msra.mxu0 0.0
      %664 = vmatprep.subr.mxu0 0.0
      %665 = vmatpush2.msra.mxu0 0.0
      %666 = vmatprep.subr.mxu0 0.0
      %667 = vmatpush2.msra.mxu0 0.0
      %668 = vmatprep.subr.mxu0 0.0
      %669 = vmatpush2.msra.mxu0 0.0
      %670 = vmatprep.subr.mxu0 0.0
      %671 = vmatpush2.msra.mxu0 0.0
      %672 = vmatprep.subr.mxu0 0.0
      %673 = vmatpush2.msra.mxu0 0.0
      %674 = vmatprep.subr.mxu0 0.0
      %675 = vmatpush2.msra.mxu0 0.0
      %676 = vmatprep.subr.mxu0 0.0
      %677 = vmatpush2.msra.mxu0 0.0
      %678 = vmatprep.subr.mxu0 0.0
      %679 = vmatpush2.msra.mxu0 0.0
      %680 = vmatprep.subr.mxu0 0.0
      %681 = vmatpush2.msra.mxu0 0.0
      %682 = vmatprep.subr.mxu0 0.0
      %683 = vmatpush2.msra.mxu0 0.0
      %684 = vmatprep.subr.mxu0 0.0
      %685 = vmatpush2.msra.mxu0 0.0
      %686 = vmatprep.subr.mxu0 0.0
      %687 = vmatpush2.msra.mxu0 0.0
      %688 = vmatprep.mubr.f32.mxu0 0.0
      %689 = vmatmul.mubr.f32.gmra.mxu0 %v599
      %v690 = vpop.f32.mrf.mxu0
      %v691 = vadd.f32 0.0, %v690
      %v692 = vpop.f32.mrf.mxu0
      %693 = vmatprep.mubr.f32.mxu0 0.0
      %694 = vmatmul.mubr.f32.gmra.mxu0 %v600
      %v695 = vpop.f32.mrf.mxu0
      %v696 = vadd.f32 0.0, %v695
      %v697 = vpop.f32.mrf.mxu0
      %698 = vmatprep.mubr.f32.mxu0 0.0
      %699 = vmatmul.mubr.f32.gmra.mxu0 %v601
      %v700 = vpop.f32.mrf.mxu0
      %v701 = vadd.f32 0.0, %v700
      %v702 = vpop.f32.mrf.mxu0
      %703 = vmatprep.mubr.f32.mxu0 0.0
      %704 = vmatmul.mubr.f32.gmra.mxu0 %v602
      %v705 = vpop.f32.mrf.mxu0
      %v706 = vadd.f32 0.0, %v705
      %v707 = vpop.f32.mrf.mxu0
      %708 = vmatprep.mubr.f32.mxu0 0.0
      %709 = vmatmul.mubr.f32.gmra.mxu0 %v603
      %v710 = vpop.f32.mrf.mxu0
      %v711 = vadd.f32 0.0, %v710
      %v712 = vpop.f32.mrf.mxu0
      %713 = vmatprep.mubr.f32.mxu0 0.0
      %714 = vmatmul.mubr.f32.gmra.mxu0 %v604
      %v715 = vpop.f32.mrf.mxu0
      %v716 = vadd.f32 0.0, %v715
      %v717 = vpop.f32.mrf.mxu0
      %718 = vmatprep.mubr.f32.mxu0 0.0
      %719 = vmatmul.mubr.f32.gmra.mxu0 %v605
      %v720 = vpop.f32.mrf.mxu0
      %v721 = vadd.f32 0.0, %v720
      %v722 = vpop.f32.mrf.mxu0
      %723 = vmatprep.mubr.f32.mxu0 0.0
      %724 = vmatmul.mubr.f32.gmra.mxu0 %v606
      %v725 = vpop.f32.mrf.mxu0
      %v726 = vadd.f32 0.0, %v725
      %v727 = vpop.f32.mrf.mxu0
      %728 = vdwg.mxu0
      %v729 = vadd.f32 %v589, %v691
      %v730 = vadd.f32 %v590, %v696
      %v731 = vadd.f32 %v591, %v701
      %v732 = vadd.f32 %v592, %v706
      %v733 = vadd.f32 %v593, %v711
      %v734 = vadd.f32 %v594, %v716
      %v735 = vadd.f32 %v595, %v721
      %v736 = vadd.f32 %v596, %v726
      %v737 = vld [vmem:[%s2] sm:$0x1]
      %v739 = vlaneseq
      %v740 = vshrl.u32 %v739, 7
      %v741 = vsub.s32 0, %v740
      %v742 = vrot.slane %v737, %v741
      %v744 = vadd.f32 %v729, %v742
      %v745 = vadd.f32 %v730, %v742
      %v746 = vadd.f32 %v731, %v742
      %v747 = vadd.f32 %v732, %v742
      %v748 = vadd.f32 %v733, %v742
      %v749 = vadd.f32 %v734, %v742
      %v750 = vadd.f32 %v735, %v742
      %v751 = vadd.f32 %v736, %v742
      %vm752 = vcmp.ge.f32.partialorder %v744, 0.0
      %vm753 = vcmp.ge.f32.partialorder %v745, 0.0
      %vm754 = vcmp.ge.f32.partialorder %v746, 0.0
      %vm755 = vcmp.ge.f32.partialorder %v747, 0.0
      %vm756 = vcmp.ge.f32.partialorder %v748, 0.0
      %vm757 = vcmp.ge.f32.partialorder %v749, 0.0
      %vm758 = vcmp.ge.f32.partialorder %v750, 0.0
      %vm759 = vcmp.ge.f32.partialorder %v751, 0.0
      %v760 = vmul.f32 %v744, 0.2
      %v761 = vmul.f32 %v745, 0.2
      %v762 = vmul.f32 %v746, 0.2
      %v763 = vmul.f32 %v747, 0.2
      %v764 = vmul.f32 %v748, 0.2
      %v765 = vmul.f32 %v749, 0.2
      %v766 = vmul.f32 %v750, 0.2
      %v767 = vmul.f32 %v751, 0.2
      %v768 = vsel %vm752, %v744, %v760
      %v769 = vsel %vm753, %v745, %v761
      %v770 = vsel %vm754, %v746, %v762
      %v771 = vsel %vm755, %v747, %v763
      %v772 = vsel %vm756, %v748, %v764
      %v773 = vsel %vm757, %v749, %v765
      %v774 = vsel %vm758, %v750, %v766
      %v775 = vsel %vm759, %v751, %v767
      %776 = vst [vmem:[%s192] sm:$0xff] %v768
      %777 = vst [vmem:[%s192 + $0x8] sm:$0xff] %v769
      %778 = vst [vmem:[%s192 + $0x10] sm:$0xff] %v770
      %779 = vst [vmem:[%s192 + $0x18] sm:$0xff] %v771
      %780 = vst [vmem:[%s192 + $0x20] sm:$0xff] %v772
      %781 = vst [vmem:[%s192 + $0x28] sm:$0xff] %v773
      %782 = vst [vmem:[%s192 + $0x30] sm:$0xff] %v774
      %783 = vst [vmem:[%s192 + $0x38] sm:$0xff] %v775
      %s784 = smul.u32 8, %s19
      %p785 = scmp.lt.s32.totalorder %s18, 1
      %s786 = scalar_select %p785, %s18, 1
      %p787 = scmp.lt.s32.totalorder %s784, 39
      %s788 = scalar_select %p787, %s784, 39
      %s789 = smul.addr %s786, 40
      %s790 = sadd.s32 %s788, %s789
      %s791 = smul.addr %s790, 8
      %s792 = scalar_lea.vmem %s3, %s791
      // Predicated region
      $region33: #{_lambda_.8} parent=31 // pred_check
        %p793 = pneg %p114
      $region34: #{_lambda_.8} parent=31 // pred_check_branch
        %795 = sbr.rel (%p793) target = $region36
      $region35: #{_lambda_.8} parent=31 // pred_region
        %s796 = smul.u32 8, %s19
      $region36: #{_lambda_.8} parent=31 // pred_fallthru
        _
    $region32: #{_lambda_.8} parent=5 // pred_fallthru
      _
    %p797 = scmp.le.s32.totalorder 2, %s9
    // Predicated region
    $region37: #{_lambda_.8} parent=5 // pred_check
      %p798 = pneg %p797
    $region38: #{_lambda_.8} parent=5 // pred_check_branch
      %800 = sbr.rel (%p798) target = $region40
    $region39: #{_lambda_.8} parent=5 // pred_region
      %s801 = ssub.s32 %s9, 2
      // Predicated region
      $region41: #{_lambda_.8} parent=39 // pred_check
        %p802 = pneg %p120
      $region42: #{_lambda_.8} parent=39 // pred_check_branch
        %804 = sbr.rel (%p802) target = $region44
      $region43: #{_lambda_.8} parent=39 // pred_region
        %s805 = smul.u32 8, %s21
        %p806 = scmp.lt.s32.totalorder %s20, 1
        %s807 = scalar_select %p806, %s20, 1
        %p808 = scmp.lt.s32.totalorder %s805, 39
        %s809 = scalar_select %p808, %s805, 39
        %s810 = smul.addr %s807, 40
        %s811 = sadd.s32 %s809, %s810
        %s812 = smul.addr %s811, 8
        %s813 = scalar_lea.vmem %s3, %s812
      $region44: #{_lambda_.8} parent=39 // pred_fallthru
        _
    $region40: #{_lambda_.8} parent=5 // pred_fallthru
      _
  $region6: #{_lambda_.8} parent=0 // loop_footer
    %s13 = sadd.s32 1, %s9
  $region7: #{_lambda_.8} parent=0 // loop_footer_branch
    %8 = sbr.rel target = $region3
  $region8: #{_lambda_.8} parent=0 // loop_exit
    _

// kernel: _lambda_.9
$region0: #{_lambda_.9}
  #allocation0 [shape = 'u32[]', space=smem, size = 0x4, offset = 0x4, fixed_abs, tag = 'smem constant byte address 0x4 - core index']
  #allocation1 [shape = 'u32[144,128]{1,0:T(1,128)}', space=vmem, size = 0x12000, scoped, tag = 'internal scratch']
  %s0 = inlined_call_operand.vmem [shape: f32[2,138,128], index: 0, kind: input, shape index: {}]
  %s1 = inlined_call_operand.vmem [shape: f32[4,128,128], index: 1, kind: input, shape index: {}]
  %s2 = inlined_call_operand.vmem [shape: f32[128,1], index: 2, kind: input, shape index: {}]
  %s3 = inlined_call_operand.vmem [shape: f32[2,128,128], index: 3, kind: output, shape index: {0}]
  %s4 = inlined_call_operand.vmem [shape: f32[2,1,128], index: 4, kind: output, shape index: {1}]
  %s5 = inlined_call_operand.vmem [shape: f32[2,1,128], index: 5, kind: output, shape index: {2}]
  %6 = xla_tuple %s3, %s4, %s5
  %s7 = sld [smem:[#allocation0]]
  $region65: #{_lambda_.9} parent=0
    _
  %s9 = ssub.s32 1, %s7
  %s10 = scalar_select 0, %s9, %s7
  loop: start=0, step=1, limit=6
  $region2: #{_lambda_.9} parent=0 // loop_pre_header
    _
  $region3: #{_lambda_.9} parent=0 // loop_header
    %s12 = sphi 0, %s16
    %p13 = scmp.ge.s32.totalorder %s12, 6
    %s19 = sphi 0, %s31
    %s20 = sphi 0, %s27
    %s21 = sphi 0, %s19
    %s22 = sphi 0, %s20
    %s23 = sphi 0, %s21
    %s24 = sphi 0, %s22
    %s34 = sphi 0, %s36
    %s37 = sphi 0, %s34
    %s38 = sphi 0, %s37
    %s54 = sphi 0, %s38
    %s58 = sphi 0, %s58
    %s60 = sphi 0, %s58
    %s61 = sphi 0, %s60
    %s75 = sphi 0, %s61
    %s81 = sphi 0, %s83
    %s84 = sphi 0, %s81
    %s85 = sphi 0, %s84
    %s101 = sphi 0, %s85
    %s109 = sphi 0, %s111
    %s112 = sphi 0, %s109
    %s113 = sphi 0, %s112
    %s129 = sphi 0, %s113
    %s135 = sphi 0, %s137
    %s138 = sphi 0, %s135
    %s139 = sphi 0, %s138
    %s155 = sphi 0, %s139
    %s161 = sphi 0, %s163
    %s164 = sphi 0, %s161
    %s165 = sphi 0, %s164
    %s181 = sphi 0, %s165
  $region4: #{_lambda_.9} parent=0 // loop_header_branch
    %15 = sbr.rel (%p13) target = $region8
  $region5: #{_lambda_.9} parent=0 // loop_body
    %s17 = ssub.s32 %s12, 1
    %s18 = ssub.s32 %s12, 2
    %s25 = sadd.s32 1, %s20
    %p26 = scmp.ge.s32.totalorder %s25, 2
    %s27 = scalar_select %p26, 0, %s25
    %s28 = sadd.s32 1, %s19
    %s29 = scalar_select %p26, %s28, %s19
    %p30 = scmp.ge.s32.totalorder %s29, 2
    %s31 = scalar_select %p30, 0, %s29
    %s32 = ssub.s32 %s19, %s31
    %p33 = scmp.eq.s32.totalorder %s32, 0
    %s35 = sadd.s32 %s34, 1
    %s36 = scalar_select %p33, %s34, %s35
    %p39 = pneg %p33
    %p40 = scmp.eq.s32.totalorder %s12, 3
    %p41 = por %p39, %p40
    %p42 = scmp.ne.s32.totalorder %s34, %s37
    %p43 = scmp.eq.s32.totalorder %s12, 0
    %p44 = por %p42, %p43
    %p45 = scmp.ne.s32.totalorder %s34, %s37
    %p46 = scmp.eq.s32.totalorder %s17, 3
    %p47 = por %p45, %p46
    %p48 = scmp.ne.s32.totalorder %s37, %s38
    %p49 = scmp.eq.s32.totalorder %s17, 0
    %p50 = por %p48, %p49
    %p51 = scmp.ne.s32.totalorder %s37, %s38
    %p52 = scmp.eq.s32.totalorder %s18, 3
    %p53 = por %p51, %p52
    %p55 = scmp.ne.s32.totalorder %s38, %s54
    %p56 = scmp.eq.s32.totalorder %s18, 0
    %p57 = por %p55, %p56
    %s59 = sadd.s32 %s58, 1
    %p62 = scmp.eq.s32.totalorder %s12, 3
    %p63 = scmp.ne.s32.totalorder %s58, %s60
    %p64 = scmp.eq.s32.totalorder %s12, 0
    %p65 = por %p63, %p64
    %p66 = scmp.ne.s32.totalorder %s58, %s60
    %p67 = scmp.eq.s32.totalorder %s17, 3
    %p68 = por %p66, %p67
    %p69 = scmp.ne.s32.totalorder %s60, %s61
    %p70 = scmp.eq.s32.totalorder %s17, 0
    %p71 = por %p69, %p70
    %p72 = scmp.ne.s32.totalorder %s60, %s61
    %p73 = scmp.eq.s32.totalorder %s18, 3
    %p74 = por %p72, %p73
    %p76 = scmp.ne.s32.totalorder %s61, %s75
    %p77 = scmp.eq.s32.totalorder %s18, 0
    %p78 = por %p76, %p77
    %s79 = ssub.s32 %s20, %s27
    %p80 = scmp.eq.s32.totalorder %s79, 0
    %s82 = sadd.s32 %s81, 1
    %s83 = scalar_select %p80, %s81, %s82
    %p86 = pneg %p80
    %p87 = scmp.eq.s32.totalorder %s12, 3
    %p88 = por %p86, %p87
    %p89 = scmp.ne.s32.totalorder %s81, %s84
    %p90 = scmp.eq.s32.totalorder %s12, 0
    %p91 = por %p89, %p90
    %p92 = scmp.ne.s32.totalorder %s81, %s84
    %p93 = scmp.eq.s32.totalorder %s17, 3
    %p94 = por %p92, %p93
    %p95 = scmp.ne.s32.totalorder %s84, %s85
    %p96 = scmp.eq.s32.totalorder %s17, 0
    %p97 = por %p95, %p96
    %p98 = scmp.ne.s32.totalorder %s84, %s85
    %p99 = scmp.eq.s32.totalorder %s18, 3
    %p100 = por %p98, %p99
    %p102 = scmp.ne.s32.totalorder %s85, %s101
    %p103 = scmp.eq.s32.totalorder %s18, 0
    %p104 = por %p102, %p103
    %s105 = ssub.s32 %s19, %s31
    %s106 = ssub.s32 %s20, %s27
    %s107 = sor.u32 %s105, %s106
    %p108 = scmp.eq.s32.totalorder %s107, 0
    %s110 = sadd.s32 %s109, 1
    %s111 = scalar_select %p108, %s109, %s110
    %p114 = pneg %p108
    %p115 = scmp.eq.s32.totalorder %s12, 3
    %p116 = por %p114, %p115
    %p117 = scmp.ne.s32.totalorder %s109, %s112
    %p118 = scmp.eq.s32.totalorder %s12, 0
    %p119 = por %p117, %p118
    %p120 = scmp.ne.s32.totalorder %s109, %s112
    %p121 = scmp.eq.s32.totalorder %s17, 3
    %p122 = por %p120, %p121
    %p123 = scmp.ne.s32.totalorder %s112, %s113
    %p124 = scmp.eq.s32.totalorder %s17, 0
    %p125 = por %p123, %p124
    %p126 = scmp.ne.s32.totalorder %s112, %s113
    %p127 = scmp.eq.s32.totalorder %s18, 3
    %p128 = por %p126, %p127
    %p130 = scmp.ne.s32.totalorder %s113, %s129
    %p131 = scmp.eq.s32.totalorder %s18, 0
    %p132 = por %p130, %p131
    %s133 = ssub.s32 %s19, %s31
    %p134 = scmp.eq.s32.totalorder %s133, 0
    %s136 = sadd.s32 %s135, 1
    %s137 = scalar_select %p134, %s135, %s136
    %p140 = pneg %p134
    %p141 = scmp.eq.s32.totalorder %s12, 3
    %p142 = por %p140, %p141
    %p143 = scmp.ne.s32.totalorder %s135, %s138
    %p144 = scmp.eq.s32.totalorder %s12, 0
    %p145 = por %p143, %p144
    %p146 = scmp.ne.s32.totalorder %s135, %s138
    %p147 = scmp.eq.s32.totalorder %s17, 3
    %p148 = por %p146, %p147
    %p149 = scmp.ne.s32.totalorder %s138, %s139
    %p150 = scmp.eq.s32.totalorder %s17, 0
    %p151 = por %p149, %p150
    %p152 = scmp.ne.s32.totalorder %s138, %s139
    %p153 = scmp.eq.s32.totalorder %s18, 3
    %p154 = por %p152, %p153
    %p156 = scmp.ne.s32.totalorder %s139, %s155
    %p157 = scmp.eq.s32.totalorder %s18, 0
    %p158 = por %p156, %p157
    %s159 = ssub.s32 %s19, %s31
    %p160 = scmp.eq.s32.totalorder %s159, 0
    %s162 = sadd.s32 %s161, 1
    %s163 = scalar_select %p160, %s161, %s162
    %p166 = pneg %p160
    %p167 = scmp.eq.s32.totalorder %s12, 3
    %p168 = por %p166, %p167
    %p169 = scmp.ne.s32.totalorder %s161, %s164
    %p170 = scmp.eq.s32.totalorder %s12, 0
    %p171 = por %p169, %p170
    %p172 = scmp.ne.s32.totalorder %s161, %s164
    %p173 = scmp.eq.s32.totalorder %s17, 3
    %p174 = por %p172, %p173
    %p175 = scmp.ne.s32.totalorder %s164, %s165
    %p176 = scmp.eq.s32.totalorder %s17, 0
    %p177 = por %p175, %p176
    %p178 = scmp.ne.s32.totalorder %s164, %s165
    %p179 = scmp.eq.s32.totalorder %s18, 3
    %p180 = por %p178, %p179
    %p182 = scmp.ne.s32.totalorder %s165, %s181
    %p183 = scmp.eq.s32.totalorder %s18, 0
    %p184 = por %p182, %p183
    %p185 = scmp.le.s32.totalorder 1, %s12
    %p186 = scmp.lt.s32.totalorder %s12, 5
    %p187 = pnand %p185, %p186
    %p188 = pneg %p187
    // Predicated region
    $region9: #{_lambda_.9} parent=5 // pred_check
      _
    $region10: #{_lambda_.9} parent=5 // pred_check_branch
      %190 = sbr.rel (%p187) target = $region12
    $region11: #{_lambda_.9} parent=5 // pred_region
      %s191 = ssub.s32 %s12, 1
      // Predicated region
      $region13: #{_lambda_.9} parent=11 // pred_check
        %p192 = pneg %p71
      $region14: #{_lambda_.9} parent=11 // pred_check_branch
        %194 = sbr.rel (%p192) target = $region16
      $region15: #{_lambda_.9} parent=11 // pred_region
        _
      $region16: #{_lambda_.9} parent=11 // pred_fallthru
        _
    $region12: #{_lambda_.9} parent=5 // pred_fallthru
      _
    %p195 = scmp.lt.s32.totalorder %s12, 4
    // Predicated region
    $region17: #{_lambda_.9} parent=5 // pred_check
      %p196 = pneg %p195
    $region18: #{_lambda_.9} parent=5 // pred_check_branch
      %198 = sbr.rel (%p196) target = $region20
    $region19: #{_lambda_.9} parent=5 // pred_region
      // Predicated region
      $region21: #{_lambda_.9} parent=19 // pred_check
        %p199 = pneg %p44
      $region22: #{_lambda_.9} parent=19 // pred_check_branch
        %201 = sbr.rel (%p199) target = $region24
      $region23: #{_lambda_.9} parent=19 // pred_region
        %p202 = scmp.lt.s32.totalorder %s19, 1
        %s203 = scalar_select %p202, %s19, 1
        %s204 = smul.addr %s203, 18
        %s205 = smul.addr %s204, 8
        %s206 = scalar_lea.vmem %s0, %s205
      $region24: #{_lambda_.9} parent=19 // pred_fallthru
        _
      // Predicated region
      $region25: #{_lambda_.9} parent=19 // pred_check
        %p207 = pneg %p91
      $region26: #{_lambda_.9} parent=19 // pred_check_branch
        %209 = sbr.rel (%p207) target = $region28
      $region27: #{_lambda_.9} parent=19 // pred_region
        %s210 = smul.u32 8, %s20
        %p211 = scmp.lt.s32.totalorder %s210, 15
        %s212 = scalar_select %p211, %s210, 15
        %s213 = smul.addr %s212, 8
        %s214 = scalar_lea.vmem %s2, %s213
        %s215 = smul.u32 8, %s20
      $region28: #{_lambda_.9} parent=19 // pred_fallthru
        _
    $region20: #{_lambda_.9} parent=5 // pred_fallthru
      _
    %p216 = scmp.le.s32.totalorder 1, %s12
    %p217 = scmp.lt.s32.totalorder %s12, 5
    %p218 = pnand %p216, %p217
    %p219 = pneg %p218
    // Predicated region
    $region29: #{_lambda_.9} parent=5 // pred_check
      _
    $region30: #{_lambda_.9} parent=5 // pred_check_branch
      %221 = sbr.rel (%p218) target = $region32
    $region31: #{_lambda_.9} parent=5 // pred_region
      %s222 = ssub.s32 %s12, 1
      %p223 = scmp.lt.s32.totalorder %s21, 1
      %s224 = scalar_select %p223, %s21, 1
      %s225 = smul.addr %s224, 18
      %s226 = smul.addr %s225, 8
      %s227 = scalar_lea.vmem %s0, %s226
      %p228 = pneg %p50
      %p229 = pneg %p47
      %p230 = pneg %p71
      %p231 = pneg %p68
      %s232 = smul.u32 8, %s22
      %p233 = scmp.lt.s32.totalorder %s232, 15
      %s234 = scalar_select %p233, %s232, 15
      %s235 = smul.addr %s234, 8
      %s236 = scalar_lea.vmem %s2, %s235
      %p237 = pneg %p97
      %p238 = pneg %p94
      %p239 = pneg %p125
      %p240 = pneg %p122
      %s241 = smul.u32 8, %s22
      %p242 = scmp.lt.s32.totalorder %s21, 1
      %s243 = scalar_select %p242, %s21, 1
      %p244 = scmp.lt.s32.totalorder %s241, 15
      %s245 = scalar_select %p244, %s241, 15
      %s246 = smul.addr %s243, 16
      %s247 = sadd.s32 %s245, %s246
      %s248 = smul.addr %s247, 8
      %s249 = scalar_lea.vmem %s3, %s248
      %p250 = pneg %p151
      %p251 = pneg %p148
      %p252 = scmp.lt.s32.totalorder %s21, 1
      %s253 = scalar_select %p252, %s21, 1
      %s254 = scalar_lea.vmem %s4, %s253
      %p255 = pneg %p177
      %p256 = pneg %p174
      %p257 = scmp.lt.s32.totalorder %s21, 1
      %s258 = scalar_select %p257, %s21, 1
      %s259 = scalar_lea.vmem %s5, %s258
      %p260 = scmp.lt.s32.totalorder %s21, 1
      %s261 = scalar_select %p260, %s21, 1
      %s262 = smul.addr %s261, 18
      %s263 = smul.addr %s262, 8
      %s264 = scalar_lea.vmem %s0, %s263
      %s265 = smul.u32 8, %s22
      %p266 = scmp.lt.s32.totalorder %s265, 15
      %s267 = scalar_select %p266, %s265, 15
      %s268 = smul.addr %s267, 8
      %s269 = scalar_lea.vmem %s2, %s268
      %s270 = smul.u32 8, %s22
      %s271 = smul.u32 8, %s22
      %p272 = scmp.lt.s32.totalorder %s21, 1
      %s273 = scalar_select %p272, %s21, 1
      %p274 = scmp.lt.s32.totalorder %s271, 15
      %s275 = scalar_select %p274, %s271, 15
      %s276 = smul.addr %s273, 16
      %s277 = sadd.s32 %s275, %s276
      %s278 = smul.addr %s277, 8
      %s279 = scalar_lea.vmem %s3, %s278
      %s280 = smul.u32 8, %s22
      %p281 = scmp.lt.s32.totalorder %s21, 1
      %s282 = scalar_select %p281, %s21, 1
      %s283 = scalar_lea.vmem %s4, %s282
      %p284 = scmp.lt.s32.totalorder %s21, 1
      %s285 = scalar_select %p284, %s21, 1
      %s286 = scalar_lea.vmem %s5, %s285
      %s287 = smul.u32 %s22, 64
      %s288 = scalar_lea.vmem %s264, %s287
      %v289 = vld [vmem:[%s288] sm:$0xff]
      %v290 = vld [vmem:[%s288 + $0x8] sm:$0xff]
      %v291 = vld [vmem:[%s288 + $0x10] sm:$0xff]
      %v292 = vld [vmem:[%s288 + $0x18] sm:$0xff]
      %v293 = vld [vmem:[%s288 + $0x20] sm:$0xff]
      %v294 = vld [vmem:[%s288 + $0x28] sm:$0xff]
      %v295 = vld [vmem:[%s288 + $0x30] sm:$0xff]
      %v296 = vld [vmem:[%s288 + $0x38] sm:$0xff]
      %v297 = vld [vmem:[%s1] sm:$0xff]
      %v298 = vld [vmem:[%s1 + $0x8] sm:$0xff]
      %v299 = vld [vmem:[%s1 + $0x10] sm:$0xff]
      %v300 = vld [vmem:[%s1 + $0x18] sm:$0xff]
      %v301 = vld [vmem:[%s1 + $0x20] sm:$0xff]
      %v302 = vld [vmem:[%s1 + $0x28] sm:$0xff]
      %v303 = vld [vmem:[%s1 + $0x30] sm:$0xff]
      %v304 = vld [vmem:[%s1 + $0x38] sm:$0xff]
      %v305 = vld [vmem:[%s1 + $0x40] sm:$0xff]
      %v306 = vld [vmem:[%s1 + $0x48] sm:$0xff]
      %v307 = vld [vmem:[%s1 + $0x50] sm:$0xff]
      %v308 = vld [vmem:[%s1 + $0x58] sm:$0xff]
      %v309 = vld [vmem:[%s1 + $0x60] sm:$0xff]
      %v310 = vld [vmem:[%s1 + $0x68] sm:$0xff]
      %v311 = vld [vmem:[%s1 + $0x70] sm:$0xff]
      %v312 = vld [vmem:[%s1 + $0x78] sm:$0xff]
      %s313 = sadd.s32 %s287, 1
      %s314 = scalar_lea.vmem %s264, %s313
      %v315 = vld [vmem:[%s314] sm:$0xff]
      %v316 = vld [vmem:[%s314 + $0x8] sm:$0xff]
      %v317 = vld [vmem:[%s314 + $0x10] sm:$0xff]
      %v318 = vld [vmem:[%s314 + $0x18] sm:$0xff]
      %v319 = vld [vmem:[%s314 + $0x20] sm:$0xff]
      %v320 = vld [vmem:[%s314 + $0x28] sm:$0xff]
      %v321 = vld [vmem:[%s314 + $0x30] sm:$0xff]
      %v322 = vld [vmem:[%s314 + $0x38] sm:$0xff]
      %s323 = scalar_lea.vmem %s1, 128
      %v324 = vld [vmem:[%s323] sm:$0xff]
      %v325 = vld [vmem:[%s323 + $0x8] sm:$0xff]
      %v326 = vld [vmem:[%s323 + $0x10] sm:$0xff]
      %v327 = vld [vmem:[%s323 + $0x18] sm:$0xff]
      %v328 = vld [vmem:[%s323 + $0x20] sm:$0xff]
      %v329 = vld [vmem:[%s323 + $0x28] sm:$0xff]
      %v330 = vld [vmem:[%s323 + $0x30] sm:$0xff]
      %v331 = vld [vmem:[%s323 + $0x38] sm:$0xff]
      %v332 = vld [vmem:[%s323 + $0x40] sm:$0xff]
      %v333 = vld [vmem:[%s323 + $0x48] sm:$0xff]
      %v334 = vld [vmem:[%s323 + $0x50] sm:$0xff]
      %v335 = vld [vmem:[%s323 + $0x58] sm:$0xff]
      %v336 = vld [vmem:[%s323 + $0x60] sm:$0xff]
      %v337 = vld [vmem:[%s323 + $0x68] sm:$0xff]
      %v338 = vld [vmem:[%s323 + $0x70] sm:$0xff]
      %v339 = vld [vmem:[%s323 + $0x78] sm:$0xff]
      %340 = vmatprep.subr.mxu0 0.0
      %341 = vmatpush1.msra.mxu0 %v339
      %342 = vmatprep.subr.mxu0 0.0
      %343 = vmatpush1.msra.mxu0 %v338
      %344 = vmatprep.subr.mxu0 0.0
      %345 = vmatpush1.msra.mxu0 %v337
      %346 = vmatprep.subr.mxu0 0.0
      %347 = vmatpush1.msra.mxu0 %v336
      %348 = vmatprep.subr.mxu0 0.0
      %349 = vmatpush1.msra.mxu0 %v335
      %350 = vmatprep.subr.mxu0 0.0
      %351 = vmatpush1.msra.mxu0 %v334
      %352 = vmatprep.subr.mxu0 0.0
      %353 = vmatpush1.msra.mxu0 %v333
      %354 = vmatprep.subr.mxu0 0.0
      %355 = vmatpush1.msra.mxu0 %v332
      %356 = vmatprep.subr.mxu0 0.0
      %357 = vmatpush1.msra.mxu0 %v331
      %358 = vmatprep.subr.mxu0 0.0
      %359 = vmatpush1.msra.mxu0 %v330
      %360 = vmatprep.subr.mxu0 0.0
      %361 = vmatpush1.msra.mxu0 %v329
      %362 = vmatprep.subr.mxu0 0.0
      %363 = vmatpush1.msra.mxu0 %v328
      %364 = vmatprep.subr.mxu0 0.0
      %365 = vmatpush1.msra.mxu0 %v327
      %366 = vmatprep.subr.mxu0 0.0
      %367 = vmatpush1.msra.mxu0 %v326
      %368 = vmatprep.subr.mxu0 0.0
      %369 = vmatpush1.msra.mxu0 %v325
      %370 = vmatprep.subr.mxu0 0.0
      %371 = vmatpush1.msra.mxu0 %v324
      %372 = vmatprep.subr.mxu0 0.0
      %373 = vmatpush2.msra.mxu0 0.0
      %374 = vmatprep.subr.mxu0 0.0
      %375 = vmatpush2.msra.mxu0 0.0
      %376 = vmatprep.subr.mxu0 0.0
      %377 = vmatpush2.msra.mxu0 0.0
      %378 = vmatprep.subr.mxu0 0.0
      %379 = vmatpush2.msra.mxu0 0.0
      %380 = vmatprep.subr.mxu0 0.0
      %381 = vmatpush2.msra.mxu0 0.0
      %382 = vmatprep.subr.mxu0 0.0
      %383 = vmatpush2.msra.mxu0 0.0
      %384 = vmatprep.subr.mxu0 0.0
      %385 = vmatpush2.msra.mxu0 0.0
      %386 = vmatprep.subr.mxu0 0.0
      %387 = vmatpush2.msra.mxu0 0.0
      %388 = vmatprep.subr.mxu0 0.0
      %389 = vmatpush2.msra.mxu0 0.0
      %390 = vmatprep.subr.mxu0 0.0
      %391 = vmatpush2.msra.mxu0 0.0
      %392 = vmatprep.subr.mxu0 0.0
      %393 = vmatpush2.msra.mxu0 0.0
      %394 = vmatprep.subr.mxu0 0.0
      %395 = vmatpush2.msra.mxu0 0.0
      %396 = vmatprep.subr.mxu0 0.0
      %397 = vmatpush2.msra.mxu0 0.0
      %398 = vmatprep.subr.mxu0 0.0
      %399 = vmatpush2.msra.mxu0 0.0
      %400 = vmatprep.subr.mxu0 0.0
      %401 = vmatpush2.msra.mxu0 0.0
      %402 = vmatprep.subr.mxu0 0.0
      %403 = vmatpush2.msra.mxu0 0.0
      %404 = vmatprep.mubr.f32.mxu0 0.0
      %405 = vmatmul.mubr.f32.gmra.mxu0 %v315
      %v406 = vpop.f32.mrf.mxu0
      %v407 = vadd.f32 0.0, %v406
      %v408 = vpop.f32.mrf.mxu0
      %409 = vmatprep.mubr.f32.mxu0 0.0
      %410 = vmatmul.mubr.f32.gmra.mxu0 %v316
      %v411 = vpop.f32.mrf.mxu0
      %v412 = vadd.f32 0.0, %v411
      %v413 = vpop.f32.mrf.mxu0
      %414 = vmatprep.mubr.f32.mxu0 0.0
      %415 = vmatmul.mubr.f32.gmra.mxu0 %v317
      %v416 = vpop.f32.mrf.mxu0
      %v417 = vadd.f32 0.0, %v416
      %v418 = vpop.f32.mrf.mxu0
      %419 = vmatprep.mubr.f32.mxu0 0.0
      %420 = vmatmul.mubr.f32.gmra.mxu0 %v318
      %v421 = vpop.f32.mrf.mxu0
      %v422 = vadd.f32 0.0, %v421
      %v423 = vpop.f32.mrf.mxu0
      %424 = vmatprep.mubr.f32.mxu0 0.0
      %425 = vmatmul.mubr.f32.gmra.mxu0 %v319
      %v426 = vpop.f32.mrf.mxu0
      %v427 = vadd.f32 0.0, %v426
      %v428 = vpop.f32.mrf.mxu0
      %429 = vmatprep.mubr.f32.mxu0 0.0
      %430 = vmatmul.mubr.f32.gmra.mxu0 %v320
      %v431 = vpop.f32.mrf.mxu0
      %v432 = vadd.f32 0.0, %v431
      %v433 = vpop.f32.mrf.mxu0
      %434 = vmatprep.mubr.f32.mxu0 0.0
      %435 = vmatmul.mubr.f32.gmra.mxu0 %v321
      %v436 = vpop.f32.mrf.mxu0
      %v437 = vadd.f32 0.0, %v436
      %v438 = vpop.f32.mrf.mxu0
      %439 = vmatprep.mubr.f32.mxu0 0.0
      %440 = vmatmul.mubr.f32.gmra.mxu0 %v322
      %v441 = vpop.f32.mrf.mxu0
      %v442 = vadd.f32 0.0, %v441
      %v443 = vpop.f32.mrf.mxu0
      %444 = vdwg.mxu0
      %445 = vmatprep.subr.mxu0 0.0
      %446 = vmatpush1.msra.mxu0 %v312
      %447 = vmatprep.subr.mxu0 0.0
      %448 = vmatpush1.msra.mxu0 %v311
      %449 = vmatprep.subr.mxu0 0.0
      %450 = vmatpush1.msra.mxu0 %v310
      %451 = vmatprep.subr.mxu0 0.0
      %452 = vmatpush1.msra.mxu0 %v309
      %453 = vmatprep.subr.mxu0 0.0
      %454 = vmatpush1.msra.mxu0 %v308
      %455 = vmatprep.subr.mxu0 0.0
      %456 = vmatpush1.msra.mxu0 %v307
      %457 = vmatprep.subr.mxu0 0.0
      %458 = vmatpush1.msra.mxu0 %v306
      %459 = vmatprep.subr.mxu0 0.0
      %460 = vmatpush1.msra.mxu0 %v305
      %461 = vmatprep.subr.mxu0 0.0
      %462 = vmatpush1.msra.mxu0 %v304
      %463 = vmatprep.subr.mxu0 0.0
      %464 = vmatpush1.msra.mxu0 %v303
      %465 = vmatprep.subr.mxu0 0.0
      %466 = vmatpush1.msra.mxu0 %v302
      %467 = vmatprep.subr.mxu0 0.0
      %468 = vmatpush1.msra.mxu0 %v301
      %469 = vmatprep.subr.mxu0 0.0
      %470 = vmatpush1.msra.mxu0 %v300
      %471 = vmatprep.subr.mxu0 0.0
      %472 = vmatpush1.msra.mxu0 %v299
      %473 = vmatprep.subr.mxu0 0.0
      %474 = vmatpush1.msra.mxu0 %v298
      %475 = vmatprep.subr.mxu0 0.0
      %476 = vmatpush1.msra.mxu0 %v297
      %477 = vmatprep.subr.mxu0 0.0
      %478 = vmatpush2.msra.mxu0 0.0
      %479 = vmatprep.subr.mxu0 0.0
      %480 = vmatpush2.msra.mxu0 0.0
      %481 = vmatprep.subr.mxu0 0.0
      %482 = vmatpush2.msra.mxu0 0.0
      %483 = vmatprep.subr.mxu0 0.0
      %484 = vmatpush2.msra.mxu0 0.0
      %485 = vmatprep.subr.mxu0 0.0
      %486 = vmatpush2.msra.mxu0 0.0
      %487 = vmatprep.subr.mxu0 0.0
      %488 = vmatpush2.msra.mxu0 0.0
      %489 = vmatprep.subr.mxu0 0.0
      %490 = vmatpush2.msra.mxu0 0.0
      %491 = vmatprep.subr.mxu0 0.0
      %492 = vmatpush2.msra.mxu0 0.0
      %493 = vmatprep.subr.mxu0 0.0
      %494 = vmatpush2.msra.mxu0 0.0
      %495 = vmatprep.subr.mxu0 0.0
      %496 = vmatpush2.msra.mxu0 0.0
      %497 = vmatprep.subr.mxu0 0.0
      %498 = vmatpush2.msra.mxu0 0.0
      %499 = vmatprep.subr.mxu0 0.0
      %500 = vmatpush2.msra.mxu0 0.0
      %501 = vmatprep.subr.mxu0 0.0
      %502 = vmatpush2.msra.mxu0 0.0
      %503 = vmatprep.subr.mxu0 0.0
      %504 = vmatpush2.msra.mxu0 0.0
      %505 = vmatprep.subr.mxu0 0.0
      %506 = vmatpush2.msra.mxu0 0.0
      %507 = vmatprep.subr.mxu0 0.0
      %508 = vmatpush2.msra.mxu0 0.0
      %509 = vmatprep.mubr.f32.mxu0 0.0
      %510 = vmatmul.mubr.f32.gmra.mxu0 %v289
      %v511 = vpop.f32.mrf.mxu0
      %v512 = vadd.f32 %v407, %v511
      %v513 = vpop.f32.mrf.mxu0
      %514 = vmatprep.mubr.f32.mxu0 0.0
      %515 = vmatmul.mubr.f32.gmra.mxu0 %v290
      %v516 = vpop.f32.mrf.mxu0
      %v517 = vadd.f32 %v412, %v516
      %v518 = vpop.f32.mrf.mxu0
      %519 = vmatprep.mubr.f32.mxu0 0.0
      %520 = vmatmul.mubr.f32.gmra.mxu0 %v291
      %v521 = vpop.f32.mrf.mxu0
      %v522 = vadd.f32 %v417, %v521
      %v523 = vpop.f32.mrf.mxu0
      %524 = vmatprep.mubr.f32.mxu0 0.0
      %525 = vmatmul.mubr.f32.gmra.mxu0 %v292
      %v526 = vpop.f32.mrf.mxu0
      %v527 = vadd.f32 %v422, %v526
      %v528 = vpop.f32.mrf.mxu0
      %529 = vmatprep.mubr.f32.mxu0 0.0
      %530 = vmatmul.mubr.f32.gmra.mxu0 %v293
      %v531 = vpop.f32.mrf.mxu0
      %v532 = vadd.f32 %v427, %v531
      %v533 = vpop.f32.mrf.mxu0
      %534 = vmatprep.mubr.f32.mxu0 0.0
      %535 = vmatmul.mubr.f32.gmra.mxu0 %v294
      %v536 = vpop.f32.mrf.mxu0
      %v537 = vadd.f32 %v432, %v536
      %v538 = vpop.f32.mrf.mxu0
      %539 = vmatprep.mubr.f32.mxu0 0.0
      %540 = vmatmul.mubr.f32.gmra.mxu0 %v295
      %v541 = vpop.f32.mrf.mxu0
      %v542 = vadd.f32 %v437, %v541
      %v543 = vpop.f32.mrf.mxu0
      %544 = vmatprep.mubr.f32.mxu0 0.0
      %545 = vmatmul.mubr.f32.gmra.mxu0 %v296
      %v546 = vpop.f32.mrf.mxu0
      %v547 = vadd.f32 %v442, %v546
      %v548 = vpop.f32.mrf.mxu0
      %549 = vdwg.mxu0
      %s550 = sadd.s32 %s287, 9
      %s551 = scalar_lea.vmem %s264, %s550
      %v552 = vld [vmem:[%s551] sm:$0xff]
      %v553 = vld [vmem:[%s551 + $0x8] sm:$0xff]
      %v554 = vld [vmem:[%s551 + $0x10] sm:$0xff]
      %v555 = vld [vmem:[%s551 + $0x18] sm:$0xff]
      %v556 = vld [vmem:[%s551 + $0x20] sm:$0xff]
      %v557 = vld [vmem:[%s551 + $0x28] sm:$0xff]
      %v558 = vld [vmem:[%s551 + $0x30] sm:$0xff]
      %v559 = vld [vmem:[%s551 + $0x38] sm:$0xff]
      %s560 = scalar_lea.vmem %s1, 256
      %v561 = vld [vmem:[%s560] sm:$0xff]
      %v562 = vld [vmem:[%s560 + $0x8] sm:$0xff]
      %v563 = vld [vmem:[%s560 + $0x10] sm:$0xff]
      %v564 = vld [vmem:[%s560 + $0x18] sm:$0xff]
      %v565 = vld [vmem:[%s560 + $0x20] sm:$0xff]
      %v566 = vld [vmem:[%s560 + $0x28] sm:$0xff]
      %v567 = vld [vmem:[%s560 + $0x30] sm:$0xff]
      %v568 = vld [vmem:[%s560 + $0x38] sm:$0xff]
      %v569 = vld [vmem:[%s560 + $0x40] sm:$0xff]
      %v570 = vld [vmem:[%s560 + $0x48] sm:$0xff]
      %v571 = vld [vmem:[%s560 + $0x50] sm:$0xff]
      %v572 = vld [vmem:[%s560 + $0x58] sm:$0xff]
      %v573 = vld [vmem:[%s560 + $0x60] sm:$0xff]
      %v574 = vld [vmem:[%s560 + $0x68] sm:$0xff]
      %v575 = vld [vmem:[%s560 + $0x70] sm:$0xff]
      %v576 = vld [vmem:[%s560 + $0x78] sm:$0xff]
      %577 = vmatprep.subr.mxu0 0.0
      %578 = vmatpush1.msra.mxu0 %v576
      %579 = vmatprep.subr.mxu0 0.0
      %580 = vmatpush1.msra.mxu0 %v575
      %581 = vmatprep.subr.mxu0 0.0
      %582 = vmatpush1.msra.mxu0 %v574
      %583 = vmatprep.subr.mxu0 0.0
      %584 = vmatpush1.msra.mxu0 %v573
      %585 = vmatprep.subr.mxu0 0.0
      %586 = vmatpush1.msra.mxu0 %v572
      %587 = vmatprep.subr.mxu0 0.0
      %588 = vmatpush1.msra.mxu0 %v571
      %589 = vmatprep.subr.mxu0 0.0
      %590 = vmatpush1.msra.mxu0 %v570
      %591 = vmatprep.subr.mxu0 0.0
      %592 = vmatpush1.msra.mxu0 %v569
      %593 = vmatprep.subr.mxu0 0.0
      %594 = vmatpush1.msra.mxu0 %v568
      %595 = vmatprep.subr.mxu0 0.0
      %596 = vmatpush1.msra.mxu0 %v567
      %597 = vmatprep.subr.mxu0 0.0
      %598 = vmatpush1.msra.mxu0 %v566
      %599 = vmatprep.subr.mxu0 0.0
      %600 = vmatpush1.msra.mxu0 %v565
      %601 = vmatprep.subr.mxu0 0.0
      %602 = vmatpush1.msra.mxu0 %v564
      %603 = vmatprep.subr.mxu0 0.0
      %604 = vmatpush1.msra.mxu0 %v563
      %605 = vmatprep.subr.mxu0 0.0
      %606 = vmatpush1.msra.mxu0 %v562
      %607 = vmatprep.subr.mxu0 0.0
      %608 = vmatpush1.msra.mxu0 %v561
      %609 = vmatprep.subr.mxu0 0.0
      %610 = vmatpush2.msra.mxu0 0.0
      %611 = vmatprep.subr.mxu0 0.0
      %612 = vmatpush2.msra.mxu0 0.0
      %613 = vmatprep.subr.mxu0 0.0
      %614 = vmatpush2.msra.mxu0 0.0
      %615 = vmatprep.subr.mxu0 0.0
      %616 = vmatpush2.msra.mxu0 0.0
      %617 = vmatprep.subr.mxu0 0.0
      %618 = vmatpush2.msra.mxu0 0.0
      %619 = vmatprep.subr.mxu0 0.0
      %620 = vmatpush2.msra.mxu0 0.0
      %621 = vmatprep.subr.mxu0 0.0
      %622 = vmatpush2.msra.mxu0 0.0
      %623 = vmatprep.subr.mxu0 0.0
      %624 = vmatpush2.msra.mxu0 0.0
      %625 = vmatprep.subr.mxu0 0.0
      %626 = vmatpush2.msra.mxu0 0.0
      %627 = vmatprep.subr.mxu0 0.0
      %628 = vmatpush2.msra.mxu0 0.0
      %629 = vmatprep.subr.mxu0 0.0
      %630 = vmatpush2.msra.mxu0 0.0
      %631 = vmatprep.subr.mxu0 0.0
      %632 = vmatpush2.msra.mxu0 0.0
      %633 = vmatprep.subr.mxu0 0.0
      %634 = vmatpush2.msra.mxu0 0.0
      %635 = vmatprep.subr.mxu0 0.0
      %636 = vmatpush2.msra.mxu0 0.0
      %637 = vmatprep.subr.mxu0 0.0
      %638 = vmatpush2.msra.mxu0 0.0
      %639 = vmatprep.subr.mxu0 0.0
      %640 = vmatpush2.msra.mxu0 0.0
      %641 = vmatprep.mubr.f32.mxu0 0.0
      %642 = vmatmul.mubr.f32.gmra.mxu0 %v552
      %v643 = vpop.f32.mrf.mxu0
      %v644 = vadd.f32 0.0, %v643
      %v645 = vpop.f32.mrf.mxu0
      %646 = vmatprep.mubr.f32.mxu0 0.0
      %647 = vmatmul.mubr.f32.gmra.mxu0 %v553
      %v648 = vpop.f32.mrf.mxu0
      %v649 = vadd.f32 0.0, %v648
      %v650 = vpop.f32.mrf.mxu0
      %651 = vmatprep.mubr.f32.mxu0 0.0
      %652 = vmatmul.mubr.f32.gmra.mxu0 %v554
      %v653 = vpop.f32.mrf.mxu0
      %v654 = vadd.f32 0.0, %v653
      %v655 = vpop.f32.mrf.mxu0
      %656 = vmatprep.mubr.f32.mxu0 0.0
      %657 = vmatmul.mubr.f32.gmra.mxu0 %v555
      %v658 = vpop.f32.mrf.mxu0
      %v659 = vadd.f32 0.0, %v658
      %v660 = vpop.f32.mrf.mxu0
      %661 = vmatprep.mubr.f32.mxu0 0.0
      %662 = vmatmul.mubr.f32.gmra.mxu0 %v556
      %v663 = vpop.f32.mrf.mxu0
      %v664 = vadd.f32 0.0, %v663
      %v665 = vpop.f32.mrf.mxu0
      %666 = vmatprep.mubr.f32.mxu0 0.0
      %667 = vmatmul.mubr.f32.gmra.mxu0 %v557
      %v668 = vpop.f32.mrf.mxu0
      %v669 = vadd.f32 0.0, %v668
      %v670 = vpop.f32.mrf.mxu0
      %671 = vmatprep.mubr.f32.mxu0 0.0
      %672 = vmatmul.mubr.f32.gmra.mxu0 %v558
      %v673 = vpop.f32.mrf.mxu0
      %v674 = vadd.f32 0.0, %v673
      %v675 = vpop.f32.mrf.mxu0
      %676 = vmatprep.mubr.f32.mxu0 0.0
      %677 = vmatmul.mubr.f32.gmra.mxu0 %v559
      %v678 = vpop.f32.mrf.mxu0
      %v679 = vadd.f32 0.0, %v678
      %v680 = vpop.f32.mrf.mxu0
      %681 = vdwg.mxu0
      %v682 = vadd.f32 %v512, %v644
      %v683 = vadd.f32 %v517, %v649
      %v684 = vadd.f32 %v522, %v654
      %v685 = vadd.f32 %v527, %v659
      %v686 = vadd.f32 %v532, %v664
      %v687 = vadd.f32 %v537, %v669
      %v688 = vadd.f32 %v542, %v674
      %v689 = vadd.f32 %v547, %v679
      %s690 = sadd.s32 %s287, 10
      %s691 = scalar_lea.vmem %s264, %s690
      %v692 = vld [vmem:[%s691] sm:$0xff]
      %v693 = vld [vmem:[%s691 + $0x8] sm:$0xff]
      %v694 = vld [vmem:[%s691 + $0x10] sm:$0xff]
      %v695 = vld [vmem:[%s691 + $0x18] sm:$0xff]
      %v696 = vld [vmem:[%s691 + $0x20] sm:$0xff]
      %v697 = vld [vmem:[%s691 + $0x28] sm:$0xff]
      %v698 = vld [vmem:[%s691 + $0x30] sm:$0xff]
      %v699 = vld [vmem:[%s691 + $0x38] sm:$0xff]
      %s700 = scalar_lea.vmem %s1, 384
      %v701 = vld [vmem:[%s700] sm:$0xff]
      %v702 = vld [vmem:[%s700 + $0x8] sm:$0xff]
      %v703 = vld [vmem:[%s700 + $0x10] sm:$0xff]
      %v704 = vld [vmem:[%s700 + $0x18] sm:$0xff]
      %v705 = vld [vmem:[%s700 + $0x20] sm:$0xff]
      %v706 = vld [vmem:[%s700 + $0x28] sm:$0xff]
      %v707 = vld [vmem:[%s700 + $0x30] sm:$0xff]
      %v708 = vld [vmem:[%s700 + $0x38] sm:$0xff]
      %v709 = vld [vmem:[%s700 + $0x40] sm:$0xff]
      %v710 = vld [vmem:[%s700 + $0x48] sm:$0xff]
      %v711 = vld [vmem:[%s700 + $0x50] sm:$0xff]
      %v712 = vld [vmem:[%s700 + $0x58] sm:$0xff]
      %v713 = vld [vmem:[%s700 + $0x60] sm:$0xff]
      %v714 = vld [vmem:[%s700 + $0x68] sm:$0xff]
      %v715 = vld [vmem:[%s700 + $0x70] sm:$0xff]
      %v716 = vld [vmem:[%s700 + $0x78] sm:$0xff]
      %717 = vmatprep.subr.mxu0 0.0
      %718 = vmatpush1.msra.mxu0 %v716
      %719 = vmatprep.subr.mxu0 0.0
      %720 = vmatpush1.msra.mxu0 %v715
      %721 = vmatprep.subr.mxu0 0.0
      %722 = vmatpush1.msra.mxu0 %v714
      %723 = vmatprep.subr.mxu0 0.0
      %724 = vmatpush1.msra.mxu0 %v713
      %725 = vmatprep.subr.mxu0 0.0
      %726 = vmatpush1.msra.mxu0 %v712
      %727 = vmatprep.subr.mxu0 0.0
      %728 = vmatpush1.msra.mxu0 %v711
      %729 = vmatprep.subr.mxu0 0.0
      %730 = vmatpush1.msra.mxu0 %v710
      %731 = vmatprep.subr.mxu0 0.0
      %732 = vmatpush1.msra.mxu0 %v709
      %733 = vmatprep.subr.mxu0 0.0
      %734 = vmatpush1.msra.mxu0 %v708
      %735 = vmatprep.subr.mxu0 0.0
      %736 = vmatpush1.msra.mxu0 %v707
      %737 = vmatprep.subr.mxu0 0.0
      %738 = vmatpush1.msra.mxu0 %v706
      %739 = vmatprep.subr.mxu0 0.0
      %740 = vmatpush1.msra.mxu0 %v705
      %741 = vmatprep.subr.mxu0 0.0
      %742 = vmatpush1.msra.mxu0 %v704
      %743 = vmatprep.subr.mxu0 0.0
      %744 = vmatpush1.msra.mxu0 %v703
      %745 = vmatprep.subr.mxu0 0.0
      %746 = vmatpush1.msra.mxu0 %v702
      %747 = vmatprep.subr.mxu0 0.0
      %748 = vmatpush1.msra.mxu0 %v701
      %749 = vmatprep.subr.mxu0 0.0
      %750 = vmatpush2.msra.mxu0 0.0
      %751 = vmatprep.subr.mxu0 0.0
      %752 = vmatpush2.msra.mxu0 0.0
      %753 = vmatprep.subr.mxu0 0.0
      %754 = vmatpush2.msra.mxu0 0.0
      %755 = vmatprep.subr.mxu0 0.0
      %756 = vmatpush2.msra.mxu0 0.0
      %757 = vmatprep.subr.mxu0 0.0
      %758 = vmatpush2.msra.mxu0 0.0
      %759 = vmatprep.subr.mxu0 0.0
      %760 = vmatpush2.msra.mxu0 0.0
      %761 = vmatprep.subr.mxu0 0.0
      %762 = vmatpush2.msra.mxu0 0.0
      %763 = vmatprep.subr.mxu0 0.0
      %764 = vmatpush2.msra.mxu0 0.0
      %765 = vmatprep.subr.mxu0 0.0
      %766 = vmatpush2.msra.mxu0 0.0
      %767 = vmatprep.subr.mxu0 0.0
      %768 = vmatpush2.msra.mxu0 0.0
      %769 = vmatprep.subr.mxu0 0.0
      %770 = vmatpush2.msra.mxu0 0.0
      %771 = vmatprep.subr.mxu0 0.0
      %772 = vmatpush2.msra.mxu0 0.0
      %773 = vmatprep.subr.mxu0 0.0
      %774 = vmatpush2.msra.mxu0 0.0
      %775 = vmatprep.subr.mxu0 0.0
      %776 = vmatpush2.msra.mxu0 0.0
      %777 = vmatprep.subr.mxu0 0.0
      %778 = vmatpush2.msra.mxu0 0.0
      %779 = vmatprep.subr.mxu0 0.0
      %780 = vmatpush2.msra.mxu0 0.0
      %781 = vmatprep.mubr.f32.mxu0 0.0
      %782 = vmatmul.mubr.f32.gmra.mxu0 %v692
      %v783 = vpop.f32.mrf.mxu0
      %v784 = vadd.f32 0.0, %v783
      %v785 = vpop.f32.mrf.mxu0
      %786 = vmatprep.mubr.f32.mxu0 0.0
      %787 = vmatmul.mubr.f32.gmra.mxu0 %v693
      %v788 = vpop.f32.mrf.mxu0
      %v789 = vadd.f32 0.0, %v788
      %v790 = vpop.f32.mrf.mxu0
      %791 = vmatprep.mubr.f32.mxu0 0.0
      %792 = vmatmul.mubr.f32.gmra.mxu0 %v694
      %v793 = vpop.f32.mrf.mxu0
      %v794 = vadd.f32 0.0, %v793
      %v795 = vpop.f32.mrf.mxu0
      %796 = vmatprep.mubr.f32.mxu0 0.0
      %797 = vmatmul.mubr.f32.gmra.mxu0 %v695
      %v798 = vpop.f32.mrf.mxu0
      %v799 = vadd.f32 0.0, %v798
      %v800 = vpop.f32.mrf.mxu0
      %801 = vmatprep.mubr.f32.mxu0 0.0
      %802 = vmatmul.mubr.f32.gmra.mxu0 %v696
      %v803 = vpop.f32.mrf.mxu0
      %v804 = vadd.f32 0.0, %v803
      %v805 = vpop.f32.mrf.mxu0
      %806 = vmatprep.mubr.f32.mxu0 0.0
      %807 = vmatmul.mubr.f32.gmra.mxu0 %v697
      %v808 = vpop.f32.mrf.mxu0
      %v809 = vadd.f32 0.0, %v808
      %v810 = vpop.f32.mrf.mxu0
      %811 = vmatprep.mubr.f32.mxu0 0.0
      %812 = vmatmul.mubr.f32.gmra.mxu0 %v698
      %v813 = vpop.f32.mrf.mxu0
      %v814 = vadd.f32 0.0, %v813
      %v815 = vpop.f32.mrf.mxu0
      %816 = vmatprep.mubr.f32.mxu0 0.0
      %817 = vmatmul.mubr.f32.gmra.mxu0 %v699
      %v818 = vpop.f32.mrf.mxu0
      %v819 = vadd.f32 0.0, %v818
      %v820 = vpop.f32.mrf.mxu0
      %821 = vdwg.mxu0
      %v822 = vadd.f32 %v682, %v784
      %v823 = vadd.f32 %v683, %v789
      %v824 = vadd.f32 %v684, %v794
      %v825 = vadd.f32 %v685, %v799
      %v826 = vadd.f32 %v686, %v804
      %v827 = vadd.f32 %v687, %v809
      %v828 = vadd.f32 %v688, %v814
      %v829 = vadd.f32 %v689, %v819
      %830 = vst [vmem:[%s279] sm:$0xff] %v822
      %831 = vst [vmem:[%s279 + $0x8] sm:$0xff] %v823
      %832 = vst [vmem:[%s279 + $0x10] sm:$0xff] %v824
      %833 = vst [vmem:[%s279 + $0x18] sm:$0xff] %v825
      %834 = vst [vmem:[%s279 + $0x20] sm:$0xff] %v826
      %835 = vst [vmem:[%s279 + $0x28] sm:$0xff] %v827
      %836 = vst [vmem:[%s279 + $0x30] sm:$0xff] %v828
      %837 = vst [vmem:[%s279 + $0x38] sm:$0xff] %v829
      %v838 = vld [vmem:[%s269] sm:$0xff]
      %v839 = vld [vmem:[%s269 + $0x8] sm:$0xff]
      %v840 = vld [vmem:[%s269 + $0x10] sm:$0xff]
      %v841 = vld [vmem:[%s269 + $0x18] sm:$0xff]
      %v842 = vld [vmem:[%s269 + $0x20] sm:$0xff]
      %v843 = vld [vmem:[%s269 + $0x28] sm:$0xff]
      %v844 = vld [vmem:[%s269 + $0x30] sm:$0xff]
      %v845 = vld [vmem:[%s269 + $0x38] sm:$0xff]
      %847 = vset.pattern.permute.xlu0 0
      %848 = vperm.xlu0 %847, %v838
      %v849 = vpop.permute.xlu0 %848
      %852 = vset.pattern.permute.xlu0 0
      %853 = vperm.xlu0 %852, %v839
      %v854 = vpop.permute.xlu0 %853
      %857 = vset.pattern.permute.xlu0 0
      %858 = vperm.xlu0 %857, %v840
      %v859 = vpop.permute.xlu0 %858
      %862 = vset.pattern.permute.xlu0 0
      %863 = vperm.xlu0 %862, %v841
      %v864 = vpop.permute.xlu0 %863
      %867 = vset.pattern.permute.xlu0 0
      %868 = vperm.xlu0 %867, %v842
      %v869 = vpop.permute.xlu0 %868
      %872 = vset.pattern.permute.xlu0 0
      %873 = vperm.xlu0 %872, %v843
      %v874 = vpop.permute.xlu0 %873
      %877 = vset.pattern.permute.xlu0 0
      %878 = vperm.xlu0 %877, %v844
      %v879 = vpop.permute.xlu0 %878
      %882 = vset.pattern.permute.xlu0 0
      %883 = vperm.xlu0 %882, %v845
      %v884 = vpop.permute.xlu0 %883
      %v886 = vmul.f32 %v822, %v849
      %v887 = vmul.f32 %v823, %v854
      %v888 = vmul.f32 %v824, %v859
      %v889 = vmul.f32 %v825, %v864
      %v890 = vmul.f32 %v826, %v869
      %v891 = vmul.f32 %v827, %v874
      %v892 = vmul.f32 %v828, %v879
      %v893 = vmul.f32 %v829, %v884
      %v894 = vadd.f32 %v886, %v887
      %v895 = vadd.f32 %v894, %v888
      %v896 = vadd.f32 %v895, %v889
      %v897 = vadd.f32 %v896, %v890
      %v898 = vadd.f32 %v897, %v891
      %v899 = vadd.f32 %v898, %v892
      %v900 = vadd.f32 %v899, %v893
      %v901 = vrot.slane %v900, 4
      %v902 = vadd.f32 %v900, %v901
      %v903 = vrot.slane %v902, 2
      %v904 = vadd.f32 %v902, %v903
      %v905 = vrot.slane %v904, 1
      %v906 = vadd.f32 %v904, %v905
      %v907 = vmul.f32 %v886, %v822
      %v908 = vmul.f32 %v887, %v823
      %v909 = vmul.f32 %v888, %v824
      %v910 = vmul.f32 %v889, %v825
      %v911 = vmul.f32 %v890, %v826
      %v912 = vmul.f32 %v891, %v827
      %v913 = vmul.f32 %v892, %v828
      %v914 = vmul.f32 %v893, %v829
      %v915 = vadd.f32 %v907, %v908
      %v916 = vadd.f32 %v915, %v909
      %v917 = vadd.f32 %v916, %v910
      %v918 = vadd.f32 %v917, %v911
      %v919 = vadd.f32 %v918, %v912
      %v920 = vadd.f32 %v919, %v913
      %v921 = vadd.f32 %v920, %v914
      %v922 = vrot.slane %v921, 4
      %v923 = vadd.f32 %v921, %v922
      %v924 = vrot.slane %v923, 2
      %v925 = vadd.f32 %v923, %v924
      %v926 = vrot.slane %v925, 1
      %v927 = vadd.f32 %v925, %v926
      %p928 = scmp.eq.s32.totalorder %s22, 0
      // Predicated region
      $region33: #{_lambda_.9} parent=31 // pred_check
        %p929 = pneg %p928
      $region34: #{_lambda_.9} parent=31 // pred_check_branch
        %931 = sbr.rel (%p929) target = $region36
      $region35: #{_lambda_.9} parent=31 // pred_region
        %932 = vst [vmem:[%s283] sm:$0x1] 0.0
        %933 = vst [vmem:[%s286] sm:$0x1] 0.0
      $region36: #{_lambda_.9} parent=31 // pred_fallthru
        _
      %v934 = vld [vmem:[%s283] sm:$0x1]
      %v935 = vadd.f32 %v934, %v906
      %936 = vst [vmem:[%s283] sm:$0x1] %v935
      %v937 = vld [vmem:[%s286] sm:$0x1]
      %v938 = vadd.f32 %v937, %v927
      %939 = vst [vmem:[%s286] sm:$0x1] %v938
      %s940 = smul.u32 8, %s22
      %p941 = scmp.lt.s32.totalorder %s21, 1
      %s942 = scalar_select %p941, %s21, 1
      %p943 = scmp.lt.s32.totalorder %s940, 15
      %s944 = scalar_select %p943, %s940, 15
      %s945 = smul.addr %s942, 16
      %s946 = sadd.s32 %s944, %s945
      %s947 = smul.addr %s946, 8
      %s948 = scalar_lea.vmem %s3, %s947
      %p949 = scmp.lt.s32.totalorder %s21, 1
      %s950 = scalar_select %p949, %s21, 1
      %s951 = scalar_lea.vmem %s4, %s950
      %p952 = scmp.lt.s32.totalorder %s21, 1
      %s953 = scalar_select %p952, %s21, 1
      %s954 = scalar_lea.vmem %s5, %s953
      // Predicated region
      $region37: #{_lambda_.9} parent=31 // pred_check
        %p955 = pneg %p122
      $region38: #{_lambda_.9} parent=31 // pred_check_branch
        %957 = sbr.rel (%p955) target = $region40
      $region39: #{_lambda_.9} parent=31 // pred_region
        %s958 = smul.u32 8, %s22
      $region40: #{_lambda_.9} parent=31 // pred_fallthru
        _
      // Predicated region
      $region41: #{_lambda_.9} parent=31 // pred_check
        %p959 = pneg %p148
      $region42: #{_lambda_.9} parent=31 // pred_check_branch
        %961 = sbr.rel (%p959) target = $region44
      $region43: #{_lambda_.9} parent=31 // pred_region
        _
      $region44: #{_lambda_.9} parent=31 // pred_fallthru
        _
      // Predicated region
      $region45: #{_lambda_.9} parent=31 // pred_check
        %p962 = pneg %p174
      $region46: #{_lambda_.9} parent=31 // pred_check_branch
        %964 = sbr.rel (%p962) target = $region48
      $region47: #{_lambda_.9} parent=31 // pred_region
        _
      $region48: #{_lambda_.9} parent=31 // pred_fallthru
        _
    $region32: #{_lambda_.9} parent=5 // pred_fallthru
      _
    %p965 = scmp.le.s32.totalorder 2, %s12
    // Predicated region
    $region49: #{_lambda_.9} parent=5 // pred_check
      %p966 = pneg %p965
    $region50: #{_lambda_.9} parent=5 // pred_check_branch
      %968 = sbr.rel (%p966) target = $region52
    $region51: #{_lambda_.9} parent=5 // pred_region
      %s969 = ssub.s32 %s12, 2
      // Predicated region
      $region53: #{_lambda_.9} parent=51 // pred_check
        %p970 = pneg %p128
      $region54: #{_lambda_.9} parent=51 // pred_check_branch
        %972 = sbr.rel (%p970) target = $region56
      $region55: #{_lambda_.9} parent=51 // pred_region
        %s973 = smul.u32 8, %s24
        %p974 = scmp.lt.s32.totalorder %s23, 1
        %s975 = scalar_select %p974, %s23, 1
        %p976 = scmp.lt.s32.totalorder %s973, 15
        %s977 = scalar_select %p976, %s973, 15
        %s978 = smul.addr %s975, 16
        %s979 = sadd.s32 %s977, %s978
        %s980 = smul.addr %s979, 8
        %s981 = scalar_lea.vmem %s3, %s980
      $region56: #{_lambda_.9} parent=51 // pred_fallthru
        _
      // Predicated region
      $region57: #{_lambda_.9} parent=51 // pred_check
        %p982 = pneg %p154
      $region58: #{_lambda_.9} parent=51 // pred_check_branch
        %984 = sbr.rel (%p982) target = $region60
      $region59: #{_lambda_.9} parent=51 // pred_region
        %p985 = scmp.lt.s32.totalorder %s23, 1
        %s986 = scalar_select %p985, %s23, 1
        %s987 = scalar_lea.vmem %s4, %s986
      $region60: #{_lambda_.9} parent=51 // pred_fallthru
        _
      // Predicated region
      $region61: #{_lambda_.9} parent=51 // pred_check
        %p988 = pneg %p180
      $region62: #{_lambda_.9} parent=51 // pred_check_branch
        %990 = sbr.rel (%p988) target = $region64
      $region63: #{_lambda_.9} parent=51 // pred_region
        %p991 = scmp.lt.s32.totalorder %s23, 1
        %s992 = scalar_select %p991, %s23, 1
        %s993 = scalar_lea.vmem %s5, %s992
      $region64: #{_lambda_.9} parent=51 // pred_fallthru
        _
    $region52: #{_lambda_.9} parent=5 // pred_fallthru
      _
  $region6: #{_lambda_.9} parent=0 // loop_footer
    %s16 = sadd.s32 1, %s12
  $region7: #{_lambda_.9} parent=0 // loop_footer_branch
    %11 = sbr.rel target = $region3
  $region8: #{_lambda_.9} parent=0 // loop_exit
    _

// kernel: _lambda_.10
$region0: #{_lambda_.10}
  #allocation0 [shape = 'u32[]', space=smem, size = 0x4, offset = 0x4, fixed_abs, tag = 'smem constant byte address 0x4 - core index']
  #allocation1 [shape = 'u32[144,128]{1,0:T(1,128)}', space=vmem, size = 0x12000, scoped, tag = 'internal scratch']
  %s0 = inlined_call_operand.vmem [shape: f32[2,128,128], index: 0, kind: input, shape index: {}]
  %s1 = inlined_call_operand.vmem [shape: f32[2,1,128], index: 1, kind: input, shape index: {}]
  %s2 = inlined_call_operand.vmem [shape: f32[2,1,128], index: 2, kind: input, shape index: {}]
  %s3 = inlined_call_operand.vmem [shape: f32[2,128,128], index: 3, kind: output, shape index: {}]
  %s4 = sld [smem:[#allocation0]]
  $region45: #{_lambda_.10} parent=0
    _
  %s6 = ssub.s32 1, %s4
  %s7 = scalar_select 0, %s6, %s4
  loop: start=0, step=1, limit=6
  $region2: #{_lambda_.10} parent=0 // loop_pre_header
    _
  $region3: #{_lambda_.10} parent=0 // loop_header
    %s9 = sphi 0, %s13
    %p10 = scmp.ge.s32.totalorder %s9, 6
    %s16 = sphi 0, %s28
    %s17 = sphi 0, %s24
    %s18 = sphi 0, %s16
    %s19 = sphi 0, %s17
    %s20 = sphi 0, %s18
    %s21 = sphi 0, %s19
    %s33 = sphi 0, %s35
    %s36 = sphi 0, %s33
    %s37 = sphi 0, %s36
    %s53 = sphi 0, %s37
    %s59 = sphi 0, %s61
    %s62 = sphi 0, %s59
    %s63 = sphi 0, %s62
    %s79 = sphi 0, %s63
    %s85 = sphi 0, %s87
    %s88 = sphi 0, %s85
    %s89 = sphi 0, %s88
    %s105 = sphi 0, %s89
    %s113 = sphi 0, %s115
    %s116 = sphi 0, %s113
    %s117 = sphi 0, %s116
    %s133 = sphi 0, %s117
  $region4: #{_lambda_.10} parent=0 // loop_header_branch
    %12 = sbr.rel (%p10) target = $region8
  $region5: #{_lambda_.10} parent=0 // loop_body
    %s14 = ssub.s32 %s9, 1
    %s15 = ssub.s32 %s9, 2
    %s22 = sadd.s32 1, %s17
    %p23 = scmp.ge.s32.totalorder %s22, 2
    %s24 = scalar_select %p23, 0, %s22
    %s25 = sadd.s32 1, %s16
    %s26 = scalar_select %p23, %s25, %s16
    %p27 = scmp.ge.s32.totalorder %s26, 2
    %s28 = scalar_select %p27, 0, %s26
    %s29 = ssub.s32 %s16, %s28
    %s30 = ssub.s32 %s17, %s24
    %s31 = sor.u32 %s29, %s30
    %p32 = scmp.eq.s32.totalorder %s31, 0
    %s34 = sadd.s32 %s33, 1
    %s35 = scalar_select %p32, %s33, %s34
    %p38 = pneg %p32
    %p39 = scmp.eq.s32.totalorder %s9, 3
    %p40 = por %p38, %p39
    %p41 = scmp.ne.s32.totalorder %s33, %s36
    %p42 = scmp.eq.s32.totalorder %s9, 0
    %p43 = por %p41, %p42
    %p44 = scmp.ne.s32.totalorder %s33, %s36
    %p45 = scmp.eq.s32.totalorder %s14, 3
    %p46 = por %p44, %p45
    %p47 = scmp.ne.s32.totalorder %s36, %s37
    %p48 = scmp.eq.s32.totalorder %s14, 0
    %p49 = por %p47, %p48
    %p50 = scmp.ne.s32.totalorder %s36, %s37
    %p51 = scmp.eq.s32.totalorder %s15, 3
    %p52 = por %p50, %p51
    %p54 = scmp.ne.s32.totalorder %s37, %s53
    %p55 = scmp.eq.s32.totalorder %s15, 0
    %p56 = por %p54, %p55
    %s57 = ssub.s32 %s16, %s28
    %p58 = scmp.eq.s32.totalorder %s57, 0
    %s60 = sadd.s32 %s59, 1
    %s61 = scalar_select %p58, %s59, %s60
    %p64 = pneg %p58
    %p65 = scmp.eq.s32.totalorder %s9, 3
    %p66 = por %p64, %p65
    %p67 = scmp.ne.s32.totalorder %s59, %s62
    %p68 = scmp.eq.s32.totalorder %s9, 0
    %p69 = por %p67, %p68
    %p70 = scmp.ne.s32.totalorder %s59, %s62
    %p71 = scmp.eq.s32.totalorder %s14, 3
    %p72 = por %p70, %p71
    %p73 = scmp.ne.s32.totalorder %s62, %s63
    %p74 = scmp.eq.s32.totalorder %s14, 0
    %p75 = por %p73, %p74
    %p76 = scmp.ne.s32.totalorder %s62, %s63
    %p77 = scmp.eq.s32.totalorder %s15, 3
    %p78 = por %p76, %p77
    %p80 = scmp.ne.s32.totalorder %s63, %s79
    %p81 = scmp.eq.s32.totalorder %s15, 0
    %p82 = por %p80, %p81
    %s83 = ssub.s32 %s16, %s28
    %p84 = scmp.eq.s32.totalorder %s83, 0
    %s86 = sadd.s32 %s85, 1
    %s87 = scalar_select %p84, %s85, %s86
    %p90 = pneg %p84
    %p91 = scmp.eq.s32.totalorder %s9, 3
    %p92 = por %p90, %p91
    %p93 = scmp.ne.s32.totalorder %s85, %s88
    %p94 = scmp.eq.s32.totalorder %s9, 0
    %p95 = por %p93, %p94
    %p96 = scmp.ne.s32.totalorder %s85, %s88
    %p97 = scmp.eq.s32.totalorder %s14, 3
    %p98 = por %p96, %p97
    %p99 = scmp.ne.s32.totalorder %s88, %s89
    %p100 = scmp.eq.s32.totalorder %s14, 0
    %p101 = por %p99, %p100
    %p102 = scmp.ne.s32.totalorder %s88, %s89
    %p103 = scmp.eq.s32.totalorder %s15, 3
    %p104 = por %p102, %p103
    %p106 = scmp.ne.s32.totalorder %s89, %s105
    %p107 = scmp.eq.s32.totalorder %s15, 0
    %p108 = por %p106, %p107
    %s109 = ssub.s32 %s16, %s28
    %s110 = ssub.s32 %s17, %s24
    %s111 = sor.u32 %s109, %s110
    %p112 = scmp.eq.s32.totalorder %s111, 0
    %s114 = sadd.s32 %s113, 1
    %s115 = scalar_select %p112, %s113, %s114
    %p118 = pneg %p112
    %p119 = scmp.eq.s32.totalorder %s9, 3
    %p120 = por %p118, %p119
    %p121 = scmp.ne.s32.totalorder %s113, %s116
    %p122 = scmp.eq.s32.totalorder %s9, 0
    %p123 = por %p121, %p122
    %p124 = scmp.ne.s32.totalorder %s113, %s116
    %p125 = scmp.eq.s32.totalorder %s14, 3
    %p126 = por %p124, %p125
    %p127 = scmp.ne.s32.totalorder %s116, %s117
    %p128 = scmp.eq.s32.totalorder %s14, 0
    %p129 = por %p127, %p128
    %p130 = scmp.ne.s32.totalorder %s116, %s117
    %p131 = scmp.eq.s32.totalorder %s15, 3
    %p132 = por %p130, %p131
    %p134 = scmp.ne.s32.totalorder %s117, %s133
    %p135 = scmp.eq.s32.totalorder %s15, 0
    %p136 = por %p134, %p135
    %p137 = scmp.le.s32.totalorder 1, %s9
    %p138 = scmp.lt.s32.totalorder %s9, 5
    %p139 = pnand %p137, %p138
    %p140 = pneg %p139
    // Predicated region
    $region9: #{_lambda_.10} parent=5 // pred_check
      _
    $region10: #{_lambda_.10} parent=5 // pred_check_branch
      %142 = sbr.rel (%p139) target = $region12
    $region11: #{_lambda_.10} parent=5 // pred_region
      %s143 = ssub.s32 %s9, 1
    $region12: #{_lambda_.10} parent=5 // pred_fallthru
      _
    %p144 = scmp.lt.s32.totalorder %s9, 4
    // Predicated region
    $region13: #{_lambda_.10} parent=5 // pred_check
      %p145 = pneg %p144
    $region14: #{_lambda_.10} parent=5 // pred_check_branch
      %147 = sbr.rel (%p145) target = $region16
    $region15: #{_lambda_.10} parent=5 // pred_region
      // Predicated region
      $region17: #{_lambda_.10} parent=15 // pred_check
        %p148 = pneg %p43
      $region18: #{_lambda_.10} parent=15 // pred_check_branch
        %150 = sbr.rel (%p148) target = $region20
      $region19: #{_lambda_.10} parent=15 // pred_region
        %s151 = smul.u32 8, %s17
        %p152 = scmp.lt.s32.totalorder %s16, 1
        %s153 = scalar_select %p152, %s16, 1
        %p154 = scmp.lt.s32.totalorder %s151, 15
        %s155 = scalar_select %p154, %s151, 15
        %s156 = smul.addr %s153, 16
        %s157 = sadd.s32 %s155, %s156
        %s158 = smul.addr %s157, 8
        %s159 = scalar_lea.vmem %s0, %s158
        %s160 = smul.u32 8, %s17
      $region20: #{_lambda_.10} parent=15 // pred_fallthru
        _
      // Predicated region
      $region21: #{_lambda_.10} parent=15 // pred_check
        %p161 = pneg %p69
      $region22: #{_lambda_.10} parent=15 // pred_check_branch
        %163 = sbr.rel (%p161) target = $region24
      $region23: #{_lambda_.10} parent=15 // pred_region
        %p164 = scmp.lt.s32.totalorder %s16, 1
        %s165 = scalar_select %p164, %s16, 1
        %s166 = scalar_lea.vmem %s1, %s165
      $region24: #{_lambda_.10} parent=15 // pred_fallthru
        _
      // Predicated region
      $region25: #{_lambda_.10} parent=15 // pred_check
        %p167 = pneg %p95
      $region26: #{_lambda_.10} parent=15 // pred_check_branch
        %169 = sbr.rel (%p167) target = $region28
      $region27: #{_lambda_.10} parent=15 // pred_region
        %p170 = scmp.lt.s32.totalorder %s16, 1
        %s171 = scalar_select %p170, %s16, 1
        %s172 = scalar_lea.vmem %s2, %s171
      $region28: #{_lambda_.10} parent=15 // pred_fallthru
        _
    $region16: #{_lambda_.10} parent=5 // pred_fallthru
      _
    %p173 = scmp.le.s32.totalorder 1, %s9
    %p174 = scmp.lt.s32.totalorder %s9, 5
    %p175 = pnand %p173, %p174
    %p176 = pneg %p175
    // Predicated region
    $region29: #{_lambda_.10} parent=5 // pred_check
      _
    $region30: #{_lambda_.10} parent=5 // pred_check_branch
      %178 = sbr.rel (%p175) target = $region32
    $region31: #{_lambda_.10} parent=5 // pred_region
      %s179 = ssub.s32 %s9, 1
      %s180 = smul.u32 8, %s19
      %p181 = scmp.lt.s32.totalorder %s18, 1
      %s182 = scalar_select %p181, %s18, 1
      %p183 = scmp.lt.s32.totalorder %s180, 15
      %s184 = scalar_select %p183, %s180, 15
      %s185 = smul.addr %s182, 16
      %s186 = sadd.s32 %s184, %s185
      %s187 = smul.addr %s186, 8
      %s188 = scalar_lea.vmem %s0, %s187
      %p189 = pneg %p49
      %p190 = pneg %p46
      %p191 = scmp.lt.s32.totalorder %s18, 1
      %s192 = scalar_select %p191, %s18, 1
      %s193 = scalar_lea.vmem %s1, %s192
      %p194 = pneg %p75
      %p195 = pneg %p72
      %p196 = scmp.lt.s32.totalorder %s18, 1
      %s197 = scalar_select %p196, %s18, 1
      %s198 = scalar_lea.vmem %s2, %s197
      %p199 = pneg %p101
      %p200 = pneg %p98
      %p201 = pneg %p129
      %p202 = pneg %p126
      %s203 = smul.u32 8, %s19
      %p204 = scmp.lt.s32.totalorder %s18, 1
      %s205 = scalar_select %p204, %s18, 1
      %p206 = scmp.lt.s32.totalorder %s203, 15
      %s207 = scalar_select %p206, %s203, 15
      %s208 = smul.addr %s205, 16
      %s209 = sadd.s32 %s207, %s208
      %s210 = smul.addr %s209, 8
      %s211 = scalar_lea.vmem %s3, %s210
      %s212 = smul.u32 8, %s19
      %p213 = scmp.lt.s32.totalorder %s18, 1
      %s214 = scalar_select %p213, %s18, 1
      %p215 = scmp.lt.s32.totalorder %s212, 15
      %s216 = scalar_select %p215, %s212, 15
      %s217 = smul.addr %s214, 16
      %s218 = sadd.s32 %s216, %s217
      %s219 = smul.addr %s218, 8
      %s220 = scalar_lea.vmem %s0, %s219
      %s221 = smul.u32 8, %s19
      %p222 = scmp.lt.s32.totalorder %s18, 1
      %s223 = scalar_select %p222, %s18, 1
      %s224 = scalar_lea.vmem %s1, %s223
      %p225 = scmp.lt.s32.totalorder %s18, 1
      %s226 = scalar_select %p225, %s18, 1
      %s227 = scalar_lea.vmem %s2, %s226
      %s228 = smul.u32 8, %s19
      %p229 = scmp.lt.s32.totalorder %s18, 1
      %s230 = scalar_select %p229, %s18, 1
      %p231 = scmp.lt.s32.totalorder %s228, 15
      %s232 = scalar_select %p231, %s228, 15
      %s233 = smul.addr %s230, 16
      %s234 = sadd.s32 %s232, %s233
      %s235 = smul.addr %s234, 8
      %s236 = scalar_lea.vmem %s3, %s235
      %s237 = smul.u32 8, %s19
      %v238 = vld [vmem:[%s220] sm:$0xff]
      %v239 = vld [vmem:[%s220 + $0x8] sm:$0xff]
      %v240 = vld [vmem:[%s220 + $0x10] sm:$0xff]
      %v241 = vld [vmem:[%s220 + $0x18] sm:$0xff]
      %v242 = vld [vmem:[%s220 + $0x20] sm:$0xff]
      %v243 = vld [vmem:[%s220 + $0x28] sm:$0xff]
      %v244 = vld [vmem:[%s220 + $0x30] sm:$0xff]
      %v245 = vld [vmem:[%s220 + $0x38] sm:$0xff]
      %v246 = vld [vmem:[%s224] sm:$0x1]
      %v247 = vmul.f32 %v246, 0.015625
      %v248 = vld [vmem:[%s227] sm:$0x1]
      %v249 = vmul.f32 %v248, 0.015625
      %v250 = vmul.f32 %v247, %v247
      %v251 = vsub.f32 %v249, %v250
      %v252 = vmax.f32 %v251, 0.0
      %v253 = vadd.f32 %v252, 1e-05
      %v254 = vrsqrt.pop %v253
      %v256 = vlaneseq
      %v257 = vshrl.u32 %v256, 7
      %v258 = vsub.s32 0, %v257
      %v259 = vrot.slane %v247, %v258
      %v261 = vsub.f32 %v238, %v259
      %v262 = vsub.f32 %v239, %v259
      %v263 = vsub.f32 %v240, %v259
      %v264 = vsub.f32 %v241, %v259
      %v265 = vsub.f32 %v242, %v259
      %v266 = vsub.f32 %v243, %v259
      %v267 = vsub.f32 %v244, %v259
      %v268 = vsub.f32 %v245, %v259
      %v270 = vlaneseq
      %v271 = vshrl.u32 %v270, 7
      %v272 = vsub.s32 0, %v271
      %v273 = vrot.slane %v254, %v272
      %v275 = vmul.f32 %v261, %v273
      %v276 = vmul.f32 %v262, %v273
      %v277 = vmul.f32 %v263, %v273
      %v278 = vmul.f32 %v264, %v273
      %v279 = vmul.f32 %v265, %v273
      %v280 = vmul.f32 %v266, %v273
      %v281 = vmul.f32 %v267, %v273
      %v282 = vmul.f32 %v268, %v273
      %vm283 = vcmp.ge.f32.partialorder %v275, 0.0
      %vm284 = vcmp.ge.f32.partialorder %v276, 0.0
      %vm285 = vcmp.ge.f32.partialorder %v277, 0.0
      %vm286 = vcmp.ge.f32.partialorder %v278, 0.0
      %vm287 = vcmp.ge.f32.partialorder %v279, 0.0
      %vm288 = vcmp.ge.f32.partialorder %v280, 0.0
      %vm289 = vcmp.ge.f32.partialorder %v281, 0.0
      %vm290 = vcmp.ge.f32.partialorder %v282, 0.0
      %v291 = vmul.f32 %v275, 0.2
      %v292 = vmul.f32 %v276, 0.2
      %v293 = vmul.f32 %v277, 0.2
      %v294 = vmul.f32 %v278, 0.2
      %v295 = vmul.f32 %v279, 0.2
      %v296 = vmul.f32 %v280, 0.2
      %v297 = vmul.f32 %v281, 0.2
      %v298 = vmul.f32 %v282, 0.2
      %v299 = vsel %vm283, %v275, %v291
      %v300 = vsel %vm284, %v276, %v292
      %v301 = vsel %vm285, %v277, %v293
      %v302 = vsel %vm286, %v278, %v294
      %v303 = vsel %vm287, %v279, %v295
      %v304 = vsel %vm288, %v280, %v296
      %v305 = vsel %vm289, %v281, %v297
      %v306 = vsel %vm290, %v282, %v298
      %307 = vst [vmem:[%s236] sm:$0xff] %v299
      %308 = vst [vmem:[%s236 + $0x8] sm:$0xff] %v300
      %309 = vst [vmem:[%s236 + $0x10] sm:$0xff] %v301
      %310 = vst [vmem:[%s236 + $0x18] sm:$0xff] %v302
      %311 = vst [vmem:[%s236 + $0x20] sm:$0xff] %v303
      %312 = vst [vmem:[%s236 + $0x28] sm:$0xff] %v304
      %313 = vst [vmem:[%s236 + $0x30] sm:$0xff] %v305
      %314 = vst [vmem:[%s236 + $0x38] sm:$0xff] %v306
      %s315 = smul.u32 8, %s19
      %p316 = scmp.lt.s32.totalorder %s18, 1
      %s317 = scalar_select %p316, %s18, 1
      %p318 = scmp.lt.s32.totalorder %s315, 15
      %s319 = scalar_select %p318, %s315, 15
      %s320 = smul.addr %s317, 16
      %s321 = sadd.s32 %s319, %s320
      %s322 = smul.addr %s321, 8
      %s323 = scalar_lea.vmem %s3, %s322
      // Predicated region
      $region33: #{_lambda_.10} parent=31 // pred_check
        %p324 = pneg %p126
      $region34: #{_lambda_.10} parent=31 // pred_check_branch
        %326 = sbr.rel (%p324) target = $region36
      $region35: #{_lambda_.10} parent=31 // pred_region
        %s327 = smul.u32 8, %s19
      $region36: #{_lambda_.10} parent=31 // pred_fallthru
        _
    $region32: #{_lambda_.10} parent=5 // pred_fallthru
      _
    %p328 = scmp.le.s32.totalorder 2, %s9
    // Predicated region
    $region37: #{_lambda_.10} parent=5 // pred_check
      %p329 = pneg %p328
    $region38: #{_lambda_.10} parent=5 // pred_check_branch
      %331 = sbr.rel (%p329) target = $region40
    $region39: #{_lambda_.10} parent=5 // pred_region
      %s332 = ssub.s32 %s9, 2
      // Predicated region
      $region41: #{_lambda_.10} parent=39 // pred_check
        %p333 = pneg %p132
      $region42: #{_lambda_.10} parent=39 // pred_check_branch
        %335 = sbr.rel (%p333) target = $region44
      $region43: #{_lambda_.10} parent=39 // pred_region
        %s336 = smul.u32 8, %s21
        %p337 = scmp.lt.s32.totalorder %s20, 1
        %s338 = scalar_select %p337, %s20, 1
        %p339 = scmp.lt.s32.totalorder %s336, 15
        %s340 = scalar_select %p339, %s336, 15
        %s341 = smul.addr %s338, 16
        %s342 = sadd.s32 %s340, %s341
        %s343 = smul.addr %s342, 8
        %s344 = scalar_lea.vmem %s3, %s343
      $region44: #{_lambda_.10} parent=39 // pred_fallthru
        _
    $region40: #{_lambda_.10} parent=5 // pred_fallthru
      _
  $region6: #{_lambda_.10} parent=0 // loop_footer
    %s13 = sadd.s32 1, %s9
  $region7: #{_lambda_.10} parent=0 // loop_footer_branch
    %8 = sbr.rel target = $region3
  $region8: #{_lambda_.10} parent=0 // loop_exit
    _

// kernel: _lambda_.12
$region0: #{_lambda_.12}
  #allocation0 [shape = 'u32[]', space=smem, size = 0x4, offset = 0x4, fixed_abs, tag = 'smem constant byte address 0x4 - core index']
  #allocation1 [shape = 'u32[144,128]{1,0:T(1,128)}', space=vmem, size = 0x12000, scoped, tag = 'internal scratch']
  %s0 = inlined_call_operand.vmem [shape: f32[2,24,128], index: 0, kind: input, shape index: {}]
  %s1 = inlined_call_operand.vmem [shape: f32[2,1,128], index: 1, kind: input, shape index: {}]
  %s2 = inlined_call_operand.vmem [shape: f32[2,1,128], index: 2, kind: input, shape index: {}]
  %s3 = inlined_call_operand.vmem [shape: f32[2,24,128], index: 3, kind: output, shape index: {}]
  %s4 = sld [smem:[#allocation0]]
  $region45: #{_lambda_.12} parent=0
    _
  %s6 = ssub.s32 1, %s4
  %s7 = scalar_select 0, %s6, %s4
  loop: start=0, step=1, limit=4
  $region2: #{_lambda_.12} parent=0 // loop_pre_header
    _
  $region3: #{_lambda_.12} parent=0 // loop_header
    %s9 = sphi 0, %s13
    %p10 = scmp.ge.s32.totalorder %s9, 4
    %s16 = sphi 0, %s28
    %s17 = sphi 0, %s24
    %s18 = sphi 0, %s16
    %s19 = sphi 0, %s17
    %s20 = sphi 0, %s18
    %s21 = sphi 0, %s19
    %s33 = sphi 0, %s35
    %s36 = sphi 0, %s33
    %s37 = sphi 0, %s36
    %s53 = sphi 0, %s37
    %s59 = sphi 0, %s61
    %s62 = sphi 0, %s59
    %s63 = sphi 0, %s62
    %s79 = sphi 0, %s63
    %s85 = sphi 0, %s87
    %s88 = sphi 0, %s85
    %s89 = sphi 0, %s88
    %s105 = sphi 0, %s89
    %s113 = sphi 0, %s115
    %s116 = sphi 0, %s113
    %s117 = sphi 0, %s116
    %s133 = sphi 0, %s117
  $region4: #{_lambda_.12} parent=0 // loop_header_branch
    %12 = sbr.rel (%p10) target = $region8
  $region5: #{_lambda_.12} parent=0 // loop_body
    %s14 = ssub.s32 %s9, 1
    %s15 = ssub.s32 %s9, 2
    %s22 = sadd.s32 1, %s17
    %p23 = scmp.ge.s32.totalorder %s22, 1
    %s24 = scalar_select %p23, 0, %s22
    %s25 = sadd.s32 1, %s16
    %s26 = scalar_select %p23, %s25, %s16
    %p27 = scmp.ge.s32.totalorder %s26, 2
    %s28 = scalar_select %p27, 0, %s26
    %s29 = ssub.s32 %s16, %s28
    %s30 = ssub.s32 %s17, %s24
    %s31 = sor.u32 %s29, %s30
    %p32 = scmp.eq.s32.totalorder %s31, 0
    %s34 = sadd.s32 %s33, 1
    %s35 = scalar_select %p32, %s33, %s34
    %p38 = pneg %p32
    %p39 = scmp.eq.s32.totalorder %s9, 1
    %p40 = por %p38, %p39
    %p41 = scmp.ne.s32.totalorder %s33, %s36
    %p42 = scmp.eq.s32.totalorder %s9, 0
    %p43 = por %p41, %p42
    %p44 = scmp.ne.s32.totalorder %s33, %s36
    %p45 = scmp.eq.s32.totalorder %s14, 1
    %p46 = por %p44, %p45
    %p47 = scmp.ne.s32.totalorder %s36, %s37
    %p48 = scmp.eq.s32.totalorder %s14, 0
    %p49 = por %p47, %p48
    %p50 = scmp.ne.s32.totalorder %s36, %s37
    %p51 = scmp.eq.s32.totalorder %s15, 1
    %p52 = por %p50, %p51
    %p54 = scmp.ne.s32.totalorder %s37, %s53
    %p55 = scmp.eq.s32.totalorder %s15, 0
    %p56 = por %p54, %p55
    %s57 = ssub.s32 %s16, %s28
    %p58 = scmp.eq.s32.totalorder %s57, 0
    %s60 = sadd.s32 %s59, 1
    %s61 = scalar_select %p58, %s59, %s60
    %p64 = pneg %p58
    %p65 = scmp.eq.s32.totalorder %s9, 1
    %p66 = por %p64, %p65
    %p67 = scmp.ne.s32.totalorder %s59, %s62
    %p68 = scmp.eq.s32.totalorder %s9, 0
    %p69 = por %p67, %p68
    %p70 = scmp.ne.s32.totalorder %s59, %s62
    %p71 = scmp.eq.s32.totalorder %s14, 1
    %p72 = por %p70, %p71
    %p73 = scmp.ne.s32.totalorder %s62, %s63
    %p74 = scmp.eq.s32.totalorder %s14, 0
    %p75 = por %p73, %p74
    %p76 = scmp.ne.s32.totalorder %s62, %s63
    %p77 = scmp.eq.s32.totalorder %s15, 1
    %p78 = por %p76, %p77
    %p80 = scmp.ne.s32.totalorder %s63, %s79
    %p81 = scmp.eq.s32.totalorder %s15, 0
    %p82 = por %p80, %p81
    %s83 = ssub.s32 %s16, %s28
    %p84 = scmp.eq.s32.totalorder %s83, 0
    %s86 = sadd.s32 %s85, 1
    %s87 = scalar_select %p84, %s85, %s86
    %p90 = pneg %p84
    %p91 = scmp.eq.s32.totalorder %s9, 1
    %p92 = por %p90, %p91
    %p93 = scmp.ne.s32.totalorder %s85, %s88
    %p94 = scmp.eq.s32.totalorder %s9, 0
    %p95 = por %p93, %p94
    %p96 = scmp.ne.s32.totalorder %s85, %s88
    %p97 = scmp.eq.s32.totalorder %s14, 1
    %p98 = por %p96, %p97
    %p99 = scmp.ne.s32.totalorder %s88, %s89
    %p100 = scmp.eq.s32.totalorder %s14, 0
    %p101 = por %p99, %p100
    %p102 = scmp.ne.s32.totalorder %s88, %s89
    %p103 = scmp.eq.s32.totalorder %s15, 1
    %p104 = por %p102, %p103
    %p106 = scmp.ne.s32.totalorder %s89, %s105
    %p107 = scmp.eq.s32.totalorder %s15, 0
    %p108 = por %p106, %p107
    %s109 = ssub.s32 %s16, %s28
    %s110 = ssub.s32 %s17, %s24
    %s111 = sor.u32 %s109, %s110
    %p112 = scmp.eq.s32.totalorder %s111, 0
    %s114 = sadd.s32 %s113, 1
    %s115 = scalar_select %p112, %s113, %s114
    %p118 = pneg %p112
    %p119 = scmp.eq.s32.totalorder %s9, 1
    %p120 = por %p118, %p119
    %p121 = scmp.ne.s32.totalorder %s113, %s116
    %p122 = scmp.eq.s32.totalorder %s9, 0
    %p123 = por %p121, %p122
    %p124 = scmp.ne.s32.totalorder %s113, %s116
    %p125 = scmp.eq.s32.totalorder %s14, 1
    %p126 = por %p124, %p125
    %p127 = scmp.ne.s32.totalorder %s116, %s117
    %p128 = scmp.eq.s32.totalorder %s14, 0
    %p129 = por %p127, %p128
    %p130 = scmp.ne.s32.totalorder %s116, %s117
    %p131 = scmp.eq.s32.totalorder %s15, 1
    %p132 = por %p130, %p131
    %p134 = scmp.ne.s32.totalorder %s117, %s133
    %p135 = scmp.eq.s32.totalorder %s15, 0
    %p136 = por %p134, %p135
    %p137 = scmp.le.s32.totalorder 1, %s9
    %p138 = scmp.lt.s32.totalorder %s9, 3
    %p139 = pnand %p137, %p138
    %p140 = pneg %p139
    // Predicated region
    $region9: #{_lambda_.12} parent=5 // pred_check
      _
    $region10: #{_lambda_.12} parent=5 // pred_check_branch
      %142 = sbr.rel (%p139) target = $region12
    $region11: #{_lambda_.12} parent=5 // pred_region
      %s143 = ssub.s32 %s9, 1
    $region12: #{_lambda_.12} parent=5 // pred_fallthru
      _
    %p144 = scmp.lt.s32.totalorder %s9, 2
    // Predicated region
    $region13: #{_lambda_.12} parent=5 // pred_check
      %p145 = pneg %p144
    $region14: #{_lambda_.12} parent=5 // pred_check_branch
      %147 = sbr.rel (%p145) target = $region16
    $region15: #{_lambda_.12} parent=5 // pred_region
      // Predicated region
      $region17: #{_lambda_.12} parent=15 // pred_check
        %p148 = pneg %p43
      $region18: #{_lambda_.12} parent=15 // pred_check_branch
        %150 = sbr.rel (%p148) target = $region20
      $region19: #{_lambda_.12} parent=15 // pred_region
        %s151 = smul.u32 3, %s17
        %p152 = scmp.lt.s32.totalorder %s16, 1
        %s153 = scalar_select %p152, %s16, 1
        %p154 = scmp.lt.s32.totalorder %s151, 2
        %s155 = scalar_select %p154, %s151, 2
        %s156 = smul.addr %s153, 3
        %s157 = sadd.s32 %s155, %s156
        %s158 = smul.addr %s157, 8
        %s159 = scalar_lea.vmem %s0, %s158
        %s160 = smul.u32 3, %s17
      $region20: #{_lambda_.12} parent=15 // pred_fallthru
        _
      // Predicated region
      $region21: #{_lambda_.12} parent=15 // pred_check
        %p161 = pneg %p69
      $region22: #{_lambda_.12} parent=15 // pred_check_branch
        %163 = sbr.rel (%p161) target = $region24
      $region23: #{_lambda_.12} parent=15 // pred_region
        %p164 = scmp.lt.s32.totalorder %s16, 1
        %s165 = scalar_select %p164, %s16, 1
        %s166 = scalar_lea.vmem %s1, %s165
      $region24: #{_lambda_.12} parent=15 // pred_fallthru
        _
      // Predicated region
      $region25: #{_lambda_.12} parent=15 // pred_check
        %p167 = pneg %p95
      $region26: #{_lambda_.12} parent=15 // pred_check_branch
        %169 = sbr.rel (%p167) target = $region28
      $region27: #{_lambda_.12} parent=15 // pred_region
        %p170 = scmp.lt.s32.totalorder %s16, 1
        %s171 = scalar_select %p170, %s16, 1
        %s172 = scalar_lea.vmem %s2, %s171
      $region28: #{_lambda_.12} parent=15 // pred_fallthru
        _
    $region16: #{_lambda_.12} parent=5 // pred_fallthru
      _
    %p173 = scmp.le.s32.totalorder 1, %s9
    %p174 = scmp.lt.s32.totalorder %s9, 3
    %p175 = pnand %p173, %p174
    %p176 = pneg %p175
    // Predicated region
    $region29: #{_lambda_.12} parent=5 // pred_check
      _
    $region30: #{_lambda_.12} parent=5 // pred_check_branch
      %178 = sbr.rel (%p175) target = $region32
    $region31: #{_lambda_.12} parent=5 // pred_region
      %s179 = ssub.s32 %s9, 1
      %s180 = smul.u32 3, %s19
      %p181 = scmp.lt.s32.totalorder %s18, 1
      %s182 = scalar_select %p181, %s18, 1
      %p183 = scmp.lt.s32.totalorder %s180, 2
      %s184 = scalar_select %p183, %s180, 2
      %s185 = smul.addr %s182, 3
      %s186 = sadd.s32 %s184, %s185
      %s187 = smul.addr %s186, 8
      %s188 = scalar_lea.vmem %s0, %s187
      %p189 = pneg %p49
      %p190 = pneg %p46
      %p191 = scmp.lt.s32.totalorder %s18, 1
      %s192 = scalar_select %p191, %s18, 1
      %s193 = scalar_lea.vmem %s1, %s192
      %p194 = pneg %p75
      %p195 = pneg %p72
      %p196 = scmp.lt.s32.totalorder %s18, 1
      %s197 = scalar_select %p196, %s18, 1
      %s198 = scalar_lea.vmem %s2, %s197
      %p199 = pneg %p101
      %p200 = pneg %p98
      %p201 = pneg %p129
      %p202 = pneg %p126
      %s203 = smul.u32 3, %s19
      %p204 = scmp.lt.s32.totalorder %s18, 1
      %s205 = scalar_select %p204, %s18, 1
      %p206 = scmp.lt.s32.totalorder %s203, 2
      %s207 = scalar_select %p206, %s203, 2
      %s208 = smul.addr %s205, 3
      %s209 = sadd.s32 %s207, %s208
      %s210 = smul.addr %s209, 8
      %s211 = scalar_lea.vmem %s3, %s210
      %s212 = smul.u32 3, %s19
      %p213 = scmp.lt.s32.totalorder %s18, 1
      %s214 = scalar_select %p213, %s18, 1
      %p215 = scmp.lt.s32.totalorder %s212, 2
      %s216 = scalar_select %p215, %s212, 2
      %s217 = smul.addr %s214, 3
      %s218 = sadd.s32 %s216, %s217
      %s219 = smul.addr %s218, 8
      %s220 = scalar_lea.vmem %s0, %s219
      %s221 = smul.u32 3, %s19
      %p222 = scmp.lt.s32.totalorder %s18, 1
      %s223 = scalar_select %p222, %s18, 1
      %s224 = scalar_lea.vmem %s1, %s223
      %p225 = scmp.lt.s32.totalorder %s18, 1
      %s226 = scalar_select %p225, %s18, 1
      %s227 = scalar_lea.vmem %s2, %s226
      %s228 = smul.u32 3, %s19
      %p229 = scmp.lt.s32.totalorder %s18, 1
      %s230 = scalar_select %p229, %s18, 1
      %p231 = scmp.lt.s32.totalorder %s228, 2
      %s232 = scalar_select %p231, %s228, 2
      %s233 = smul.addr %s230, 3
      %s234 = sadd.s32 %s232, %s233
      %s235 = smul.addr %s234, 8
      %s236 = scalar_lea.vmem %s3, %s235
      %s237 = smul.u32 3, %s19
      %v238 = vld [vmem:[%s220] sm:$0xff]
      %v239 = vld [vmem:[%s220 + $0x8] sm:$0xff]
      %v240 = vld [vmem:[%s220 + $0x10] sm:$0xff]
      %v241 = vld [vmem:[%s224] sm:$0x1]
      %v242 = vmul.f32 %v241, 0.0625
      %v243 = vld [vmem:[%s227] sm:$0x1]
      %v244 = vmul.f32 %v243, 0.0625
      %v245 = vmul.f32 %v242, %v242
      %v246 = vsub.f32 %v244, %v245
      %v247 = vmax.f32 %v246, 0.0
      %v248 = vadd.f32 %v247, 1e-05
      %v249 = vrsqrt.pop %v248
      %v251 = vlaneseq
      %v252 = vshrl.u32 %v251, 7
      %v253 = vsub.s32 0, %v252
      %v254 = vrot.slane %v242, %v253
      %v256 = vsub.f32 %v238, %v254
      %v257 = vsub.f32 %v239, %v254
      %v258 = vsub.f32 %v240, %v254
      %v260 = vlaneseq
      %v261 = vshrl.u32 %v260, 7
      %v262 = vsub.s32 0, %v261
      %v263 = vrot.slane %v249, %v262
      %v265 = vmul.f32 %v256, %v263
      %v266 = vmul.f32 %v257, %v263
      %v267 = vmul.f32 %v258, %v263
      %vm268 = vcmp.ge.f32.partialorder %v265, 0.0
      %vm269 = vcmp.ge.f32.partialorder %v266, 0.0
      %vm270 = vcmp.ge.f32.partialorder %v267, 0.0
      %v271 = vmul.f32 %v265, 0.2
      %v272 = vmul.f32 %v266, 0.2
      %v273 = vmul.f32 %v267, 0.2
      %v274 = vsel %vm268, %v265, %v271
      %v275 = vsel %vm269, %v266, %v272
      %v276 = vsel %vm270, %v267, %v273
      %277 = vst [vmem:[%s236] sm:$0xff] %v274
      %278 = vst [vmem:[%s236 + $0x8] sm:$0xff] %v275
      %279 = vst [vmem:[%s236 + $0x10] sm:$0xff] %v276
      %s280 = smul.u32 3, %s19
      %p281 = scmp.lt.s32.totalorder %s18, 1
      %s282 = scalar_select %p281, %s18, 1
      %p283 = scmp.lt.s32.totalorder %s280, 2
      %s284 = scalar_select %p283, %s280, 2
      %s285 = smul.addr %s282, 3
      %s286 = sadd.s32 %s284, %s285
      %s287 = smul.addr %s286, 8
      %s288 = scalar_lea.vmem %s3, %s287
      // Predicated region
      $region33: #{_lambda_.12} parent=31 // pred_check
        %p289 = pneg %p126
      $region34: #{_lambda_.12} parent=31 // pred_check_branch
        %291 = sbr.rel (%p289) target = $region36
      $region35: #{_lambda_.12} parent=31 // pred_region
        %s292 = smul.u32 3, %s19
      $region36: #{_lambda_.12} parent=31 // pred_fallthru
        _
    $region32: #{_lambda_.12} parent=5 // pred_fallthru
      _
    %p293 = scmp.le.s32.totalorder 2, %s9
    // Predicated region
    $region37: #{_lambda_.12} parent=5 // pred_check
      %p294 = pneg %p293
    $region38: #{_lambda_.12} parent=5 // pred_check_branch
      %296 = sbr.rel (%p294) target = $region40
    $region39: #{_lambda_.12} parent=5 // pred_region
      %s297 = ssub.s32 %s9, 2
      // Predicated region
      $region41: #{_lambda_.12} parent=39 // pred_check
        %p298 = pneg %p132
      $region42: #{_lambda_.12} parent=39 // pred_check_branch
        %300 = sbr.rel (%p298) target = $region44
      $region43: #{_lambda_.12} parent=39 // pred_region
        %s301 = smul.u32 3, %s21
        %p302 = scmp.lt.s32.totalorder %s20, 1
        %s303 = scalar_select %p302, %s20, 1
        %p304 = scmp.lt.s32.totalorder %s301, 2
        %s305 = scalar_select %p304, %s301, 2
        %s306 = smul.addr %s303, 3
        %s307 = sadd.s32 %s305, %s306
        %s308 = smul.addr %s307, 8
        %s309 = scalar_lea.vmem %s3, %s308
      $region44: #{_lambda_.12} parent=39 // pred_fallthru
        _
    $region40: #{_lambda_.12} parent=5 // pred_fallthru
      _
  $region6: #{_lambda_.12} parent=0 // loop_footer
    %s13 = sadd.s32 1, %s9
  $region7: #{_lambda_.12} parent=0 // loop_footer_branch
    %8 = sbr.rel target = $region3
  $region8: #{_lambda_.12} parent=0 // loop_exit
    _

// kernel: _lambda_.11
$region0: #{_lambda_.11}
  #allocation0 [shape = 'u32[]', space=smem, size = 0x4, offset = 0x4, fixed_abs, tag = 'smem constant byte address 0x4 - core index']
  #allocation1 [shape = 'u32[144,128]{1,0:T(1,128)}', space=vmem, size = 0x12000, scoped, tag = 'internal scratch']
  %s0 = inlined_call_operand.vmem [shape: f32[2,30,128], index: 0, kind: input, shape index: {}]
  %s1 = inlined_call_operand.vmem [shape: f32[4,128,128], index: 1, kind: input, shape index: {}]
  %s2 = inlined_call_operand.vmem [shape: f32[24,1], index: 2, kind: input, shape index: {}]
  %s3 = inlined_call_operand.vmem [shape: f32[2,24,128], index: 3, kind: output, shape index: {0}]
  %s4 = inlined_call_operand.vmem [shape: f32[2,1,128], index: 4, kind: output, shape index: {1}]
  %s5 = inlined_call_operand.vmem [shape: f32[2,1,128], index: 5, kind: output, shape index: {2}]
  %6 = xla_tuple %s3, %s4, %s5
  %s7 = sld [smem:[#allocation0]]
  $region65: #{_lambda_.11} parent=0
    _
  %s9 = ssub.s32 1, %s7
  %s10 = scalar_select 0, %s9, %s7
  loop: start=0, step=1, limit=4
  $region2: #{_lambda_.11} parent=0 // loop_pre_header
    _
  $region3: #{_lambda_.11} parent=0 // loop_header
    %s12 = sphi 0, %s16
    %p13 = scmp.ge.s32.totalorder %s12, 4
    %s19 = sphi 0, %s31
    %s20 = sphi 0, %s27
    %s21 = sphi 0, %s19
    %s22 = sphi 0, %s20
    %s23 = sphi 0, %s21
    %s24 = sphi 0, %s22
    %s34 = sphi 0, %s36
    %s37 = sphi 0, %s34
    %s38 = sphi 0, %s37
    %s54 = sphi 0, %s38
    %s58 = sphi 0, %s58
    %s60 = sphi 0, %s58
    %s61 = sphi 0, %s60
    %s75 = sphi 0, %s61
    %s81 = sphi 0, %s83
    %s84 = sphi 0, %s81
    %s85 = sphi 0, %s84
    %s101 = sphi 0, %s85
    %s109 = sphi 0, %s111
    %s112 = sphi 0, %s109
    %s113 = sphi 0, %s112
    %s129 = sphi 0, %s113
    %s135 = sphi 0, %s137
    %s138 = sphi 0, %s135
    %s139 = sphi 0, %s138
    %s155 = sphi 0, %s139
    %s161 = sphi 0, %s163
    %s164 = sphi 0, %s161
    %s165 = sphi 0, %s164
    %s181 = sphi 0, %s165
  $region4: #{_lambda_.11} parent=0 // loop_header_branch
    %15 = sbr.rel (%p13) target = $region8
  $region5: #{_lambda_.11} parent=0 // loop_body
    %s17 = ssub.s32 %s12, 1
    %s18 = ssub.s32 %s12, 2
    %s25 = sadd.s32 1, %s20
    %p26 = scmp.ge.s32.totalorder %s25, 1
    %s27 = scalar_select %p26, 0, %s25
    %s28 = sadd.s32 1, %s19
    %s29 = scalar_select %p26, %s28, %s19
    %p30 = scmp.ge.s32.totalorder %s29, 2
    %s31 = scalar_select %p30, 0, %s29
    %s32 = ssub.s32 %s19, %s31
    %p33 = scmp.eq.s32.totalorder %s32, 0
    %s35 = sadd.s32 %s34, 1
    %s36 = scalar_select %p33, %s34, %s35
    %p39 = pneg %p33
    %p40 = scmp.eq.s32.totalorder %s12, 1
    %p41 = por %p39, %p40
    %p42 = scmp.ne.s32.totalorder %s34, %s37
    %p43 = scmp.eq.s32.totalorder %s12, 0
    %p44 = por %p42, %p43
    %p45 = scmp.ne.s32.totalorder %s34, %s37
    %p46 = scmp.eq.s32.totalorder %s17, 1
    %p47 = por %p45, %p46
    %p48 = scmp.ne.s32.totalorder %s37, %s38
    %p49 = scmp.eq.s32.totalorder %s17, 0
    %p50 = por %p48, %p49
    %p51 = scmp.ne.s32.totalorder %s37, %s38
    %p52 = scmp.eq.s32.totalorder %s18, 1
    %p53 = por %p51, %p52
    %p55 = scmp.ne.s32.totalorder %s38, %s54
    %p56 = scmp.eq.s32.totalorder %s18, 0
    %p57 = por %p55, %p56
    %s59 = sadd.s32 %s58, 1
    %p62 = scmp.eq.s32.totalorder %s12, 1
    %p63 = scmp.ne.s32.totalorder %s58, %s60
    %p64 = scmp.eq.s32.totalorder %s12, 0
    %p65 = por %p63, %p64
    %p66 = scmp.ne.s32.totalorder %s58, %s60
    %p67 = scmp.eq.s32.totalorder %s17, 1
    %p68 = por %p66, %p67
    %p69 = scmp.ne.s32.totalorder %s60, %s61
    %p70 = scmp.eq.s32.totalorder %s17, 0
    %p71 = por %p69, %p70
    %p72 = scmp.ne.s32.totalorder %s60, %s61
    %p73 = scmp.eq.s32.totalorder %s18, 1
    %p74 = por %p72, %p73
    %p76 = scmp.ne.s32.totalorder %s61, %s75
    %p77 = scmp.eq.s32.totalorder %s18, 0
    %p78 = por %p76, %p77
    %s79 = ssub.s32 %s20, %s27
    %p80 = scmp.eq.s32.totalorder %s79, 0
    %s82 = sadd.s32 %s81, 1
    %s83 = scalar_select %p80, %s81, %s82
    %p86 = pneg %p80
    %p87 = scmp.eq.s32.totalorder %s12, 1
    %p88 = por %p86, %p87
    %p89 = scmp.ne.s32.totalorder %s81, %s84
    %p90 = scmp.eq.s32.totalorder %s12, 0
    %p91 = por %p89, %p90
    %p92 = scmp.ne.s32.totalorder %s81, %s84
    %p93 = scmp.eq.s32.totalorder %s17, 1
    %p94 = por %p92, %p93
    %p95 = scmp.ne.s32.totalorder %s84, %s85
    %p96 = scmp.eq.s32.totalorder %s17, 0
    %p97 = por %p95, %p96
    %p98 = scmp.ne.s32.totalorder %s84, %s85
    %p99 = scmp.eq.s32.totalorder %s18, 1
    %p100 = por %p98, %p99
    %p102 = scmp.ne.s32.totalorder %s85, %s101
    %p103 = scmp.eq.s32.totalorder %s18, 0
    %p104 = por %p102, %p103
    %s105 = ssub.s32 %s19, %s31
    %s106 = ssub.s32 %s20, %s27
    %s107 = sor.u32 %s105, %s106
    %p108 = scmp.eq.s32.totalorder %s107, 0
    %s110 = sadd.s32 %s109, 1
    %s111 = scalar_select %p108, %s109, %s110
    %p114 = pneg %p108
    %p115 = scmp.eq.s32.totalorder %s12, 1
    %p116 = por %p114, %p115
    %p117 = scmp.ne.s32.totalorder %s109, %s112
    %p118 = scmp.eq.s32.totalorder %s12, 0
    %p119 = por %p117, %p118
    %p120 = scmp.ne.s32.totalorder %s109, %s112
    %p121 = scmp.eq.s32.totalorder %s17, 1
    %p122 = por %p120, %p121
    %p123 = scmp.ne.s32.totalorder %s112, %s113
    %p124 = scmp.eq.s32.totalorder %s17, 0
    %p125 = por %p123, %p124
    %p126 = scmp.ne.s32.totalorder %s112, %s113
    %p127 = scmp.eq.s32.totalorder %s18, 1
    %p128 = por %p126, %p127
    %p130 = scmp.ne.s32.totalorder %s113, %s129
    %p131 = scmp.eq.s32.totalorder %s18, 0
    %p132 = por %p130, %p131
    %s133 = ssub.s32 %s19, %s31
    %p134 = scmp.eq.s32.totalorder %s133, 0
    %s136 = sadd.s32 %s135, 1
    %s137 = scalar_select %p134, %s135, %s136
    %p140 = pneg %p134
    %p141 = scmp.eq.s32.totalorder %s12, 1
    %p142 = por %p140, %p141
    %p143 = scmp.ne.s32.totalorder %s135, %s138
    %p144 = scmp.eq.s32.totalorder %s12, 0
    %p145 = por %p143, %p144
    %p146 = scmp.ne.s32.totalorder %s135, %s138
    %p147 = scmp.eq.s32.totalorder %s17, 1
    %p148 = por %p146, %p147
    %p149 = scmp.ne.s32.totalorder %s138, %s139
    %p150 = scmp.eq.s32.totalorder %s17, 0
    %p151 = por %p149, %p150
    %p152 = scmp.ne.s32.totalorder %s138, %s139
    %p153 = scmp.eq.s32.totalorder %s18, 1
    %p154 = por %p152, %p153
    %p156 = scmp.ne.s32.totalorder %s139, %s155
    %p157 = scmp.eq.s32.totalorder %s18, 0
    %p158 = por %p156, %p157
    %s159 = ssub.s32 %s19, %s31
    %p160 = scmp.eq.s32.totalorder %s159, 0
    %s162 = sadd.s32 %s161, 1
    %s163 = scalar_select %p160, %s161, %s162
    %p166 = pneg %p160
    %p167 = scmp.eq.s32.totalorder %s12, 1
    %p168 = por %p166, %p167
    %p169 = scmp.ne.s32.totalorder %s161, %s164
    %p170 = scmp.eq.s32.totalorder %s12, 0
    %p171 = por %p169, %p170
    %p172 = scmp.ne.s32.totalorder %s161, %s164
    %p173 = scmp.eq.s32.totalorder %s17, 1
    %p174 = por %p172, %p173
    %p175 = scmp.ne.s32.totalorder %s164, %s165
    %p176 = scmp.eq.s32.totalorder %s17, 0
    %p177 = por %p175, %p176
    %p178 = scmp.ne.s32.totalorder %s164, %s165
    %p179 = scmp.eq.s32.totalorder %s18, 1
    %p180 = por %p178, %p179
    %p182 = scmp.ne.s32.totalorder %s165, %s181
    %p183 = scmp.eq.s32.totalorder %s18, 0
    %p184 = por %p182, %p183
    %p185 = scmp.le.s32.totalorder 1, %s12
    %p186 = scmp.lt.s32.totalorder %s12, 3
    %p187 = pnand %p185, %p186
    %p188 = pneg %p187
    // Predicated region
    $region9: #{_lambda_.11} parent=5 // pred_check
      _
    $region10: #{_lambda_.11} parent=5 // pred_check_branch
      %190 = sbr.rel (%p187) target = $region12
    $region11: #{_lambda_.11} parent=5 // pred_region
      %s191 = ssub.s32 %s12, 1
      // Predicated region
      $region13: #{_lambda_.11} parent=11 // pred_check
        %p192 = pneg %p71
      $region14: #{_lambda_.11} parent=11 // pred_check_branch
        %194 = sbr.rel (%p192) target = $region16
      $region15: #{_lambda_.11} parent=11 // pred_region
        _
      $region16: #{_lambda_.11} parent=11 // pred_fallthru
        _
      // Predicated region
      $region17: #{_lambda_.11} parent=11 // pred_check
        %p195 = pneg %p97
      $region18: #{_lambda_.11} parent=11 // pred_check_branch
        %197 = sbr.rel (%p195) target = $region20
      $region19: #{_lambda_.11} parent=11 // pred_region
        %s198 = smul.u32 3, %s22
        %p199 = scmp.lt.s32.totalorder %s198, 2
        %s200 = scalar_select %p199, %s198, 2
        %s201 = smul.addr %s200, 8
        %s202 = scalar_lea.vmem %s2, %s201
        %s203 = smul.u32 3, %s22
      $region20: #{_lambda_.11} parent=11 // pred_fallthru
        _
    $region12: #{_lambda_.11} parent=5 // pred_fallthru
      _
    %p204 = scmp.lt.s32.totalorder %s12, 2
    // Predicated region
    $region21: #{_lambda_.11} parent=5 // pred_check
      %p205 = pneg %p204
    $region22: #{_lambda_.11} parent=5 // pred_check_branch
      %207 = sbr.rel (%p205) target = $region24
    $region23: #{_lambda_.11} parent=5 // pred_region
      // Predicated region
      $region25: #{_lambda_.11} parent=23 // pred_check
        %p208 = pneg %p44
      $region26: #{_lambda_.11} parent=23 // pred_check_branch
        %210 = sbr.rel (%p208) target = $region28
      $region27: #{_lambda_.11} parent=23 // pred_region
        %p211 = scmp.lt.s32.totalorder %s19, 1
        %s212 = scalar_select %p211, %s19, 1
        %s213 = smul.addr %s212, 4
        %s214 = smul.addr %s213, 8
        %s215 = scalar_lea.vmem %s0, %s214
      $region28: #{_lambda_.11} parent=23 // pred_fallthru
        _
    $region24: #{_lambda_.11} parent=5 // pred_fallthru
      _
    %p216 = scmp.le.s32.totalorder 1, %s12
    %p217 = scmp.lt.s32.totalorder %s12, 3
    %p218 = pnand %p216, %p217
    %p219 = pneg %p218
    // Predicated region
    $region29: #{_lambda_.11} parent=5 // pred_check
      _
    $region30: #{_lambda_.11} parent=5 // pred_check_branch
      %221 = sbr.rel (%p218) target = $region32
    $region31: #{_lambda_.11} parent=5 // pred_region
      %s222 = ssub.s32 %s12, 1
      %p223 = scmp.lt.s32.totalorder %s21, 1
      %s224 = scalar_select %p223, %s21, 1
      %s225 = smul.addr %s224, 4
      %s226 = smul.addr %s225, 8
      %s227 = scalar_lea.vmem %s0, %s226
      %p228 = pneg %p50
      %p229 = pneg %p47
      %p230 = pneg %p71
      %p231 = pneg %p68
      %s232 = smul.u32 3, %s22
      %p233 = scmp.lt.s32.totalorder %s232, 2
      %s234 = scalar_select %p233, %s232, 2
      %s235 = smul.addr %s234, 8
      %s236 = scalar_lea.vmem %s2, %s235
      %p237 = pneg %p97
      %p238 = pneg %p94
      %p239 = pneg %p125
      %p240 = pneg %p122
      %s241 = smul.u32 3, %s22
      %p242 = scmp.lt.s32.totalorder %s21, 1
      %s243 = scalar_select %p242, %s21, 1
      %p244 = scmp.lt.s32.totalorder %s241, 2
      %s245 = scalar_select %p244, %s241, 2
      %s246 = smul.addr %s243, 3
      %s247 = sadd.s32 %s245, %s246
      %s248 = smul.addr %s247, 8
      %s249 = scalar_lea.vmem %s3, %s248
      %p250 = pneg %p151
      %p251 = pneg %p148
      %p252 = scmp.lt.s32.totalorder %s21, 1
      %s253 = scalar_select %p252, %s21, 1
      %s254 = scalar_lea.vmem %s4, %s253
      %p255 = pneg %p177
      %p256 = pneg %p174
      %p257 = scmp.lt.s32.totalorder %s21, 1
      %s258 = scalar_select %p257, %s21, 1
      %s259 = scalar_lea.vmem %s5, %s258
      %p260 = scmp.lt.s32.totalorder %s21, 1
      %s261 = scalar_select %p260, %s21, 1
      %s262 = smul.addr %s261, 4
      %s263 = smul.addr %s262, 8
      %s264 = scalar_lea.vmem %s0, %s263
      %s265 = smul.u32 3, %s22
      %p266 = scmp.lt.s32.totalorder %s265, 2
      %s267 = scalar_select %p266, %s265, 2
      %s268 = smul.addr %s267, 8
      %s269 = scalar_lea.vmem %s2, %s268
      %s270 = smul.u32 3, %s22
      %s271 = smul.u32 3, %s22
      %p272 = scmp.lt.s32.totalorder %s21, 1
      %s273 = scalar_select %p272, %s21, 1
      %p274 = scmp.lt.s32.totalorder %s271, 2
      %s275 = scalar_select %p274, %s271, 2
      %s276 = smul.addr %s273, 3
      %s277 = sadd.s32 %s275, %s276
      %s278 = smul.addr %s277, 8
      %s279 = scalar_lea.vmem %s3, %s278
      %s280 = smul.u32 3, %s22
      %p281 = scmp.lt.s32.totalorder %s21, 1
      %s282 = scalar_select %p281, %s21, 1
      %s283 = scalar_lea.vmem %s4, %s282
      %p284 = scmp.lt.s32.totalorder %s21, 1
      %s285 = scalar_select %p284, %s21, 1
      %s286 = scalar_lea.vmem %s5, %s285
      %s287 = smul.u32 %s22, 24
      %s288 = scalar_lea.vmem %s264, %s287
      %v289 = vld [vmem:[%s288] sm:$0xff]
      %v290 = vld [vmem:[%s288 + $0x8] sm:$0xff]
      %v291 = vld [vmem:[%s288 + $0x10] sm:$0xff]
      %v292 = vld [vmem:[%s1] sm:$0xff]
      %v293 = vld [vmem:[%s1 + $0x8] sm:$0xff]
      %v294 = vld [vmem:[%s1 + $0x10] sm:$0xff]
      %v295 = vld [vmem:[%s1 + $0x18] sm:$0xff]
      %v296 = vld [vmem:[%s1 + $0x20] sm:$0xff]
      %v297 = vld [vmem:[%s1 + $0x28] sm:$0xff]
      %v298 = vld [vmem:[%s1 + $0x30] sm:$0xff]
      %v299 = vld [vmem:[%s1 + $0x38] sm:$0xff]
      %v300 = vld [vmem:[%s1 + $0x40] sm:$0xff]
      %v301 = vld [vmem:[%s1 + $0x48] sm:$0xff]
      %v302 = vld [vmem:[%s1 + $0x50] sm:$0xff]
      %v303 = vld [vmem:[%s1 + $0x58] sm:$0xff]
      %v304 = vld [vmem:[%s1 + $0x60] sm:$0xff]
      %v305 = vld [vmem:[%s1 + $0x68] sm:$0xff]
      %v306 = vld [vmem:[%s1 + $0x70] sm:$0xff]
      %v307 = vld [vmem:[%s1 + $0x78] sm:$0xff]
      %s308 = sadd.s32 %s287, 1
      %s309 = scalar_lea.vmem %s264, %s308
      %v310 = vld [vmem:[%s309] sm:$0xff]
      %v311 = vld [vmem:[%s309 + $0x8] sm:$0xff]
      %v312 = vld [vmem:[%s309 + $0x10] sm:$0xff]
      %s313 = scalar_lea.vmem %s1, 128
      %v314 = vld [vmem:[%s313] sm:$0xff]
      %v315 = vld [vmem:[%s313 + $0x8] sm:$0xff]
      %v316 = vld [vmem:[%s313 + $0x10] sm:$0xff]
      %v317 = vld [vmem:[%s313 + $0x18] sm:$0xff]
      %v318 = vld [vmem:[%s313 + $0x20] sm:$0xff]
      %v319 = vld [vmem:[%s313 + $0x28] sm:$0xff]
      %v320 = vld [vmem:[%s313 + $0x30] sm:$0xff]
      %v321 = vld [vmem:[%s313 + $0x38] sm:$0xff]
      %v322 = vld [vmem:[%s313 + $0x40] sm:$0xff]
      %v323 = vld [vmem:[%s313 + $0x48] sm:$0xff]
      %v324 = vld [vmem:[%s313 + $0x50] sm:$0xff]
      %v325 = vld [vmem:[%s313 + $0x58] sm:$0xff]
      %v326 = vld [vmem:[%s313 + $0x60] sm:$0xff]
      %v327 = vld [vmem:[%s313 + $0x68] sm:$0xff]
      %v328 = vld [vmem:[%s313 + $0x70] sm:$0xff]
      %v329 = vld [vmem:[%s313 + $0x78] sm:$0xff]
      %330 = vmatprep.subr.mxu0 0.0
      %331 = vmatpush1.msra.mxu0 %v329
      %332 = vmatprep.subr.mxu0 0.0
      %333 = vmatpush1.msra.mxu0 %v328
      %334 = vmatprep.subr.mxu0 0.0
      %335 = vmatpush1.msra.mxu0 %v327
      %336 = vmatprep.subr.mxu0 0.0
      %337 = vmatpush1.msra.mxu0 %v326
      %338 = vmatprep.subr.mxu0 0.0
      %339 = vmatpush1.msra.mxu0 %v325
      %340 = vmatprep.subr.mxu0 0.0
      %341 = vmatpush1.msra.mxu0 %v324
      %342 = vmatprep.subr.mxu0 0.0
      %343 = vmatpush1.msra.mxu0 %v323
      %344 = vmatprep.subr.mxu0 0.0
      %345 = vmatpush1.msra.mxu0 %v322
      %346 = vmatprep.subr.mxu0 0.0
      %347 = vmatpush1.msra.mxu0 %v321
      %348 = vmatprep.subr.mxu0 0.0
      %349 = vmatpush1.msra.mxu0 %v320
      %350 = vmatprep.subr.mxu0 0.0
      %351 = vmatpush1.msra.mxu0 %v319
      %352 = vmatprep.subr.mxu0 0.0
      %353 = vmatpush1.msra.mxu0 %v318
      %354 = vmatprep.subr.mxu0 0.0
      %355 = vmatpush1.msra.mxu0 %v317
      %356 = vmatprep.subr.mxu0 0.0
      %357 = vmatpush1.msra.mxu0 %v316
      %358 = vmatprep.subr.mxu0 0.0
      %359 = vmatpush1.msra.mxu0 %v315
      %360 = vmatprep.subr.mxu0 0.0
      %361 = vmatpush1.msra.mxu0 %v314
      %362 = vmatprep.subr.mxu0 0.0
      %363 = vmatpush2.msra.mxu0 0.0
      %364 = vmatprep.subr.mxu0 0.0
      %365 = vmatpush2.msra.mxu0 0.0
      %366 = vmatprep.subr.mxu0 0.0
      %367 = vmatpush2.msra.mxu0 0.0
      %368 = vmatprep.subr.mxu0 0.0
      %369 = vmatpush2.msra.mxu0 0.0
      %370 = vmatprep.subr.mxu0 0.0
      %371 = vmatpush2.msra.mxu0 0.0
      %372 = vmatprep.subr.mxu0 0.0
      %373 = vmatpush2.msra.mxu0 0.0
      %374 = vmatprep.subr.mxu0 0.0
      %375 = vmatpush2.msra.mxu0 0.0
      %376 = vmatprep.subr.mxu0 0.0
      %377 = vmatpush2.msra.mxu0 0.0
      %378 = vmatprep.subr.mxu0 0.0
      %379 = vmatpush2.msra.mxu0 0.0
      %380 = vmatprep.subr.mxu0 0.0
      %381 = vmatpush2.msra.mxu0 0.0
      %382 = vmatprep.subr.mxu0 0.0
      %383 = vmatpush2.msra.mxu0 0.0
      %384 = vmatprep.subr.mxu0 0.0
      %385 = vmatpush2.msra.mxu0 0.0
      %386 = vmatprep.subr.mxu0 0.0
      %387 = vmatpush2.msra.mxu0 0.0
      %388 = vmatprep.subr.mxu0 0.0
      %389 = vmatpush2.msra.mxu0 0.0
      %390 = vmatprep.subr.mxu0 0.0
      %391 = vmatpush2.msra.mxu0 0.0
      %392 = vmatprep.subr.mxu0 0.0
      %393 = vmatpush2.msra.mxu0 0.0
      %394 = vmatprep.mubr.f32.mxu0 0.0
      %395 = vmatmul.mubr.f32.gmra.mxu0 %v310
      %v396 = vpop.f32.mrf.mxu0
      %v397 = vadd.f32 0.0, %v396
      %v398 = vpop.f32.mrf.mxu0
      %399 = vmatprep.mubr.f32.mxu0 0.0
      %400 = vmatmul.mubr.f32.gmra.mxu0 %v311
      %v401 = vpop.f32.mrf.mxu0
      %v402 = vadd.f32 0.0, %v401
      %v403 = vpop.f32.mrf.mxu0
      %404 = vmatprep.mubr.f32.mxu0 0.0
      %405 = vmatmul.mubr.f32.gmra.mxu0 %v312
      %v406 = vpop.f32.mrf.mxu0
      %v407 = vadd.f32 0.0, %v406
      %v408 = vpop.f32.mrf.mxu0
      %409 = vdwg.mxu0
      %410 = vmatprep.subr.mxu0 0.0
      %411 = vmatpush1.msra.mxu0 %v307
      %412 = vmatprep.subr.mxu0 0.0
      %413 = vmatpush1.msra.mxu0 %v306
      %414 = vmatprep.subr.mxu0 0.0
      %415 = vmatpush1.msra.mxu0 %v305
      %416 = vmatprep.subr.mxu0 0.0
      %417 = vmatpush1.msra.mxu0 %v304
      %418 = vmatprep.subr.mxu0 0.0
      %419 = vmatpush1.msra.mxu0 %v303
      %420 = vmatprep.subr.mxu0 0.0
      %421 = vmatpush1.msra.mxu0 %v302
      %422 = vmatprep.subr.mxu0 0.0
      %423 = vmatpush1.msra.mxu0 %v301
      %424 = vmatprep.subr.mxu0 0.0
      %425 = vmatpush1.msra.mxu0 %v300
      %426 = vmatprep.subr.mxu0 0.0
      %427 = vmatpush1.msra.mxu0 %v299
      %428 = vmatprep.subr.mxu0 0.0
      %429 = vmatpush1.msra.mxu0 %v298
      %430 = vmatprep.subr.mxu0 0.0
      %431 = vmatpush1.msra.mxu0 %v297
      %432 = vmatprep.subr.mxu0 0.0
      %433 = vmatpush1.msra.mxu0 %v296
      %434 = vmatprep.subr.mxu0 0.0
      %435 = vmatpush1.msra.mxu0 %v295
      %436 = vmatprep.subr.mxu0 0.0
      %437 = vmatpush1.msra.mxu0 %v294
      %438 = vmatprep.subr.mxu0 0.0
      %439 = vmatpush1.msra.mxu0 %v293
      %440 = vmatprep.subr.mxu0 0.0
      %441 = vmatpush1.msra.mxu0 %v292
      %442 = vmatprep.subr.mxu0 0.0
      %443 = vmatpush2.msra.mxu0 0.0
      %444 = vmatprep.subr.mxu0 0.0
      %445 = vmatpush2.msra.mxu0 0.0
      %446 = vmatprep.subr.mxu0 0.0
      %447 = vmatpush2.msra.mxu0 0.0
      %448 = vmatprep.subr.mxu0 0.0
      %449 = vmatpush2.msra.mxu0 0.0
      %450 = vmatprep.subr.mxu0 0.0
      %451 = vmatpush2.msra.mxu0 0.0
      %452 = vmatprep.subr.mxu0 0.0
      %453 = vmatpush2.msra.mxu0 0.0
      %454 = vmatprep.subr.mxu0 0.0
      %455 = vmatpush2.msra.mxu0 0.0
      %456 = vmatprep.subr.mxu0 0.0
      %457 = vmatpush2.msra.mxu0 0.0
      %458 = vmatprep.subr.mxu0 0.0
      %459 = vmatpush2.msra.mxu0 0.0
      %460 = vmatprep.subr.mxu0 0.0
      %461 = vmatpush2.msra.mxu0 0.0
      %462 = vmatprep.subr.mxu0 0.0
      %463 = vmatpush2.msra.mxu0 0.0
      %464 = vmatprep.subr.mxu0 0.0
      %465 = vmatpush2.msra.mxu0 0.0
      %466 = vmatprep.subr.mxu0 0.0
      %467 = vmatpush2.msra.mxu0 0.0
      %468 = vmatprep.subr.mxu0 0.0
      %469 = vmatpush2.msra.mxu0 0.0
      %470 = vmatprep.subr.mxu0 0.0
      %471 = vmatpush2.msra.mxu0 0.0
      %472 = vmatprep.subr.mxu0 0.0
      %473 = vmatpush2.msra.mxu0 0.0
      %474 = vmatprep.mubr.f32.mxu0 0.0
      %475 = vmatmul.mubr.f32.gmra.mxu0 %v289
      %v476 = vpop.f32.mrf.mxu0
      %v477 = vadd.f32 %v397, %v476
      %v478 = vpop.f32.mrf.mxu0
      %479 = vmatprep.mubr.f32.mxu0 0.0
      %480 = vmatmul.mubr.f32.gmra.mxu0 %v290
      %v481 = vpop.f32.mrf.mxu0
      %v482 = vadd.f32 %v402, %v481
      %v483 = vpop.f32.mrf.mxu0
      %484 = vmatprep.mubr.f32.mxu0 0.0
      %485 = vmatmul.mubr.f32.gmra.mxu0 %v291
      %v486 = vpop.f32.mrf.mxu0
      %v487 = vadd.f32 %v407, %v486
      %v488 = vpop.f32.mrf.mxu0
      %489 = vdwg.mxu0
      %s490 = sadd.s32 %s287, 5
      %s491 = scalar_lea.vmem %s264, %s490
      %v492 = vld [vmem:[%s491] sm:$0xff]
      %v493 = vld [vmem:[%s491 + $0x8] sm:$0xff]
      %v494 = vld [vmem:[%s491 + $0x10] sm:$0xff]
      %s495 = scalar_lea.vmem %s1, 256
      %v496 = vld [vmem:[%s495] sm:$0xff]
      %v497 = vld [vmem:[%s495 + $0x8] sm:$0xff]
      %v498 = vld [vmem:[%s495 + $0x10] sm:$0xff]
      %v499 = vld [vmem:[%s495 + $0x18] sm:$0xff]
      %v500 = vld [vmem:[%s495 + $0x20] sm:$0xff]
      %v501 = vld [vmem:[%s495 + $0x28] sm:$0xff]
      %v502 = vld [vmem:[%s495 + $0x30] sm:$0xff]
      %v503 = vld [vmem:[%s495 + $0x38] sm:$0xff]
      %v504 = vld [vmem:[%s495 + $0x40] sm:$0xff]
      %v505 = vld [vmem:[%s495 + $0x48] sm:$0xff]
      %v506 = vld [vmem:[%s495 + $0x50] sm:$0xff]
      %v507 = vld [vmem:[%s495 + $0x58] sm:$0xff]
      %v508 = vld [vmem:[%s495 + $0x60] sm:$0xff]
      %v509 = vld [vmem:[%s495 + $0x68] sm:$0xff]
      %v510 = vld [vmem:[%s495 + $0x70] sm:$0xff]
      %v511 = vld [vmem:[%s495 + $0x78] sm:$0xff]
      %512 = vmatprep.subr.mxu0 0.0
      %513 = vmatpush1.msra.mxu0 %v511
      %514 = vmatprep.subr.mxu0 0.0
      %515 = vmatpush1.msra.mxu0 %v510
      %516 = vmatprep.subr.mxu0 0.0
      %517 = vmatpush1.msra.mxu0 %v509
      %518 = vmatprep.subr.mxu0 0.0
      %519 = vmatpush1.msra.mxu0 %v508
      %520 = vmatprep.subr.mxu0 0.0
      %521 = vmatpush1.msra.mxu0 %v507
      %522 = vmatprep.subr.mxu0 0.0
      %523 = vmatpush1.msra.mxu0 %v506
      %524 = vmatprep.subr.mxu0 0.0
      %525 = vmatpush1.msra.mxu0 %v505
      %526 = vmatprep.subr.mxu0 0.0
      %527 = vmatpush1.msra.mxu0 %v504
      %528 = vmatprep.subr.mxu0 0.0
      %529 = vmatpush1.msra.mxu0 %v503
      %530 = vmatprep.subr.mxu0 0.0
      %531 = vmatpush1.msra.mxu0 %v502
      %532 = vmatprep.subr.mxu0 0.0
      %533 = vmatpush1.msra.mxu0 %v501
      %534 = vmatprep.subr.mxu0 0.0
      %535 = vmatpush1.msra.mxu0 %v500
      %536 = vmatprep.subr.mxu0 0.0
      %537 = vmatpush1.msra.mxu0 %v499
      %538 = vmatprep.subr.mxu0 0.0
      %539 = vmatpush1.msra.mxu0 %v498
      %540 = vmatprep.subr.mxu0 0.0
      %541 = vmatpush1.msra.mxu0 %v497
      %542 = vmatprep.subr.mxu0 0.0
      %543 = vmatpush1.msra.mxu0 %v496
      %544 = vmatprep.subr.mxu0 0.0
      %545 = vmatpush2.msra.mxu0 0.0
      %546 = vmatprep.subr.mxu0 0.0
      %547 = vmatpush2.msra.mxu0 0.0
      %548 = vmatprep.subr.mxu0 0.0
      %549 = vmatpush2.msra.mxu0 0.0
      %550 = vmatprep.subr.mxu0 0.0
      %551 = vmatpush2.msra.mxu0 0.0
      %552 = vmatprep.subr.mxu0 0.0
      %553 = vmatpush2.msra.mxu0 0.0
      %554 = vmatprep.subr.mxu0 0.0
      %555 = vmatpush2.msra.mxu0 0.0
      %556 = vmatprep.subr.mxu0 0.0
      %557 = vmatpush2.msra.mxu0 0.0
      %558 = vmatprep.subr.mxu0 0.0
      %559 = vmatpush2.msra.mxu0 0.0
      %560 = vmatprep.subr.mxu0 0.0
      %561 = vmatpush2.msra.mxu0 0.0
      %562 = vmatprep.subr.mxu0 0.0
      %563 = vmatpush2.msra.mxu0 0.0
      %564 = vmatprep.subr.mxu0 0.0
      %565 = vmatpush2.msra.mxu0 0.0
      %566 = vmatprep.subr.mxu0 0.0
      %567 = vmatpush2.msra.mxu0 0.0
      %568 = vmatprep.subr.mxu0 0.0
      %569 = vmatpush2.msra.mxu0 0.0
      %570 = vmatprep.subr.mxu0 0.0
      %571 = vmatpush2.msra.mxu0 0.0
      %572 = vmatprep.subr.mxu0 0.0
      %573 = vmatpush2.msra.mxu0 0.0
      %574 = vmatprep.subr.mxu0 0.0
      %575 = vmatpush2.msra.mxu0 0.0
      %576 = vmatprep.mubr.f32.mxu0 0.0
      %577 = vmatmul.mubr.f32.gmra.mxu0 %v492
      %v578 = vpop.f32.mrf.mxu0
      %v579 = vadd.f32 0.0, %v578
      %v580 = vpop.f32.mrf.mxu0
      %581 = vmatprep.mubr.f32.mxu0 0.0
      %582 = vmatmul.mubr.f32.gmra.mxu0 %v493
      %v583 = vpop.f32.mrf.mxu0
      %v584 = vadd.f32 0.0, %v583
      %v585 = vpop.f32.mrf.mxu0
      %586 = vmatprep.mubr.f32.mxu0 0.0
      %587 = vmatmul.mubr.f32.gmra.mxu0 %v494
      %v588 = vpop.f32.mrf.mxu0
      %v589 = vadd.f32 0.0, %v588
      %v590 = vpop.f32.mrf.mxu0
      %591 = vdwg.mxu0
      %v592 = vadd.f32 %v477, %v579
      %v593 = vadd.f32 %v482, %v584
      %v594 = vadd.f32 %v487, %v589
      %s595 = sadd.s32 %s287, 6
      %s596 = scalar_lea.vmem %s264, %s595
      %v597 = vld [vmem:[%s596] sm:$0xff]
      %v598 = vld [vmem:[%s596 + $0x8] sm:$0xff]
      %v599 = vld [vmem:[%s596 + $0x10] sm:$0xff]
      %s600 = scalar_lea.vmem %s1, 384
      %v601 = vld [vmem:[%s600] sm:$0xff]
      %v602 = vld [vmem:[%s600 + $0x8] sm:$0xff]
      %v603 = vld [vmem:[%s600 + $0x10] sm:$0xff]
      %v604 = vld [vmem:[%s600 + $0x18] sm:$0xff]
      %v605 = vld [vmem:[%s600 + $0x20] sm:$0xff]
      %v606 = vld [vmem:[%s600 + $0x28] sm:$0xff]
      %v607 = vld [vmem:[%s600 + $0x30] sm:$0xff]
      %v608 = vld [vmem:[%s600 + $0x38] sm:$0xff]
      %v609 = vld [vmem:[%s600 + $0x40] sm:$0xff]
      %v610 = vld [vmem:[%s600 + $0x48] sm:$0xff]
      %v611 = vld [vmem:[%s600 + $0x50] sm:$0xff]
      %v612 = vld [vmem:[%s600 + $0x58] sm:$0xff]
      %v613 = vld [vmem:[%s600 + $0x60] sm:$0xff]
      %v614 = vld [vmem:[%s600 + $0x68] sm:$0xff]
      %v615 = vld [vmem:[%s600 + $0x70] sm:$0xff]
      %v616 = vld [vmem:[%s600 + $0x78] sm:$0xff]
      %617 = vmatprep.subr.mxu0 0.0
      %618 = vmatpush1.msra.mxu0 %v616
      %619 = vmatprep.subr.mxu0 0.0
      %620 = vmatpush1.msra.mxu0 %v615
      %621 = vmatprep.subr.mxu0 0.0
      %622 = vmatpush1.msra.mxu0 %v614
      %623 = vmatprep.subr.mxu0 0.0
      %624 = vmatpush1.msra.mxu0 %v613
      %625 = vmatprep.subr.mxu0 0.0
      %626 = vmatpush1.msra.mxu0 %v612
      %627 = vmatprep.subr.mxu0 0.0
      %628 = vmatpush1.msra.mxu0 %v611
      %629 = vmatprep.subr.mxu0 0.0
      %630 = vmatpush1.msra.mxu0 %v610
      %631 = vmatprep.subr.mxu0 0.0
      %632 = vmatpush1.msra.mxu0 %v609
      %633 = vmatprep.subr.mxu0 0.0
      %634 = vmatpush1.msra.mxu0 %v608
      %635 = vmatprep.subr.mxu0 0.0
      %636 = vmatpush1.msra.mxu0 %v607
      %637 = vmatprep.subr.mxu0 0.0
      %638 = vmatpush1.msra.mxu0 %v606
      %639 = vmatprep.subr.mxu0 0.0
      %640 = vmatpush1.msra.mxu0 %v605
      %641 = vmatprep.subr.mxu0 0.0
      %642 = vmatpush1.msra.mxu0 %v604
      %643 = vmatprep.subr.mxu0 0.0
      %644 = vmatpush1.msra.mxu0 %v603
      %645 = vmatprep.subr.mxu0 0.0
      %646 = vmatpush1.msra.mxu0 %v602
      %647 = vmatprep.subr.mxu0 0.0
      %648 = vmatpush1.msra.mxu0 %v601
      %649 = vmatprep.subr.mxu0 0.0
      %650 = vmatpush2.msra.mxu0 0.0
      %651 = vmatprep.subr.mxu0 0.0
      %652 = vmatpush2.msra.mxu0 0.0
      %653 = vmatprep.subr.mxu0 0.0
      %654 = vmatpush2.msra.mxu0 0.0
      %655 = vmatprep.subr.mxu0 0.0
      %656 = vmatpush2.msra.mxu0 0.0
      %657 = vmatprep.subr.mxu0 0.0
      %658 = vmatpush2.msra.mxu0 0.0
      %659 = vmatprep.subr.mxu0 0.0
      %660 = vmatpush2.msra.mxu0 0.0
      %661 = vmatprep.subr.mxu0 0.0
      %662 = vmatpush2.msra.mxu0 0.0
      %663 = vmatprep.subr.mxu0 0.0
      %664 = vmatpush2.msra.mxu0 0.0
      %665 = vmatprep.subr.mxu0 0.0
      %666 = vmatpush2.msra.mxu0 0.0
      %667 = vmatprep.subr.mxu0 0.0
      %668 = vmatpush2.msra.mxu0 0.0
      %669 = vmatprep.subr.mxu0 0.0
      %670 = vmatpush2.msra.mxu0 0.0
      %671 = vmatprep.subr.mxu0 0.0
      %672 = vmatpush2.msra.mxu0 0.0
      %673 = vmatprep.subr.mxu0 0.0
      %674 = vmatpush2.msra.mxu0 0.0
      %675 = vmatprep.subr.mxu0 0.0
      %676 = vmatpush2.msra.mxu0 0.0
      %677 = vmatprep.subr.mxu0 0.0
      %678 = vmatpush2.msra.mxu0 0.0
      %679 = vmatprep.subr.mxu0 0.0
      %680 = vmatpush2.msra.mxu0 0.0
      %681 = vmatprep.mubr.f32.mxu0 0.0
      %682 = vmatmul.mubr.f32.gmra.mxu0 %v597
      %v683 = vpop.f32.mrf.mxu0
      %v684 = vadd.f32 0.0, %v683
      %v685 = vpop.f32.mrf.mxu0
      %686 = vmatprep.mubr.f32.mxu0 0.0
      %687 = vmatmul.mubr.f32.gmra.mxu0 %v598
      %v688 = vpop.f32.mrf.mxu0
      %v689 = vadd.f32 0.0, %v688
      %v690 = vpop.f32.mrf.mxu0
      %691 = vmatprep.mubr.f32.mxu0 0.0
      %692 = vmatmul.mubr.f32.gmra.mxu0 %v599
      %v693 = vpop.f32.mrf.mxu0
      %v694 = vadd.f32 0.0, %v693
      %v695 = vpop.f32.mrf.mxu0
      %696 = vdwg.mxu0
      %v697 = vadd.f32 %v592, %v684
      %v698 = vadd.f32 %v593, %v689
      %v699 = vadd.f32 %v594, %v694
      %700 = vst [vmem:[%s279] sm:$0xff] %v697
      %701 = vst [vmem:[%s279 + $0x8] sm:$0xff] %v698
      %702 = vst [vmem:[%s279 + $0x10] sm:$0xff] %v699
      %v703 = vld [vmem:[%s269] sm:$0xff]
      %v704 = vld [vmem:[%s269 + $0x8] sm:$0xff]
      %v705 = vld [vmem:[%s269 + $0x10] sm:$0xff]
      %707 = vset.pattern.permute.xlu0 0
      %708 = vperm.xlu0 %707, %v703
      %v709 = vpop.permute.xlu0 %708
      %712 = vset.pattern.permute.xlu0 0
      %713 = vperm.xlu0 %712, %v704
      %v714 = vpop.permute.xlu0 %713
      %717 = vset.pattern.permute.xlu0 0
      %718 = vperm.xlu0 %717, %v705
      %v719 = vpop.permute.xlu0 %718
      %v721 = vmul.f32 %v697, %v709
      %v722 = vmul.f32 %v698, %v714
      %v723 = vmul.f32 %v699, %v719
      %v724 = vadd.f32 %v721, %v722
      %v725 = vadd.f32 %v724, %v723
      %v726 = vrot.slane %v725, 4
      %v727 = vadd.f32 %v725, %v726
      %v728 = vrot.slane %v727, 2
      %v729 = vadd.f32 %v727, %v728
      %v730 = vrot.slane %v729, 1
      %v731 = vadd.f32 %v729, %v730
      %v732 = vmul.f32 %v721, %v697
      %v733 = vmul.f32 %v722, %v698
      %v734 = vmul.f32 %v723, %v699
      %v735 = vadd.f32 %v732, %v733
      %v736 = vadd.f32 %v735, %v734
      %v737 = vrot.slane %v736, 4
      %v738 = vadd.f32 %v736, %v737
      %v739 = vrot.slane %v738, 2
      %v740 = vadd.f32 %v738, %v739
      %v741 = vrot.slane %v740, 1
      %v742 = vadd.f32 %v740, %v741
      %p743 = scmp.eq.s32.totalorder %s22, 0
      // Predicated region
      $region33: #{_lambda_.11} parent=31 // pred_check
        %p744 = pneg %p743
      $region34: #{_lambda_.11} parent=31 // pred_check_branch
        %746 = sbr.rel (%p744) target = $region36
      $region35: #{_lambda_.11} parent=31 // pred_region
        %747 = vst [vmem:[%s283] sm:$0x1] 0.0
        %748 = vst [vmem:[%s286] sm:$0x1] 0.0
      $region36: #{_lambda_.11} parent=31 // pred_fallthru
        _
      %v749 = vld [vmem:[%s283] sm:$0x1]
      %v750 = vadd.f32 %v749, %v731
      %751 = vst [vmem:[%s283] sm:$0x1] %v750
      %v752 = vld [vmem:[%s286] sm:$0x1]
      %v753 = vadd.f32 %v752, %v742
      %754 = vst [vmem:[%s286] sm:$0x1] %v753
      %s755 = smul.u32 3, %s22
      %p756 = scmp.lt.s32.totalorder %s21, 1
      %s757 = scalar_select %p756, %s21, 1
      %p758 = scmp.lt.s32.totalorder %s755, 2
      %s759 = scalar_select %p758, %s755, 2
      %s760 = smul.addr %s757, 3
      %s761 = sadd.s32 %s759, %s760
      %s762 = smul.addr %s761, 8
      %s763 = scalar_lea.vmem %s3, %s762
      %p764 = scmp.lt.s32.totalorder %s21, 1
      %s765 = scalar_select %p764, %s21, 1
      %s766 = scalar_lea.vmem %s4, %s765
      %p767 = scmp.lt.s32.totalorder %s21, 1
      %s768 = scalar_select %p767, %s21, 1
      %s769 = scalar_lea.vmem %s5, %s768
      // Predicated region
      $region37: #{_lambda_.11} parent=31 // pred_check
        %p770 = pneg %p122
      $region38: #{_lambda_.11} parent=31 // pred_check_branch
        %772 = sbr.rel (%p770) target = $region40
      $region39: #{_lambda_.11} parent=31 // pred_region
        %s773 = smul.u32 3, %s22
      $region40: #{_lambda_.11} parent=31 // pred_fallthru
        _
      // Predicated region
      $region41: #{_lambda_.11} parent=31 // pred_check
        %p774 = pneg %p148
      $region42: #{_lambda_.11} parent=31 // pred_check_branch
        %776 = sbr.rel (%p774) target = $region44
      $region43: #{_lambda_.11} parent=31 // pred_region
        _
      $region44: #{_lambda_.11} parent=31 // pred_fallthru
        _
      // Predicated region
      $region45: #{_lambda_.11} parent=31 // pred_check
        %p777 = pneg %p174
      $region46: #{_lambda_.11} parent=31 // pred_check_branch
        %779 = sbr.rel (%p777) target = $region48
      $region47: #{_lambda_.11} parent=31 // pred_region
        _
      $region48: #{_lambda_.11} parent=31 // pred_fallthru
        _
    $region32: #{_lambda_.11} parent=5 // pred_fallthru
      _
    %p780 = scmp.le.s32.totalorder 2, %s12
    // Predicated region
    $region49: #{_lambda_.11} parent=5 // pred_check
      %p781 = pneg %p780
    $region50: #{_lambda_.11} parent=5 // pred_check_branch
      %783 = sbr.rel (%p781) target = $region52
    $region51: #{_lambda_.11} parent=5 // pred_region
      %s784 = ssub.s32 %s12, 2
      // Predicated region
      $region53: #{_lambda_.11} parent=51 // pred_check
        %p785 = pneg %p128
      $region54: #{_lambda_.11} parent=51 // pred_check_branch
        %787 = sbr.rel (%p785) target = $region56
      $region55: #{_lambda_.11} parent=51 // pred_region
        %s788 = smul.u32 3, %s24
        %p789 = scmp.lt.s32.totalorder %s23, 1
        %s790 = scalar_select %p789, %s23, 1
        %p791 = scmp.lt.s32.totalorder %s788, 2
        %s792 = scalar_select %p791, %s788, 2
        %s793 = smul.addr %s790, 3
        %s794 = sadd.s32 %s792, %s793
        %s795 = smul.addr %s794, 8
        %s796 = scalar_lea.vmem %s3, %s795
      $region56: #{_lambda_.11} parent=51 // pred_fallthru
        _
      // Predicated region
      $region57: #{_lambda_.11} parent=51 // pred_check
        %p797 = pneg %p154
      $region58: #{_lambda_.11} parent=51 // pred_check_branch
        %799 = sbr.rel (%p797) target = $region60
      $region59: #{_lambda_.11} parent=51 // pred_region
        %p800 = scmp.lt.s32.totalorder %s23, 1
        %s801 = scalar_select %p800, %s23, 1
        %s802 = scalar_lea.vmem %s4, %s801
      $region60: #{_lambda_.11} parent=51 // pred_fallthru
        _
      // Predicated region
      $region61: #{_lambda_.11} parent=51 // pred_check
        %p803 = pneg %p180
      $region62: #{_lambda_.11} parent=51 // pred_check_branch
        %805 = sbr.rel (%p803) target = $region64
      $region63: #{_lambda_.11} parent=51 // pred_region
        %p806 = scmp.lt.s32.totalorder %s23, 1
        %s807 = scalar_select %p806, %s23, 1
        %s808 = scalar_lea.vmem %s5, %s807
      $region64: #{_lambda_.11} parent=51 // pred_fallthru
        _
    $region52: #{_lambda_.11} parent=5 // pred_fallthru
      _
  $region6: #{_lambda_.11} parent=0 // loop_footer
    %s16 = sadd.s32 1, %s12
  $region7: #{_lambda_.11} parent=0 // loop_footer_branch
    %11 = sbr.rel target = $region3
  $region8: #{_lambda_.11} parent=0 // loop_exit
    _

// kernel: _lambda_.14
$region0: #{_lambda_.14}
  #allocation0 [shape = 'u32[]', space=smem, size = 0x4, offset = 0x4, fixed_abs, tag = 'smem constant byte address 0x4 - core index']
  #allocation1 [shape = 'u32[144,128]{1,0:T(1,128)}', space=vmem, size = 0x12000, scoped, tag = 'internal scratch']
  %s0 = inlined_call_operand.vmem [shape: f32[2,24,128], index: 0, kind: input, shape index: {}]
  %s1 = inlined_call_operand.vmem [shape: f32[2,1,128], index: 1, kind: input, shape index: {}]
  %s2 = inlined_call_operand.vmem [shape: f32[2,1,128], index: 2, kind: input, shape index: {}]
  %s3 = inlined_call_operand.vmem [shape: f32[2,24,128], index: 3, kind: output, shape index: {}]
  %s4 = sld [smem:[#allocation0]]
  $region45: #{_lambda_.14} parent=0
    _
  %s6 = ssub.s32 1, %s4
  %s7 = scalar_select 0, %s6, %s4
  loop: start=0, step=1, limit=4
  $region2: #{_lambda_.14} parent=0 // loop_pre_header
    _
  $region3: #{_lambda_.14} parent=0 // loop_header
    %s9 = sphi 0, %s13
    %p10 = scmp.ge.s32.totalorder %s9, 4
    %s16 = sphi 0, %s28
    %s17 = sphi 0, %s24
    %s18 = sphi 0, %s16
    %s19 = sphi 0, %s17
    %s20 = sphi 0, %s18
    %s21 = sphi 0, %s19
    %s33 = sphi 0, %s35
    %s36 = sphi 0, %s33
    %s37 = sphi 0, %s36
    %s53 = sphi 0, %s37
    %s59 = sphi 0, %s61
    %s62 = sphi 0, %s59
    %s63 = sphi 0, %s62
    %s79 = sphi 0, %s63
    %s85 = sphi 0, %s87
    %s88 = sphi 0, %s85
    %s89 = sphi 0, %s88
    %s105 = sphi 0, %s89
    %s113 = sphi 0, %s115
    %s116 = sphi 0, %s113
    %s117 = sphi 0, %s116
    %s133 = sphi 0, %s117
  $region4: #{_lambda_.14} parent=0 // loop_header_branch
    %12 = sbr.rel (%p10) target = $region8
  $region5: #{_lambda_.14} parent=0 // loop_body
    %s14 = ssub.s32 %s9, 1
    %s15 = ssub.s32 %s9, 2
    %s22 = sadd.s32 1, %s17
    %p23 = scmp.ge.s32.totalorder %s22, 1
    %s24 = scalar_select %p23, 0, %s22
    %s25 = sadd.s32 1, %s16
    %s26 = scalar_select %p23, %s25, %s16
    %p27 = scmp.ge.s32.totalorder %s26, 2
    %s28 = scalar_select %p27, 0, %s26
    %s29 = ssub.s32 %s16, %s28
    %s30 = ssub.s32 %s17, %s24
    %s31 = sor.u32 %s29, %s30
    %p32 = scmp.eq.s32.totalorder %s31, 0
    %s34 = sadd.s32 %s33, 1
    %s35 = scalar_select %p32, %s33, %s34
    %p38 = pneg %p32
    %p39 = scmp.eq.s32.totalorder %s9, 1
    %p40 = por %p38, %p39
    %p41 = scmp.ne.s32.totalorder %s33, %s36
    %p42 = scmp.eq.s32.totalorder %s9, 0
    %p43 = por %p41, %p42
    %p44 = scmp.ne.s32.totalorder %s33, %s36
    %p45 = scmp.eq.s32.totalorder %s14, 1
    %p46 = por %p44, %p45
    %p47 = scmp.ne.s32.totalorder %s36, %s37
    %p48 = scmp.eq.s32.totalorder %s14, 0
    %p49 = por %p47, %p48
    %p50 = scmp.ne.s32.totalorder %s36, %s37
    %p51 = scmp.eq.s32.totalorder %s15, 1
    %p52 = por %p50, %p51
    %p54 = scmp.ne.s32.totalorder %s37, %s53
    %p55 = scmp.eq.s32.totalorder %s15, 0
    %p56 = por %p54, %p55
    %s57 = ssub.s32 %s16, %s28
    %p58 = scmp.eq.s32.totalorder %s57, 0
    %s60 = sadd.s32 %s59, 1
    %s61 = scalar_select %p58, %s59, %s60
    %p64 = pneg %p58
    %p65 = scmp.eq.s32.totalorder %s9, 1
    %p66 = por %p64, %p65
    %p67 = scmp.ne.s32.totalorder %s59, %s62
    %p68 = scmp.eq.s32.totalorder %s9, 0
    %p69 = por %p67, %p68
    %p70 = scmp.ne.s32.totalorder %s59, %s62
    %p71 = scmp.eq.s32.totalorder %s14, 1
    %p72 = por %p70, %p71
    %p73 = scmp.ne.s32.totalorder %s62, %s63
    %p74 = scmp.eq.s32.totalorder %s14, 0
    %p75 = por %p73, %p74
    %p76 = scmp.ne.s32.totalorder %s62, %s63
    %p77 = scmp.eq.s32.totalorder %s15, 1
    %p78 = por %p76, %p77
    %p80 = scmp.ne.s32.totalorder %s63, %s79
    %p81 = scmp.eq.s32.totalorder %s15, 0
    %p82 = por %p80, %p81
    %s83 = ssub.s32 %s16, %s28
    %p84 = scmp.eq.s32.totalorder %s83, 0
    %s86 = sadd.s32 %s85, 1
    %s87 = scalar_select %p84, %s85, %s86
    %p90 = pneg %p84
    %p91 = scmp.eq.s32.totalorder %s9, 1
    %p92 = por %p90, %p91
    %p93 = scmp.ne.s32.totalorder %s85, %s88
    %p94 = scmp.eq.s32.totalorder %s9, 0
    %p95 = por %p93, %p94
    %p96 = scmp.ne.s32.totalorder %s85, %s88
    %p97 = scmp.eq.s32.totalorder %s14, 1
    %p98 = por %p96, %p97
    %p99 = scmp.ne.s32.totalorder %s88, %s89
    %p100 = scmp.eq.s32.totalorder %s14, 0
    %p101 = por %p99, %p100
    %p102 = scmp.ne.s32.totalorder %s88, %s89
    %p103 = scmp.eq.s32.totalorder %s15, 1
    %p104 = por %p102, %p103
    %p106 = scmp.ne.s32.totalorder %s89, %s105
    %p107 = scmp.eq.s32.totalorder %s15, 0
    %p108 = por %p106, %p107
    %s109 = ssub.s32 %s16, %s28
    %s110 = ssub.s32 %s17, %s24
    %s111 = sor.u32 %s109, %s110
    %p112 = scmp.eq.s32.totalorder %s111, 0
    %s114 = sadd.s32 %s113, 1
    %s115 = scalar_select %p112, %s113, %s114
    %p118 = pneg %p112
    %p119 = scmp.eq.s32.totalorder %s9, 1
    %p120 = por %p118, %p119
    %p121 = scmp.ne.s32.totalorder %s113, %s116
    %p122 = scmp.eq.s32.totalorder %s9, 0
    %p123 = por %p121, %p122
    %p124 = scmp.ne.s32.totalorder %s113, %s116
    %p125 = scmp.eq.s32.totalorder %s14, 1
    %p126 = por %p124, %p125
    %p127 = scmp.ne.s32.totalorder %s116, %s117
    %p128 = scmp.eq.s32.totalorder %s14, 0
    %p129 = por %p127, %p128
    %p130 = scmp.ne.s32.totalorder %s116, %s117
    %p131 = scmp.eq.s32.totalorder %s15, 1
    %p132 = por %p130, %p131
    %p134 = scmp.ne.s32.totalorder %s117, %s133
    %p135 = scmp.eq.s32.totalorder %s15, 0
    %p136 = por %p134, %p135
    %p137 = scmp.le.s32.totalorder 1, %s9
    %p138 = scmp.lt.s32.totalorder %s9, 3
    %p139 = pnand %p137, %p138
    %p140 = pneg %p139
    // Predicated region
    $region9: #{_lambda_.14} parent=5 // pred_check
      _
    $region10: #{_lambda_.14} parent=5 // pred_check_branch
      %142 = sbr.rel (%p139) target = $region12
    $region11: #{_lambda_.14} parent=5 // pred_region
      %s143 = ssub.s32 %s9, 1
    $region12: #{_lambda_.14} parent=5 // pred_fallthru
      _
    %p144 = scmp.lt.s32.totalorder %s9, 2
    // Predicated region
    $region13: #{_lambda_.14} parent=5 // pred_check
      %p145 = pneg %p144
    $region14: #{_lambda_.14} parent=5 // pred_check_branch
      %147 = sbr.rel (%p145) target = $region16
    $region15: #{_lambda_.14} parent=5 // pred_region
      // Predicated region
      $region17: #{_lambda_.14} parent=15 // pred_check
        %p148 = pneg %p43
      $region18: #{_lambda_.14} parent=15 // pred_check_branch
        %150 = sbr.rel (%p148) target = $region20
      $region19: #{_lambda_.14} parent=15 // pred_region
        %s151 = smul.u32 3, %s17
        %p152 = scmp.lt.s32.totalorder %s16, 1
        %s153 = scalar_select %p152, %s16, 1
        %p154 = scmp.lt.s32.totalorder %s151, 2
        %s155 = scalar_select %p154, %s151, 2
        %s156 = smul.addr %s153, 3
        %s157 = sadd.s32 %s155, %s156
        %s158 = smul.addr %s157, 8
        %s159 = scalar_lea.vmem %s0, %s158
        %s160 = smul.u32 3, %s17
      $region20: #{_lambda_.14} parent=15 // pred_fallthru
        _
      // Predicated region
      $region21: #{_lambda_.14} parent=15 // pred_check
        %p161 = pneg %p69
      $region22: #{_lambda_.14} parent=15 // pred_check_branch
        %163 = sbr.rel (%p161) target = $region24
      $region23: #{_lambda_.14} parent=15 // pred_region
        %p164 = scmp.lt.s32.totalorder %s16, 1
        %s165 = scalar_select %p164, %s16, 1
        %s166 = scalar_lea.vmem %s1, %s165
      $region24: #{_lambda_.14} parent=15 // pred_fallthru
        _
      // Predicated region
      $region25: #{_lambda_.14} parent=15 // pred_check
        %p167 = pneg %p95
      $region26: #{_lambda_.14} parent=15 // pred_check_branch
        %169 = sbr.rel (%p167) target = $region28
      $region27: #{_lambda_.14} parent=15 // pred_region
        %p170 = scmp.lt.s32.totalorder %s16, 1
        %s171 = scalar_select %p170, %s16, 1
        %s172 = scalar_lea.vmem %s2, %s171
      $region28: #{_lambda_.14} parent=15 // pred_fallthru
        _
    $region16: #{_lambda_.14} parent=5 // pred_fallthru
      _
    %p173 = scmp.le.s32.totalorder 1, %s9
    %p174 = scmp.lt.s32.totalorder %s9, 3
    %p175 = pnand %p173, %p174
    %p176 = pneg %p175
    // Predicated region
    $region29: #{_lambda_.14} parent=5 // pred_check
      _
    $region30: #{_lambda_.14} parent=5 // pred_check_branch
      %178 = sbr.rel (%p175) target = $region32
    $region31: #{_lambda_.14} parent=5 // pred_region
      %s179 = ssub.s32 %s9, 1
      %s180 = smul.u32 3, %s19
      %p181 = scmp.lt.s32.totalorder %s18, 1
      %s182 = scalar_select %p181, %s18, 1
      %p183 = scmp.lt.s32.totalorder %s180, 2
      %s184 = scalar_select %p183, %s180, 2
      %s185 = smul.addr %s182, 3
      %s186 = sadd.s32 %s184, %s185
      %s187 = smul.addr %s186, 8
      %s188 = scalar_lea.vmem %s0, %s187
      %p189 = pneg %p49
      %p190 = pneg %p46
      %p191 = scmp.lt.s32.totalorder %s18, 1
      %s192 = scalar_select %p191, %s18, 1
      %s193 = scalar_lea.vmem %s1, %s192
      %p194 = pneg %p75
      %p195 = pneg %p72
      %p196 = scmp.lt.s32.totalorder %s18, 1
      %s197 = scalar_select %p196, %s18, 1
      %s198 = scalar_lea.vmem %s2, %s197
      %p199 = pneg %p101
      %p200 = pneg %p98
      %p201 = pneg %p129
      %p202 = pneg %p126
      %s203 = smul.u32 3, %s19
      %p204 = scmp.lt.s32.totalorder %s18, 1
      %s205 = scalar_select %p204, %s18, 1
      %p206 = scmp.lt.s32.totalorder %s203, 2
      %s207 = scalar_select %p206, %s203, 2
      %s208 = smul.addr %s205, 3
      %s209 = sadd.s32 %s207, %s208
      %s210 = smul.addr %s209, 8
      %s211 = scalar_lea.vmem %s3, %s210
      %s212 = smul.u32 3, %s19
      %p213 = scmp.lt.s32.totalorder %s18, 1
      %s214 = scalar_select %p213, %s18, 1
      %p215 = scmp.lt.s32.totalorder %s212, 2
      %s216 = scalar_select %p215, %s212, 2
      %s217 = smul.addr %s214, 3
      %s218 = sadd.s32 %s216, %s217
      %s219 = smul.addr %s218, 8
      %s220 = scalar_lea.vmem %s0, %s219
      %s221 = smul.u32 3, %s19
      %p222 = scmp.lt.s32.totalorder %s18, 1
      %s223 = scalar_select %p222, %s18, 1
      %s224 = scalar_lea.vmem %s1, %s223
      %p225 = scmp.lt.s32.totalorder %s18, 1
      %s226 = scalar_select %p225, %s18, 1
      %s227 = scalar_lea.vmem %s2, %s226
      %s228 = smul.u32 3, %s19
      %p229 = scmp.lt.s32.totalorder %s18, 1
      %s230 = scalar_select %p229, %s18, 1
      %p231 = scmp.lt.s32.totalorder %s228, 2
      %s232 = scalar_select %p231, %s228, 2
      %s233 = smul.addr %s230, 3
      %s234 = sadd.s32 %s232, %s233
      %s235 = smul.addr %s234, 8
      %s236 = scalar_lea.vmem %s3, %s235
      %s237 = smul.u32 3, %s19
      %v238 = vld [vmem:[%s220] sm:$0xff]
      %v239 = vld [vmem:[%s220 + $0x8] sm:$0xff]
      %v240 = vld [vmem:[%s220 + $0x10] sm:$0xff]
      %v241 = vld [vmem:[%s224] sm:$0x1]
      %v242 = vmul.f32 %v241, 0.11111111
      %v243 = vld [vmem:[%s227] sm:$0x1]
      %v244 = vmul.f32 %v243, 0.11111111
      %v245 = vmul.f32 %v242, %v242
      %v246 = vsub.f32 %v244, %v245
      %v247 = vmax.f32 %v246, 0.0
      %v248 = vadd.f32 %v247, 1e-05
      %v249 = vrsqrt.pop %v248
      %v251 = vlaneseq
      %v252 = vshrl.u32 %v251, 7
      %v253 = vsub.s32 0, %v252
      %v254 = vrot.slane %v242, %v253
      %v256 = vsub.f32 %v238, %v254
      %v257 = vsub.f32 %v239, %v254
      %v258 = vsub.f32 %v240, %v254
      %v260 = vlaneseq
      %v261 = vshrl.u32 %v260, 7
      %v262 = vsub.s32 0, %v261
      %v263 = vrot.slane %v249, %v262
      %v265 = vmul.f32 %v256, %v263
      %v266 = vmul.f32 %v257, %v263
      %v267 = vmul.f32 %v258, %v263
      %vm268 = vcmp.ge.f32.partialorder %v265, 0.0
      %vm269 = vcmp.ge.f32.partialorder %v266, 0.0
      %vm270 = vcmp.ge.f32.partialorder %v267, 0.0
      %v271 = vmul.f32 %v265, 0.2
      %v272 = vmul.f32 %v266, 0.2
      %v273 = vmul.f32 %v267, 0.2
      %v274 = vsel %vm268, %v265, %v271
      %v275 = vsel %vm269, %v266, %v272
      %v276 = vsel %vm270, %v267, %v273
      %277 = vst [vmem:[%s236] sm:$0xff] %v274
      %278 = vst [vmem:[%s236 + $0x8] sm:$0xff] %v275
      %279 = vst [vmem:[%s236 + $0x10] sm:$0xff] %v276
      %s280 = smul.u32 3, %s19
      %p281 = scmp.lt.s32.totalorder %s18, 1
      %s282 = scalar_select %p281, %s18, 1
      %p283 = scmp.lt.s32.totalorder %s280, 2
      %s284 = scalar_select %p283, %s280, 2
      %s285 = smul.addr %s282, 3
      %s286 = sadd.s32 %s284, %s285
      %s287 = smul.addr %s286, 8
      %s288 = scalar_lea.vmem %s3, %s287
      // Predicated region
      $region33: #{_lambda_.14} parent=31 // pred_check
        %p289 = pneg %p126
      $region34: #{_lambda_.14} parent=31 // pred_check_branch
        %291 = sbr.rel (%p289) target = $region36
      $region35: #{_lambda_.14} parent=31 // pred_region
        %s292 = smul.u32 3, %s19
      $region36: #{_lambda_.14} parent=31 // pred_fallthru
        _
    $region32: #{_lambda_.14} parent=5 // pred_fallthru
      _
    %p293 = scmp.le.s32.totalorder 2, %s9
    // Predicated region
    $region37: #{_lambda_.14} parent=5 // pred_check
      %p294 = pneg %p293
    $region38: #{_lambda_.14} parent=5 // pred_check_branch
      %296 = sbr.rel (%p294) target = $region40
    $region39: #{_lambda_.14} parent=5 // pred_region
      %s297 = ssub.s32 %s9, 2
      // Predicated region
      $region41: #{_lambda_.14} parent=39 // pred_check
        %p298 = pneg %p132
      $region42: #{_lambda_.14} parent=39 // pred_check_branch
        %300 = sbr.rel (%p298) target = $region44
      $region43: #{_lambda_.14} parent=39 // pred_region
        %s301 = smul.u32 3, %s21
        %p302 = scmp.lt.s32.totalorder %s20, 1
        %s303 = scalar_select %p302, %s20, 1
        %p304 = scmp.lt.s32.totalorder %s301, 2
        %s305 = scalar_select %p304, %s301, 2
        %s306 = smul.addr %s303, 3
        %s307 = sadd.s32 %s305, %s306
        %s308 = smul.addr %s307, 8
        %s309 = scalar_lea.vmem %s3, %s308
      $region44: #{_lambda_.14} parent=39 // pred_fallthru
        _
    $region40: #{_lambda_.14} parent=5 // pred_fallthru
      _
  $region6: #{_lambda_.14} parent=0 // loop_footer
    %s13 = sadd.s32 1, %s9
  $region7: #{_lambda_.14} parent=0 // loop_footer_branch
    %8 = sbr.rel target = $region3
  $region8: #{_lambda_.14} parent=0 // loop_exit
    _

// kernel: _lambda_.15
$region0: #{_lambda_.15}
  #allocation0 [shape = 'u32[]', space=smem, size = 0x4, offset = 0x4, fixed_abs, tag = 'smem constant byte address 0x4 - core index']
  #allocation1 [shape = 'u32[144,128]{1,0:T(1,128)}', space=vmem, size = 0x12000, scoped, tag = 'internal scratch']
  %s0 = inlined_call_operand.vmem [shape: f32[2,34,128], index: 0, kind: input, shape index: {}]
  %s1 = inlined_call_operand.vmem [shape: f32[16,128,128], index: 1, kind: input, shape index: {}]
  %s2 = inlined_call_operand.vmem [shape: f32[1,128], index: 2, kind: input, shape index: {}]
  %s3 = inlined_call_operand.vmem [shape: f32[2,16,128], index: 3, kind: output, shape index: {}]
  %s4 = sld [smem:[#allocation0]]
  $region45: #{_lambda_.15} parent=0
    _
  %s6 = ssub.s32 1, %s4
  %s7 = scalar_select 0, %s6, %s4
  loop: start=0, step=1, limit=4
  $region2: #{_lambda_.15} parent=0 // loop_pre_header
    _
  $region3: #{_lambda_.15} parent=0 // loop_header
    %s9 = sphi 0, %s13
    %p10 = scmp.ge.s32.totalorder %s9, 4
    %s16 = sphi 0, %s28
    %s17 = sphi 0, %s24
    %s18 = sphi 0, %s16
    %s19 = sphi 0, %s17
    %s20 = sphi 0, %s18
    %s21 = sphi 0, %s19
    %s31 = sphi 0, %s33
    %s34 = sphi 0, %s31
    %s35 = sphi 0, %s34
    %s51 = sphi 0, %s35
    %s55 = sphi 0, %s55
    %s57 = sphi 0, %s55
    %s58 = sphi 0, %s57
    %s72 = sphi 0, %s58
    %s76 = sphi 0, %s76
    %s78 = sphi 0, %s76
    %s79 = sphi 0, %s78
    %s93 = sphi 0, %s79
    %s101 = sphi 0, %s103
    %s104 = sphi 0, %s101
    %s105 = sphi 0, %s104
    %s121 = sphi 0, %s105
  $region4: #{_lambda_.15} parent=0 // loop_header_branch
    %12 = sbr.rel (%p10) target = $region8
  $region5: #{_lambda_.15} parent=0 // loop_body
    %s14 = ssub.s32 %s9, 1
    %s15 = ssub.s32 %s9, 2
    %s22 = sadd.s32 1, %s17
    %p23 = scmp.ge.s32.totalorder %s22, 1
    %s24 = scalar_select %p23, 0, %s22
    %s25 = sadd.s32 1, %s16
    %s26 = scalar_select %p23, %s25, %s16
    %p27 = scmp.ge.s32.totalorder %s26, 2
    %s28 = scalar_select %p27, 0, %s26
    %s29 = ssub.s32 %s16, %s28
    %p30 = scmp.eq.s32.totalorder %s29, 0
    %s32 = sadd.s32 %s31, 1
    %s33 = scalar_select %p30, %s31, %s32
    %p36 = pneg %p30
    %p37 = scmp.eq.s32.totalorder %s9, 1
    %p38 = por %p36, %p37
    %p39 = scmp.ne.s32.totalorder %s31, %s34
    %p40 = scmp.eq.s32.totalorder %s9, 0
    %p41 = por %p39, %p40
    %p42 = scmp.ne.s32.totalorder %s31, %s34
    %p43 = scmp.eq.s32.totalorder %s14, 1
    %p44 = por %p42, %p43
    %p45 = scmp.ne.s32.totalorder %s34, %s35
    %p46 = scmp.eq.s32.totalorder %s14, 0
    %p47 = por %p45, %p46
    %p48 = scmp.ne.s32.totalorder %s34, %s35
    %p49 = scmp.eq.s32.totalorder %s15, 1
    %p50 = por %p48, %p49
    %p52 = scmp.ne.s32.totalorder %s35, %s51
    %p53 = scmp.eq.s32.totalorder %s15, 0
    %p54 = por %p52, %p53
    %s56 = sadd.s32 %s55, 1
    %p59 = scmp.eq.s32.totalorder %s9, 1
    %p60 = scmp.ne.s32.totalorder %s55, %s57
    %p61 = scmp.eq.s32.totalorder %s9, 0
    %p62 = por %p60, %p61
    %p63 = scmp.ne.s32.totalorder %s55, %s57
    %p64 = scmp.eq.s32.totalorder %s14, 1
    %p65 = por %p63, %p64
    %p66 = scmp.ne.s32.totalorder %s57, %s58
    %p67 = scmp.eq.s32.totalorder %s14, 0
    %p68 = por %p66, %p67
    %p69 = scmp.ne.s32.totalorder %s57, %s58
    %p70 = scmp.eq.s32.totalorder %s15, 1
    %p71 = por %p69, %p70
    %p73 = scmp.ne.s32.totalorder %s58, %s72
    %p74 = scmp.eq.s32.totalorder %s15, 0
    %p75 = por %p73, %p74
    %s77 = sadd.s32 %s76, 1
    %p80 = scmp.eq.s32.totalorder %s9, 1
    %p81 = scmp.ne.s32.totalorder %s76, %s78
    %p82 = scmp.eq.s32.totalorder %s9, 0
    %p83 = por %p81, %p82
    %p84 = scmp.ne.s32.totalorder %s76, %s78
    %p85 = scmp.eq.s32.totalorder %s14, 1
    %p86 = por %p84, %p85
    %p87 = scmp.ne.s32.totalorder %s78, %s79
    %p88 = scmp.eq.s32.totalorder %s14, 0
    %p89 = por %p87, %p88
    %p90 = scmp.ne.s32.totalorder %s78, %s79
    %p91 = scmp.eq.s32.totalorder %s15, 1
    %p92 = por %p90, %p91
    %p94 = scmp.ne.s32.totalorder %s79, %s93
    %p95 = scmp.eq.s32.totalorder %s15, 0
    %p96 = por %p94, %p95
    %s97 = ssub.s32 %s16, %s28
    %s98 = ssub.s32 %s17, %s24
    %s99 = sor.u32 %s97, %s98
    %p100 = scmp.eq.s32.totalorder %s99, 0
    %s102 = sadd.s32 %s101, 1
    %s103 = scalar_select %p100, %s101, %s102
    %p106 = pneg %p100
    %p107 = scmp.eq.s32.totalorder %s9, 1
    %p108 = por %p106, %p107
    %p109 = scmp.ne.s32.totalorder %s101, %s104
    %p110 = scmp.eq.s32.totalorder %s9, 0
    %p111 = por %p109, %p110
    %p112 = scmp.ne.s32.totalorder %s101, %s104
    %p113 = scmp.eq.s32.totalorder %s14, 1
    %p114 = por %p112, %p113
    %p115 = scmp.ne.s32.totalorder %s104, %s105
    %p116 = scmp.eq.s32.totalorder %s14, 0
    %p117 = por %p115, %p116
    %p118 = scmp.ne.s32.totalorder %s104, %s105
    %p119 = scmp.eq.s32.totalorder %s15, 1
    %p120 = por %p118, %p119
    %p122 = scmp.ne.s32.totalorder %s105, %s121
    %p123 = scmp.eq.s32.totalorder %s15, 0
    %p124 = por %p122, %p123
    %p125 = scmp.le.s32.totalorder 1, %s9
    %p126 = scmp.lt.s32.totalorder %s9, 3
    %p127 = pnand %p125, %p126
    %p128 = pneg %p127
    // Predicated region
    $region9: #{_lambda_.15} parent=5 // pred_check
      _
    $region10: #{_lambda_.15} parent=5 // pred_check_branch
      %130 = sbr.rel (%p127) target = $region12
    $region11: #{_lambda_.15} parent=5 // pred_region
      %s131 = ssub.s32 %s9, 1
      // Predicated region
      $region13: #{_lambda_.15} parent=11 // pred_check
        %p132 = pneg %p68
      $region14: #{_lambda_.15} parent=11 // pred_check_branch
        %134 = sbr.rel (%p132) target = $region16
      $region15: #{_lambda_.15} parent=11 // pred_region
        _
      $region16: #{_lambda_.15} parent=11 // pred_fallthru
        _
      // Predicated region
      $region17: #{_lambda_.15} parent=11 // pred_check
        %p135 = pneg %p89
      $region18: #{_lambda_.15} parent=11 // pred_check_branch
        %137 = sbr.rel (%p135) target = $region20
      $region19: #{_lambda_.15} parent=11 // pred_region
        _
      $region20: #{_lambda_.15} parent=11 // pred_fallthru
        _
    $region12: #{_lambda_.15} parent=5 // pred_fallthru
      _
    %p138 = scmp.lt.s32.totalorder %s9, 2
    // Predicated region
    $region21: #{_lambda_.15} parent=5 // pred_check
      %p139 = pneg %p138
    $region22: #{_lambda_.15} parent=5 // pred_check_branch
      %141 = sbr.rel (%p139) target = $region24
    $region23: #{_lambda_.15} parent=5 // pred_region
      // Predicated region
      $region25: #{_lambda_.15} parent=23 // pred_check
        %p142 = pneg %p41
      $region26: #{_lambda_.15} parent=23 // pred_check_branch
        %144 = sbr.rel (%p142) target = $region28
      $region27: #{_lambda_.15} parent=23 // pred_region
        %p145 = scmp.lt.s32.totalorder %s16, 1
        %s146 = scalar_select %p145, %s16, 1
        %s147 = smul.addr %s146, 5
        %s148 = smul.addr %s147, 8
        %s149 = scalar_lea.vmem %s0, %s148
      $region28: #{_lambda_.15} parent=23 // pred_fallthru
        _
    $region24: #{_lambda_.15} parent=5 // pred_fallthru
      _
    %p150 = scmp.le.s32.totalorder 1, %s9
    %p151 = scmp.lt.s32.totalorder %s9, 3
    %p152 = pnand %p150, %p151
    %p153 = pneg %p152
    // Predicated region
    $region29: #{_lambda_.15} parent=5 // pred_check
      _
    $region30: #{_lambda_.15} parent=5 // pred_check_branch
      %155 = sbr.rel (%p152) target = $region32
    $region31: #{_lambda_.15} parent=5 // pred_region
      %s156 = ssub.s32 %s9, 1
      %p157 = scmp.lt.s32.totalorder %s18, 1
      %s158 = scalar_select %p157, %s18, 1
      %s159 = smul.addr %s158, 5
      %s160 = smul.addr %s159, 8
      %s161 = scalar_lea.vmem %s0, %s160
      %p162 = pneg %p47
      %p163 = pneg %p44
      %p164 = pneg %p68
      %p165 = pneg %p65
      %p166 = pneg %p89
      %p167 = pneg %p86
      %p168 = pneg %p117
      %p169 = pneg %p114
      %s170 = smul.u32 2, %s19
      %p171 = scmp.lt.s32.totalorder %s18, 1
      %s172 = scalar_select %p171, %s18, 1
      %p173 = scmp.lt.s32.totalorder %s170, 1
      %s174 = scalar_select %p173, %s170, 1
      %s175 = smul.addr %s172, 2
      %s176 = sadd.s32 %s174, %s175
      %s177 = smul.addr %s176, 8
      %s178 = scalar_lea.vmem %s3, %s177
      %p179 = scmp.lt.s32.totalorder %s18, 1
      %s180 = scalar_select %p179, %s18, 1
      %s181 = smul.addr %s180, 5
      %s182 = smul.addr %s181, 8
      %s183 = scalar_lea.vmem %s0, %s182
      %s184 = smul.u32 2, %s19
      %p185 = scmp.lt.s32.totalorder %s18, 1
      %s186 = scalar_select %p185, %s18, 1
      %p187 = scmp.lt.s32.totalorder %s184, 1
      %s188 = scalar_select %p187, %s184, 1
      %s189 = smul.addr %s186, 2
      %s190 = sadd.s32 %s188, %s189
      %s191 = smul.addr %s190, 8
      %s192 = scalar_lea.vmem %s3, %s191
      %s193 = smul.u32 2, %s19
      %s194 = smul.u32 %s19, 16
      %s195 = scalar_lea.vmem %s183, %s194
      %v196 = vld [vmem:[%s195] sm:$0xff]
      %v197 = vld [vmem:[%s195 + $0x8] sm:$0xff]
      %v198 = vld [vmem:[%s1] sm:$0xff]
      %v199 = vld [vmem:[%s1 + $0x8] sm:$0xff]
      %v200 = vld [vmem:[%s1 + $0x10] sm:$0xff]
      %v201 = vld [vmem:[%s1 + $0x18] sm:$0xff]
      %v202 = vld [vmem:[%s1 + $0x20] sm:$0xff]
      %v203 = vld [vmem:[%s1 + $0x28] sm:$0xff]
      %v204 = vld [vmem:[%s1 + $0x30] sm:$0xff]
      %v205 = vld [vmem:[%s1 + $0x38] sm:$0xff]
      %v206 = vld [vmem:[%s1 + $0x40] sm:$0xff]
      %v207 = vld [vmem:[%s1 + $0x48] sm:$0xff]
      %v208 = vld [vmem:[%s1 + $0x50] sm:$0xff]
      %v209 = vld [vmem:[%s1 + $0x58] sm:$0xff]
      %v210 = vld [vmem:[%s1 + $0x60] sm:$0xff]
      %v211 = vld [vmem:[%s1 + $0x68] sm:$0xff]
      %v212 = vld [vmem:[%s1 + $0x70] sm:$0xff]
      %v213 = vld [vmem:[%s1 + $0x78] sm:$0xff]
      %s214 = sadd.s32 %s194, 1
      %s215 = scalar_lea.vmem %s183, %s214
      %v216 = vld [vmem:[%s215] sm:$0xff]
      %v217 = vld [vmem:[%s215 + $0x8] sm:$0xff]
      %s218 = scalar_lea.vmem %s1, 128
      %v219 = vld [vmem:[%s218] sm:$0xff]
      %v220 = vld [vmem:[%s218 + $0x8] sm:$0xff]
      %v221 = vld [vmem:[%s218 + $0x10] sm:$0xff]
      %v222 = vld [vmem:[%s218 + $0x18] sm:$0xff]
      %v223 = vld [vmem:[%s218 + $0x20] sm:$0xff]
      %v224 = vld [vmem:[%s218 + $0x28] sm:$0xff]
      %v225 = vld [vmem:[%s218 + $0x30] sm:$0xff]
      %v226 = vld [vmem:[%s218 + $0x38] sm:$0xff]
      %v227 = vld [vmem:[%s218 + $0x40] sm:$0xff]
      %v228 = vld [vmem:[%s218 + $0x48] sm:$0xff]
      %v229 = vld [vmem:[%s218 + $0x50] sm:$0xff]
      %v230 = vld [vmem:[%s218 + $0x58] sm:$0xff]
      %v231 = vld [vmem:[%s218 + $0x60] sm:$0xff]
      %v232 = vld [vmem:[%s218 + $0x68] sm:$0xff]
      %v233 = vld [vmem:[%s218 + $0x70] sm:$0xff]
      %v234 = vld [vmem:[%s218 + $0x78] sm:$0xff]
      %235 = vmatprep.subr.mxu0 0.0
      %236 = vmatpush1.msra.mxu0 %v234
      %237 = vmatprep.subr.mxu0 0.0
      %238 = vmatpush1.msra.mxu0 %v233
      %239 = vmatprep.subr.mxu0 0.0
      %240 = vmatpush1.msra.mxu0 %v232
      %241 = vmatprep.subr.mxu0 0.0
      %242 = vmatpush1.msra.mxu0 %v231
      %243 = vmatprep.subr.mxu0 0.0
      %244 = vmatpush1.msra.mxu0 %v230
      %245 = vmatprep.subr.mxu0 0.0
      %246 = vmatpush1.msra.mxu0 %v229
      %247 = vmatprep.subr.mxu0 0.0
      %248 = vmatpush1.msra.mxu0 %v228
      %249 = vmatprep.subr.mxu0 0.0
      %250 = vmatpush1.msra.mxu0 %v227
      %251 = vmatprep.subr.mxu0 0.0
      %252 = vmatpush1.msra.mxu0 %v226
      %253 = vmatprep.subr.mxu0 0.0
      %254 = vmatpush1.msra.mxu0 %v225
      %255 = vmatprep.subr.mxu0 0.0
      %256 = vmatpush1.msra.mxu0 %v224
      %257 = vmatprep.subr.mxu0 0.0
      %258 = vmatpush1.msra.mxu0 %v223
      %259 = vmatprep.subr.mxu0 0.0
      %260 = vmatpush1.msra.mxu0 %v222
      %261 = vmatprep.subr.mxu0 0.0
      %262 = vmatpush1.msra.mxu0 %v221
      %263 = vmatprep.subr.mxu0 0.0
      %264 = vmatpush1.msra.mxu0 %v220
      %265 = vmatprep.subr.mxu0 0.0
      %266 = vmatpush1.msra.mxu0 %v219
      %267 = vmatprep.subr.mxu0 0.0
      %268 = vmatpush2.msra.mxu0 0.0
      %269 = vmatprep.subr.mxu0 0.0
      %270 = vmatpush2.msra.mxu0 0.0
      %271 = vmatprep.subr.mxu0 0.0
      %272 = vmatpush2.msra.mxu0 0.0
      %273 = vmatprep.subr.mxu0 0.0
      %274 = vmatpush2.msra.mxu0 0.0
      %275 = vmatprep.subr.mxu0 0.0
      %276 = vmatpush2.msra.mxu0 0.0
      %277 = vmatprep.subr.mxu0 0.0
      %278 = vmatpush2.msra.mxu0 0.0
      %279 = vmatprep.subr.mxu0 0.0
      %280 = vmatpush2.msra.mxu0 0.0
      %281 = vmatprep.subr.mxu0 0.0
      %282 = vmatpush2.msra.mxu0 0.0
      %283 = vmatprep.subr.mxu0 0.0
      %284 = vmatpush2.msra.mxu0 0.0
      %285 = vmatprep.subr.mxu0 0.0
      %286 = vmatpush2.msra.mxu0 0.0
      %287 = vmatprep.subr.mxu0 0.0
      %288 = vmatpush2.msra.mxu0 0.0
      %289 = vmatprep.subr.mxu0 0.0
      %290 = vmatpush2.msra.mxu0 0.0
      %291 = vmatprep.subr.mxu0 0.0
      %292 = vmatpush2.msra.mxu0 0.0
      %293 = vmatprep.subr.mxu0 0.0
      %294 = vmatpush2.msra.mxu0 0.0
      %295 = vmatprep.subr.mxu0 0.0
      %296 = vmatpush2.msra.mxu0 0.0
      %297 = vmatprep.subr.mxu0 0.0
      %298 = vmatpush2.msra.mxu0 0.0
      %299 = vmatprep.mubr.f32.mxu0 0.0
      %300 = vmatmul.mubr.f32.gmra.mxu0 %v216
      %v301 = vpop.f32.mrf.mxu0
      %v302 = vadd.f32 0.0, %v301
      %v303 = vpop.f32.mrf.mxu0
      %304 = vmatprep.mubr.f32.mxu0 0.0
      %305 = vmatmul.mubr.f32.gmra.mxu0 %v217
      %v306 = vpop.f32.mrf.mxu0
      %v307 = vadd.f32 0.0, %v306
      %v308 = vpop.f32.mrf.mxu0
      %309 = vdwg.mxu0
      %310 = vmatprep.subr.mxu0 0.0
      %311 = vmatpush1.msra.mxu0 %v213
      %312 = vmatprep.subr.mxu0 0.0
      %313 = vmatpush1.msra.mxu0 %v212
      %314 = vmatprep.subr.mxu0 0.0
      %315 = vmatpush1.msra.mxu0 %v211
      %316 = vmatprep.subr.mxu0 0.0
      %317 = vmatpush1.msra.mxu0 %v210
      %318 = vmatprep.subr.mxu0 0.0
      %319 = vmatpush1.msra.mxu0 %v209
      %320 = vmatprep.subr.mxu0 0.0
      %321 = vmatpush1.msra.mxu0 %v208
      %322 = vmatprep.subr.mxu0 0.0
      %323 = vmatpush1.msra.mxu0 %v207
      %324 = vmatprep.subr.mxu0 0.0
      %325 = vmatpush1.msra.mxu0 %v206
      %326 = vmatprep.subr.mxu0 0.0
      %327 = vmatpush1.msra.mxu0 %v205
      %328 = vmatprep.subr.mxu0 0.0
      %329 = vmatpush1.msra.mxu0 %v204
      %330 = vmatprep.subr.mxu0 0.0
      %331 = vmatpush1.msra.mxu0 %v203
      %332 = vmatprep.subr.mxu0 0.0
      %333 = vmatpush1.msra.mxu0 %v202
      %334 = vmatprep.subr.mxu0 0.0
      %335 = vmatpush1.msra.mxu0 %v201
      %336 = vmatprep.subr.mxu0 0.0
      %337 = vmatpush1.msra.mxu0 %v200
      %338 = vmatprep.subr.mxu0 0.0
      %339 = vmatpush1.msra.mxu0 %v199
      %340 = vmatprep.subr.mxu0 0.0
      %341 = vmatpush1.msra.mxu0 %v198
      %342 = vmatprep.subr.mxu0 0.0
      %343 = vmatpush2.msra.mxu0 0.0
      %344 = vmatprep.subr.mxu0 0.0
      %345 = vmatpush2.msra.mxu0 0.0
      %346 = vmatprep.subr.mxu0 0.0
      %347 = vmatpush2.msra.mxu0 0.0
      %348 = vmatprep.subr.mxu0 0.0
      %349 = vmatpush2.msra.mxu0 0.0
      %350 = vmatprep.subr.mxu0 0.0
      %351 = vmatpush2.msra.mxu0 0.0
      %352 = vmatprep.subr.mxu0 0.0
      %353 = vmatpush2.msra.mxu0 0.0
      %354 = vmatprep.subr.mxu0 0.0
      %355 = vmatpush2.msra.mxu0 0.0
      %356 = vmatprep.subr.mxu0 0.0
      %357 = vmatpush2.msra.mxu0 0.0
      %358 = vmatprep.subr.mxu0 0.0
      %359 = vmatpush2.msra.mxu0 0.0
      %360 = vmatprep.subr.mxu0 0.0
      %361 = vmatpush2.msra.mxu0 0.0
      %362 = vmatprep.subr.mxu0 0.0
      %363 = vmatpush2.msra.mxu0 0.0
      %364 = vmatprep.subr.mxu0 0.0
      %365 = vmatpush2.msra.mxu0 0.0
      %366 = vmatprep.subr.mxu0 0.0
      %367 = vmatpush2.msra.mxu0 0.0
      %368 = vmatprep.subr.mxu0 0.0
      %369 = vmatpush2.msra.mxu0 0.0
      %370 = vmatprep.subr.mxu0 0.0
      %371 = vmatpush2.msra.mxu0 0.0
      %372 = vmatprep.subr.mxu0 0.0
      %373 = vmatpush2.msra.mxu0 0.0
      %374 = vmatprep.mubr.f32.mxu0 0.0
      %375 = vmatmul.mubr.f32.gmra.mxu0 %v196
      %v376 = vpop.f32.mrf.mxu0
      %v377 = vadd.f32 %v302, %v376
      %v378 = vpop.f32.mrf.mxu0
      %379 = vmatprep.mubr.f32.mxu0 0.0
      %380 = vmatmul.mubr.f32.gmra.mxu0 %v197
      %v381 = vpop.f32.mrf.mxu0
      %v382 = vadd.f32 %v307, %v381
      %v383 = vpop.f32.mrf.mxu0
      %384 = vdwg.mxu0
      %s385 = sadd.s32 %s194, 2
      %s386 = scalar_lea.vmem %s183, %s385
      %v387 = vld [vmem:[%s386] sm:$0xff]
      %v388 = vld [vmem:[%s386 + $0x8] sm:$0xff]
      %s389 = scalar_lea.vmem %s1, 256
      %v390 = vld [vmem:[%s389] sm:$0xff]
      %v391 = vld [vmem:[%s389 + $0x8] sm:$0xff]
      %v392 = vld [vmem:[%s389 + $0x10] sm:$0xff]
      %v393 = vld [vmem:[%s389 + $0x18] sm:$0xff]
      %v394 = vld [vmem:[%s389 + $0x20] sm:$0xff]
      %v395 = vld [vmem:[%s389 + $0x28] sm:$0xff]
      %v396 = vld [vmem:[%s389 + $0x30] sm:$0xff]
      %v397 = vld [vmem:[%s389 + $0x38] sm:$0xff]
      %v398 = vld [vmem:[%s389 + $0x40] sm:$0xff]
      %v399 = vld [vmem:[%s389 + $0x48] sm:$0xff]
      %v400 = vld [vmem:[%s389 + $0x50] sm:$0xff]
      %v401 = vld [vmem:[%s389 + $0x58] sm:$0xff]
      %v402 = vld [vmem:[%s389 + $0x60] sm:$0xff]
      %v403 = vld [vmem:[%s389 + $0x68] sm:$0xff]
      %v404 = vld [vmem:[%s389 + $0x70] sm:$0xff]
      %v405 = vld [vmem:[%s389 + $0x78] sm:$0xff]
      %406 = vmatprep.subr.mxu0 0.0
      %407 = vmatpush1.msra.mxu0 %v405
      %408 = vmatprep.subr.mxu0 0.0
      %409 = vmatpush1.msra.mxu0 %v404
      %410 = vmatprep.subr.mxu0 0.0
      %411 = vmatpush1.msra.mxu0 %v403
      %412 = vmatprep.subr.mxu0 0.0
      %413 = vmatpush1.msra.mxu0 %v402
      %414 = vmatprep.subr.mxu0 0.0
      %415 = vmatpush1.msra.mxu0 %v401
      %416 = vmatprep.subr.mxu0 0.0
      %417 = vmatpush1.msra.mxu0 %v400
      %418 = vmatprep.subr.mxu0 0.0
      %419 = vmatpush1.msra.mxu0 %v399
      %420 = vmatprep.subr.mxu0 0.0
      %421 = vmatpush1.msra.mxu0 %v398
      %422 = vmatprep.subr.mxu0 0.0
      %423 = vmatpush1.msra.mxu0 %v397
      %424 = vmatprep.subr.mxu0 0.0
      %425 = vmatpush1.msra.mxu0 %v396
      %426 = vmatprep.subr.mxu0 0.0
      %427 = vmatpush1.msra.mxu0 %v395
      %428 = vmatprep.subr.mxu0 0.0
      %429 = vmatpush1.msra.mxu0 %v394
      %430 = vmatprep.subr.mxu0 0.0
      %431 = vmatpush1.msra.mxu0 %v393
      %432 = vmatprep.subr.mxu0 0.0
      %433 = vmatpush1.msra.mxu0 %v392
      %434 = vmatprep.subr.mxu0 0.0
      %435 = vmatpush1.msra.mxu0 %v391
      %436 = vmatprep.subr.mxu0 0.0
      %437 = vmatpush1.msra.mxu0 %v390
      %438 = vmatprep.subr.mxu0 0.0
      %439 = vmatpush2.msra.mxu0 0.0
      %440 = vmatprep.subr.mxu0 0.0
      %441 = vmatpush2.msra.mxu0 0.0
      %442 = vmatprep.subr.mxu0 0.0
      %443 = vmatpush2.msra.mxu0 0.0
      %444 = vmatprep.subr.mxu0 0.0
      %445 = vmatpush2.msra.mxu0 0.0
      %446 = vmatprep.subr.mxu0 0.0
      %447 = vmatpush2.msra.mxu0 0.0
      %448 = vmatprep.subr.mxu0 0.0
      %449 = vmatpush2.msra.mxu0 0.0
      %450 = vmatprep.subr.mxu0 0.0
      %451 = vmatpush2.msra.mxu0 0.0
      %452 = vmatprep.subr.mxu0 0.0
      %453 = vmatpush2.msra.mxu0 0.0
      %454 = vmatprep.subr.mxu0 0.0
      %455 = vmatpush2.msra.mxu0 0.0
      %456 = vmatprep.subr.mxu0 0.0
      %457 = vmatpush2.msra.mxu0 0.0
      %458 = vmatprep.subr.mxu0 0.0
      %459 = vmatpush2.msra.mxu0 0.0
      %460 = vmatprep.subr.mxu0 0.0
      %461 = vmatpush2.msra.mxu0 0.0
      %462 = vmatprep.subr.mxu0 0.0
      %463 = vmatpush2.msra.mxu0 0.0
      %464 = vmatprep.subr.mxu0 0.0
      %465 = vmatpush2.msra.mxu0 0.0
      %466 = vmatprep.subr.mxu0 0.0
      %467 = vmatpush2.msra.mxu0 0.0
      %468 = vmatprep.subr.mxu0 0.0
      %469 = vmatpush2.msra.mxu0 0.0
      %470 = vmatprep.mubr.f32.mxu0 0.0
      %471 = vmatmul.mubr.f32.gmra.mxu0 %v387
      %v472 = vpop.f32.mrf.mxu0
      %v473 = vadd.f32 0.0, %v472
      %v474 = vpop.f32.mrf.mxu0
      %475 = vmatprep.mubr.f32.mxu0 0.0
      %476 = vmatmul.mubr.f32.gmra.mxu0 %v388
      %v477 = vpop.f32.mrf.mxu0
      %v478 = vadd.f32 0.0, %v477
      %v479 = vpop.f32.mrf.mxu0
      %480 = vdwg.mxu0
      %v481 = vadd.f32 %v377, %v473
      %v482 = vadd.f32 %v382, %v478
      %s483 = sadd.s32 %s194, 3
      %s484 = scalar_lea.vmem %s183, %s483
      %v485 = vld [vmem:[%s484] sm:$0xff]
      %v486 = vld [vmem:[%s484 + $0x8] sm:$0xff]
      %s487 = scalar_lea.vmem %s1, 384
      %v488 = vld [vmem:[%s487] sm:$0xff]
      %v489 = vld [vmem:[%s487 + $0x8] sm:$0xff]
      %v490 = vld [vmem:[%s487 + $0x10] sm:$0xff]
      %v491 = vld [vmem:[%s487 + $0x18] sm:$0xff]
      %v492 = vld [vmem:[%s487 + $0x20] sm:$0xff]
      %v493 = vld [vmem:[%s487 + $0x28] sm:$0xff]
      %v494 = vld [vmem:[%s487 + $0x30] sm:$0xff]
      %v495 = vld [vmem:[%s487 + $0x38] sm:$0xff]
      %v496 = vld [vmem:[%s487 + $0x40] sm:$0xff]
      %v497 = vld [vmem:[%s487 + $0x48] sm:$0xff]
      %v498 = vld [vmem:[%s487 + $0x50] sm:$0xff]
      %v499 = vld [vmem:[%s487 + $0x58] sm:$0xff]
      %v500 = vld [vmem:[%s487 + $0x60] sm:$0xff]
      %v501 = vld [vmem:[%s487 + $0x68] sm:$0xff]
      %v502 = vld [vmem:[%s487 + $0x70] sm:$0xff]
      %v503 = vld [vmem:[%s487 + $0x78] sm:$0xff]
      %504 = vmatprep.subr.mxu0 0.0
      %505 = vmatpush1.msra.mxu0 %v503
      %506 = vmatprep.subr.mxu0 0.0
      %507 = vmatpush1.msra.mxu0 %v502
      %508 = vmatprep.subr.mxu0 0.0
      %509 = vmatpush1.msra.mxu0 %v501
      %510 = vmatprep.subr.mxu0 0.0
      %511 = vmatpush1.msra.mxu0 %v500
      %512 = vmatprep.subr.mxu0 0.0
      %513 = vmatpush1.msra.mxu0 %v499
      %514 = vmatprep.subr.mxu0 0.0
      %515 = vmatpush1.msra.mxu0 %v498
      %516 = vmatprep.subr.mxu0 0.0
      %517 = vmatpush1.msra.mxu0 %v497
      %518 = vmatprep.subr.mxu0 0.0
      %519 = vmatpush1.msra.mxu0 %v496
      %520 = vmatprep.subr.mxu0 0.0
      %521 = vmatpush1.msra.mxu0 %v495
      %522 = vmatprep.subr.mxu0 0.0
      %523 = vmatpush1.msra.mxu0 %v494
      %524 = vmatprep.subr.mxu0 0.0
      %525 = vmatpush1.msra.mxu0 %v493
      %526 = vmatprep.subr.mxu0 0.0
      %527 = vmatpush1.msra.mxu0 %v492
      %528 = vmatprep.subr.mxu0 0.0
      %529 = vmatpush1.msra.mxu0 %v491
      %530 = vmatprep.subr.mxu0 0.0
      %531 = vmatpush1.msra.mxu0 %v490
      %532 = vmatprep.subr.mxu0 0.0
      %533 = vmatpush1.msra.mxu0 %v489
      %534 = vmatprep.subr.mxu0 0.0
      %535 = vmatpush1.msra.mxu0 %v488
      %536 = vmatprep.subr.mxu0 0.0
      %537 = vmatpush2.msra.mxu0 0.0
      %538 = vmatprep.subr.mxu0 0.0
      %539 = vmatpush2.msra.mxu0 0.0
      %540 = vmatprep.subr.mxu0 0.0
      %541 = vmatpush2.msra.mxu0 0.0
      %542 = vmatprep.subr.mxu0 0.0
      %543 = vmatpush2.msra.mxu0 0.0
      %544 = vmatprep.subr.mxu0 0.0
      %545 = vmatpush2.msra.mxu0 0.0
      %546 = vmatprep.subr.mxu0 0.0
      %547 = vmatpush2.msra.mxu0 0.0
      %548 = vmatprep.subr.mxu0 0.0
      %549 = vmatpush2.msra.mxu0 0.0
      %550 = vmatprep.subr.mxu0 0.0
      %551 = vmatpush2.msra.mxu0 0.0
      %552 = vmatprep.subr.mxu0 0.0
      %553 = vmatpush2.msra.mxu0 0.0
      %554 = vmatprep.subr.mxu0 0.0
      %555 = vmatpush2.msra.mxu0 0.0
      %556 = vmatprep.subr.mxu0 0.0
      %557 = vmatpush2.msra.mxu0 0.0
      %558 = vmatprep.subr.mxu0 0.0
      %559 = vmatpush2.msra.mxu0 0.0
      %560 = vmatprep.subr.mxu0 0.0
      %561 = vmatpush2.msra.mxu0 0.0
      %562 = vmatprep.subr.mxu0 0.0
      %563 = vmatpush2.msra.mxu0 0.0
      %564 = vmatprep.subr.mxu0 0.0
      %565 = vmatpush2.msra.mxu0 0.0
      %566 = vmatprep.subr.mxu0 0.0
      %567 = vmatpush2.msra.mxu0 0.0
      %568 = vmatprep.mubr.f32.mxu0 0.0
      %569 = vmatmul.mubr.f32.gmra.mxu0 %v485
      %v570 = vpop.f32.mrf.mxu0
      %v571 = vadd.f32 0.0, %v570
      %v572 = vpop.f32.mrf.mxu0
      %573 = vmatprep.mubr.f32.mxu0 0.0
      %574 = vmatmul.mubr.f32.gmra.mxu0 %v486
      %v575 = vpop.f32.mrf.mxu0
      %v576 = vadd.f32 0.0, %v575
      %v577 = vpop.f32.mrf.mxu0
      %578 = vdwg.mxu0
      %v579 = vadd.f32 %v481, %v571
      %v580 = vadd.f32 %v482, %v576
      %s581 = sadd.s32 %s194, 5
      %s582 = scalar_lea.vmem %s183, %s581
      %v583 = vld [vmem:[%s582] sm:$0xff]
      %v584 = vld [vmem:[%s582 + $0x8] sm:$0xff]
      %s585 = scalar_lea.vmem %s1, 512
      %v586 = vld [vmem:[%s585] sm:$0xff]
      %v587 = vld [vmem:[%s585 + $0x8] sm:$0xff]
      %v588 = vld [vmem:[%s585 + $0x10] sm:$0xff]
      %v589 = vld [vmem:[%s585 + $0x18] sm:$0xff]
      %v590 = vld [vmem:[%s585 + $0x20] sm:$0xff]
      %v591 = vld [vmem:[%s585 + $0x28] sm:$0xff]
      %v592 = vld [vmem:[%s585 + $0x30] sm:$0xff]
      %v593 = vld [vmem:[%s585 + $0x38] sm:$0xff]
      %v594 = vld [vmem:[%s585 + $0x40] sm:$0xff]
      %v595 = vld [vmem:[%s585 + $0x48] sm:$0xff]
      %v596 = vld [vmem:[%s585 + $0x50] sm:$0xff]
      %v597 = vld [vmem:[%s585 + $0x58] sm:$0xff]
      %v598 = vld [vmem:[%s585 + $0x60] sm:$0xff]
      %v599 = vld [vmem:[%s585 + $0x68] sm:$0xff]
      %v600 = vld [vmem:[%s585 + $0x70] sm:$0xff]
      %v601 = vld [vmem:[%s585 + $0x78] sm:$0xff]
      %602 = vmatprep.subr.mxu0 0.0
      %603 = vmatpush1.msra.mxu0 %v601
      %604 = vmatprep.subr.mxu0 0.0
      %605 = vmatpush1.msra.mxu0 %v600
      %606 = vmatprep.subr.mxu0 0.0
      %607 = vmatpush1.msra.mxu0 %v599
      %608 = vmatprep.subr.mxu0 0.0
      %609 = vmatpush1.msra.mxu0 %v598
      %610 = vmatprep.subr.mxu0 0.0
      %611 = vmatpush1.msra.mxu0 %v597
      %612 = vmatprep.subr.mxu0 0.0
      %613 = vmatpush1.msra.mxu0 %v596
      %614 = vmatprep.subr.mxu0 0.0
      %615 = vmatpush1.msra.mxu0 %v595
      %616 = vmatprep.subr.mxu0 0.0
      %617 = vmatpush1.msra.mxu0 %v594
      %618 = vmatprep.subr.mxu0 0.0
      %619 = vmatpush1.msra.mxu0 %v593
      %620 = vmatprep.subr.mxu0 0.0
      %621 = vmatpush1.msra.mxu0 %v592
      %622 = vmatprep.subr.mxu0 0.0
      %623 = vmatpush1.msra.mxu0 %v591
      %624 = vmatprep.subr.mxu0 0.0
      %625 = vmatpush1.msra.mxu0 %v590
      %626 = vmatprep.subr.mxu0 0.0
      %627 = vmatpush1.msra.mxu0 %v589
      %628 = vmatprep.subr.mxu0 0.0
      %629 = vmatpush1.msra.mxu0 %v588
      %630 = vmatprep.subr.mxu0 0.0
      %631 = vmatpush1.msra.mxu0 %v587
      %632 = vmatprep.subr.mxu0 0.0
      %633 = vmatpush1.msra.mxu0 %v586
      %634 = vmatprep.subr.mxu0 0.0
      %635 = vmatpush2.msra.mxu0 0.0
      %636 = vmatprep.subr.mxu0 0.0
      %637 = vmatpush2.msra.mxu0 0.0
      %638 = vmatprep.subr.mxu0 0.0
      %639 = vmatpush2.msra.mxu0 0.0
      %640 = vmatprep.subr.mxu0 0.0
      %641 = vmatpush2.msra.mxu0 0.0
      %642 = vmatprep.subr.mxu0 0.0
      %643 = vmatpush2.msra.mxu0 0.0
      %644 = vmatprep.subr.mxu0 0.0
      %645 = vmatpush2.msra.mxu0 0.0
      %646 = vmatprep.subr.mxu0 0.0
      %647 = vmatpush2.msra.mxu0 0.0
      %648 = vmatprep.subr.mxu0 0.0
      %649 = vmatpush2.msra.mxu0 0.0
      %650 = vmatprep.subr.mxu0 0.0
      %651 = vmatpush2.msra.mxu0 0.0
      %652 = vmatprep.subr.mxu0 0.0
      %653 = vmatpush2.msra.mxu0 0.0
      %654 = vmatprep.subr.mxu0 0.0
      %655 = vmatpush2.msra.mxu0 0.0
      %656 = vmatprep.subr.mxu0 0.0
      %657 = vmatpush2.msra.mxu0 0.0
      %658 = vmatprep.subr.mxu0 0.0
      %659 = vmatpush2.msra.mxu0 0.0
      %660 = vmatprep.subr.mxu0 0.0
      %661 = vmatpush2.msra.mxu0 0.0
      %662 = vmatprep.subr.mxu0 0.0
      %663 = vmatpush2.msra.mxu0 0.0
      %664 = vmatprep.subr.mxu0 0.0
      %665 = vmatpush2.msra.mxu0 0.0
      %666 = vmatprep.mubr.f32.mxu0 0.0
      %667 = vmatmul.mubr.f32.gmra.mxu0 %v583
      %v668 = vpop.f32.mrf.mxu0
      %v669 = vadd.f32 0.0, %v668
      %v670 = vpop.f32.mrf.mxu0
      %671 = vmatprep.mubr.f32.mxu0 0.0
      %672 = vmatmul.mubr.f32.gmra.mxu0 %v584
      %v673 = vpop.f32.mrf.mxu0
      %v674 = vadd.f32 0.0, %v673
      %v675 = vpop.f32.mrf.mxu0
      %676 = vdwg.mxu0
      %v677 = vadd.f32 %v579, %v669
      %v678 = vadd.f32 %v580, %v674
      %s679 = sadd.s32 %s194, 6
      %s680 = scalar_lea.vmem %s183, %s679
      %v681 = vld [vmem:[%s680] sm:$0xff]
      %v682 = vld [vmem:[%s680 + $0x8] sm:$0xff]
      %s683 = scalar_lea.vmem %s1, 640
      %v684 = vld [vmem:[%s683] sm:$0xff]
      %v685 = vld [vmem:[%s683 + $0x8] sm:$0xff]
      %v686 = vld [vmem:[%s683 + $0x10] sm:$0xff]
      %v687 = vld [vmem:[%s683 + $0x18] sm:$0xff]
      %v688 = vld [vmem:[%s683 + $0x20] sm:$0xff]
      %v689 = vld [vmem:[%s683 + $0x28] sm:$0xff]
      %v690 = vld [vmem:[%s683 + $0x30] sm:$0xff]
      %v691 = vld [vmem:[%s683 + $0x38] sm:$0xff]
      %v692 = vld [vmem:[%s683 + $0x40] sm:$0xff]
      %v693 = vld [vmem:[%s683 + $0x48] sm:$0xff]
      %v694 = vld [vmem:[%s683 + $0x50] sm:$0xff]
      %v695 = vld [vmem:[%s683 + $0x58] sm:$0xff]
      %v696 = vld [vmem:[%s683 + $0x60] sm:$0xff]
      %v697 = vld [vmem:[%s683 + $0x68] sm:$0xff]
      %v698 = vld [vmem:[%s683 + $0x70] sm:$0xff]
      %v699 = vld [vmem:[%s683 + $0x78] sm:$0xff]
      %700 = vmatprep.subr.mxu0 0.0
      %701 = vmatpush1.msra.mxu0 %v699
      %702 = vmatprep.subr.mxu0 0.0
      %703 = vmatpush1.msra.mxu0 %v698
      %704 = vmatprep.subr.mxu0 0.0
      %705 = vmatpush1.msra.mxu0 %v697
      %706 = vmatprep.subr.mxu0 0.0
      %707 = vmatpush1.msra.mxu0 %v696
      %708 = vmatprep.subr.mxu0 0.0
      %709 = vmatpush1.msra.mxu0 %v695
      %710 = vmatprep.subr.mxu0 0.0
      %711 = vmatpush1.msra.mxu0 %v694
      %712 = vmatprep.subr.mxu0 0.0
      %713 = vmatpush1.msra.mxu0 %v693
      %714 = vmatprep.subr.mxu0 0.0
      %715 = vmatpush1.msra.mxu0 %v692
      %716 = vmatprep.subr.mxu0 0.0
      %717 = vmatpush1.msra.mxu0 %v691
      %718 = vmatprep.subr.mxu0 0.0
      %719 = vmatpush1.msra.mxu0 %v690
      %720 = vmatprep.subr.mxu0 0.0
      %721 = vmatpush1.msra.mxu0 %v689
      %722 = vmatprep.subr.mxu0 0.0
      %723 = vmatpush1.msra.mxu0 %v688
      %724 = vmatprep.subr.mxu0 0.0
      %725 = vmatpush1.msra.mxu0 %v687
      %726 = vmatprep.subr.mxu0 0.0
      %727 = vmatpush1.msra.mxu0 %v686
      %728 = vmatprep.subr.mxu0 0.0
      %729 = vmatpush1.msra.mxu0 %v685
      %730 = vmatprep.subr.mxu0 0.0
      %731 = vmatpush1.msra.mxu0 %v684
      %732 = vmatprep.subr.mxu0 0.0
      %733 = vmatpush2.msra.mxu0 0.0
      %734 = vmatprep.subr.mxu0 0.0
      %735 = vmatpush2.msra.mxu0 0.0
      %736 = vmatprep.subr.mxu0 0.0
      %737 = vmatpush2.msra.mxu0 0.0
      %738 = vmatprep.subr.mxu0 0.0
      %739 = vmatpush2.msra.mxu0 0.0
      %740 = vmatprep.subr.mxu0 0.0
      %741 = vmatpush2.msra.mxu0 0.0
      %742 = vmatprep.subr.mxu0 0.0
      %743 = vmatpush2.msra.mxu0 0.0
      %744 = vmatprep.subr.mxu0 0.0
      %745 = vmatpush2.msra.mxu0 0.0
      %746 = vmatprep.subr.mxu0 0.0
      %747 = vmatpush2.msra.mxu0 0.0
      %748 = vmatprep.subr.mxu0 0.0
      %749 = vmatpush2.msra.mxu0 0.0
      %750 = vmatprep.subr.mxu0 0.0
      %751 = vmatpush2.msra.mxu0 0.0
      %752 = vmatprep.subr.mxu0 0.0
      %753 = vmatpush2.msra.mxu0 0.0
      %754 = vmatprep.subr.mxu0 0.0
      %755 = vmatpush2.msra.mxu0 0.0
      %756 = vmatprep.subr.mxu0 0.0
      %757 = vmatpush2.msra.mxu0 0.0
      %758 = vmatprep.subr.mxu0 0.0
      %759 = vmatpush2.msra.mxu0 0.0
      %760 = vmatprep.subr.mxu0 0.0
      %761 = vmatpush2.msra.mxu0 0.0
      %762 = vmatprep.subr.mxu0 0.0
      %763 = vmatpush2.msra.mxu0 0.0
      %764 = vmatprep.mubr.f32.mxu0 0.0
      %765 = vmatmul.mubr.f32.gmra.mxu0 %v681
      %v766 = vpop.f32.mrf.mxu0
      %v767 = vadd.f32 0.0, %v766
      %v768 = vpop.f32.mrf.mxu0
      %769 = vmatprep.mubr.f32.mxu0 0.0
      %770 = vmatmul.mubr.f32.gmra.mxu0 %v682
      %v771 = vpop.f32.mrf.mxu0
      %v772 = vadd.f32 0.0, %v771
      %v773 = vpop.f32.mrf.mxu0
      %774 = vdwg.mxu0
      %v775 = vadd.f32 %v677, %v767
      %v776 = vadd.f32 %v678, %v772
      %s777 = sadd.s32 %s194, 7
      %s778 = scalar_lea.vmem %s183, %s777
      %v779 = vld [vmem:[%s778] sm:$0xff]
      %v780 = vld [vmem:[%s778 + $0x8] sm:$0xff]
      %s781 = scalar_lea.vmem %s1, 768
      %v782 = vld [vmem:[%s781] sm:$0xff]
      %v783 = vld [vmem:[%s781 + $0x8] sm:$0xff]
      %v784 = vld [vmem:[%s781 + $0x10] sm:$0xff]
      %v785 = vld [vmem:[%s781 + $0x18] sm:$0xff]
      %v786 = vld [vmem:[%s781 + $0x20] sm:$0xff]
      %v787 = vld [vmem:[%s781 + $0x28] sm:$0xff]
      %v788 = vld [vmem:[%s781 + $0x30] sm:$0xff]
      %v789 = vld [vmem:[%s781 + $0x38] sm:$0xff]
      %v790 = vld [vmem:[%s781 + $0x40] sm:$0xff]
      %v791 = vld [vmem:[%s781 + $0x48] sm:$0xff]
      %v792 = vld [vmem:[%s781 + $0x50] sm:$0xff]
      %v793 = vld [vmem:[%s781 + $0x58] sm:$0xff]
      %v794 = vld [vmem:[%s781 + $0x60] sm:$0xff]
      %v795 = vld [vmem:[%s781 + $0x68] sm:$0xff]
      %v796 = vld [vmem:[%s781 + $0x70] sm:$0xff]
      %v797 = vld [vmem:[%s781 + $0x78] sm:$0xff]
      %798 = vmatprep.subr.mxu0 0.0
      %799 = vmatpush1.msra.mxu0 %v797
      %800 = vmatprep.subr.mxu0 0.0
      %801 = vmatpush1.msra.mxu0 %v796
      %802 = vmatprep.subr.mxu0 0.0
      %803 = vmatpush1.msra.mxu0 %v795
      %804 = vmatprep.subr.mxu0 0.0
      %805 = vmatpush1.msra.mxu0 %v794
      %806 = vmatprep.subr.mxu0 0.0
      %807 = vmatpush1.msra.mxu0 %v793
      %808 = vmatprep.subr.mxu0 0.0
      %809 = vmatpush1.msra.mxu0 %v792
      %810 = vmatprep.subr.mxu0 0.0
      %811 = vmatpush1.msra.mxu0 %v791
      %812 = vmatprep.subr.mxu0 0.0
      %813 = vmatpush1.msra.mxu0 %v790
      %814 = vmatprep.subr.mxu0 0.0
      %815 = vmatpush1.msra.mxu0 %v789
      %816 = vmatprep.subr.mxu0 0.0
      %817 = vmatpush1.msra.mxu0 %v788
      %818 = vmatprep.subr.mxu0 0.0
      %819 = vmatpush1.msra.mxu0 %v787
      %820 = vmatprep.subr.mxu0 0.0
      %821 = vmatpush1.msra.mxu0 %v786
      %822 = vmatprep.subr.mxu0 0.0
      %823 = vmatpush1.msra.mxu0 %v785
      %824 = vmatprep.subr.mxu0 0.0
      %825 = vmatpush1.msra.mxu0 %v784
      %826 = vmatprep.subr.mxu0 0.0
      %827 = vmatpush1.msra.mxu0 %v783
      %828 = vmatprep.subr.mxu0 0.0
      %829 = vmatpush1.msra.mxu0 %v782
      %830 = vmatprep.subr.mxu0 0.0
      %831 = vmatpush2.msra.mxu0 0.0
      %832 = vmatprep.subr.mxu0 0.0
      %833 = vmatpush2.msra.mxu0 0.0
      %834 = vmatprep.subr.mxu0 0.0
      %835 = vmatpush2.msra.mxu0 0.0
      %836 = vmatprep.subr.mxu0 0.0
      %837 = vmatpush2.msra.mxu0 0.0
      %838 = vmatprep.subr.mxu0 0.0
      %839 = vmatpush2.msra.mxu0 0.0
      %840 = vmatprep.subr.mxu0 0.0
      %841 = vmatpush2.msra.mxu0 0.0
      %842 = vmatprep.subr.mxu0 0.0
      %843 = vmatpush2.msra.mxu0 0.0
      %844 = vmatprep.subr.mxu0 0.0
      %845 = vmatpush2.msra.mxu0 0.0
      %846 = vmatprep.subr.mxu0 0.0
      %847 = vmatpush2.msra.mxu0 0.0
      %848 = vmatprep.subr.mxu0 0.0
      %849 = vmatpush2.msra.mxu0 0.0
      %850 = vmatprep.subr.mxu0 0.0
      %851 = vmatpush2.msra.mxu0 0.0
      %852 = vmatprep.subr.mxu0 0.0
      %853 = vmatpush2.msra.mxu0 0.0
      %854 = vmatprep.subr.mxu0 0.0
      %855 = vmatpush2.msra.mxu0 0.0
      %856 = vmatprep.subr.mxu0 0.0
      %857 = vmatpush2.msra.mxu0 0.0
      %858 = vmatprep.subr.mxu0 0.0
      %859 = vmatpush2.msra.mxu0 0.0
      %860 = vmatprep.subr.mxu0 0.0
      %861 = vmatpush2.msra.mxu0 0.0
      %862 = vmatprep.mubr.f32.mxu0 0.0
      %863 = vmatmul.mubr.f32.gmra.mxu0 %v779
      %v864 = vpop.f32.mrf.mxu0
      %v865 = vadd.f32 0.0, %v864
      %v866 = vpop.f32.mrf.mxu0
      %867 = vmatprep.mubr.f32.mxu0 0.0
      %868 = vmatmul.mubr.f32.gmra.mxu0 %v780
      %v869 = vpop.f32.mrf.mxu0
      %v870 = vadd.f32 0.0, %v869
      %v871 = vpop.f32.mrf.mxu0
      %872 = vdwg.mxu0
      %v873 = vadd.f32 %v775, %v865
      %v874 = vadd.f32 %v776, %v870
      %s875 = sadd.s32 %s194, 8
      %s876 = scalar_lea.vmem %s183, %s875
      %v877 = vld [vmem:[%s876] sm:$0xff]
      %v878 = vld [vmem:[%s876 + $0x8] sm:$0xff]
      %s879 = scalar_lea.vmem %s1, 896
      %v880 = vld [vmem:[%s879] sm:$0xff]
      %v881 = vld [vmem:[%s879 + $0x8] sm:$0xff]
      %v882 = vld [vmem:[%s879 + $0x10] sm:$0xff]
      %v883 = vld [vmem:[%s879 + $0x18] sm:$0xff]
      %v884 = vld [vmem:[%s879 + $0x20] sm:$0xff]
      %v885 = vld [vmem:[%s879 + $0x28] sm:$0xff]
      %v886 = vld [vmem:[%s879 + $0x30] sm:$0xff]
      %v887 = vld [vmem:[%s879 + $0x38] sm:$0xff]
      %v888 = vld [vmem:[%s879 + $0x40] sm:$0xff]
      %v889 = vld [vmem:[%s879 + $0x48] sm:$0xff]
      %v890 = vld [vmem:[%s879 + $0x50] sm:$0xff]
      %v891 = vld [vmem:[%s879 + $0x58] sm:$0xff]
      %v892 = vld [vmem:[%s879 + $0x60] sm:$0xff]
      %v893 = vld [vmem:[%s879 + $0x68] sm:$0xff]
      %v894 = vld [vmem:[%s879 + $0x70] sm:$0xff]
      %v895 = vld [vmem:[%s879 + $0x78] sm:$0xff]
      %896 = vmatprep.subr.mxu0 0.0
      %897 = vmatpush1.msra.mxu0 %v895
      %898 = vmatprep.subr.mxu0 0.0
      %899 = vmatpush1.msra.mxu0 %v894
      %900 = vmatprep.subr.mxu0 0.0
      %901 = vmatpush1.msra.mxu0 %v893
      %902 = vmatprep.subr.mxu0 0.0
      %903 = vmatpush1.msra.mxu0 %v892
      %904 = vmatprep.subr.mxu0 0.0
      %905 = vmatpush1.msra.mxu0 %v891
      %906 = vmatprep.subr.mxu0 0.0
      %907 = vmatpush1.msra.mxu0 %v890
      %908 = vmatprep.subr.mxu0 0.0
      %909 = vmatpush1.msra.mxu0 %v889
      %910 = vmatprep.subr.mxu0 0.0
      %911 = vmatpush1.msra.mxu0 %v888
      %912 = vmatprep.subr.mxu0 0.0
      %913 = vmatpush1.msra.mxu0 %v887
      %914 = vmatprep.subr.mxu0 0.0
      %915 = vmatpush1.msra.mxu0 %v886
      %916 = vmatprep.subr.mxu0 0.0
      %917 = vmatpush1.msra.mxu0 %v885
      %918 = vmatprep.subr.mxu0 0.0
      %919 = vmatpush1.msra.mxu0 %v884
      %920 = vmatprep.subr.mxu0 0.0
      %921 = vmatpush1.msra.mxu0 %v883
      %922 = vmatprep.subr.mxu0 0.0
      %923 = vmatpush1.msra.mxu0 %v882
      %924 = vmatprep.subr.mxu0 0.0
      %925 = vmatpush1.msra.mxu0 %v881
      %926 = vmatprep.subr.mxu0 0.0
      %927 = vmatpush1.msra.mxu0 %v880
      %928 = vmatprep.subr.mxu0 0.0
      %929 = vmatpush2.msra.mxu0 0.0
      %930 = vmatprep.subr.mxu0 0.0
      %931 = vmatpush2.msra.mxu0 0.0
      %932 = vmatprep.subr.mxu0 0.0
      %933 = vmatpush2.msra.mxu0 0.0
      %934 = vmatprep.subr.mxu0 0.0
      %935 = vmatpush2.msra.mxu0 0.0
      %936 = vmatprep.subr.mxu0 0.0
      %937 = vmatpush2.msra.mxu0 0.0
      %938 = vmatprep.subr.mxu0 0.0
      %939 = vmatpush2.msra.mxu0 0.0
      %940 = vmatprep.subr.mxu0 0.0
      %941 = vmatpush2.msra.mxu0 0.0
      %942 = vmatprep.subr.mxu0 0.0
      %943 = vmatpush2.msra.mxu0 0.0
      %944 = vmatprep.subr.mxu0 0.0
      %945 = vmatpush2.msra.mxu0 0.0
      %946 = vmatprep.subr.mxu0 0.0
      %947 = vmatpush2.msra.mxu0 0.0
      %948 = vmatprep.subr.mxu0 0.0
      %949 = vmatpush2.msra.mxu0 0.0
      %950 = vmatprep.subr.mxu0 0.0
      %951 = vmatpush2.msra.mxu0 0.0
      %952 = vmatprep.subr.mxu0 0.0
      %953 = vmatpush2.msra.mxu0 0.0
      %954 = vmatprep.subr.mxu0 0.0
      %955 = vmatpush2.msra.mxu0 0.0
      %956 = vmatprep.subr.mxu0 0.0
      %957 = vmatpush2.msra.mxu0 0.0
      %958 = vmatprep.subr.mxu0 0.0
      %959 = vmatpush2.msra.mxu0 0.0
      %960 = vmatprep.mubr.f32.mxu0 0.0
      %961 = vmatmul.mubr.f32.gmra.mxu0 %v877
      %v962 = vpop.f32.mrf.mxu0
      %v963 = vadd.f32 0.0, %v962
      %v964 = vpop.f32.mrf.mxu0
      %965 = vmatprep.mubr.f32.mxu0 0.0
      %966 = vmatmul.mubr.f32.gmra.mxu0 %v878
      %v967 = vpop.f32.mrf.mxu0
      %v968 = vadd.f32 0.0, %v967
      %v969 = vpop.f32.mrf.mxu0
      %970 = vdwg.mxu0
      %v971 = vadd.f32 %v873, %v963
      %v972 = vadd.f32 %v874, %v968
      %s973 = sadd.s32 %s194, 10
      %s974 = scalar_lea.vmem %s183, %s973
      %v975 = vld [vmem:[%s974] sm:$0xff]
      %v976 = vld [vmem:[%s974 + $0x8] sm:$0xff]
      %s977 = scalar_lea.vmem %s1, 1024
      %v978 = vld [vmem:[%s977] sm:$0xff]
      %v979 = vld [vmem:[%s977 + $0x8] sm:$0xff]
      %v980 = vld [vmem:[%s977 + $0x10] sm:$0xff]
      %v981 = vld [vmem:[%s977 + $0x18] sm:$0xff]
      %v982 = vld [vmem:[%s977 + $0x20] sm:$0xff]
      %v983 = vld [vmem:[%s977 + $0x28] sm:$0xff]
      %v984 = vld [vmem:[%s977 + $0x30] sm:$0xff]
      %v985 = vld [vmem:[%s977 + $0x38] sm:$0xff]
      %v986 = vld [vmem:[%s977 + $0x40] sm:$0xff]
      %v987 = vld [vmem:[%s977 + $0x48] sm:$0xff]
      %v988 = vld [vmem:[%s977 + $0x50] sm:$0xff]
      %v989 = vld [vmem:[%s977 + $0x58] sm:$0xff]
      %v990 = vld [vmem:[%s977 + $0x60] sm:$0xff]
      %v991 = vld [vmem:[%s977 + $0x68] sm:$0xff]
      %v992 = vld [vmem:[%s977 + $0x70] sm:$0xff]
      %v993 = vld [vmem:[%s977 + $0x78] sm:$0xff]
      %994 = vmatprep.subr.mxu0 0.0
      %995 = vmatpush1.msra.mxu0 %v993
      %996 = vmatprep.subr.mxu0 0.0
      %997 = vmatpush1.msra.mxu0 %v992
      %998 = vmatprep.subr.mxu0 0.0
      %999 = vmatpush1.msra.mxu0 %v991
      %1000 = vmatprep.subr.mxu0 0.0
      %1001 = vmatpush1.msra.mxu0 %v990
      %1002 = vmatprep.subr.mxu0 0.0
      %1003 = vmatpush1.msra.mxu0 %v989
      %1004 = vmatprep.subr.mxu0 0.0
      %1005 = vmatpush1.msra.mxu0 %v988
      %1006 = vmatprep.subr.mxu0 0.0
      %1007 = vmatpush1.msra.mxu0 %v987
      %1008 = vmatprep.subr.mxu0 0.0
      %1009 = vmatpush1.msra.mxu0 %v986
      %1010 = vmatprep.subr.mxu0 0.0
      %1011 = vmatpush1.msra.mxu0 %v985
      %1012 = vmatprep.subr.mxu0 0.0
      %1013 = vmatpush1.msra.mxu0 %v984
      %1014 = vmatprep.subr.mxu0 0.0
      %1015 = vmatpush1.msra.mxu0 %v983
      %1016 = vmatprep.subr.mxu0 0.0
      %1017 = vmatpush1.msra.mxu0 %v982
      %1018 = vmatprep.subr.mxu0 0.0
      %1019 = vmatpush1.msra.mxu0 %v981
      %1020 = vmatprep.subr.mxu0 0.0
      %1021 = vmatpush1.msra.mxu0 %v980
      %1022 = vmatprep.subr.mxu0 0.0
      %1023 = vmatpush1.msra.mxu0 %v979
      %1024 = vmatprep.subr.mxu0 0.0
      %1025 = vmatpush1.msra.mxu0 %v978
      %1026 = vmatprep.subr.mxu0 0.0
      %1027 = vmatpush2.msra.mxu0 0.0
      %1028 = vmatprep.subr.mxu0 0.0
      %1029 = vmatpush2.msra.mxu0 0.0
      %1030 = vmatprep.subr.mxu0 0.0
      %1031 = vmatpush2.msra.mxu0 0.0
      %1032 = vmatprep.subr.mxu0 0.0
      %1033 = vmatpush2.msra.mxu0 0.0
      %1034 = vmatprep.subr.mxu0 0.0
      %1035 = vmatpush2.msra.mxu0 0.0
      %1036 = vmatprep.subr.mxu0 0.0
      %1037 = vmatpush2.msra.mxu0 0.0
      %1038 = vmatprep.subr.mxu0 0.0
      %1039 = vmatpush2.msra.mxu0 0.0
      %1040 = vmatprep.subr.mxu0 0.0
      %1041 = vmatpush2.msra.mxu0 0.0
      %1042 = vmatprep.subr.mxu0 0.0
      %1043 = vmatpush2.msra.mxu0 0.0
      %1044 = vmatprep.subr.mxu0 0.0
      %1045 = vmatpush2.msra.mxu0 0.0
      %1046 = vmatprep.subr.mxu0 0.0
      %1047 = vmatpush2.msra.mxu0 0.0
      %1048 = vmatprep.subr.mxu0 0.0
      %1049 = vmatpush2.msra.mxu0 0.0
      %1050 = vmatprep.subr.mxu0 0.0
      %1051 = vmatpush2.msra.mxu0 0.0
      %1052 = vmatprep.subr.mxu0 0.0
      %1053 = vmatpush2.msra.mxu0 0.0
      %1054 = vmatprep.subr.mxu0 0.0
      %1055 = vmatpush2.msra.mxu0 0.0
      %1056 = vmatprep.subr.mxu0 0.0
      %1057 = vmatpush2.msra.mxu0 0.0
      %1058 = vmatprep.mubr.f32.mxu0 0.0
      %1059 = vmatmul.mubr.f32.gmra.mxu0 %v975
      %v1060 = vpop.f32.mrf.mxu0
      %v1061 = vadd.f32 0.0, %v1060
      %v1062 = vpop.f32.mrf.mxu0
      %1063 = vmatprep.mubr.f32.mxu0 0.0
      %1064 = vmatmul.mubr.f32.gmra.mxu0 %v976
      %v1065 = vpop.f32.mrf.mxu0
      %v1066 = vadd.f32 0.0, %v1065
      %v1067 = vpop.f32.mrf.mxu0
      %1068 = vdwg.mxu0
      %v1069 = vadd.f32 %v971, %v1061
      %v1070 = vadd.f32 %v972, %v1066
      %s1071 = sadd.s32 %s194, 11
      %s1072 = scalar_lea.vmem %s183, %s1071
      %v1073 = vld [vmem:[%s1072] sm:$0xff]
      %v1074 = vld [vmem:[%s1072 + $0x8] sm:$0xff]
      %s1075 = scalar_lea.vmem %s1, 1152
      %v1076 = vld [vmem:[%s1075] sm:$0xff]
      %v1077 = vld [vmem:[%s1075 + $0x8] sm:$0xff]
      %v1078 = vld [vmem:[%s1075 + $0x10] sm:$0xff]
      %v1079 = vld [vmem:[%s1075 + $0x18] sm:$0xff]
      %v1080 = vld [vmem:[%s1075 + $0x20] sm:$0xff]
      %v1081 = vld [vmem:[%s1075 + $0x28] sm:$0xff]
      %v1082 = vld [vmem:[%s1075 + $0x30] sm:$0xff]
      %v1083 = vld [vmem:[%s1075 + $0x38] sm:$0xff]
      %v1084 = vld [vmem:[%s1075 + $0x40] sm:$0xff]
      %v1085 = vld [vmem:[%s1075 + $0x48] sm:$0xff]
      %v1086 = vld [vmem:[%s1075 + $0x50] sm:$0xff]
      %v1087 = vld [vmem:[%s1075 + $0x58] sm:$0xff]
      %v1088 = vld [vmem:[%s1075 + $0x60] sm:$0xff]
      %v1089 = vld [vmem:[%s1075 + $0x68] sm:$0xff]
      %v1090 = vld [vmem:[%s1075 + $0x70] sm:$0xff]
      %v1091 = vld [vmem:[%s1075 + $0x78] sm:$0xff]
      %1092 = vmatprep.subr.mxu0 0.0
      %1093 = vmatpush1.msra.mxu0 %v1091
      %1094 = vmatprep.subr.mxu0 0.0
      %1095 = vmatpush1.msra.mxu0 %v1090
      %1096 = vmatprep.subr.mxu0 0.0
      %1097 = vmatpush1.msra.mxu0 %v1089
      %1098 = vmatprep.subr.mxu0 0.0
      %1099 = vmatpush1.msra.mxu0 %v1088
      %1100 = vmatprep.subr.mxu0 0.0
      %1101 = vmatpush1.msra.mxu0 %v1087
      %1102 = vmatprep.subr.mxu0 0.0
      %1103 = vmatpush1.msra.mxu0 %v1086
      %1104 = vmatprep.subr.mxu0 0.0
      %1105 = vmatpush1.msra.mxu0 %v1085
      %1106 = vmatprep.subr.mxu0 0.0
      %1107 = vmatpush1.msra.mxu0 %v1084
      %1108 = vmatprep.subr.mxu0 0.0
      %1109 = vmatpush1.msra.mxu0 %v1083
      %1110 = vmatprep.subr.mxu0 0.0
      %1111 = vmatpush1.msra.mxu0 %v1082
      %1112 = vmatprep.subr.mxu0 0.0
      %1113 = vmatpush1.msra.mxu0 %v1081
      %1114 = vmatprep.subr.mxu0 0.0
      %1115 = vmatpush1.msra.mxu0 %v1080
      %1116 = vmatprep.subr.mxu0 0.0
      %1117 = vmatpush1.msra.mxu0 %v1079
      %1118 = vmatprep.subr.mxu0 0.0
      %1119 = vmatpush1.msra.mxu0 %v1078
      %1120 = vmatprep.subr.mxu0 0.0
      %1121 = vmatpush1.msra.mxu0 %v1077
      %1122 = vmatprep.subr.mxu0 0.0
      %1123 = vmatpush1.msra.mxu0 %v1076
      %1124 = vmatprep.subr.mxu0 0.0
      %1125 = vmatpush2.msra.mxu0 0.0
      %1126 = vmatprep.subr.mxu0 0.0
      %1127 = vmatpush2.msra.mxu0 0.0
      %1128 = vmatprep.subr.mxu0 0.0
      %1129 = vmatpush2.msra.mxu0 0.0
      %1130 = vmatprep.subr.mxu0 0.0
      %1131 = vmatpush2.msra.mxu0 0.0
      %1132 = vmatprep.subr.mxu0 0.0
      %1133 = vmatpush2.msra.mxu0 0.0
      %1134 = vmatprep.subr.mxu0 0.0
      %1135 = vmatpush2.msra.mxu0 0.0
      %1136 = vmatprep.subr.mxu0 0.0
      %1137 = vmatpush2.msra.mxu0 0.0
      %1138 = vmatprep.subr.mxu0 0.0
      %1139 = vmatpush2.msra.mxu0 0.0
      %1140 = vmatprep.subr.mxu0 0.0
      %1141 = vmatpush2.msra.mxu0 0.0
      %1142 = vmatprep.subr.mxu0 0.0
      %1143 = vmatpush2.msra.mxu0 0.0
      %1144 = vmatprep.subr.mxu0 0.0
      %1145 = vmatpush2.msra.mxu0 0.0
      %1146 = vmatprep.subr.mxu0 0.0
      %1147 = vmatpush2.msra.mxu0 0.0
      %1148 = vmatprep.subr.mxu0 0.0
      %1149 = vmatpush2.msra.mxu0 0.0
      %1150 = vmatprep.subr.mxu0 0.0
      %1151 = vmatpush2.msra.mxu0 0.0
      %1152 = vmatprep.subr.mxu0 0.0
      %1153 = vmatpush2.msra.mxu0 0.0
      %1154 = vmatprep.subr.mxu0 0.0
      %1155 = vmatpush2.msra.mxu0 0.0
      %1156 = vmatprep.mubr.f32.mxu0 0.0
      %1157 = vmatmul.mubr.f32.gmra.mxu0 %v1073
      %v1158 = vpop.f32.mrf.mxu0
      %v1159 = vadd.f32 0.0, %v1158
      %v1160 = vpop.f32.mrf.mxu0
      %1161 = vmatprep.mubr.f32.mxu0 0.0
      %1162 = vmatmul.mubr.f32.gmra.mxu0 %v1074
      %v1163 = vpop.f32.mrf.mxu0
      %v1164 = vadd.f32 0.0, %v1163
      %v1165 = vpop.f32.mrf.mxu0
      %1166 = vdwg.mxu0
      %v1167 = vadd.f32 %v1069, %v1159
      %v1168 = vadd.f32 %v1070, %v1164
      %s1169 = sadd.s32 %s194, 12
      %s1170 = scalar_lea.vmem %s183, %s1169
      %v1171 = vld [vmem:[%s1170] sm:$0xff]
      %v1172 = vld [vmem:[%s1170 + $0x8] sm:$0xff]
      %s1173 = scalar_lea.vmem %s1, 1280
      %v1174 = vld [vmem:[%s1173] sm:$0xff]
      %v1175 = vld [vmem:[%s1173 + $0x8] sm:$0xff]
      %v1176 = vld [vmem:[%s1173 + $0x10] sm:$0xff]
      %v1177 = vld [vmem:[%s1173 + $0x18] sm:$0xff]
      %v1178 = vld [vmem:[%s1173 + $0x20] sm:$0xff]
      %v1179 = vld [vmem:[%s1173 + $0x28] sm:$0xff]
      %v1180 = vld [vmem:[%s1173 + $0x30] sm:$0xff]
      %v1181 = vld [vmem:[%s1173 + $0x38] sm:$0xff]
      %v1182 = vld [vmem:[%s1173 + $0x40] sm:$0xff]
      %v1183 = vld [vmem:[%s1173 + $0x48] sm:$0xff]
      %v1184 = vld [vmem:[%s1173 + $0x50] sm:$0xff]
      %v1185 = vld [vmem:[%s1173 + $0x58] sm:$0xff]
      %v1186 = vld [vmem:[%s1173 + $0x60] sm:$0xff]
      %v1187 = vld [vmem:[%s1173 + $0x68] sm:$0xff]
      %v1188 = vld [vmem:[%s1173 + $0x70] sm:$0xff]
      %v1189 = vld [vmem:[%s1173 + $0x78] sm:$0xff]
      %1190 = vmatprep.subr.mxu0 0.0
      %1191 = vmatpush1.msra.mxu0 %v1189
      %1192 = vmatprep.subr.mxu0 0.0
      %1193 = vmatpush1.msra.mxu0 %v1188
      %1194 = vmatprep.subr.mxu0 0.0
      %1195 = vmatpush1.msra.mxu0 %v1187
      %1196 = vmatprep.subr.mxu0 0.0
      %1197 = vmatpush1.msra.mxu0 %v1186
      %1198 = vmatprep.subr.mxu0 0.0
      %1199 = vmatpush1.msra.mxu0 %v1185
      %1200 = vmatprep.subr.mxu0 0.0
      %1201 = vmatpush1.msra.mxu0 %v1184
      %1202 = vmatprep.subr.mxu0 0.0
      %1203 = vmatpush1.msra.mxu0 %v1183
      %1204 = vmatprep.subr.mxu0 0.0
      %1205 = vmatpush1.msra.mxu0 %v1182
      %1206 = vmatprep.subr.mxu0 0.0
      %1207 = vmatpush1.msra.mxu0 %v1181
      %1208 = vmatprep.subr.mxu0 0.0
      %1209 = vmatpush1.msra.mxu0 %v1180
      %1210 = vmatprep.subr.mxu0 0.0
      %1211 = vmatpush1.msra.mxu0 %v1179
      %1212 = vmatprep.subr.mxu0 0.0
      %1213 = vmatpush1.msra.mxu0 %v1178
      %1214 = vmatprep.subr.mxu0 0.0
      %1215 = vmatpush1.msra.mxu0 %v1177
      %1216 = vmatprep.subr.mxu0 0.0
      %1217 = vmatpush1.msra.mxu0 %v1176
      %1218 = vmatprep.subr.mxu0 0.0
      %1219 = vmatpush1.msra.mxu0 %v1175
      %1220 = vmatprep.subr.mxu0 0.0
      %1221 = vmatpush1.msra.mxu0 %v1174
      %1222 = vmatprep.subr.mxu0 0.0
      %1223 = vmatpush2.msra.mxu0 0.0
      %1224 = vmatprep.subr.mxu0 0.0
      %1225 = vmatpush2.msra.mxu0 0.0
      %1226 = vmatprep.subr.mxu0 0.0
      %1227 = vmatpush2.msra.mxu0 0.0
      %1228 = vmatprep.subr.mxu0 0.0
      %1229 = vmatpush2.msra.mxu0 0.0
      %1230 = vmatprep.subr.mxu0 0.0
      %1231 = vmatpush2.msra.mxu0 0.0
      %1232 = vmatprep.subr.mxu0 0.0
      %1233 = vmatpush2.msra.mxu0 0.0
      %1234 = vmatprep.subr.mxu0 0.0
      %1235 = vmatpush2.msra.mxu0 0.0
      %1236 = vmatprep.subr.mxu0 0.0
      %1237 = vmatpush2.msra.mxu0 0.0
      %1238 = vmatprep.subr.mxu0 0.0
      %1239 = vmatpush2.msra.mxu0 0.0
      %1240 = vmatprep.subr.mxu0 0.0
      %1241 = vmatpush2.msra.mxu0 0.0
      %1242 = vmatprep.subr.mxu0 0.0
      %1243 = vmatpush2.msra.mxu0 0.0
      %1244 = vmatprep.subr.mxu0 0.0
      %1245 = vmatpush2.msra.mxu0 0.0
      %1246 = vmatprep.subr.mxu0 0.0
      %1247 = vmatpush2.msra.mxu0 0.0
      %1248 = vmatprep.subr.mxu0 0.0
      %1249 = vmatpush2.msra.mxu0 0.0
      %1250 = vmatprep.subr.mxu0 0.0
      %1251 = vmatpush2.msra.mxu0 0.0
      %1252 = vmatprep.subr.mxu0 0.0
      %1253 = vmatpush2.msra.mxu0 0.0
      %1254 = vmatprep.mubr.f32.mxu0 0.0
      %1255 = vmatmul.mubr.f32.gmra.mxu0 %v1171
      %v1256 = vpop.f32.mrf.mxu0
      %v1257 = vadd.f32 0.0, %v1256
      %v1258 = vpop.f32.mrf.mxu0
      %1259 = vmatprep.mubr.f32.mxu0 0.0
      %1260 = vmatmul.mubr.f32.gmra.mxu0 %v1172
      %v1261 = vpop.f32.mrf.mxu0
      %v1262 = vadd.f32 0.0, %v1261
      %v1263 = vpop.f32.mrf.mxu0
      %1264 = vdwg.mxu0
      %v1265 = vadd.f32 %v1167, %v1257
      %v1266 = vadd.f32 %v1168, %v1262
      %s1267 = sadd.s32 %s194, 13
      %s1268 = scalar_lea.vmem %s183, %s1267
      %v1269 = vld [vmem:[%s1268] sm:$0xff]
      %v1270 = vld [vmem:[%s1268 + $0x8] sm:$0xff]
      %s1271 = scalar_lea.vmem %s1, 1408
      %v1272 = vld [vmem:[%s1271] sm:$0xff]
      %v1273 = vld [vmem:[%s1271 + $0x8] sm:$0xff]
      %v1274 = vld [vmem:[%s1271 + $0x10] sm:$0xff]
      %v1275 = vld [vmem:[%s1271 + $0x18] sm:$0xff]
      %v1276 = vld [vmem:[%s1271 + $0x20] sm:$0xff]
      %v1277 = vld [vmem:[%s1271 + $0x28] sm:$0xff]
      %v1278 = vld [vmem:[%s1271 + $0x30] sm:$0xff]
      %v1279 = vld [vmem:[%s1271 + $0x38] sm:$0xff]
      %v1280 = vld [vmem:[%s1271 + $0x40] sm:$0xff]
      %v1281 = vld [vmem:[%s1271 + $0x48] sm:$0xff]
      %v1282 = vld [vmem:[%s1271 + $0x50] sm:$0xff]
      %v1283 = vld [vmem:[%s1271 + $0x58] sm:$0xff]
      %v1284 = vld [vmem:[%s1271 + $0x60] sm:$0xff]
      %v1285 = vld [vmem:[%s1271 + $0x68] sm:$0xff]
      %v1286 = vld [vmem:[%s1271 + $0x70] sm:$0xff]
      %v1287 = vld [vmem:[%s1271 + $0x78] sm:$0xff]
      %1288 = vmatprep.subr.mxu0 0.0
      %1289 = vmatpush1.msra.mxu0 %v1287
      %1290 = vmatprep.subr.mxu0 0.0
      %1291 = vmatpush1.msra.mxu0 %v1286
      %1292 = vmatprep.subr.mxu0 0.0
      %1293 = vmatpush1.msra.mxu0 %v1285
      %1294 = vmatprep.subr.mxu0 0.0
      %1295 = vmatpush1.msra.mxu0 %v1284
      %1296 = vmatprep.subr.mxu0 0.0
      %1297 = vmatpush1.msra.mxu0 %v1283
      %1298 = vmatprep.subr.mxu0 0.0
      %1299 = vmatpush1.msra.mxu0 %v1282
      %1300 = vmatprep.subr.mxu0 0.0
      %1301 = vmatpush1.msra.mxu0 %v1281
      %1302 = vmatprep.subr.mxu0 0.0
      %1303 = vmatpush1.msra.mxu0 %v1280
      %1304 = vmatprep.subr.mxu0 0.0
      %1305 = vmatpush1.msra.mxu0 %v1279
      %1306 = vmatprep.subr.mxu0 0.0
      %1307 = vmatpush1.msra.mxu0 %v1278
      %1308 = vmatprep.subr.mxu0 0.0
      %1309 = vmatpush1.msra.mxu0 %v1277
      %1310 = vmatprep.subr.mxu0 0.0
      %1311 = vmatpush1.msra.mxu0 %v1276
      %1312 = vmatprep.subr.mxu0 0.0
      %1313 = vmatpush1.msra.mxu0 %v1275
      %1314 = vmatprep.subr.mxu0 0.0
      %1315 = vmatpush1.msra.mxu0 %v1274
      %1316 = vmatprep.subr.mxu0 0.0
      %1317 = vmatpush1.msra.mxu0 %v1273
      %1318 = vmatprep.subr.mxu0 0.0
      %1319 = vmatpush1.msra.mxu0 %v1272
      %1320 = vmatprep.subr.mxu0 0.0
      %1321 = vmatpush2.msra.mxu0 0.0
      %1322 = vmatprep.subr.mxu0 0.0
      %1323 = vmatpush2.msra.mxu0 0.0
      %1324 = vmatprep.subr.mxu0 0.0
      %1325 = vmatpush2.msra.mxu0 0.0
      %1326 = vmatprep.subr.mxu0 0.0
      %1327 = vmatpush2.msra.mxu0 0.0
      %1328 = vmatprep.subr.mxu0 0.0
      %1329 = vmatpush2.msra.mxu0 0.0
      %1330 = vmatprep.subr.mxu0 0.0
      %1331 = vmatpush2.msra.mxu0 0.0
      %1332 = vmatprep.subr.mxu0 0.0
      %1333 = vmatpush2.msra.mxu0 0.0
      %1334 = vmatprep.subr.mxu0 0.0
      %1335 = vmatpush2.msra.mxu0 0.0
      %1336 = vmatprep.subr.mxu0 0.0
      %1337 = vmatpush2.msra.mxu0 0.0
      %1338 = vmatprep.subr.mxu0 0.0
      %1339 = vmatpush2.msra.mxu0 0.0
      %1340 = vmatprep.subr.mxu0 0.0
      %1341 = vmatpush2.msra.mxu0 0.0
      %1342 = vmatprep.subr.mxu0 0.0
      %1343 = vmatpush2.msra.mxu0 0.0
      %1344 = vmatprep.subr.mxu0 0.0
      %1345 = vmatpush2.msra.mxu0 0.0
      %1346 = vmatprep.subr.mxu0 0.0
      %1347 = vmatpush2.msra.mxu0 0.0
      %1348 = vmatprep.subr.mxu0 0.0
      %1349 = vmatpush2.msra.mxu0 0.0
      %1350 = vmatprep.subr.mxu0 0.0
      %1351 = vmatpush2.msra.mxu0 0.0
      %1352 = vmatprep.mubr.f32.mxu0 0.0
      %1353 = vmatmul.mubr.f32.gmra.mxu0 %v1269
      %v1354 = vpop.f32.mrf.mxu0
      %v1355 = vadd.f32 0.0, %v1354
      %v1356 = vpop.f32.mrf.mxu0
      %1357 = vmatprep.mubr.f32.mxu0 0.0
      %1358 = vmatmul.mubr.f32.gmra.mxu0 %v1270
      %v1359 = vpop.f32.mrf.mxu0
      %v1360 = vadd.f32 0.0, %v1359
      %v1361 = vpop.f32.mrf.mxu0
      %1362 = vdwg.mxu0
      %v1363 = vadd.f32 %v1265, %v1355
      %v1364 = vadd.f32 %v1266, %v1360
      %s1365 = sadd.s32 %s194, 15
      %s1366 = scalar_lea.vmem %s183, %s1365
      %v1367 = vld [vmem:[%s1366] sm:$0xff]
      %v1368 = vld [vmem:[%s1366 + $0x8] sm:$0xff]
      %s1369 = scalar_lea.vmem %s1, 1536
      %v1370 = vld [vmem:[%s1369] sm:$0xff]
      %v1371 = vld [vmem:[%s1369 + $0x8] sm:$0xff]
      %v1372 = vld [vmem:[%s1369 + $0x10] sm:$0xff]
      %v1373 = vld [vmem:[%s1369 + $0x18] sm:$0xff]
      %v1374 = vld [vmem:[%s1369 + $0x20] sm:$0xff]
      %v1375 = vld [vmem:[%s1369 + $0x28] sm:$0xff]
      %v1376 = vld [vmem:[%s1369 + $0x30] sm:$0xff]
      %v1377 = vld [vmem:[%s1369 + $0x38] sm:$0xff]
      %v1378 = vld [vmem:[%s1369 + $0x40] sm:$0xff]
      %v1379 = vld [vmem:[%s1369 + $0x48] sm:$0xff]
      %v1380 = vld [vmem:[%s1369 + $0x50] sm:$0xff]
      %v1381 = vld [vmem:[%s1369 + $0x58] sm:$0xff]
      %v1382 = vld [vmem:[%s1369 + $0x60] sm:$0xff]
      %v1383 = vld [vmem:[%s1369 + $0x68] sm:$0xff]
      %v1384 = vld [vmem:[%s1369 + $0x70] sm:$0xff]
      %v1385 = vld [vmem:[%s1369 + $0x78] sm:$0xff]
      %1386 = vmatprep.subr.mxu0 0.0
      %1387 = vmatpush1.msra.mxu0 %v1385
      %1388 = vmatprep.subr.mxu0 0.0
      %1389 = vmatpush1.msra.mxu0 %v1384
      %1390 = vmatprep.subr.mxu0 0.0
      %1391 = vmatpush1.msra.mxu0 %v1383
      %1392 = vmatprep.subr.mxu0 0.0
      %1393 = vmatpush1.msra.mxu0 %v1382
      %1394 = vmatprep.subr.mxu0 0.0
      %1395 = vmatpush1.msra.mxu0 %v1381
      %1396 = vmatprep.subr.mxu0 0.0
      %1397 = vmatpush1.msra.mxu0 %v1380
      %1398 = vmatprep.subr.mxu0 0.0
      %1399 = vmatpush1.msra.mxu0 %v1379
      %1400 = vmatprep.subr.mxu0 0.0
      %1401 = vmatpush1.msra.mxu0 %v1378
      %1402 = vmatprep.subr.mxu0 0.0
      %1403 = vmatpush1.msra.mxu0 %v1377
      %1404 = vmatprep.subr.mxu0 0.0
      %1405 = vmatpush1.msra.mxu0 %v1376
      %1406 = vmatprep.subr.mxu0 0.0
      %1407 = vmatpush1.msra.mxu0 %v1375
      %1408 = vmatprep.subr.mxu0 0.0
      %1409 = vmatpush1.msra.mxu0 %v1374
      %1410 = vmatprep.subr.mxu0 0.0
      %1411 = vmatpush1.msra.mxu0 %v1373
      %1412 = vmatprep.subr.mxu0 0.0
      %1413 = vmatpush1.msra.mxu0 %v1372
      %1414 = vmatprep.subr.mxu0 0.0
      %1415 = vmatpush1.msra.mxu0 %v1371
      %1416 = vmatprep.subr.mxu0 0.0
      %1417 = vmatpush1.msra.mxu0 %v1370
      %1418 = vmatprep.subr.mxu0 0.0
      %1419 = vmatpush2.msra.mxu0 0.0
      %1420 = vmatprep.subr.mxu0 0.0
      %1421 = vmatpush2.msra.mxu0 0.0
      %1422 = vmatprep.subr.mxu0 0.0
      %1423 = vmatpush2.msra.mxu0 0.0
      %1424 = vmatprep.subr.mxu0 0.0
      %1425 = vmatpush2.msra.mxu0 0.0
      %1426 = vmatprep.subr.mxu0 0.0
      %1427 = vmatpush2.msra.mxu0 0.0
      %1428 = vmatprep.subr.mxu0 0.0
      %1429 = vmatpush2.msra.mxu0 0.0
      %1430 = vmatprep.subr.mxu0 0.0
      %1431 = vmatpush2.msra.mxu0 0.0
      %1432 = vmatprep.subr.mxu0 0.0
      %1433 = vmatpush2.msra.mxu0 0.0
      %1434 = vmatprep.subr.mxu0 0.0
      %1435 = vmatpush2.msra.mxu0 0.0
      %1436 = vmatprep.subr.mxu0 0.0
      %1437 = vmatpush2.msra.mxu0 0.0
      %1438 = vmatprep.subr.mxu0 0.0
      %1439 = vmatpush2.msra.mxu0 0.0
      %1440 = vmatprep.subr.mxu0 0.0
      %1441 = vmatpush2.msra.mxu0 0.0
      %1442 = vmatprep.subr.mxu0 0.0
      %1443 = vmatpush2.msra.mxu0 0.0
      %1444 = vmatprep.subr.mxu0 0.0
      %1445 = vmatpush2.msra.mxu0 0.0
      %1446 = vmatprep.subr.mxu0 0.0
      %1447 = vmatpush2.msra.mxu0 0.0
      %1448 = vmatprep.subr.mxu0 0.0
      %1449 = vmatpush2.msra.mxu0 0.0
      %1450 = vmatprep.mubr.f32.mxu0 0.0
      %1451 = vmatmul.mubr.f32.gmra.mxu0 %v1367
      %v1452 = vpop.f32.mrf.mxu0
      %v1453 = vadd.f32 0.0, %v1452
      %v1454 = vpop.f32.mrf.mxu0
      %1455 = vmatprep.mubr.f32.mxu0 0.0
      %1456 = vmatmul.mubr.f32.gmra.mxu0 %v1368
      %v1457 = vpop.f32.mrf.mxu0
      %v1458 = vadd.f32 0.0, %v1457
      %v1459 = vpop.f32.mrf.mxu0
      %1460 = vdwg.mxu0
      %v1461 = vadd.f32 %v1363, %v1453
      %v1462 = vadd.f32 %v1364, %v1458
      %s1463 = sadd.s32 %s194, 16
      %s1464 = scalar_lea.vmem %s183, %s1463
      %v1465 = vld [vmem:[%s1464] sm:$0xff]
      %v1466 = vld [vmem:[%s1464 + $0x8] sm:$0xff]
      %s1467 = scalar_lea.vmem %s1, 1664
      %v1468 = vld [vmem:[%s1467] sm:$0xff]
      %v1469 = vld [vmem:[%s1467 + $0x8] sm:$0xff]
      %v1470 = vld [vmem:[%s1467 + $0x10] sm:$0xff]
      %v1471 = vld [vmem:[%s1467 + $0x18] sm:$0xff]
      %v1472 = vld [vmem:[%s1467 + $0x20] sm:$0xff]
      %v1473 = vld [vmem:[%s1467 + $0x28] sm:$0xff]
      %v1474 = vld [vmem:[%s1467 + $0x30] sm:$0xff]
      %v1475 = vld [vmem:[%s1467 + $0x38] sm:$0xff]
      %v1476 = vld [vmem:[%s1467 + $0x40] sm:$0xff]
      %v1477 = vld [vmem:[%s1467 + $0x48] sm:$0xff]
      %v1478 = vld [vmem:[%s1467 + $0x50] sm:$0xff]
      %v1479 = vld [vmem:[%s1467 + $0x58] sm:$0xff]
      %v1480 = vld [vmem:[%s1467 + $0x60] sm:$0xff]
      %v1481 = vld [vmem:[%s1467 + $0x68] sm:$0xff]
      %v1482 = vld [vmem:[%s1467 + $0x70] sm:$0xff]
      %v1483 = vld [vmem:[%s1467 + $0x78] sm:$0xff]
      %1484 = vmatprep.subr.mxu0 0.0
      %1485 = vmatpush1.msra.mxu0 %v1483
      %1486 = vmatprep.subr.mxu0 0.0
      %1487 = vmatpush1.msra.mxu0 %v1482
      %1488 = vmatprep.subr.mxu0 0.0
      %1489 = vmatpush1.msra.mxu0 %v1481
      %1490 = vmatprep.subr.mxu0 0.0
      %1491 = vmatpush1.msra.mxu0 %v1480
      %1492 = vmatprep.subr.mxu0 0.0
      %1493 = vmatpush1.msra.mxu0 %v1479
      %1494 = vmatprep.subr.mxu0 0.0
      %1495 = vmatpush1.msra.mxu0 %v1478
      %1496 = vmatprep.subr.mxu0 0.0
      %1497 = vmatpush1.msra.mxu0 %v1477
      %1498 = vmatprep.subr.mxu0 0.0
      %1499 = vmatpush1.msra.mxu0 %v1476
      %1500 = vmatprep.subr.mxu0 0.0
      %1501 = vmatpush1.msra.mxu0 %v1475
      %1502 = vmatprep.subr.mxu0 0.0
      %1503 = vmatpush1.msra.mxu0 %v1474
      %1504 = vmatprep.subr.mxu0 0.0
      %1505 = vmatpush1.msra.mxu0 %v1473
      %1506 = vmatprep.subr.mxu0 0.0
      %1507 = vmatpush1.msra.mxu0 %v1472
      %1508 = vmatprep.subr.mxu0 0.0
      %1509 = vmatpush1.msra.mxu0 %v1471
      %1510 = vmatprep.subr.mxu0 0.0
      %1511 = vmatpush1.msra.mxu0 %v1470
      %1512 = vmatprep.subr.mxu0 0.0
      %1513 = vmatpush1.msra.mxu0 %v1469
      %1514 = vmatprep.subr.mxu0 0.0
      %1515 = vmatpush1.msra.mxu0 %v1468
      %1516 = vmatprep.subr.mxu0 0.0
      %1517 = vmatpush2.msra.mxu0 0.0
      %1518 = vmatprep.subr.mxu0 0.0
      %1519 = vmatpush2.msra.mxu0 0.0
      %1520 = vmatprep.subr.mxu0 0.0
      %1521 = vmatpush2.msra.mxu0 0.0
      %1522 = vmatprep.subr.mxu0 0.0
      %1523 = vmatpush2.msra.mxu0 0.0
      %1524 = vmatprep.subr.mxu0 0.0
      %1525 = vmatpush2.msra.mxu0 0.0
      %1526 = vmatprep.subr.mxu0 0.0
      %1527 = vmatpush2.msra.mxu0 0.0
      %1528 = vmatprep.subr.mxu0 0.0
      %1529 = vmatpush2.msra.mxu0 0.0
      %1530 = vmatprep.subr.mxu0 0.0
      %1531 = vmatpush2.msra.mxu0 0.0
      %1532 = vmatprep.subr.mxu0 0.0
      %1533 = vmatpush2.msra.mxu0 0.0
      %1534 = vmatprep.subr.mxu0 0.0
      %1535 = vmatpush2.msra.mxu0 0.0
      %1536 = vmatprep.subr.mxu0 0.0
      %1537 = vmatpush2.msra.mxu0 0.0
      %1538 = vmatprep.subr.mxu0 0.0
      %1539 = vmatpush2.msra.mxu0 0.0
      %1540 = vmatprep.subr.mxu0 0.0
      %1541 = vmatpush2.msra.mxu0 0.0
      %1542 = vmatprep.subr.mxu0 0.0
      %1543 = vmatpush2.msra.mxu0 0.0
      %1544 = vmatprep.subr.mxu0 0.0
      %1545 = vmatpush2.msra.mxu0 0.0
      %1546 = vmatprep.subr.mxu0 0.0
      %1547 = vmatpush2.msra.mxu0 0.0
      %1548 = vmatprep.mubr.f32.mxu0 0.0
      %1549 = vmatmul.mubr.f32.gmra.mxu0 %v1465
      %v1550 = vpop.f32.mrf.mxu0
      %v1551 = vadd.f32 0.0, %v1550
      %v1552 = vpop.f32.mrf.mxu0
      %1553 = vmatprep.mubr.f32.mxu0 0.0
      %1554 = vmatmul.mubr.f32.gmra.mxu0 %v1466
      %v1555 = vpop.f32.mrf.mxu0
      %v1556 = vadd.f32 0.0, %v1555
      %v1557 = vpop.f32.mrf.mxu0
      %1558 = vdwg.mxu0
      %v1559 = vadd.f32 %v1461, %v1551
      %v1560 = vadd.f32 %v1462, %v1556
      %s1561 = sadd.s32 %s194, 17
      %s1562 = scalar_lea.vmem %s183, %s1561
      %v1563 = vld [vmem:[%s1562] sm:$0xff]
      %v1564 = vld [vmem:[%s1562 + $0x8] sm:$0xff]
      %s1565 = scalar_lea.vmem %s1, 1792
      %v1566 = vld [vmem:[%s1565] sm:$0xff]
      %v1567 = vld [vmem:[%s1565 + $0x8] sm:$0xff]
      %v1568 = vld [vmem:[%s1565 + $0x10] sm:$0xff]
      %v1569 = vld [vmem:[%s1565 + $0x18] sm:$0xff]
      %v1570 = vld [vmem:[%s1565 + $0x20] sm:$0xff]
      %v1571 = vld [vmem:[%s1565 + $0x28] sm:$0xff]
      %v1572 = vld [vmem:[%s1565 + $0x30] sm:$0xff]
      %v1573 = vld [vmem:[%s1565 + $0x38] sm:$0xff]
      %v1574 = vld [vmem:[%s1565 + $0x40] sm:$0xff]
      %v1575 = vld [vmem:[%s1565 + $0x48] sm:$0xff]
      %v1576 = vld [vmem:[%s1565 + $0x50] sm:$0xff]
      %v1577 = vld [vmem:[%s1565 + $0x58] sm:$0xff]
      %v1578 = vld [vmem:[%s1565 + $0x60] sm:$0xff]
      %v1579 = vld [vmem:[%s1565 + $0x68] sm:$0xff]
      %v1580 = vld [vmem:[%s1565 + $0x70] sm:$0xff]
      %v1581 = vld [vmem:[%s1565 + $0x78] sm:$0xff]
      %1582 = vmatprep.subr.mxu0 0.0
      %1583 = vmatpush1.msra.mxu0 %v1581
      %1584 = vmatprep.subr.mxu0 0.0
      %1585 = vmatpush1.msra.mxu0 %v1580
      %1586 = vmatprep.subr.mxu0 0.0
      %1587 = vmatpush1.msra.mxu0 %v1579
      %1588 = vmatprep.subr.mxu0 0.0
      %1589 = vmatpush1.msra.mxu0 %v1578
      %1590 = vmatprep.subr.mxu0 0.0
      %1591 = vmatpush1.msra.mxu0 %v1577
      %1592 = vmatprep.subr.mxu0 0.0
      %1593 = vmatpush1.msra.mxu0 %v1576
      %1594 = vmatprep.subr.mxu0 0.0
      %1595 = vmatpush1.msra.mxu0 %v1575
      %1596 = vmatprep.subr.mxu0 0.0
      %1597 = vmatpush1.msra.mxu0 %v1574
      %1598 = vmatprep.subr.mxu0 0.0
      %1599 = vmatpush1.msra.mxu0 %v1573
      %1600 = vmatprep.subr.mxu0 0.0
      %1601 = vmatpush1.msra.mxu0 %v1572
      %1602 = vmatprep.subr.mxu0 0.0
      %1603 = vmatpush1.msra.mxu0 %v1571
      %1604 = vmatprep.subr.mxu0 0.0
      %1605 = vmatpush1.msra.mxu0 %v1570
      %1606 = vmatprep.subr.mxu0 0.0
      %1607 = vmatpush1.msra.mxu0 %v1569
      %1608 = vmatprep.subr.mxu0 0.0
      %1609 = vmatpush1.msra.mxu0 %v1568
      %1610 = vmatprep.subr.mxu0 0.0
      %1611 = vmatpush1.msra.mxu0 %v1567
      %1612 = vmatprep.subr.mxu0 0.0
      %1613 = vmatpush1.msra.mxu0 %v1566
      %1614 = vmatprep.subr.mxu0 0.0
      %1615 = vmatpush2.msra.mxu0 0.0
      %1616 = vmatprep.subr.mxu0 0.0
      %1617 = vmatpush2.msra.mxu0 0.0
      %1618 = vmatprep.subr.mxu0 0.0
      %1619 = vmatpush2.msra.mxu0 0.0
      %1620 = vmatprep.subr.mxu0 0.0
      %1621 = vmatpush2.msra.mxu0 0.0
      %1622 = vmatprep.subr.mxu0 0.0
      %1623 = vmatpush2.msra.mxu0 0.0
      %1624 = vmatprep.subr.mxu0 0.0
      %1625 = vmatpush2.msra.mxu0 0.0
      %1626 = vmatprep.subr.mxu0 0.0
      %1627 = vmatpush2.msra.mxu0 0.0
      %1628 = vmatprep.subr.mxu0 0.0
      %1629 = vmatpush2.msra.mxu0 0.0
      %1630 = vmatprep.subr.mxu0 0.0
      %1631 = vmatpush2.msra.mxu0 0.0
      %1632 = vmatprep.subr.mxu0 0.0
      %1633 = vmatpush2.msra.mxu0 0.0
      %1634 = vmatprep.subr.mxu0 0.0
      %1635 = vmatpush2.msra.mxu0 0.0
      %1636 = vmatprep.subr.mxu0 0.0
      %1637 = vmatpush2.msra.mxu0 0.0
      %1638 = vmatprep.subr.mxu0 0.0
      %1639 = vmatpush2.msra.mxu0 0.0
      %1640 = vmatprep.subr.mxu0 0.0
      %1641 = vmatpush2.msra.mxu0 0.0
      %1642 = vmatprep.subr.mxu0 0.0
      %1643 = vmatpush2.msra.mxu0 0.0
      %1644 = vmatprep.subr.mxu0 0.0
      %1645 = vmatpush2.msra.mxu0 0.0
      %1646 = vmatprep.mubr.f32.mxu0 0.0
      %1647 = vmatmul.mubr.f32.gmra.mxu0 %v1563
      %v1648 = vpop.f32.mrf.mxu0
      %v1649 = vadd.f32 0.0, %v1648
      %v1650 = vpop.f32.mrf.mxu0
      %1651 = vmatprep.mubr.f32.mxu0 0.0
      %1652 = vmatmul.mubr.f32.gmra.mxu0 %v1564
      %v1653 = vpop.f32.mrf.mxu0
      %v1654 = vadd.f32 0.0, %v1653
      %v1655 = vpop.f32.mrf.mxu0
      %1656 = vdwg.mxu0
      %v1657 = vadd.f32 %v1559, %v1649
      %v1658 = vadd.f32 %v1560, %v1654
      %s1659 = sadd.s32 %s194, 18
      %s1660 = scalar_lea.vmem %s183, %s1659
      %v1661 = vld [vmem:[%s1660] sm:$0xff]
      %v1662 = vld [vmem:[%s1660 + $0x8] sm:$0xff]
      %s1663 = scalar_lea.vmem %s1, 1920
      %v1664 = vld [vmem:[%s1663] sm:$0xff]
      %v1665 = vld [vmem:[%s1663 + $0x8] sm:$0xff]
      %v1666 = vld [vmem:[%s1663 + $0x10] sm:$0xff]
      %v1667 = vld [vmem:[%s1663 + $0x18] sm:$0xff]
      %v1668 = vld [vmem:[%s1663 + $0x20] sm:$0xff]
      %v1669 = vld [vmem:[%s1663 + $0x28] sm:$0xff]
      %v1670 = vld [vmem:[%s1663 + $0x30] sm:$0xff]
      %v1671 = vld [vmem:[%s1663 + $0x38] sm:$0xff]
      %v1672 = vld [vmem:[%s1663 + $0x40] sm:$0xff]
      %v1673 = vld [vmem:[%s1663 + $0x48] sm:$0xff]
      %v1674 = vld [vmem:[%s1663 + $0x50] sm:$0xff]
      %v1675 = vld [vmem:[%s1663 + $0x58] sm:$0xff]
      %v1676 = vld [vmem:[%s1663 + $0x60] sm:$0xff]
      %v1677 = vld [vmem:[%s1663 + $0x68] sm:$0xff]
      %v1678 = vld [vmem:[%s1663 + $0x70] sm:$0xff]
      %v1679 = vld [vmem:[%s1663 + $0x78] sm:$0xff]
      %1680 = vmatprep.subr.mxu0 0.0
      %1681 = vmatpush1.msra.mxu0 %v1679
      %1682 = vmatprep.subr.mxu0 0.0
      %1683 = vmatpush1.msra.mxu0 %v1678
      %1684 = vmatprep.subr.mxu0 0.0
      %1685 = vmatpush1.msra.mxu0 %v1677
      %1686 = vmatprep.subr.mxu0 0.0
      %1687 = vmatpush1.msra.mxu0 %v1676
      %1688 = vmatprep.subr.mxu0 0.0
      %1689 = vmatpush1.msra.mxu0 %v1675
      %1690 = vmatprep.subr.mxu0 0.0
      %1691 = vmatpush1.msra.mxu0 %v1674
      %1692 = vmatprep.subr.mxu0 0.0
      %1693 = vmatpush1.msra.mxu0 %v1673
      %1694 = vmatprep.subr.mxu0 0.0
      %1695 = vmatpush1.msra.mxu0 %v1672
      %1696 = vmatprep.subr.mxu0 0.0
      %1697 = vmatpush1.msra.mxu0 %v1671
      %1698 = vmatprep.subr.mxu0 0.0
      %1699 = vmatpush1.msra.mxu0 %v1670
      %1700 = vmatprep.subr.mxu0 0.0
      %1701 = vmatpush1.msra.mxu0 %v1669
      %1702 = vmatprep.subr.mxu0 0.0
      %1703 = vmatpush1.msra.mxu0 %v1668
      %1704 = vmatprep.subr.mxu0 0.0
      %1705 = vmatpush1.msra.mxu0 %v1667
      %1706 = vmatprep.subr.mxu0 0.0
      %1707 = vmatpush1.msra.mxu0 %v1666
      %1708 = vmatprep.subr.mxu0 0.0
      %1709 = vmatpush1.msra.mxu0 %v1665
      %1710 = vmatprep.subr.mxu0 0.0
      %1711 = vmatpush1.msra.mxu0 %v1664
      %1712 = vmatprep.subr.mxu0 0.0
      %1713 = vmatpush2.msra.mxu0 0.0
      %1714 = vmatprep.subr.mxu0 0.0
      %1715 = vmatpush2.msra.mxu0 0.0
      %1716 = vmatprep.subr.mxu0 0.0
      %1717 = vmatpush2.msra.mxu0 0.0
      %1718 = vmatprep.subr.mxu0 0.0
      %1719 = vmatpush2.msra.mxu0 0.0
      %1720 = vmatprep.subr.mxu0 0.0
      %1721 = vmatpush2.msra.mxu0 0.0
      %1722 = vmatprep.subr.mxu0 0.0
      %1723 = vmatpush2.msra.mxu0 0.0
      %1724 = vmatprep.subr.mxu0 0.0
      %1725 = vmatpush2.msra.mxu0 0.0
      %1726 = vmatprep.subr.mxu0 0.0
      %1727 = vmatpush2.msra.mxu0 0.0
      %1728 = vmatprep.subr.mxu0 0.0
      %1729 = vmatpush2.msra.mxu0 0.0
      %1730 = vmatprep.subr.mxu0 0.0
      %1731 = vmatpush2.msra.mxu0 0.0
      %1732 = vmatprep.subr.mxu0 0.0
      %1733 = vmatpush2.msra.mxu0 0.0
      %1734 = vmatprep.subr.mxu0 0.0
      %1735 = vmatpush2.msra.mxu0 0.0
      %1736 = vmatprep.subr.mxu0 0.0
      %1737 = vmatpush2.msra.mxu0 0.0
      %1738 = vmatprep.subr.mxu0 0.0
      %1739 = vmatpush2.msra.mxu0 0.0
      %1740 = vmatprep.subr.mxu0 0.0
      %1741 = vmatpush2.msra.mxu0 0.0
      %1742 = vmatprep.subr.mxu0 0.0
      %1743 = vmatpush2.msra.mxu0 0.0
      %1744 = vmatprep.mubr.f32.mxu0 0.0
      %1745 = vmatmul.mubr.f32.gmra.mxu0 %v1661
      %v1746 = vpop.f32.mrf.mxu0
      %v1747 = vadd.f32 0.0, %v1746
      %v1748 = vpop.f32.mrf.mxu0
      %1749 = vmatprep.mubr.f32.mxu0 0.0
      %1750 = vmatmul.mubr.f32.gmra.mxu0 %v1662
      %v1751 = vpop.f32.mrf.mxu0
      %v1752 = vadd.f32 0.0, %v1751
      %v1753 = vpop.f32.mrf.mxu0
      %1754 = vdwg.mxu0
      %v1755 = vadd.f32 %v1657, %v1747
      %v1756 = vadd.f32 %v1658, %v1752
      %v1757 = vld [vmem:[%s2] sm:$0x1]
      %v1759 = vlaneseq
      %v1760 = vshrl.u32 %v1759, 7
      %v1761 = vsub.s32 0, %v1760
      %v1762 = vrot.slane %v1757, %v1761
      %v1764 = vadd.f32 %v1755, %v1762
      %v1765 = vadd.f32 %v1756, %v1762
      %1766 = vst [vmem:[%s192] sm:$0xff] %v1764
      %1767 = vst [vmem:[%s192 + $0x8] sm:$0xff] %v1765
      %s1768 = smul.u32 2, %s19
      %p1769 = scmp.lt.s32.totalorder %s18, 1
      %s1770 = scalar_select %p1769, %s18, 1
      %p1771 = scmp.lt.s32.totalorder %s1768, 1
      %s1772 = scalar_select %p1771, %s1768, 1
      %s1773 = smul.addr %s1770, 2
      %s1774 = sadd.s32 %s1772, %s1773
      %s1775 = smul.addr %s1774, 8
      %s1776 = scalar_lea.vmem %s3, %s1775
      // Predicated region
      $region33: #{_lambda_.15} parent=31 // pred_check
        %p1777 = pneg %p114
      $region34: #{_lambda_.15} parent=31 // pred_check_branch
        %1779 = sbr.rel (%p1777) target = $region36
      $region35: #{_lambda_.15} parent=31 // pred_region
        %s1780 = smul.u32 2, %s19
      $region36: #{_lambda_.15} parent=31 // pred_fallthru
        _
    $region32: #{_lambda_.15} parent=5 // pred_fallthru
      _
    %p1781 = scmp.le.s32.totalorder 2, %s9
    // Predicated region
    $region37: #{_lambda_.15} parent=5 // pred_check
      %p1782 = pneg %p1781
    $region38: #{_lambda_.15} parent=5 // pred_check_branch
      %1784 = sbr.rel (%p1782) target = $region40
    $region39: #{_lambda_.15} parent=5 // pred_region
      %s1785 = ssub.s32 %s9, 2
      // Predicated region
      $region41: #{_lambda_.15} parent=39 // pred_check
        %p1786 = pneg %p120
      $region42: #{_lambda_.15} parent=39 // pred_check_branch
        %1788 = sbr.rel (%p1786) target = $region44
      $region43: #{_lambda_.15} parent=39 // pred_region
        %s1789 = smul.u32 2, %s21
        %p1790 = scmp.lt.s32.totalorder %s20, 1
        %s1791 = scalar_select %p1790, %s20, 1
        %p1792 = scmp.lt.s32.totalorder %s1789, 1
        %s1793 = scalar_select %p1792, %s1789, 1
        %s1794 = smul.addr %s1791, 2
        %s1795 = sadd.s32 %s1793, %s1794
        %s1796 = smul.addr %s1795, 8
        %s1797 = scalar_lea.vmem %s3, %s1796
      $region44: #{_lambda_.15} parent=39 // pred_fallthru
        _
    $region40: #{_lambda_.15} parent=5 // pred_fallthru
      _
  $region6: #{_lambda_.15} parent=0 // loop_footer
    %s13 = sadd.s32 1, %s9
  $region7: #{_lambda_.15} parent=0 // loop_footer_branch
    %8 = sbr.rel target = $region3
  $region8: #{_lambda_.15} parent=0 // loop_exit
    _

// kernel: _lambda_.13
$region0: #{_lambda_.13}
  #allocation0 [shape = 'u32[]', space=smem, size = 0x4, offset = 0x4, fixed_abs, tag = 'smem constant byte address 0x4 - core index']
  #allocation1 [shape = 'u32[144,128]{1,0:T(1,128)}', space=vmem, size = 0x12000, scoped, tag = 'internal scratch']
  %s0 = inlined_call_operand.vmem [shape: f32[2,45,128], index: 0, kind: input, shape index: {}]
  %s1 = inlined_call_operand.vmem [shape: f32[16,128,128], index: 1, kind: input, shape index: {}]
  %s2 = inlined_call_operand.vmem [shape: f32[24,1], index: 2, kind: input, shape index: {}]
  %s3 = inlined_call_operand.vmem [shape: f32[2,24,128], index: 3, kind: output, shape index: {0}]
  %s4 = inlined_call_operand.vmem [shape: f32[2,1,128], index: 4, kind: output, shape index: {1}]
  %s5 = inlined_call_operand.vmem [shape: f32[2,1,128], index: 5, kind: output, shape index: {2}]
  %6 = xla_tuple %s3, %s4, %s5
  %s7 = sld [smem:[#allocation0]]
  $region65: #{_lambda_.13} parent=0
    _
  %s9 = ssub.s32 1, %s7
  %s10 = scalar_select 0, %s9, %s7
  loop: start=0, step=1, limit=4
  $region2: #{_lambda_.13} parent=0 // loop_pre_header
    _
  $region3: #{_lambda_.13} parent=0 // loop_header
    %s12 = sphi 0, %s16
    %p13 = scmp.ge.s32.totalorder %s12, 4
    %s19 = sphi 0, %s31
    %s20 = sphi 0, %s27
    %s21 = sphi 0, %s19
    %s22 = sphi 0, %s20
    %s23 = sphi 0, %s21
    %s24 = sphi 0, %s22
    %s34 = sphi 0, %s36
    %s37 = sphi 0, %s34
    %s38 = sphi 0, %s37
    %s54 = sphi 0, %s38
    %s58 = sphi 0, %s58
    %s60 = sphi 0, %s58
    %s61 = sphi 0, %s60
    %s75 = sphi 0, %s61
    %s81 = sphi 0, %s83
    %s84 = sphi 0, %s81
    %s85 = sphi 0, %s84
    %s101 = sphi 0, %s85
    %s109 = sphi 0, %s111
    %s112 = sphi 0, %s109
    %s113 = sphi 0, %s112
    %s129 = sphi 0, %s113
    %s135 = sphi 0, %s137
    %s138 = sphi 0, %s135
    %s139 = sphi 0, %s138
    %s155 = sphi 0, %s139
    %s161 = sphi 0, %s163
    %s164 = sphi 0, %s161
    %s165 = sphi 0, %s164
    %s181 = sphi 0, %s165
  $region4: #{_lambda_.13} parent=0 // loop_header_branch
    %15 = sbr.rel (%p13) target = $region8
  $region5: #{_lambda_.13} parent=0 // loop_body
    %s17 = ssub.s32 %s12, 1
    %s18 = ssub.s32 %s12, 2
    %s25 = sadd.s32 1, %s20
    %p26 = scmp.ge.s32.totalorder %s25, 1
    %s27 = scalar_select %p26, 0, %s25
    %s28 = sadd.s32 1, %s19
    %s29 = scalar_select %p26, %s28, %s19
    %p30 = scmp.ge.s32.totalorder %s29, 2
    %s31 = scalar_select %p30, 0, %s29
    %s32 = ssub.s32 %s19, %s31
    %p33 = scmp.eq.s32.totalorder %s32, 0
    %s35 = sadd.s32 %s34, 1
    %s36 = scalar_select %p33, %s34, %s35
    %p39 = pneg %p33
    %p40 = scmp.eq.s32.totalorder %s12, 1
    %p41 = por %p39, %p40
    %p42 = scmp.ne.s32.totalorder %s34, %s37
    %p43 = scmp.eq.s32.totalorder %s12, 0
    %p44 = por %p42, %p43
    %p45 = scmp.ne.s32.totalorder %s34, %s37
    %p46 = scmp.eq.s32.totalorder %s17, 1
    %p47 = por %p45, %p46
    %p48 = scmp.ne.s32.totalorder %s37, %s38
    %p49 = scmp.eq.s32.totalorder %s17, 0
    %p50 = por %p48, %p49
    %p51 = scmp.ne.s32.totalorder %s37, %s38
    %p52 = scmp.eq.s32.totalorder %s18, 1
    %p53 = por %p51, %p52
    %p55 = scmp.ne.s32.totalorder %s38, %s54
    %p56 = scmp.eq.s32.totalorder %s18, 0
    %p57 = por %p55, %p56
    %s59 = sadd.s32 %s58, 1
    %p62 = scmp.eq.s32.totalorder %s12, 1
    %p63 = scmp.ne.s32.totalorder %s58, %s60
    %p64 = scmp.eq.s32.totalorder %s12, 0
    %p65 = por %p63, %p64
    %p66 = scmp.ne.s32.totalorder %s58, %s60
    %p67 = scmp.eq.s32.totalorder %s17, 1
    %p68 = por %p66, %p67
    %p69 = scmp.ne.s32.totalorder %s60, %s61
    %p70 = scmp.eq.s32.totalorder %s17, 0
    %p71 = por %p69, %p70
    %p72 = scmp.ne.s32.totalorder %s60, %s61
    %p73 = scmp.eq.s32.totalorder %s18, 1
    %p74 = por %p72, %p73
    %p76 = scmp.ne.s32.totalorder %s61, %s75
    %p77 = scmp.eq.s32.totalorder %s18, 0
    %p78 = por %p76, %p77
    %s79 = ssub.s32 %s20, %s27
    %p80 = scmp.eq.s32.totalorder %s79, 0
    %s82 = sadd.s32 %s81, 1
    %s83 = scalar_select %p80, %s81, %s82
    %p86 = pneg %p80
    %p87 = scmp.eq.s32.totalorder %s12, 1
    %p88 = por %p86, %p87
    %p89 = scmp.ne.s32.totalorder %s81, %s84
    %p90 = scmp.eq.s32.totalorder %s12, 0
    %p91 = por %p89, %p90
    %p92 = scmp.ne.s32.totalorder %s81, %s84
    %p93 = scmp.eq.s32.totalorder %s17, 1
    %p94 = por %p92, %p93
    %p95 = scmp.ne.s32.totalorder %s84, %s85
    %p96 = scmp.eq.s32.totalorder %s17, 0
    %p97 = por %p95, %p96
    %p98 = scmp.ne.s32.totalorder %s84, %s85
    %p99 = scmp.eq.s32.totalorder %s18, 1
    %p100 = por %p98, %p99
    %p102 = scmp.ne.s32.totalorder %s85, %s101
    %p103 = scmp.eq.s32.totalorder %s18, 0
    %p104 = por %p102, %p103
    %s105 = ssub.s32 %s19, %s31
    %s106 = ssub.s32 %s20, %s27
    %s107 = sor.u32 %s105, %s106
    %p108 = scmp.eq.s32.totalorder %s107, 0
    %s110 = sadd.s32 %s109, 1
    %s111 = scalar_select %p108, %s109, %s110
    %p114 = pneg %p108
    %p115 = scmp.eq.s32.totalorder %s12, 1
    %p116 = por %p114, %p115
    %p117 = scmp.ne.s32.totalorder %s109, %s112
    %p118 = scmp.eq.s32.totalorder %s12, 0
    %p119 = por %p117, %p118
    %p120 = scmp.ne.s32.totalorder %s109, %s112
    %p121 = scmp.eq.s32.totalorder %s17, 1
    %p122 = por %p120, %p121
    %p123 = scmp.ne.s32.totalorder %s112, %s113
    %p124 = scmp.eq.s32.totalorder %s17, 0
    %p125 = por %p123, %p124
    %p126 = scmp.ne.s32.totalorder %s112, %s113
    %p127 = scmp.eq.s32.totalorder %s18, 1
    %p128 = por %p126, %p127
    %p130 = scmp.ne.s32.totalorder %s113, %s129
    %p131 = scmp.eq.s32.totalorder %s18, 0
    %p132 = por %p130, %p131
    %s133 = ssub.s32 %s19, %s31
    %p134 = scmp.eq.s32.totalorder %s133, 0
    %s136 = sadd.s32 %s135, 1
    %s137 = scalar_select %p134, %s135, %s136
    %p140 = pneg %p134
    %p141 = scmp.eq.s32.totalorder %s12, 1
    %p142 = por %p140, %p141
    %p143 = scmp.ne.s32.totalorder %s135, %s138
    %p144 = scmp.eq.s32.totalorder %s12, 0
    %p145 = por %p143, %p144
    %p146 = scmp.ne.s32.totalorder %s135, %s138
    %p147 = scmp.eq.s32.totalorder %s17, 1
    %p148 = por %p146, %p147
    %p149 = scmp.ne.s32.totalorder %s138, %s139
    %p150 = scmp.eq.s32.totalorder %s17, 0
    %p151 = por %p149, %p150
    %p152 = scmp.ne.s32.totalorder %s138, %s139
    %p153 = scmp.eq.s32.totalorder %s18, 1
    %p154 = por %p152, %p153
    %p156 = scmp.ne.s32.totalorder %s139, %s155
    %p157 = scmp.eq.s32.totalorder %s18, 0
    %p158 = por %p156, %p157
    %s159 = ssub.s32 %s19, %s31
    %p160 = scmp.eq.s32.totalorder %s159, 0
    %s162 = sadd.s32 %s161, 1
    %s163 = scalar_select %p160, %s161, %s162
    %p166 = pneg %p160
    %p167 = scmp.eq.s32.totalorder %s12, 1
    %p168 = por %p166, %p167
    %p169 = scmp.ne.s32.totalorder %s161, %s164
    %p170 = scmp.eq.s32.totalorder %s12, 0
    %p171 = por %p169, %p170
    %p172 = scmp.ne.s32.totalorder %s161, %s164
    %p173 = scmp.eq.s32.totalorder %s17, 1
    %p174 = por %p172, %p173
    %p175 = scmp.ne.s32.totalorder %s164, %s165
    %p176 = scmp.eq.s32.totalorder %s17, 0
    %p177 = por %p175, %p176
    %p178 = scmp.ne.s32.totalorder %s164, %s165
    %p179 = scmp.eq.s32.totalorder %s18, 1
    %p180 = por %p178, %p179
    %p182 = scmp.ne.s32.totalorder %s165, %s181
    %p183 = scmp.eq.s32.totalorder %s18, 0
    %p184 = por %p182, %p183
    %p185 = scmp.le.s32.totalorder 1, %s12
    %p186 = scmp.lt.s32.totalorder %s12, 3
    %p187 = pnand %p185, %p186
    %p188 = pneg %p187
    // Predicated region
    $region9: #{_lambda_.13} parent=5 // pred_check
      _
    $region10: #{_lambda_.13} parent=5 // pred_check_branch
      %190 = sbr.rel (%p187) target = $region12
    $region11: #{_lambda_.13} parent=5 // pred_region
      %s191 = ssub.s32 %s12, 1
      // Predicated region
      $region13: #{_lambda_.13} parent=11 // pred_check
        %p192 = pneg %p71
      $region14: #{_lambda_.13} parent=11 // pred_check_branch
        %194 = sbr.rel (%p192) target = $region16
      $region15: #{_lambda_.13} parent=11 // pred_region
        _
      $region16: #{_lambda_.13} parent=11 // pred_fallthru
        _
      // Predicated region
      $region17: #{_lambda_.13} parent=11 // pred_check
        %p195 = pneg %p97
      $region18: #{_lambda_.13} parent=11 // pred_check_branch
        %197 = sbr.rel (%p195) target = $region20
      $region19: #{_lambda_.13} parent=11 // pred_region
        %s198 = smul.u32 3, %s22
        %p199 = scmp.lt.s32.totalorder %s198, 2
        %s200 = scalar_select %p199, %s198, 2
        %s201 = smul.addr %s200, 8
        %s202 = scalar_lea.vmem %s2, %s201
        %s203 = smul.u32 3, %s22
      $region20: #{_lambda_.13} parent=11 // pred_fallthru
        _
    $region12: #{_lambda_.13} parent=5 // pred_fallthru
      _
    %p204 = scmp.lt.s32.totalorder %s12, 2
    // Predicated region
    $region21: #{_lambda_.13} parent=5 // pred_check
      %p205 = pneg %p204
    $region22: #{_lambda_.13} parent=5 // pred_check_branch
      %207 = sbr.rel (%p205) target = $region24
    $region23: #{_lambda_.13} parent=5 // pred_region
      // Predicated region
      $region25: #{_lambda_.13} parent=23 // pred_check
        %p208 = pneg %p44
      $region26: #{_lambda_.13} parent=23 // pred_check_branch
        %210 = sbr.rel (%p208) target = $region28
      $region27: #{_lambda_.13} parent=23 // pred_region
        %p211 = scmp.lt.s32.totalorder %s19, 1
        %s212 = scalar_select %p211, %s19, 1
        %s213 = smul.addr %s212, 6
        %s214 = smul.addr %s213, 8
        %s215 = scalar_lea.vmem %s0, %s214
      $region28: #{_lambda_.13} parent=23 // pred_fallthru
        _
    $region24: #{_lambda_.13} parent=5 // pred_fallthru
      _
    %p216 = scmp.le.s32.totalorder 1, %s12
    %p217 = scmp.lt.s32.totalorder %s12, 3
    %p218 = pnand %p216, %p217
    %p219 = pneg %p218
    // Predicated region
    $region29: #{_lambda_.13} parent=5 // pred_check
      _
    $region30: #{_lambda_.13} parent=5 // pred_check_branch
      %221 = sbr.rel (%p218) target = $region32
    $region31: #{_lambda_.13} parent=5 // pred_region
      %s222 = ssub.s32 %s12, 1
      %p223 = scmp.lt.s32.totalorder %s21, 1
      %s224 = scalar_select %p223, %s21, 1
      %s225 = smul.addr %s224, 6
      %s226 = smul.addr %s225, 8
      %s227 = scalar_lea.vmem %s0, %s226
      %p228 = pneg %p50
      %p229 = pneg %p47
      %p230 = pneg %p71
      %p231 = pneg %p68
      %s232 = smul.u32 3, %s22
      %p233 = scmp.lt.s32.totalorder %s232, 2
      %s234 = scalar_select %p233, %s232, 2
      %s235 = smul.addr %s234, 8
      %s236 = scalar_lea.vmem %s2, %s235
      %p237 = pneg %p97
      %p238 = pneg %p94
      %p239 = pneg %p125
      %p240 = pneg %p122
      %s241 = smul.u32 3, %s22
      %p242 = scmp.lt.s32.totalorder %s21, 1
      %s243 = scalar_select %p242, %s21, 1
      %p244 = scmp.lt.s32.totalorder %s241, 2
      %s245 = scalar_select %p244, %s241, 2
      %s246 = smul.addr %s243, 3
      %s247 = sadd.s32 %s245, %s246
      %s248 = smul.addr %s247, 8
      %s249 = scalar_lea.vmem %s3, %s248
      %p250 = pneg %p151
      %p251 = pneg %p148
      %p252 = scmp.lt.s32.totalorder %s21, 1
      %s253 = scalar_select %p252, %s21, 1
      %s254 = scalar_lea.vmem %s4, %s253
      %p255 = pneg %p177
      %p256 = pneg %p174
      %p257 = scmp.lt.s32.totalorder %s21, 1
      %s258 = scalar_select %p257, %s21, 1
      %s259 = scalar_lea.vmem %s5, %s258
      %p260 = scmp.lt.s32.totalorder %s21, 1
      %s261 = scalar_select %p260, %s21, 1
      %s262 = smul.addr %s261, 6
      %s263 = smul.addr %s262, 8
      %s264 = scalar_lea.vmem %s0, %s263
      %s265 = smul.u32 3, %s22
      %p266 = scmp.lt.s32.totalorder %s265, 2
      %s267 = scalar_select %p266, %s265, 2
      %s268 = smul.addr %s267, 8
      %s269 = scalar_lea.vmem %s2, %s268
      %s270 = smul.u32 3, %s22
      %s271 = smul.u32 3, %s22
      %p272 = scmp.lt.s32.totalorder %s21, 1
      %s273 = scalar_select %p272, %s21, 1
      %p274 = scmp.lt.s32.totalorder %s271, 2
      %s275 = scalar_select %p274, %s271, 2
      %s276 = smul.addr %s273, 3
      %s277 = sadd.s32 %s275, %s276
      %s278 = smul.addr %s277, 8
      %s279 = scalar_lea.vmem %s3, %s278
      %s280 = smul.u32 3, %s22
      %p281 = scmp.lt.s32.totalorder %s21, 1
      %s282 = scalar_select %p281, %s21, 1
      %s283 = scalar_lea.vmem %s4, %s282
      %p284 = scmp.lt.s32.totalorder %s21, 1
      %s285 = scalar_select %p284, %s21, 1
      %s286 = scalar_lea.vmem %s5, %s285
      %s287 = smul.u32 %s22, 24
      %s288 = scalar_lea.vmem %s264, %s287
      %v289 = vld [vmem:[%s288] sm:$0xff]
      %v290 = vld [vmem:[%s288 + $0x8] sm:$0xff]
      %v291 = vld [vmem:[%s288 + $0x10] sm:$0xff]
      %v292 = vld [vmem:[%s1] sm:$0xff]
      %v293 = vld [vmem:[%s1 + $0x8] sm:$0xff]
      %v294 = vld [vmem:[%s1 + $0x10] sm:$0xff]
      %v295 = vld [vmem:[%s1 + $0x18] sm:$0xff]
      %v296 = vld [vmem:[%s1 + $0x20] sm:$0xff]
      %v297 = vld [vmem:[%s1 + $0x28] sm:$0xff]
      %v298 = vld [vmem:[%s1 + $0x30] sm:$0xff]
      %v299 = vld [vmem:[%s1 + $0x38] sm:$0xff]
      %v300 = vld [vmem:[%s1 + $0x40] sm:$0xff]
      %v301 = vld [vmem:[%s1 + $0x48] sm:$0xff]
      %v302 = vld [vmem:[%s1 + $0x50] sm:$0xff]
      %v303 = vld [vmem:[%s1 + $0x58] sm:$0xff]
      %v304 = vld [vmem:[%s1 + $0x60] sm:$0xff]
      %v305 = vld [vmem:[%s1 + $0x68] sm:$0xff]
      %v306 = vld [vmem:[%s1 + $0x70] sm:$0xff]
      %v307 = vld [vmem:[%s1 + $0x78] sm:$0xff]
      %s308 = sadd.s32 %s287, 1
      %s309 = scalar_lea.vmem %s264, %s308
      %v310 = vld [vmem:[%s309] sm:$0xff]
      %v311 = vld [vmem:[%s309 + $0x8] sm:$0xff]
      %v312 = vld [vmem:[%s309 + $0x10] sm:$0xff]
      %s313 = scalar_lea.vmem %s1, 128
      %v314 = vld [vmem:[%s313] sm:$0xff]
      %v315 = vld [vmem:[%s313 + $0x8] sm:$0xff]
      %v316 = vld [vmem:[%s313 + $0x10] sm:$0xff]
      %v317 = vld [vmem:[%s313 + $0x18] sm:$0xff]
      %v318 = vld [vmem:[%s313 + $0x20] sm:$0xff]
      %v319 = vld [vmem:[%s313 + $0x28] sm:$0xff]
      %v320 = vld [vmem:[%s313 + $0x30] sm:$0xff]
      %v321 = vld [vmem:[%s313 + $0x38] sm:$0xff]
      %v322 = vld [vmem:[%s313 + $0x40] sm:$0xff]
      %v323 = vld [vmem:[%s313 + $0x48] sm:$0xff]
      %v324 = vld [vmem:[%s313 + $0x50] sm:$0xff]
      %v325 = vld [vmem:[%s313 + $0x58] sm:$0xff]
      %v326 = vld [vmem:[%s313 + $0x60] sm:$0xff]
      %v327 = vld [vmem:[%s313 + $0x68] sm:$0xff]
      %v328 = vld [vmem:[%s313 + $0x70] sm:$0xff]
      %v329 = vld [vmem:[%s313 + $0x78] sm:$0xff]
      %330 = vmatprep.subr.mxu0 0.0
      %331 = vmatpush1.msra.mxu0 %v329
      %332 = vmatprep.subr.mxu0 0.0
      %333 = vmatpush1.msra.mxu0 %v328
      %334 = vmatprep.subr.mxu0 0.0
      %335 = vmatpush1.msra.mxu0 %v327
      %336 = vmatprep.subr.mxu0 0.0
      %337 = vmatpush1.msra.mxu0 %v326
      %338 = vmatprep.subr.mxu0 0.0
      %339 = vmatpush1.msra.mxu0 %v325
      %340 = vmatprep.subr.mxu0 0.0
      %341 = vmatpush1.msra.mxu0 %v324
      %342 = vmatprep.subr.mxu0 0.0
      %343 = vmatpush1.msra.mxu0 %v323
      %344 = vmatprep.subr.mxu0 0.0
      %345 = vmatpush1.msra.mxu0 %v322
      %346 = vmatprep.subr.mxu0 0.0
      %347 = vmatpush1.msra.mxu0 %v321
      %348 = vmatprep.subr.mxu0 0.0
      %349 = vmatpush1.msra.mxu0 %v320
      %350 = vmatprep.subr.mxu0 0.0
      %351 = vmatpush1.msra.mxu0 %v319
      %352 = vmatprep.subr.mxu0 0.0
      %353 = vmatpush1.msra.mxu0 %v318
      %354 = vmatprep.subr.mxu0 0.0
      %355 = vmatpush1.msra.mxu0 %v317
      %356 = vmatprep.subr.mxu0 0.0
      %357 = vmatpush1.msra.mxu0 %v316
      %358 = vmatprep.subr.mxu0 0.0
      %359 = vmatpush1.msra.mxu0 %v315
      %360 = vmatprep.subr.mxu0 0.0
      %361 = vmatpush1.msra.mxu0 %v314
      %362 = vmatprep.subr.mxu0 0.0
      %363 = vmatpush2.msra.mxu0 0.0
      %364 = vmatprep.subr.mxu0 0.0
      %365 = vmatpush2.msra.mxu0 0.0
      %366 = vmatprep.subr.mxu0 0.0
      %367 = vmatpush2.msra.mxu0 0.0
      %368 = vmatprep.subr.mxu0 0.0
      %369 = vmatpush2.msra.mxu0 0.0
      %370 = vmatprep.subr.mxu0 0.0
      %371 = vmatpush2.msra.mxu0 0.0
      %372 = vmatprep.subr.mxu0 0.0
      %373 = vmatpush2.msra.mxu0 0.0
      %374 = vmatprep.subr.mxu0 0.0
      %375 = vmatpush2.msra.mxu0 0.0
      %376 = vmatprep.subr.mxu0 0.0
      %377 = vmatpush2.msra.mxu0 0.0
      %378 = vmatprep.subr.mxu0 0.0
      %379 = vmatpush2.msra.mxu0 0.0
      %380 = vmatprep.subr.mxu0 0.0
      %381 = vmatpush2.msra.mxu0 0.0
      %382 = vmatprep.subr.mxu0 0.0
      %383 = vmatpush2.msra.mxu0 0.0
      %384 = vmatprep.subr.mxu0 0.0
      %385 = vmatpush2.msra.mxu0 0.0
      %386 = vmatprep.subr.mxu0 0.0
      %387 = vmatpush2.msra.mxu0 0.0
      %388 = vmatprep.subr.mxu0 0.0
      %389 = vmatpush2.msra.mxu0 0.0
      %390 = vmatprep.subr.mxu0 0.0
      %391 = vmatpush2.msra.mxu0 0.0
      %392 = vmatprep.subr.mxu0 0.0
      %393 = vmatpush2.msra.mxu0 0.0
      %394 = vmatprep.mubr.f32.mxu0 0.0
      %395 = vmatmul.mubr.f32.gmra.mxu0 %v310
      %v396 = vpop.f32.mrf.mxu0
      %v397 = vadd.f32 0.0, %v396
      %v398 = vpop.f32.mrf.mxu0
      %399 = vmatprep.mubr.f32.mxu0 0.0
      %400 = vmatmul.mubr.f32.gmra.mxu0 %v311
      %v401 = vpop.f32.mrf.mxu0
      %v402 = vadd.f32 0.0, %v401
      %v403 = vpop.f32.mrf.mxu0
      %404 = vmatprep.mubr.f32.mxu0 0.0
      %405 = vmatmul.mubr.f32.gmra.mxu0 %v312
      %v406 = vpop.f32.mrf.mxu0
      %v407 = vadd.f32 0.0, %v406
      %v408 = vpop.f32.mrf.mxu0
      %409 = vdwg.mxu0
      %410 = vmatprep.subr.mxu0 0.0
      %411 = vmatpush1.msra.mxu0 %v307
      %412 = vmatprep.subr.mxu0 0.0
      %413 = vmatpush1.msra.mxu0 %v306
      %414 = vmatprep.subr.mxu0 0.0
      %415 = vmatpush1.msra.mxu0 %v305
      %416 = vmatprep.subr.mxu0 0.0
      %417 = vmatpush1.msra.mxu0 %v304
      %418 = vmatprep.subr.mxu0 0.0
      %419 = vmatpush1.msra.mxu0 %v303
      %420 = vmatprep.subr.mxu0 0.0
      %421 = vmatpush1.msra.mxu0 %v302
      %422 = vmatprep.subr.mxu0 0.0
      %423 = vmatpush1.msra.mxu0 %v301
      %424 = vmatprep.subr.mxu0 0.0
      %425 = vmatpush1.msra.mxu0 %v300
      %426 = vmatprep.subr.mxu0 0.0
      %427 = vmatpush1.msra.mxu0 %v299
      %428 = vmatprep.subr.mxu0 0.0
      %429 = vmatpush1.msra.mxu0 %v298
      %430 = vmatprep.subr.mxu0 0.0
      %431 = vmatpush1.msra.mxu0 %v297
      %432 = vmatprep.subr.mxu0 0.0
      %433 = vmatpush1.msra.mxu0 %v296
      %434 = vmatprep.subr.mxu0 0.0
      %435 = vmatpush1.msra.mxu0 %v295
      %436 = vmatprep.subr.mxu0 0.0
      %437 = vmatpush1.msra.mxu0 %v294
      %438 = vmatprep.subr.mxu0 0.0
      %439 = vmatpush1.msra.mxu0 %v293
      %440 = vmatprep.subr.mxu0 0.0
      %441 = vmatpush1.msra.mxu0 %v292
      %442 = vmatprep.subr.mxu0 0.0
      %443 = vmatpush2.msra.mxu0 0.0
      %444 = vmatprep.subr.mxu0 0.0
      %445 = vmatpush2.msra.mxu0 0.0
      %446 = vmatprep.subr.mxu0 0.0
      %447 = vmatpush2.msra.mxu0 0.0
      %448 = vmatprep.subr.mxu0 0.0
      %449 = vmatpush2.msra.mxu0 0.0
      %450 = vmatprep.subr.mxu0 0.0
      %451 = vmatpush2.msra.mxu0 0.0
      %452 = vmatprep.subr.mxu0 0.0
      %453 = vmatpush2.msra.mxu0 0.0
      %454 = vmatprep.subr.mxu0 0.0
      %455 = vmatpush2.msra.mxu0 0.0
      %456 = vmatprep.subr.mxu0 0.0
      %457 = vmatpush2.msra.mxu0 0.0
      %458 = vmatprep.subr.mxu0 0.0
      %459 = vmatpush2.msra.mxu0 0.0
      %460 = vmatprep.subr.mxu0 0.0
      %461 = vmatpush2.msra.mxu0 0.0
      %462 = vmatprep.subr.mxu0 0.0
      %463 = vmatpush2.msra.mxu0 0.0
      %464 = vmatprep.subr.mxu0 0.0
      %465 = vmatpush2.msra.mxu0 0.0
      %466 = vmatprep.subr.mxu0 0.0
      %467 = vmatpush2.msra.mxu0 0.0
      %468 = vmatprep.subr.mxu0 0.0
      %469 = vmatpush2.msra.mxu0 0.0
      %470 = vmatprep.subr.mxu0 0.0
      %471 = vmatpush2.msra.mxu0 0.0
      %472 = vmatprep.subr.mxu0 0.0
      %473 = vmatpush2.msra.mxu0 0.0
      %474 = vmatprep.mubr.f32.mxu0 0.0
      %475 = vmatmul.mubr.f32.gmra.mxu0 %v289
      %v476 = vpop.f32.mrf.mxu0
      %v477 = vadd.f32 %v397, %v476
      %v478 = vpop.f32.mrf.mxu0
      %479 = vmatprep.mubr.f32.mxu0 0.0
      %480 = vmatmul.mubr.f32.gmra.mxu0 %v290
      %v481 = vpop.f32.mrf.mxu0
      %v482 = vadd.f32 %v402, %v481
      %v483 = vpop.f32.mrf.mxu0
      %484 = vmatprep.mubr.f32.mxu0 0.0
      %485 = vmatmul.mubr.f32.gmra.mxu0 %v291
      %v486 = vpop.f32.mrf.mxu0
      %v487 = vadd.f32 %v407, %v486
      %v488 = vpop.f32.mrf.mxu0
      %489 = vdwg.mxu0
      %s490 = sadd.s32 %s287, 2
      %s491 = scalar_lea.vmem %s264, %s490
      %v492 = vld [vmem:[%s491] sm:$0xff]
      %v493 = vld [vmem:[%s491 + $0x8] sm:$0xff]
      %v494 = vld [vmem:[%s491 + $0x10] sm:$0xff]
      %s495 = scalar_lea.vmem %s1, 256
      %v496 = vld [vmem:[%s495] sm:$0xff]
      %v497 = vld [vmem:[%s495 + $0x8] sm:$0xff]
      %v498 = vld [vmem:[%s495 + $0x10] sm:$0xff]
      %v499 = vld [vmem:[%s495 + $0x18] sm:$0xff]
      %v500 = vld [vmem:[%s495 + $0x20] sm:$0xff]
      %v501 = vld [vmem:[%s495 + $0x28] sm:$0xff]
      %v502 = vld [vmem:[%s495 + $0x30] sm:$0xff]
      %v503 = vld [vmem:[%s495 + $0x38] sm:$0xff]
      %v504 = vld [vmem:[%s495 + $0x40] sm:$0xff]
      %v505 = vld [vmem:[%s495 + $0x48] sm:$0xff]
      %v506 = vld [vmem:[%s495 + $0x50] sm:$0xff]
      %v507 = vld [vmem:[%s495 + $0x58] sm:$0xff]
      %v508 = vld [vmem:[%s495 + $0x60] sm:$0xff]
      %v509 = vld [vmem:[%s495 + $0x68] sm:$0xff]
      %v510 = vld [vmem:[%s495 + $0x70] sm:$0xff]
      %v511 = vld [vmem:[%s495 + $0x78] sm:$0xff]
      %512 = vmatprep.subr.mxu0 0.0
      %513 = vmatpush1.msra.mxu0 %v511
      %514 = vmatprep.subr.mxu0 0.0
      %515 = vmatpush1.msra.mxu0 %v510
      %516 = vmatprep.subr.mxu0 0.0
      %517 = vmatpush1.msra.mxu0 %v509
      %518 = vmatprep.subr.mxu0 0.0
      %519 = vmatpush1.msra.mxu0 %v508
      %520 = vmatprep.subr.mxu0 0.0
      %521 = vmatpush1.msra.mxu0 %v507
      %522 = vmatprep.subr.mxu0 0.0
      %523 = vmatpush1.msra.mxu0 %v506
      %524 = vmatprep.subr.mxu0 0.0
      %525 = vmatpush1.msra.mxu0 %v505
      %526 = vmatprep.subr.mxu0 0.0
      %527 = vmatpush1.msra.mxu0 %v504
      %528 = vmatprep.subr.mxu0 0.0
      %529 = vmatpush1.msra.mxu0 %v503
      %530 = vmatprep.subr.mxu0 0.0
      %531 = vmatpush1.msra.mxu0 %v502
      %532 = vmatprep.subr.mxu0 0.0
      %533 = vmatpush1.msra.mxu0 %v501
      %534 = vmatprep.subr.mxu0 0.0
      %535 = vmatpush1.msra.mxu0 %v500
      %536 = vmatprep.subr.mxu0 0.0
      %537 = vmatpush1.msra.mxu0 %v499
      %538 = vmatprep.subr.mxu0 0.0
      %539 = vmatpush1.msra.mxu0 %v498
      %540 = vmatprep.subr.mxu0 0.0
      %541 = vmatpush1.msra.mxu0 %v497
      %542 = vmatprep.subr.mxu0 0.0
      %543 = vmatpush1.msra.mxu0 %v496
      %544 = vmatprep.subr.mxu0 0.0
      %545 = vmatpush2.msra.mxu0 0.0
      %546 = vmatprep.subr.mxu0 0.0
      %547 = vmatpush2.msra.mxu0 0.0
      %548 = vmatprep.subr.mxu0 0.0
      %549 = vmatpush2.msra.mxu0 0.0
      %550 = vmatprep.subr.mxu0 0.0
      %551 = vmatpush2.msra.mxu0 0.0
      %552 = vmatprep.subr.mxu0 0.0
      %553 = vmatpush2.msra.mxu0 0.0
      %554 = vmatprep.subr.mxu0 0.0
      %555 = vmatpush2.msra.mxu0 0.0
      %556 = vmatprep.subr.mxu0 0.0
      %557 = vmatpush2.msra.mxu0 0.0
      %558 = vmatprep.subr.mxu0 0.0
      %559 = vmatpush2.msra.mxu0 0.0
      %560 = vmatprep.subr.mxu0 0.0
      %561 = vmatpush2.msra.mxu0 0.0
      %562 = vmatprep.subr.mxu0 0.0
      %563 = vmatpush2.msra.mxu0 0.0
      %564 = vmatprep.subr.mxu0 0.0
      %565 = vmatpush2.msra.mxu0 0.0
      %566 = vmatprep.subr.mxu0 0.0
      %567 = vmatpush2.msra.mxu0 0.0
      %568 = vmatprep.subr.mxu0 0.0
      %569 = vmatpush2.msra.mxu0 0.0
      %570 = vmatprep.subr.mxu0 0.0
      %571 = vmatpush2.msra.mxu0 0.0
      %572 = vmatprep.subr.mxu0 0.0
      %573 = vmatpush2.msra.mxu0 0.0
      %574 = vmatprep.subr.mxu0 0.0
      %575 = vmatpush2.msra.mxu0 0.0
      %576 = vmatprep.mubr.f32.mxu0 0.0
      %577 = vmatmul.mubr.f32.gmra.mxu0 %v492
      %v578 = vpop.f32.mrf.mxu0
      %v579 = vadd.f32 0.0, %v578
      %v580 = vpop.f32.mrf.mxu0
      %581 = vmatprep.mubr.f32.mxu0 0.0
      %582 = vmatmul.mubr.f32.gmra.mxu0 %v493
      %v583 = vpop.f32.mrf.mxu0
      %v584 = vadd.f32 0.0, %v583
      %v585 = vpop.f32.mrf.mxu0
      %586 = vmatprep.mubr.f32.mxu0 0.0
      %587 = vmatmul.mubr.f32.gmra.mxu0 %v494
      %v588 = vpop.f32.mrf.mxu0
      %v589 = vadd.f32 0.0, %v588
      %v590 = vpop.f32.mrf.mxu0
      %591 = vdwg.mxu0
      %v592 = vadd.f32 %v477, %v579
      %v593 = vadd.f32 %v482, %v584
      %v594 = vadd.f32 %v487, %v589
      %s595 = sadd.s32 %s287, 3
      %s596 = scalar_lea.vmem %s264, %s595
      %v597 = vld [vmem:[%s596] sm:$0xff]
      %v598 = vld [vmem:[%s596 + $0x8] sm:$0xff]
      %v599 = vld [vmem:[%s596 + $0x10] sm:$0xff]
      %s600 = scalar_lea.vmem %s1, 384
      %v601 = vld [vmem:[%s600] sm:$0xff]
      %v602 = vld [vmem:[%s600 + $0x8] sm:$0xff]
      %v603 = vld [vmem:[%s600 + $0x10] sm:$0xff]
      %v604 = vld [vmem:[%s600 + $0x18] sm:$0xff]
      %v605 = vld [vmem:[%s600 + $0x20] sm:$0xff]
      %v606 = vld [vmem:[%s600 + $0x28] sm:$0xff]
      %v607 = vld [vmem:[%s600 + $0x30] sm:$0xff]
      %v608 = vld [vmem:[%s600 + $0x38] sm:$0xff]
      %v609 = vld [vmem:[%s600 + $0x40] sm:$0xff]
      %v610 = vld [vmem:[%s600 + $0x48] sm:$0xff]
      %v611 = vld [vmem:[%s600 + $0x50] sm:$0xff]
      %v612 = vld [vmem:[%s600 + $0x58] sm:$0xff]
      %v613 = vld [vmem:[%s600 + $0x60] sm:$0xff]
      %v614 = vld [vmem:[%s600 + $0x68] sm:$0xff]
      %v615 = vld [vmem:[%s600 + $0x70] sm:$0xff]
      %v616 = vld [vmem:[%s600 + $0x78] sm:$0xff]
      %617 = vmatprep.subr.mxu0 0.0
      %618 = vmatpush1.msra.mxu0 %v616
      %619 = vmatprep.subr.mxu0 0.0
      %620 = vmatpush1.msra.mxu0 %v615
      %621 = vmatprep.subr.mxu0 0.0
      %622 = vmatpush1.msra.mxu0 %v614
      %623 = vmatprep.subr.mxu0 0.0
      %624 = vmatpush1.msra.mxu0 %v613
      %625 = vmatprep.subr.mxu0 0.0
      %626 = vmatpush1.msra.mxu0 %v612
      %627 = vmatprep.subr.mxu0 0.0
      %628 = vmatpush1.msra.mxu0 %v611
      %629 = vmatprep.subr.mxu0 0.0
      %630 = vmatpush1.msra.mxu0 %v610
      %631 = vmatprep.subr.mxu0 0.0
      %632 = vmatpush1.msra.mxu0 %v609
      %633 = vmatprep.subr.mxu0 0.0
      %634 = vmatpush1.msra.mxu0 %v608
      %635 = vmatprep.subr.mxu0 0.0
      %636 = vmatpush1.msra.mxu0 %v607
      %637 = vmatprep.subr.mxu0 0.0
      %638 = vmatpush1.msra.mxu0 %v606
      %639 = vmatprep.subr.mxu0 0.0
      %640 = vmatpush1.msra.mxu0 %v605
      %641 = vmatprep.subr.mxu0 0.0
      %642 = vmatpush1.msra.mxu0 %v604
      %643 = vmatprep.subr.mxu0 0.0
      %644 = vmatpush1.msra.mxu0 %v603
      %645 = vmatprep.subr.mxu0 0.0
      %646 = vmatpush1.msra.mxu0 %v602
      %647 = vmatprep.subr.mxu0 0.0
      %648 = vmatpush1.msra.mxu0 %v601
      %649 = vmatprep.subr.mxu0 0.0
      %650 = vmatpush2.msra.mxu0 0.0
      %651 = vmatprep.subr.mxu0 0.0
      %652 = vmatpush2.msra.mxu0 0.0
      %653 = vmatprep.subr.mxu0 0.0
      %654 = vmatpush2.msra.mxu0 0.0
      %655 = vmatprep.subr.mxu0 0.0
      %656 = vmatpush2.msra.mxu0 0.0
      %657 = vmatprep.subr.mxu0 0.0
      %658 = vmatpush2.msra.mxu0 0.0
      %659 = vmatprep.subr.mxu0 0.0
      %660 = vmatpush2.msra.mxu0 0.0
      %661 = vmatprep.subr.mxu0 0.0
      %662 = vmatpush2.msra.mxu0 0.0
      %663 = vmatprep.subr.mxu0 0.0
      %664 = vmatpush2.msra.mxu0 0.0
      %665 = vmatprep.subr.mxu0 0.0
      %666 = vmatpush2.msra.mxu0 0.0
      %667 = vmatprep.subr.mxu0 0.0
      %668 = vmatpush2.msra.mxu0 0.0
      %669 = vmatprep.subr.mxu0 0.0
      %670 = vmatpush2.msra.mxu0 0.0
      %671 = vmatprep.subr.mxu0 0.0
      %672 = vmatpush2.msra.mxu0 0.0
      %673 = vmatprep.subr.mxu0 0.0
      %674 = vmatpush2.msra.mxu0 0.0
      %675 = vmatprep.subr.mxu0 0.0
      %676 = vmatpush2.msra.mxu0 0.0
      %677 = vmatprep.subr.mxu0 0.0
      %678 = vmatpush2.msra.mxu0 0.0
      %679 = vmatprep.subr.mxu0 0.0
      %680 = vmatpush2.msra.mxu0 0.0
      %681 = vmatprep.mubr.f32.mxu0 0.0
      %682 = vmatmul.mubr.f32.gmra.mxu0 %v597
      %v683 = vpop.f32.mrf.mxu0
      %v684 = vadd.f32 0.0, %v683
      %v685 = vpop.f32.mrf.mxu0
      %686 = vmatprep.mubr.f32.mxu0 0.0
      %687 = vmatmul.mubr.f32.gmra.mxu0 %v598
      %v688 = vpop.f32.mrf.mxu0
      %v689 = vadd.f32 0.0, %v688
      %v690 = vpop.f32.mrf.mxu0
      %691 = vmatprep.mubr.f32.mxu0 0.0
      %692 = vmatmul.mubr.f32.gmra.mxu0 %v599
      %v693 = vpop.f32.mrf.mxu0
      %v694 = vadd.f32 0.0, %v693
      %v695 = vpop.f32.mrf.mxu0
      %696 = vdwg.mxu0
      %v697 = vadd.f32 %v592, %v684
      %v698 = vadd.f32 %v593, %v689
      %v699 = vadd.f32 %v594, %v694
      %s700 = sadd.s32 %s287, 6
      %s701 = scalar_lea.vmem %s264, %s700
      %v702 = vld [vmem:[%s701] sm:$0xff]
      %v703 = vld [vmem:[%s701 + $0x8] sm:$0xff]
      %v704 = vld [vmem:[%s701 + $0x10] sm:$0xff]
      %s705 = scalar_lea.vmem %s1, 512
      %v706 = vld [vmem:[%s705] sm:$0xff]
      %v707 = vld [vmem:[%s705 + $0x8] sm:$0xff]
      %v708 = vld [vmem:[%s705 + $0x10] sm:$0xff]
      %v709 = vld [vmem:[%s705 + $0x18] sm:$0xff]
      %v710 = vld [vmem:[%s705 + $0x20] sm:$0xff]
      %v711 = vld [vmem:[%s705 + $0x28] sm:$0xff]
      %v712 = vld [vmem:[%s705 + $0x30] sm:$0xff]
      %v713 = vld [vmem:[%s705 + $0x38] sm:$0xff]
      %v714 = vld [vmem:[%s705 + $0x40] sm:$0xff]
      %v715 = vld [vmem:[%s705 + $0x48] sm:$0xff]
      %v716 = vld [vmem:[%s705 + $0x50] sm:$0xff]
      %v717 = vld [vmem:[%s705 + $0x58] sm:$0xff]
      %v718 = vld [vmem:[%s705 + $0x60] sm:$0xff]
      %v719 = vld [vmem:[%s705 + $0x68] sm:$0xff]
      %v720 = vld [vmem:[%s705 + $0x70] sm:$0xff]
      %v721 = vld [vmem:[%s705 + $0x78] sm:$0xff]
      %722 = vmatprep.subr.mxu0 0.0
      %723 = vmatpush1.msra.mxu0 %v721
      %724 = vmatprep.subr.mxu0 0.0
      %725 = vmatpush1.msra.mxu0 %v720
      %726 = vmatprep.subr.mxu0 0.0
      %727 = vmatpush1.msra.mxu0 %v719
      %728 = vmatprep.subr.mxu0 0.0
      %729 = vmatpush1.msra.mxu0 %v718
      %730 = vmatprep.subr.mxu0 0.0
      %731 = vmatpush1.msra.mxu0 %v717
      %732 = vmatprep.subr.mxu0 0.0
      %733 = vmatpush1.msra.mxu0 %v716
      %734 = vmatprep.subr.mxu0 0.0
      %735 = vmatpush1.msra.mxu0 %v715
      %736 = vmatprep.subr.mxu0 0.0
      %737 = vmatpush1.msra.mxu0 %v714
      %738 = vmatprep.subr.mxu0 0.0
      %739 = vmatpush1.msra.mxu0 %v713
      %740 = vmatprep.subr.mxu0 0.0
      %741 = vmatpush1.msra.mxu0 %v712
      %742 = vmatprep.subr.mxu0 0.0
      %743 = vmatpush1.msra.mxu0 %v711
      %744 = vmatprep.subr.mxu0 0.0
      %745 = vmatpush1.msra.mxu0 %v710
      %746 = vmatprep.subr.mxu0 0.0
      %747 = vmatpush1.msra.mxu0 %v709
      %748 = vmatprep.subr.mxu0 0.0
      %749 = vmatpush1.msra.mxu0 %v708
      %750 = vmatprep.subr.mxu0 0.0
      %751 = vmatpush1.msra.mxu0 %v707
      %752 = vmatprep.subr.mxu0 0.0
      %753 = vmatpush1.msra.mxu0 %v706
      %754 = vmatprep.subr.mxu0 0.0
      %755 = vmatpush2.msra.mxu0 0.0
      %756 = vmatprep.subr.mxu0 0.0
      %757 = vmatpush2.msra.mxu0 0.0
      %758 = vmatprep.subr.mxu0 0.0
      %759 = vmatpush2.msra.mxu0 0.0
      %760 = vmatprep.subr.mxu0 0.0
      %761 = vmatpush2.msra.mxu0 0.0
      %762 = vmatprep.subr.mxu0 0.0
      %763 = vmatpush2.msra.mxu0 0.0
      %764 = vmatprep.subr.mxu0 0.0
      %765 = vmatpush2.msra.mxu0 0.0
      %766 = vmatprep.subr.mxu0 0.0
      %767 = vmatpush2.msra.mxu0 0.0
      %768 = vmatprep.subr.mxu0 0.0
      %769 = vmatpush2.msra.mxu0 0.0
      %770 = vmatprep.subr.mxu0 0.0
      %771 = vmatpush2.msra.mxu0 0.0
      %772 = vmatprep.subr.mxu0 0.0
      %773 = vmatpush2.msra.mxu0 0.0
      %774 = vmatprep.subr.mxu0 0.0
      %775 = vmatpush2.msra.mxu0 0.0
      %776 = vmatprep.subr.mxu0 0.0
      %777 = vmatpush2.msra.mxu0 0.0
      %778 = vmatprep.subr.mxu0 0.0
      %779 = vmatpush2.msra.mxu0 0.0
      %780 = vmatprep.subr.mxu0 0.0
      %781 = vmatpush2.msra.mxu0 0.0
      %782 = vmatprep.subr.mxu0 0.0
      %783 = vmatpush2.msra.mxu0 0.0
      %784 = vmatprep.subr.mxu0 0.0
      %785 = vmatpush2.msra.mxu0 0.0
      %786 = vmatprep.mubr.f32.mxu0 0.0
      %787 = vmatmul.mubr.f32.gmra.mxu0 %v702
      %v788 = vpop.f32.mrf.mxu0
      %v789 = vadd.f32 0.0, %v788
      %v790 = vpop.f32.mrf.mxu0
      %791 = vmatprep.mubr.f32.mxu0 0.0
      %792 = vmatmul.mubr.f32.gmra.mxu0 %v703
      %v793 = vpop.f32.mrf.mxu0
      %v794 = vadd.f32 0.0, %v793
      %v795 = vpop.f32.mrf.mxu0
      %796 = vmatprep.mubr.f32.mxu0 0.0
      %797 = vmatmul.mubr.f32.gmra.mxu0 %v704
      %v798 = vpop.f32.mrf.mxu0
      %v799 = vadd.f32 0.0, %v798
      %v800 = vpop.f32.mrf.mxu0
      %801 = vdwg.mxu0
      %v802 = vadd.f32 %v697, %v789
      %v803 = vadd.f32 %v698, %v794
      %v804 = vadd.f32 %v699, %v799
      %s805 = sadd.s32 %s287, 7
      %s806 = scalar_lea.vmem %s264, %s805
      %v807 = vld [vmem:[%s806] sm:$0xff]
      %v808 = vld [vmem:[%s806 + $0x8] sm:$0xff]
      %v809 = vld [vmem:[%s806 + $0x10] sm:$0xff]
      %s810 = scalar_lea.vmem %s1, 640
      %v811 = vld [vmem:[%s810] sm:$0xff]
      %v812 = vld [vmem:[%s810 + $0x8] sm:$0xff]
      %v813 = vld [vmem:[%s810 + $0x10] sm:$0xff]
      %v814 = vld [vmem:[%s810 + $0x18] sm:$0xff]
      %v815 = vld [vmem:[%s810 + $0x20] sm:$0xff]
      %v816 = vld [vmem:[%s810 + $0x28] sm:$0xff]
      %v817 = vld [vmem:[%s810 + $0x30] sm:$0xff]
      %v818 = vld [vmem:[%s810 + $0x38] sm:$0xff]
      %v819 = vld [vmem:[%s810 + $0x40] sm:$0xff]
      %v820 = vld [vmem:[%s810 + $0x48] sm:$0xff]
      %v821 = vld [vmem:[%s810 + $0x50] sm:$0xff]
      %v822 = vld [vmem:[%s810 + $0x58] sm:$0xff]
      %v823 = vld [vmem:[%s810 + $0x60] sm:$0xff]
      %v824 = vld [vmem:[%s810 + $0x68] sm:$0xff]
      %v825 = vld [vmem:[%s810 + $0x70] sm:$0xff]
      %v826 = vld [vmem:[%s810 + $0x78] sm:$0xff]
      %827 = vmatprep.subr.mxu0 0.0
      %828 = vmatpush1.msra.mxu0 %v826
      %829 = vmatprep.subr.mxu0 0.0
      %830 = vmatpush1.msra.mxu0 %v825
      %831 = vmatprep.subr.mxu0 0.0
      %832 = vmatpush1.msra.mxu0 %v824
      %833 = vmatprep.subr.mxu0 0.0
      %834 = vmatpush1.msra.mxu0 %v823
      %835 = vmatprep.subr.mxu0 0.0
      %836 = vmatpush1.msra.mxu0 %v822
      %837 = vmatprep.subr.mxu0 0.0
      %838 = vmatpush1.msra.mxu0 %v821
      %839 = vmatprep.subr.mxu0 0.0
      %840 = vmatpush1.msra.mxu0 %v820
      %841 = vmatprep.subr.mxu0 0.0
      %842 = vmatpush1.msra.mxu0 %v819
      %843 = vmatprep.subr.mxu0 0.0
      %844 = vmatpush1.msra.mxu0 %v818
      %845 = vmatprep.subr.mxu0 0.0
      %846 = vmatpush1.msra.mxu0 %v817
      %847 = vmatprep.subr.mxu0 0.0
      %848 = vmatpush1.msra.mxu0 %v816
      %849 = vmatprep.subr.mxu0 0.0
      %850 = vmatpush1.msra.mxu0 %v815
      %851 = vmatprep.subr.mxu0 0.0
      %852 = vmatpush1.msra.mxu0 %v814
      %853 = vmatprep.subr.mxu0 0.0
      %854 = vmatpush1.msra.mxu0 %v813
      %855 = vmatprep.subr.mxu0 0.0
      %856 = vmatpush1.msra.mxu0 %v812
      %857 = vmatprep.subr.mxu0 0.0
      %858 = vmatpush1.msra.mxu0 %v811
      %859 = vmatprep.subr.mxu0 0.0
      %860 = vmatpush2.msra.mxu0 0.0
      %861 = vmatprep.subr.mxu0 0.0
      %862 = vmatpush2.msra.mxu0 0.0
      %863 = vmatprep.subr.mxu0 0.0
      %864 = vmatpush2.msra.mxu0 0.0
      %865 = vmatprep.subr.mxu0 0.0
      %866 = vmatpush2.msra.mxu0 0.0
      %867 = vmatprep.subr.mxu0 0.0
      %868 = vmatpush2.msra.mxu0 0.0
      %869 = vmatprep.subr.mxu0 0.0
      %870 = vmatpush2.msra.mxu0 0.0
      %871 = vmatprep.subr.mxu0 0.0
      %872 = vmatpush2.msra.mxu0 0.0
      %873 = vmatprep.subr.mxu0 0.0
      %874 = vmatpush2.msra.mxu0 0.0
      %875 = vmatprep.subr.mxu0 0.0
      %876 = vmatpush2.msra.mxu0 0.0
      %877 = vmatprep.subr.mxu0 0.0
      %878 = vmatpush2.msra.mxu0 0.0
      %879 = vmatprep.subr.mxu0 0.0
      %880 = vmatpush2.msra.mxu0 0.0
      %881 = vmatprep.subr.mxu0 0.0
      %882 = vmatpush2.msra.mxu0 0.0
      %883 = vmatprep.subr.mxu0 0.0
      %884 = vmatpush2.msra.mxu0 0.0
      %885 = vmatprep.subr.mxu0 0.0
      %886 = vmatpush2.msra.mxu0 0.0
      %887 = vmatprep.subr.mxu0 0.0
      %888 = vmatpush2.msra.mxu0 0.0
      %889 = vmatprep.subr.mxu0 0.0
      %890 = vmatpush2.msra.mxu0 0.0
      %891 = vmatprep.mubr.f32.mxu0 0.0
      %892 = vmatmul.mubr.f32.gmra.mxu0 %v807
      %v893 = vpop.f32.mrf.mxu0
      %v894 = vadd.f32 0.0, %v893
      %v895 = vpop.f32.mrf.mxu0
      %896 = vmatprep.mubr.f32.mxu0 0.0
      %897 = vmatmul.mubr.f32.gmra.mxu0 %v808
      %v898 = vpop.f32.mrf.mxu0
      %v899 = vadd.f32 0.0, %v898
      %v900 = vpop.f32.mrf.mxu0
      %901 = vmatprep.mubr.f32.mxu0 0.0
      %902 = vmatmul.mubr.f32.gmra.mxu0 %v809
      %v903 = vpop.f32.mrf.mxu0
      %v904 = vadd.f32 0.0, %v903
      %v905 = vpop.f32.mrf.mxu0
      %906 = vdwg.mxu0
      %v907 = vadd.f32 %v802, %v894
      %v908 = vadd.f32 %v803, %v899
      %v909 = vadd.f32 %v804, %v904
      %s910 = sadd.s32 %s287, 8
      %s911 = scalar_lea.vmem %s264, %s910
      %v912 = vld [vmem:[%s911] sm:$0xff]
      %v913 = vld [vmem:[%s911 + $0x8] sm:$0xff]
      %v914 = vld [vmem:[%s911 + $0x10] sm:$0xff]
      %s915 = scalar_lea.vmem %s1, 768
      %v916 = vld [vmem:[%s915] sm:$0xff]
      %v917 = vld [vmem:[%s915 + $0x8] sm:$0xff]
      %v918 = vld [vmem:[%s915 + $0x10] sm:$0xff]
      %v919 = vld [vmem:[%s915 + $0x18] sm:$0xff]
      %v920 = vld [vmem:[%s915 + $0x20] sm:$0xff]
      %v921 = vld [vmem:[%s915 + $0x28] sm:$0xff]
      %v922 = vld [vmem:[%s915 + $0x30] sm:$0xff]
      %v923 = vld [vmem:[%s915 + $0x38] sm:$0xff]
      %v924 = vld [vmem:[%s915 + $0x40] sm:$0xff]
      %v925 = vld [vmem:[%s915 + $0x48] sm:$0xff]
      %v926 = vld [vmem:[%s915 + $0x50] sm:$0xff]
      %v927 = vld [vmem:[%s915 + $0x58] sm:$0xff]
      %v928 = vld [vmem:[%s915 + $0x60] sm:$0xff]
      %v929 = vld [vmem:[%s915 + $0x68] sm:$0xff]
      %v930 = vld [vmem:[%s915 + $0x70] sm:$0xff]
      %v931 = vld [vmem:[%s915 + $0x78] sm:$0xff]
      %932 = vmatprep.subr.mxu0 0.0
      %933 = vmatpush1.msra.mxu0 %v931
      %934 = vmatprep.subr.mxu0 0.0
      %935 = vmatpush1.msra.mxu0 %v930
      %936 = vmatprep.subr.mxu0 0.0
      %937 = vmatpush1.msra.mxu0 %v929
      %938 = vmatprep.subr.mxu0 0.0
      %939 = vmatpush1.msra.mxu0 %v928
      %940 = vmatprep.subr.mxu0 0.0
      %941 = vmatpush1.msra.mxu0 %v927
      %942 = vmatprep.subr.mxu0 0.0
      %943 = vmatpush1.msra.mxu0 %v926
      %944 = vmatprep.subr.mxu0 0.0
      %945 = vmatpush1.msra.mxu0 %v925
      %946 = vmatprep.subr.mxu0 0.0
      %947 = vmatpush1.msra.mxu0 %v924
      %948 = vmatprep.subr.mxu0 0.0
      %949 = vmatpush1.msra.mxu0 %v923
      %950 = vmatprep.subr.mxu0 0.0
      %951 = vmatpush1.msra.mxu0 %v922
      %952 = vmatprep.subr.mxu0 0.0
      %953 = vmatpush1.msra.mxu0 %v921
      %954 = vmatprep.subr.mxu0 0.0
      %955 = vmatpush1.msra.mxu0 %v920
      %956 = vmatprep.subr.mxu0 0.0
      %957 = vmatpush1.msra.mxu0 %v919
      %958 = vmatprep.subr.mxu0 0.0
      %959 = vmatpush1.msra.mxu0 %v918
      %960 = vmatprep.subr.mxu0 0.0
      %961 = vmatpush1.msra.mxu0 %v917
      %962 = vmatprep.subr.mxu0 0.0
      %963 = vmatpush1.msra.mxu0 %v916
      %964 = vmatprep.subr.mxu0 0.0
      %965 = vmatpush2.msra.mxu0 0.0
      %966 = vmatprep.subr.mxu0 0.0
      %967 = vmatpush2.msra.mxu0 0.0
      %968 = vmatprep.subr.mxu0 0.0
      %969 = vmatpush2.msra.mxu0 0.0
      %970 = vmatprep.subr.mxu0 0.0
      %971 = vmatpush2.msra.mxu0 0.0
      %972 = vmatprep.subr.mxu0 0.0
      %973 = vmatpush2.msra.mxu0 0.0
      %974 = vmatprep.subr.mxu0 0.0
      %975 = vmatpush2.msra.mxu0 0.0
      %976 = vmatprep.subr.mxu0 0.0
      %977 = vmatpush2.msra.mxu0 0.0
      %978 = vmatprep.subr.mxu0 0.0
      %979 = vmatpush2.msra.mxu0 0.0
      %980 = vmatprep.subr.mxu0 0.0
      %981 = vmatpush2.msra.mxu0 0.0
      %982 = vmatprep.subr.mxu0 0.0
      %983 = vmatpush2.msra.mxu0 0.0
      %984 = vmatprep.subr.mxu0 0.0
      %985 = vmatpush2.msra.mxu0 0.0
      %986 = vmatprep.subr.mxu0 0.0
      %987 = vmatpush2.msra.mxu0 0.0
      %988 = vmatprep.subr.mxu0 0.0
      %989 = vmatpush2.msra.mxu0 0.0
      %990 = vmatprep.subr.mxu0 0.0
      %991 = vmatpush2.msra.mxu0 0.0
      %992 = vmatprep.subr.mxu0 0.0
      %993 = vmatpush2.msra.mxu0 0.0
      %994 = vmatprep.subr.mxu0 0.0
      %995 = vmatpush2.msra.mxu0 0.0
      %996 = vmatprep.mubr.f32.mxu0 0.0
      %997 = vmatmul.mubr.f32.gmra.mxu0 %v912
      %v998 = vpop.f32.mrf.mxu0
      %v999 = vadd.f32 0.0, %v998
      %v1000 = vpop.f32.mrf.mxu0
      %1001 = vmatprep.mubr.f32.mxu0 0.0
      %1002 = vmatmul.mubr.f32.gmra.mxu0 %v913
      %v1003 = vpop.f32.mrf.mxu0
      %v1004 = vadd.f32 0.0, %v1003
      %v1005 = vpop.f32.mrf.mxu0
      %1006 = vmatprep.mubr.f32.mxu0 0.0
      %1007 = vmatmul.mubr.f32.gmra.mxu0 %v914
      %v1008 = vpop.f32.mrf.mxu0
      %v1009 = vadd.f32 0.0, %v1008
      %v1010 = vpop.f32.mrf.mxu0
      %1011 = vdwg.mxu0
      %v1012 = vadd.f32 %v907, %v999
      %v1013 = vadd.f32 %v908, %v1004
      %v1014 = vadd.f32 %v909, %v1009
      %s1015 = sadd.s32 %s287, 9
      %s1016 = scalar_lea.vmem %s264, %s1015
      %v1017 = vld [vmem:[%s1016] sm:$0xff]
      %v1018 = vld [vmem:[%s1016 + $0x8] sm:$0xff]
      %v1019 = vld [vmem:[%s1016 + $0x10] sm:$0xff]
      %s1020 = scalar_lea.vmem %s1, 896
      %v1021 = vld [vmem:[%s1020] sm:$0xff]
      %v1022 = vld [vmem:[%s1020 + $0x8] sm:$0xff]
      %v1023 = vld [vmem:[%s1020 + $0x10] sm:$0xff]
      %v1024 = vld [vmem:[%s1020 + $0x18] sm:$0xff]
      %v1025 = vld [vmem:[%s1020 + $0x20] sm:$0xff]
      %v1026 = vld [vmem:[%s1020 + $0x28] sm:$0xff]
      %v1027 = vld [vmem:[%s1020 + $0x30] sm:$0xff]
      %v1028 = vld [vmem:[%s1020 + $0x38] sm:$0xff]
      %v1029 = vld [vmem:[%s1020 + $0x40] sm:$0xff]
      %v1030 = vld [vmem:[%s1020 + $0x48] sm:$0xff]
      %v1031 = vld [vmem:[%s1020 + $0x50] sm:$0xff]
      %v1032 = vld [vmem:[%s1020 + $0x58] sm:$0xff]
      %v1033 = vld [vmem:[%s1020 + $0x60] sm:$0xff]
      %v1034 = vld [vmem:[%s1020 + $0x68] sm:$0xff]
      %v1035 = vld [vmem:[%s1020 + $0x70] sm:$0xff]
      %v1036 = vld [vmem:[%s1020 + $0x78] sm:$0xff]
      %1037 = vmatprep.subr.mxu0 0.0
      %1038 = vmatpush1.msra.mxu0 %v1036
      %1039 = vmatprep.subr.mxu0 0.0
      %1040 = vmatpush1.msra.mxu0 %v1035
      %1041 = vmatprep.subr.mxu0 0.0
      %1042 = vmatpush1.msra.mxu0 %v1034
      %1043 = vmatprep.subr.mxu0 0.0
      %1044 = vmatpush1.msra.mxu0 %v1033
      %1045 = vmatprep.subr.mxu0 0.0
      %1046 = vmatpush1.msra.mxu0 %v1032
      %1047 = vmatprep.subr.mxu0 0.0
      %1048 = vmatpush1.msra.mxu0 %v1031
      %1049 = vmatprep.subr.mxu0 0.0
      %1050 = vmatpush1.msra.mxu0 %v1030
      %1051 = vmatprep.subr.mxu0 0.0
      %1052 = vmatpush1.msra.mxu0 %v1029
      %1053 = vmatprep.subr.mxu0 0.0
      %1054 = vmatpush1.msra.mxu0 %v1028
      %1055 = vmatprep.subr.mxu0 0.0
      %1056 = vmatpush1.msra.mxu0 %v1027
      %1057 = vmatprep.subr.mxu0 0.0
      %1058 = vmatpush1.msra.mxu0 %v1026
      %1059 = vmatprep.subr.mxu0 0.0
      %1060 = vmatpush1.msra.mxu0 %v1025
      %1061 = vmatprep.subr.mxu0 0.0
      %1062 = vmatpush1.msra.mxu0 %v1024
      %1063 = vmatprep.subr.mxu0 0.0
      %1064 = vmatpush1.msra.mxu0 %v1023
      %1065 = vmatprep.subr.mxu0 0.0
      %1066 = vmatpush1.msra.mxu0 %v1022
      %1067 = vmatprep.subr.mxu0 0.0
      %1068 = vmatpush1.msra.mxu0 %v1021
      %1069 = vmatprep.subr.mxu0 0.0
      %1070 = vmatpush2.msra.mxu0 0.0
      %1071 = vmatprep.subr.mxu0 0.0
      %1072 = vmatpush2.msra.mxu0 0.0
      %1073 = vmatprep.subr.mxu0 0.0
      %1074 = vmatpush2.msra.mxu0 0.0
      %1075 = vmatprep.subr.mxu0 0.0
      %1076 = vmatpush2.msra.mxu0 0.0
      %1077 = vmatprep.subr.mxu0 0.0
      %1078 = vmatpush2.msra.mxu0 0.0
      %1079 = vmatprep.subr.mxu0 0.0
      %1080 = vmatpush2.msra.mxu0 0.0
      %1081 = vmatprep.subr.mxu0 0.0
      %1082 = vmatpush2.msra.mxu0 0.0
      %1083 = vmatprep.subr.mxu0 0.0
      %1084 = vmatpush2.msra.mxu0 0.0
      %1085 = vmatprep.subr.mxu0 0.0
      %1086 = vmatpush2.msra.mxu0 0.0
      %1087 = vmatprep.subr.mxu0 0.0
      %1088 = vmatpush2.msra.mxu0 0.0
      %1089 = vmatprep.subr.mxu0 0.0
      %1090 = vmatpush2.msra.mxu0 0.0
      %1091 = vmatprep.subr.mxu0 0.0
      %1092 = vmatpush2.msra.mxu0 0.0
      %1093 = vmatprep.subr.mxu0 0.0
      %1094 = vmatpush2.msra.mxu0 0.0
      %1095 = vmatprep.subr.mxu0 0.0
      %1096 = vmatpush2.msra.mxu0 0.0
      %1097 = vmatprep.subr.mxu0 0.0
      %1098 = vmatpush2.msra.mxu0 0.0
      %1099 = vmatprep.subr.mxu0 0.0
      %1100 = vmatpush2.msra.mxu0 0.0
      %1101 = vmatprep.mubr.f32.mxu0 0.0
      %1102 = vmatmul.mubr.f32.gmra.mxu0 %v1017
      %v1103 = vpop.f32.mrf.mxu0
      %v1104 = vadd.f32 0.0, %v1103
      %v1105 = vpop.f32.mrf.mxu0
      %1106 = vmatprep.mubr.f32.mxu0 0.0
      %1107 = vmatmul.mubr.f32.gmra.mxu0 %v1018
      %v1108 = vpop.f32.mrf.mxu0
      %v1109 = vadd.f32 0.0, %v1108
      %v1110 = vpop.f32.mrf.mxu0
      %1111 = vmatprep.mubr.f32.mxu0 0.0
      %1112 = vmatmul.mubr.f32.gmra.mxu0 %v1019
      %v1113 = vpop.f32.mrf.mxu0
      %v1114 = vadd.f32 0.0, %v1113
      %v1115 = vpop.f32.mrf.mxu0
      %1116 = vdwg.mxu0
      %v1117 = vadd.f32 %v1012, %v1104
      %v1118 = vadd.f32 %v1013, %v1109
      %v1119 = vadd.f32 %v1014, %v1114
      %s1120 = sadd.s32 %s287, 12
      %s1121 = scalar_lea.vmem %s264, %s1120
      %v1122 = vld [vmem:[%s1121] sm:$0xff]
      %v1123 = vld [vmem:[%s1121 + $0x8] sm:$0xff]
      %v1124 = vld [vmem:[%s1121 + $0x10] sm:$0xff]
      %s1125 = scalar_lea.vmem %s1, 1024
      %v1126 = vld [vmem:[%s1125] sm:$0xff]
      %v1127 = vld [vmem:[%s1125 + $0x8] sm:$0xff]
      %v1128 = vld [vmem:[%s1125 + $0x10] sm:$0xff]
      %v1129 = vld [vmem:[%s1125 + $0x18] sm:$0xff]
      %v1130 = vld [vmem:[%s1125 + $0x20] sm:$0xff]
      %v1131 = vld [vmem:[%s1125 + $0x28] sm:$0xff]
      %v1132 = vld [vmem:[%s1125 + $0x30] sm:$0xff]
      %v1133 = vld [vmem:[%s1125 + $0x38] sm:$0xff]
      %v1134 = vld [vmem:[%s1125 + $0x40] sm:$0xff]
      %v1135 = vld [vmem:[%s1125 + $0x48] sm:$0xff]
      %v1136 = vld [vmem:[%s1125 + $0x50] sm:$0xff]
      %v1137 = vld [vmem:[%s1125 + $0x58] sm:$0xff]
      %v1138 = vld [vmem:[%s1125 + $0x60] sm:$0xff]
      %v1139 = vld [vmem:[%s1125 + $0x68] sm:$0xff]
      %v1140 = vld [vmem:[%s1125 + $0x70] sm:$0xff]
      %v1141 = vld [vmem:[%s1125 + $0x78] sm:$0xff]
      %1142 = vmatprep.subr.mxu0 0.0
      %1143 = vmatpush1.msra.mxu0 %v1141
      %1144 = vmatprep.subr.mxu0 0.0
      %1145 = vmatpush1.msra.mxu0 %v1140
      %1146 = vmatprep.subr.mxu0 0.0
      %1147 = vmatpush1.msra.mxu0 %v1139
      %1148 = vmatprep.subr.mxu0 0.0
      %1149 = vmatpush1.msra.mxu0 %v1138
      %1150 = vmatprep.subr.mxu0 0.0
      %1151 = vmatpush1.msra.mxu0 %v1137
      %1152 = vmatprep.subr.mxu0 0.0
      %1153 = vmatpush1.msra.mxu0 %v1136
      %1154 = vmatprep.subr.mxu0 0.0
      %1155 = vmatpush1.msra.mxu0 %v1135
      %1156 = vmatprep.subr.mxu0 0.0
      %1157 = vmatpush1.msra.mxu0 %v1134
      %1158 = vmatprep.subr.mxu0 0.0
      %1159 = vmatpush1.msra.mxu0 %v1133
      %1160 = vmatprep.subr.mxu0 0.0
      %1161 = vmatpush1.msra.mxu0 %v1132
      %1162 = vmatprep.subr.mxu0 0.0
      %1163 = vmatpush1.msra.mxu0 %v1131
      %1164 = vmatprep.subr.mxu0 0.0
      %1165 = vmatpush1.msra.mxu0 %v1130
      %1166 = vmatprep.subr.mxu0 0.0
      %1167 = vmatpush1.msra.mxu0 %v1129
      %1168 = vmatprep.subr.mxu0 0.0
      %1169 = vmatpush1.msra.mxu0 %v1128
      %1170 = vmatprep.subr.mxu0 0.0
      %1171 = vmatpush1.msra.mxu0 %v1127
      %1172 = vmatprep.subr.mxu0 0.0
      %1173 = vmatpush1.msra.mxu0 %v1126
      %1174 = vmatprep.subr.mxu0 0.0
      %1175 = vmatpush2.msra.mxu0 0.0
      %1176 = vmatprep.subr.mxu0 0.0
      %1177 = vmatpush2.msra.mxu0 0.0
      %1178 = vmatprep.subr.mxu0 0.0
      %1179 = vmatpush2.msra.mxu0 0.0
      %1180 = vmatprep.subr.mxu0 0.0
      %1181 = vmatpush2.msra.mxu0 0.0
      %1182 = vmatprep.subr.mxu0 0.0
      %1183 = vmatpush2.msra.mxu0 0.0
      %1184 = vmatprep.subr.mxu0 0.0
      %1185 = vmatpush2.msra.mxu0 0.0
      %1186 = vmatprep.subr.mxu0 0.0
      %1187 = vmatpush2.msra.mxu0 0.0
      %1188 = vmatprep.subr.mxu0 0.0
      %1189 = vmatpush2.msra.mxu0 0.0
      %1190 = vmatprep.subr.mxu0 0.0
      %1191 = vmatpush2.msra.mxu0 0.0
      %1192 = vmatprep.subr.mxu0 0.0
      %1193 = vmatpush2.msra.mxu0 0.0
      %1194 = vmatprep.subr.mxu0 0.0
      %1195 = vmatpush2.msra.mxu0 0.0
      %1196 = vmatprep.subr.mxu0 0.0
      %1197 = vmatpush2.msra.mxu0 0.0
      %1198 = vmatprep.subr.mxu0 0.0
      %1199 = vmatpush2.msra.mxu0 0.0
      %1200 = vmatprep.subr.mxu0 0.0
      %1201 = vmatpush2.msra.mxu0 0.0
      %1202 = vmatprep.subr.mxu0 0.0
      %1203 = vmatpush2.msra.mxu0 0.0
      %1204 = vmatprep.subr.mxu0 0.0
      %1205 = vmatpush2.msra.mxu0 0.0
      %1206 = vmatprep.mubr.f32.mxu0 0.0
      %1207 = vmatmul.mubr.f32.gmra.mxu0 %v1122
      %v1208 = vpop.f32.mrf.mxu0
      %v1209 = vadd.f32 0.0, %v1208
      %v1210 = vpop.f32.mrf.mxu0
      %1211 = vmatprep.mubr.f32.mxu0 0.0
      %1212 = vmatmul.mubr.f32.gmra.mxu0 %v1123
      %v1213 = vpop.f32.mrf.mxu0
      %v1214 = vadd.f32 0.0, %v1213
      %v1215 = vpop.f32.mrf.mxu0
      %1216 = vmatprep.mubr.f32.mxu0 0.0
      %1217 = vmatmul.mubr.f32.gmra.mxu0 %v1124
      %v1218 = vpop.f32.mrf.mxu0
      %v1219 = vadd.f32 0.0, %v1218
      %v1220 = vpop.f32.mrf.mxu0
      %1221 = vdwg.mxu0
      %v1222 = vadd.f32 %v1117, %v1209
      %v1223 = vadd.f32 %v1118, %v1214
      %v1224 = vadd.f32 %v1119, %v1219
      %s1225 = sadd.s32 %s287, 13
      %s1226 = scalar_lea.vmem %s264, %s1225
      %v1227 = vld [vmem:[%s1226] sm:$0xff]
      %v1228 = vld [vmem:[%s1226 + $0x8] sm:$0xff]
      %v1229 = vld [vmem:[%s1226 + $0x10] sm:$0xff]
      %s1230 = scalar_lea.vmem %s1, 1152
      %v1231 = vld [vmem:[%s1230] sm:$0xff]
      %v1232 = vld [vmem:[%s1230 + $0x8] sm:$0xff]
      %v1233 = vld [vmem:[%s1230 + $0x10] sm:$0xff]
      %v1234 = vld [vmem:[%s1230 + $0x18] sm:$0xff]
      %v1235 = vld [vmem:[%s1230 + $0x20] sm:$0xff]
      %v1236 = vld [vmem:[%s1230 + $0x28] sm:$0xff]
      %v1237 = vld [vmem:[%s1230 + $0x30] sm:$0xff]
      %v1238 = vld [vmem:[%s1230 + $0x38] sm:$0xff]
      %v1239 = vld [vmem:[%s1230 + $0x40] sm:$0xff]
      %v1240 = vld [vmem:[%s1230 + $0x48] sm:$0xff]
      %v1241 = vld [vmem:[%s1230 + $0x50] sm:$0xff]
      %v1242 = vld [vmem:[%s1230 + $0x58] sm:$0xff]
      %v1243 = vld [vmem:[%s1230 + $0x60] sm:$0xff]
      %v1244 = vld [vmem:[%s1230 + $0x68] sm:$0xff]
      %v1245 = vld [vmem:[%s1230 + $0x70] sm:$0xff]
      %v1246 = vld [vmem:[%s1230 + $0x78] sm:$0xff]
      %1247 = vmatprep.subr.mxu0 0.0
      %1248 = vmatpush1.msra.mxu0 %v1246
      %1249 = vmatprep.subr.mxu0 0.0
      %1250 = vmatpush1.msra.mxu0 %v1245
      %1251 = vmatprep.subr.mxu0 0.0
      %1252 = vmatpush1.msra.mxu0 %v1244
      %1253 = vmatprep.subr.mxu0 0.0
      %1254 = vmatpush1.msra.mxu0 %v1243
      %1255 = vmatprep.subr.mxu0 0.0
      %1256 = vmatpush1.msra.mxu0 %v1242
      %1257 = vmatprep.subr.mxu0 0.0
      %1258 = vmatpush1.msra.mxu0 %v1241
      %1259 = vmatprep.subr.mxu0 0.0
      %1260 = vmatpush1.msra.mxu0 %v1240
      %1261 = vmatprep.subr.mxu0 0.0
      %1262 = vmatpush1.msra.mxu0 %v1239
      %1263 = vmatprep.subr.mxu0 0.0
      %1264 = vmatpush1.msra.mxu0 %v1238
      %1265 = vmatprep.subr.mxu0 0.0
      %1266 = vmatpush1.msra.mxu0 %v1237
      %1267 = vmatprep.subr.mxu0 0.0
      %1268 = vmatpush1.msra.mxu0 %v1236
      %1269 = vmatprep.subr.mxu0 0.0
      %1270 = vmatpush1.msra.mxu0 %v1235
      %1271 = vmatprep.subr.mxu0 0.0
      %1272 = vmatpush1.msra.mxu0 %v1234
      %1273 = vmatprep.subr.mxu0 0.0
      %1274 = vmatpush1.msra.mxu0 %v1233
      %1275 = vmatprep.subr.mxu0 0.0
      %1276 = vmatpush1.msra.mxu0 %v1232
      %1277 = vmatprep.subr.mxu0 0.0
      %1278 = vmatpush1.msra.mxu0 %v1231
      %1279 = vmatprep.subr.mxu0 0.0
      %1280 = vmatpush2.msra.mxu0 0.0
      %1281 = vmatprep.subr.mxu0 0.0
      %1282 = vmatpush2.msra.mxu0 0.0
      %1283 = vmatprep.subr.mxu0 0.0
      %1284 = vmatpush2.msra.mxu0 0.0
      %1285 = vmatprep.subr.mxu0 0.0
      %1286 = vmatpush2.msra.mxu0 0.0
      %1287 = vmatprep.subr.mxu0 0.0
      %1288 = vmatpush2.msra.mxu0 0.0
      %1289 = vmatprep.subr.mxu0 0.0
      %1290 = vmatpush2.msra.mxu0 0.0
      %1291 = vmatprep.subr.mxu0 0.0
      %1292 = vmatpush2.msra.mxu0 0.0
      %1293 = vmatprep.subr.mxu0 0.0
      %1294 = vmatpush2.msra.mxu0 0.0
      %1295 = vmatprep.subr.mxu0 0.0
      %1296 = vmatpush2.msra.mxu0 0.0
      %1297 = vmatprep.subr.mxu0 0.0
      %1298 = vmatpush2.msra.mxu0 0.0
      %1299 = vmatprep.subr.mxu0 0.0
      %1300 = vmatpush2.msra.mxu0 0.0
      %1301 = vmatprep.subr.mxu0 0.0
      %1302 = vmatpush2.msra.mxu0 0.0
      %1303 = vmatprep.subr.mxu0 0.0
      %1304 = vmatpush2.msra.mxu0 0.0
      %1305 = vmatprep.subr.mxu0 0.0
      %1306 = vmatpush2.msra.mxu0 0.0
      %1307 = vmatprep.subr.mxu0 0.0
      %1308 = vmatpush2.msra.mxu0 0.0
      %1309 = vmatprep.subr.mxu0 0.0
      %1310 = vmatpush2.msra.mxu0 0.0
      %1311 = vmatprep.mubr.f32.mxu0 0.0
      %1312 = vmatmul.mubr.f32.gmra.mxu0 %v1227
      %v1313 = vpop.f32.mrf.mxu0
      %v1314 = vadd.f32 0.0, %v1313
      %v1315 = vpop.f32.mrf.mxu0
      %1316 = vmatprep.mubr.f32.mxu0 0.0
      %1317 = vmatmul.mubr.f32.gmra.mxu0 %v1228
      %v1318 = vpop.f32.mrf.mxu0
      %v1319 = vadd.f32 0.0, %v1318
      %v1320 = vpop.f32.mrf.mxu0
      %1321 = vmatprep.mubr.f32.mxu0 0.0
      %1322 = vmatmul.mubr.f32.gmra.mxu0 %v1229
      %v1323 = vpop.f32.mrf.mxu0
      %v1324 = vadd.f32 0.0, %v1323
      %v1325 = vpop.f32.mrf.mxu0
      %1326 = vdwg.mxu0
      %v1327 = vadd.f32 %v1222, %v1314
      %v1328 = vadd.f32 %v1223, %v1319
      %v1329 = vadd.f32 %v1224, %v1324
      %s1330 = sadd.s32 %s287, 14
      %s1331 = scalar_lea.vmem %s264, %s1330
      %v1332 = vld [vmem:[%s1331] sm:$0xff]
      %v1333 = vld [vmem:[%s1331 + $0x8] sm:$0xff]
      %v1334 = vld [vmem:[%s1331 + $0x10] sm:$0xff]
      %s1335 = scalar_lea.vmem %s1, 1280
      %v1336 = vld [vmem:[%s1335] sm:$0xff]
      %v1337 = vld [vmem:[%s1335 + $0x8] sm:$0xff]
      %v1338 = vld [vmem:[%s1335 + $0x10] sm:$0xff]
      %v1339 = vld [vmem:[%s1335 + $0x18] sm:$0xff]
      %v1340 = vld [vmem:[%s1335 + $0x20] sm:$0xff]
      %v1341 = vld [vmem:[%s1335 + $0x28] sm:$0xff]
      %v1342 = vld [vmem:[%s1335 + $0x30] sm:$0xff]
      %v1343 = vld [vmem:[%s1335 + $0x38] sm:$0xff]
      %v1344 = vld [vmem:[%s1335 + $0x40] sm:$0xff]
      %v1345 = vld [vmem:[%s1335 + $0x48] sm:$0xff]
      %v1346 = vld [vmem:[%s1335 + $0x50] sm:$0xff]
      %v1347 = vld [vmem:[%s1335 + $0x58] sm:$0xff]
      %v1348 = vld [vmem:[%s1335 + $0x60] sm:$0xff]
      %v1349 = vld [vmem:[%s1335 + $0x68] sm:$0xff]
      %v1350 = vld [vmem:[%s1335 + $0x70] sm:$0xff]
      %v1351 = vld [vmem:[%s1335 + $0x78] sm:$0xff]
      %1352 = vmatprep.subr.mxu0 0.0
      %1353 = vmatpush1.msra.mxu0 %v1351
      %1354 = vmatprep.subr.mxu0 0.0
      %1355 = vmatpush1.msra.mxu0 %v1350
      %1356 = vmatprep.subr.mxu0 0.0
      %1357 = vmatpush1.msra.mxu0 %v1349
      %1358 = vmatprep.subr.mxu0 0.0
      %1359 = vmatpush1.msra.mxu0 %v1348
      %1360 = vmatprep.subr.mxu0 0.0
      %1361 = vmatpush1.msra.mxu0 %v1347
      %1362 = vmatprep.subr.mxu0 0.0
      %1363 = vmatpush1.msra.mxu0 %v1346
      %1364 = vmatprep.subr.mxu0 0.0
      %1365 = vmatpush1.msra.mxu0 %v1345
      %1366 = vmatprep.subr.mxu0 0.0
      %1367 = vmatpush1.msra.mxu0 %v1344
      %1368 = vmatprep.subr.mxu0 0.0
      %1369 = vmatpush1.msra.mxu0 %v1343
      %1370 = vmatprep.subr.mxu0 0.0
      %1371 = vmatpush1.msra.mxu0 %v1342
      %1372 = vmatprep.subr.mxu0 0.0
      %1373 = vmatpush1.msra.mxu0 %v1341
      %1374 = vmatprep.subr.mxu0 0.0
      %1375 = vmatpush1.msra.mxu0 %v1340
      %1376 = vmatprep.subr.mxu0 0.0
      %1377 = vmatpush1.msra.mxu0 %v1339
      %1378 = vmatprep.subr.mxu0 0.0
      %1379 = vmatpush1.msra.mxu0 %v1338
      %1380 = vmatprep.subr.mxu0 0.0
      %1381 = vmatpush1.msra.mxu0 %v1337
      %1382 = vmatprep.subr.mxu0 0.0
      %1383 = vmatpush1.msra.mxu0 %v1336
      %1384 = vmatprep.subr.mxu0 0.0
      %1385 = vmatpush2.msra.mxu0 0.0
      %1386 = vmatprep.subr.mxu0 0.0
      %1387 = vmatpush2.msra.mxu0 0.0
      %1388 = vmatprep.subr.mxu0 0.0
      %1389 = vmatpush2.msra.mxu0 0.0
      %1390 = vmatprep.subr.mxu0 0.0
      %1391 = vmatpush2.msra.mxu0 0.0
      %1392 = vmatprep.subr.mxu0 0.0
      %1393 = vmatpush2.msra.mxu0 0.0
      %1394 = vmatprep.subr.mxu0 0.0
      %1395 = vmatpush2.msra.mxu0 0.0
      %1396 = vmatprep.subr.mxu0 0.0
      %1397 = vmatpush2.msra.mxu0 0.0
      %1398 = vmatprep.subr.mxu0 0.0
      %1399 = vmatpush2.msra.mxu0 0.0
      %1400 = vmatprep.subr.mxu0 0.0
      %1401 = vmatpush2.msra.mxu0 0.0
      %1402 = vmatprep.subr.mxu0 0.0
      %1403 = vmatpush2.msra.mxu0 0.0
      %1404 = vmatprep.subr.mxu0 0.0
      %1405 = vmatpush2.msra.mxu0 0.0
      %1406 = vmatprep.subr.mxu0 0.0
      %1407 = vmatpush2.msra.mxu0 0.0
      %1408 = vmatprep.subr.mxu0 0.0
      %1409 = vmatpush2.msra.mxu0 0.0
      %1410 = vmatprep.subr.mxu0 0.0
      %1411 = vmatpush2.msra.mxu0 0.0
      %1412 = vmatprep.subr.mxu0 0.0
      %1413 = vmatpush2.msra.mxu0 0.0
      %1414 = vmatprep.subr.mxu0 0.0
      %1415 = vmatpush2.msra.mxu0 0.0
      %1416 = vmatprep.mubr.f32.mxu0 0.0
      %1417 = vmatmul.mubr.f32.gmra.mxu0 %v1332
      %v1418 = vpop.f32.mrf.mxu0
      %v1419 = vadd.f32 0.0, %v1418
      %v1420 = vpop.f32.mrf.mxu0
      %1421 = vmatprep.mubr.f32.mxu0 0.0
      %1422 = vmatmul.mubr.f32.gmra.mxu0 %v1333
      %v1423 = vpop.f32.mrf.mxu0
      %v1424 = vadd.f32 0.0, %v1423
      %v1425 = vpop.f32.mrf.mxu0
      %1426 = vmatprep.mubr.f32.mxu0 0.0
      %1427 = vmatmul.mubr.f32.gmra.mxu0 %v1334
      %v1428 = vpop.f32.mrf.mxu0
      %v1429 = vadd.f32 0.0, %v1428
      %v1430 = vpop.f32.mrf.mxu0
      %1431 = vdwg.mxu0
      %v1432 = vadd.f32 %v1327, %v1419
      %v1433 = vadd.f32 %v1328, %v1424
      %v1434 = vadd.f32 %v1329, %v1429
      %s1435 = sadd.s32 %s287, 15
      %s1436 = scalar_lea.vmem %s264, %s1435
      %v1437 = vld [vmem:[%s1436] sm:$0xff]
      %v1438 = vld [vmem:[%s1436 + $0x8] sm:$0xff]
      %v1439 = vld [vmem:[%s1436 + $0x10] sm:$0xff]
      %s1440 = scalar_lea.vmem %s1, 1408
      %v1441 = vld [vmem:[%s1440] sm:$0xff]
      %v1442 = vld [vmem:[%s1440 + $0x8] sm:$0xff]
      %v1443 = vld [vmem:[%s1440 + $0x10] sm:$0xff]
      %v1444 = vld [vmem:[%s1440 + $0x18] sm:$0xff]
      %v1445 = vld [vmem:[%s1440 + $0x20] sm:$0xff]
      %v1446 = vld [vmem:[%s1440 + $0x28] sm:$0xff]
      %v1447 = vld [vmem:[%s1440 + $0x30] sm:$0xff]
      %v1448 = vld [vmem:[%s1440 + $0x38] sm:$0xff]
      %v1449 = vld [vmem:[%s1440 + $0x40] sm:$0xff]
      %v1450 = vld [vmem:[%s1440 + $0x48] sm:$0xff]
      %v1451 = vld [vmem:[%s1440 + $0x50] sm:$0xff]
      %v1452 = vld [vmem:[%s1440 + $0x58] sm:$0xff]
      %v1453 = vld [vmem:[%s1440 + $0x60] sm:$0xff]
      %v1454 = vld [vmem:[%s1440 + $0x68] sm:$0xff]
      %v1455 = vld [vmem:[%s1440 + $0x70] sm:$0xff]
      %v1456 = vld [vmem:[%s1440 + $0x78] sm:$0xff]
      %1457 = vmatprep.subr.mxu0 0.0
      %1458 = vmatpush1.msra.mxu0 %v1456
      %1459 = vmatprep.subr.mxu0 0.0
      %1460 = vmatpush1.msra.mxu0 %v1455
      %1461 = vmatprep.subr.mxu0 0.0
      %1462 = vmatpush1.msra.mxu0 %v1454
      %1463 = vmatprep.subr.mxu0 0.0
      %1464 = vmatpush1.msra.mxu0 %v1453
      %1465 = vmatprep.subr.mxu0 0.0
      %1466 = vmatpush1.msra.mxu0 %v1452
      %1467 = vmatprep.subr.mxu0 0.0
      %1468 = vmatpush1.msra.mxu0 %v1451
      %1469 = vmatprep.subr.mxu0 0.0
      %1470 = vmatpush1.msra.mxu0 %v1450
      %1471 = vmatprep.subr.mxu0 0.0
      %1472 = vmatpush1.msra.mxu0 %v1449
      %1473 = vmatprep.subr.mxu0 0.0
      %1474 = vmatpush1.msra.mxu0 %v1448
      %1475 = vmatprep.subr.mxu0 0.0
      %1476 = vmatpush1.msra.mxu0 %v1447
      %1477 = vmatprep.subr.mxu0 0.0
      %1478 = vmatpush1.msra.mxu0 %v1446
      %1479 = vmatprep.subr.mxu0 0.0
      %1480 = vmatpush1.msra.mxu0 %v1445
      %1481 = vmatprep.subr.mxu0 0.0
      %1482 = vmatpush1.msra.mxu0 %v1444
      %1483 = vmatprep.subr.mxu0 0.0
      %1484 = vmatpush1.msra.mxu0 %v1443
      %1485 = vmatprep.subr.mxu0 0.0
      %1486 = vmatpush1.msra.mxu0 %v1442
      %1487 = vmatprep.subr.mxu0 0.0
      %1488 = vmatpush1.msra.mxu0 %v1441
      %1489 = vmatprep.subr.mxu0 0.0
      %1490 = vmatpush2.msra.mxu0 0.0
      %1491 = vmatprep.subr.mxu0 0.0
      %1492 = vmatpush2.msra.mxu0 0.0
      %1493 = vmatprep.subr.mxu0 0.0
      %1494 = vmatpush2.msra.mxu0 0.0
      %1495 = vmatprep.subr.mxu0 0.0
      %1496 = vmatpush2.msra.mxu0 0.0
      %1497 = vmatprep.subr.mxu0 0.0
      %1498 = vmatpush2.msra.mxu0 0.0
      %1499 = vmatprep.subr.mxu0 0.0
      %1500 = vmatpush2.msra.mxu0 0.0
      %1501 = vmatprep.subr.mxu0 0.0
      %1502 = vmatpush2.msra.mxu0 0.0
      %1503 = vmatprep.subr.mxu0 0.0
      %1504 = vmatpush2.msra.mxu0 0.0
      %1505 = vmatprep.subr.mxu0 0.0
      %1506 = vmatpush2.msra.mxu0 0.0
      %1507 = vmatprep.subr.mxu0 0.0
      %1508 = vmatpush2.msra.mxu0 0.0
      %1509 = vmatprep.subr.mxu0 0.0
      %1510 = vmatpush2.msra.mxu0 0.0
      %1511 = vmatprep.subr.mxu0 0.0
      %1512 = vmatpush2.msra.mxu0 0.0
      %1513 = vmatprep.subr.mxu0 0.0
      %1514 = vmatpush2.msra.mxu0 0.0
      %1515 = vmatprep.subr.mxu0 0.0
      %1516 = vmatpush2.msra.mxu0 0.0
      %1517 = vmatprep.subr.mxu0 0.0
      %1518 = vmatpush2.msra.mxu0 0.0
      %1519 = vmatprep.subr.mxu0 0.0
      %1520 = vmatpush2.msra.mxu0 0.0
      %1521 = vmatprep.mubr.f32.mxu0 0.0
      %1522 = vmatmul.mubr.f32.gmra.mxu0 %v1437
      %v1523 = vpop.f32.mrf.mxu0
      %v1524 = vadd.f32 0.0, %v1523
      %v1525 = vpop.f32.mrf.mxu0
      %1526 = vmatprep.mubr.f32.mxu0 0.0
      %1527 = vmatmul.mubr.f32.gmra.mxu0 %v1438
      %v1528 = vpop.f32.mrf.mxu0
      %v1529 = vadd.f32 0.0, %v1528
      %v1530 = vpop.f32.mrf.mxu0
      %1531 = vmatprep.mubr.f32.mxu0 0.0
      %1532 = vmatmul.mubr.f32.gmra.mxu0 %v1439
      %v1533 = vpop.f32.mrf.mxu0
      %v1534 = vadd.f32 0.0, %v1533
      %v1535 = vpop.f32.mrf.mxu0
      %1536 = vdwg.mxu0
      %v1537 = vadd.f32 %v1432, %v1524
      %v1538 = vadd.f32 %v1433, %v1529
      %v1539 = vadd.f32 %v1434, %v1534
      %s1540 = sadd.s32 %s287, 18
      %s1541 = scalar_lea.vmem %s264, %s1540
      %v1542 = vld [vmem:[%s1541] sm:$0xff]
      %v1543 = vld [vmem:[%s1541 + $0x8] sm:$0xff]
      %v1544 = vld [vmem:[%s1541 + $0x10] sm:$0xff]
      %s1545 = scalar_lea.vmem %s1, 1536
      %v1546 = vld [vmem:[%s1545] sm:$0xff]
      %v1547 = vld [vmem:[%s1545 + $0x8] sm:$0xff]
      %v1548 = vld [vmem:[%s1545 + $0x10] sm:$0xff]
      %v1549 = vld [vmem:[%s1545 + $0x18] sm:$0xff]
      %v1550 = vld [vmem:[%s1545 + $0x20] sm:$0xff]
      %v1551 = vld [vmem:[%s1545 + $0x28] sm:$0xff]
      %v1552 = vld [vmem:[%s1545 + $0x30] sm:$0xff]
      %v1553 = vld [vmem:[%s1545 + $0x38] sm:$0xff]
      %v1554 = vld [vmem:[%s1545 + $0x40] sm:$0xff]
      %v1555 = vld [vmem:[%s1545 + $0x48] sm:$0xff]
      %v1556 = vld [vmem:[%s1545 + $0x50] sm:$0xff]
      %v1557 = vld [vmem:[%s1545 + $0x58] sm:$0xff]
      %v1558 = vld [vmem:[%s1545 + $0x60] sm:$0xff]
      %v1559 = vld [vmem:[%s1545 + $0x68] sm:$0xff]
      %v1560 = vld [vmem:[%s1545 + $0x70] sm:$0xff]
      %v1561 = vld [vmem:[%s1545 + $0x78] sm:$0xff]
      %1562 = vmatprep.subr.mxu0 0.0
      %1563 = vmatpush1.msra.mxu0 %v1561
      %1564 = vmatprep.subr.mxu0 0.0
      %1565 = vmatpush1.msra.mxu0 %v1560
      %1566 = vmatprep.subr.mxu0 0.0
      %1567 = vmatpush1.msra.mxu0 %v1559
      %1568 = vmatprep.subr.mxu0 0.0
      %1569 = vmatpush1.msra.mxu0 %v1558
      %1570 = vmatprep.subr.mxu0 0.0
      %1571 = vmatpush1.msra.mxu0 %v1557
      %1572 = vmatprep.subr.mxu0 0.0
      %1573 = vmatpush1.msra.mxu0 %v1556
      %1574 = vmatprep.subr.mxu0 0.0
      %1575 = vmatpush1.msra.mxu0 %v1555
      %1576 = vmatprep.subr.mxu0 0.0
      %1577 = vmatpush1.msra.mxu0 %v1554
      %1578 = vmatprep.subr.mxu0 0.0
      %1579 = vmatpush1.msra.mxu0 %v1553
      %1580 = vmatprep.subr.mxu0 0.0
      %1581 = vmatpush1.msra.mxu0 %v1552
      %1582 = vmatprep.subr.mxu0 0.0
      %1583 = vmatpush1.msra.mxu0 %v1551
      %1584 = vmatprep.subr.mxu0 0.0
      %1585 = vmatpush1.msra.mxu0 %v1550
      %1586 = vmatprep.subr.mxu0 0.0
      %1587 = vmatpush1.msra.mxu0 %v1549
      %1588 = vmatprep.subr.mxu0 0.0
      %1589 = vmatpush1.msra.mxu0 %v1548
      %1590 = vmatprep.subr.mxu0 0.0
      %1591 = vmatpush1.msra.mxu0 %v1547
      %1592 = vmatprep.subr.mxu0 0.0
      %1593 = vmatpush1.msra.mxu0 %v1546
      %1594 = vmatprep.subr.mxu0 0.0
      %1595 = vmatpush2.msra.mxu0 0.0
      %1596 = vmatprep.subr.mxu0 0.0
      %1597 = vmatpush2.msra.mxu0 0.0
      %1598 = vmatprep.subr.mxu0 0.0
      %1599 = vmatpush2.msra.mxu0 0.0
      %1600 = vmatprep.subr.mxu0 0.0
      %1601 = vmatpush2.msra.mxu0 0.0
      %1602 = vmatprep.subr.mxu0 0.0
      %1603 = vmatpush2.msra.mxu0 0.0
      %1604 = vmatprep.subr.mxu0 0.0
      %1605 = vmatpush2.msra.mxu0 0.0
      %1606 = vmatprep.subr.mxu0 0.0
      %1607 = vmatpush2.msra.mxu0 0.0
      %1608 = vmatprep.subr.mxu0 0.0
      %1609 = vmatpush2.msra.mxu0 0.0
      %1610 = vmatprep.subr.mxu0 0.0
      %1611 = vmatpush2.msra.mxu0 0.0
      %1612 = vmatprep.subr.mxu0 0.0
      %1613 = vmatpush2.msra.mxu0 0.0
      %1614 = vmatprep.subr.mxu0 0.0
      %1615 = vmatpush2.msra.mxu0 0.0
      %1616 = vmatprep.subr.mxu0 0.0
      %1617 = vmatpush2.msra.mxu0 0.0
      %1618 = vmatprep.subr.mxu0 0.0
      %1619 = vmatpush2.msra.mxu0 0.0
      %1620 = vmatprep.subr.mxu0 0.0
      %1621 = vmatpush2.msra.mxu0 0.0
      %1622 = vmatprep.subr.mxu0 0.0
      %1623 = vmatpush2.msra.mxu0 0.0
      %1624 = vmatprep.subr.mxu0 0.0
      %1625 = vmatpush2.msra.mxu0 0.0
      %1626 = vmatprep.mubr.f32.mxu0 0.0
      %1627 = vmatmul.mubr.f32.gmra.mxu0 %v1542
      %v1628 = vpop.f32.mrf.mxu0
      %v1629 = vadd.f32 0.0, %v1628
      %v1630 = vpop.f32.mrf.mxu0
      %1631 = vmatprep.mubr.f32.mxu0 0.0
      %1632 = vmatmul.mubr.f32.gmra.mxu0 %v1543
      %v1633 = vpop.f32.mrf.mxu0
      %v1634 = vadd.f32 0.0, %v1633
      %v1635 = vpop.f32.mrf.mxu0
      %1636 = vmatprep.mubr.f32.mxu0 0.0
      %1637 = vmatmul.mubr.f32.gmra.mxu0 %v1544
      %v1638 = vpop.f32.mrf.mxu0
      %v1639 = vadd.f32 0.0, %v1638
      %v1640 = vpop.f32.mrf.mxu0
      %1641 = vdwg.mxu0
      %v1642 = vadd.f32 %v1537, %v1629
      %v1643 = vadd.f32 %v1538, %v1634
      %v1644 = vadd.f32 %v1539, %v1639
      %s1645 = sadd.s32 %s287, 19
      %s1646 = scalar_lea.vmem %s264, %s1645
      %v1647 = vld [vmem:[%s1646] sm:$0xff]
      %v1648 = vld [vmem:[%s1646 + $0x8] sm:$0xff]
      %v1649 = vld [vmem:[%s1646 + $0x10] sm:$0xff]
      %s1650 = scalar_lea.vmem %s1, 1664
      %v1651 = vld [vmem:[%s1650] sm:$0xff]
      %v1652 = vld [vmem:[%s1650 + $0x8] sm:$0xff]
      %v1653 = vld [vmem:[%s1650 + $0x10] sm:$0xff]
      %v1654 = vld [vmem:[%s1650 + $0x18] sm:$0xff]
      %v1655 = vld [vmem:[%s1650 + $0x20] sm:$0xff]
      %v1656 = vld [vmem:[%s1650 + $0x28] sm:$0xff]
      %v1657 = vld [vmem:[%s1650 + $0x30] sm:$0xff]
      %v1658 = vld [vmem:[%s1650 + $0x38] sm:$0xff]
      %v1659 = vld [vmem:[%s1650 + $0x40] sm:$0xff]
      %v1660 = vld [vmem:[%s1650 + $0x48] sm:$0xff]
      %v1661 = vld [vmem:[%s1650 + $0x50] sm:$0xff]
      %v1662 = vld [vmem:[%s1650 + $0x58] sm:$0xff]
      %v1663 = vld [vmem:[%s1650 + $0x60] sm:$0xff]
      %v1664 = vld [vmem:[%s1650 + $0x68] sm:$0xff]
      %v1665 = vld [vmem:[%s1650 + $0x70] sm:$0xff]
      %v1666 = vld [vmem:[%s1650 + $0x78] sm:$0xff]
      %1667 = vmatprep.subr.mxu0 0.0
      %1668 = vmatpush1.msra.mxu0 %v1666
      %1669 = vmatprep.subr.mxu0 0.0
      %1670 = vmatpush1.msra.mxu0 %v1665
      %1671 = vmatprep.subr.mxu0 0.0
      %1672 = vmatpush1.msra.mxu0 %v1664
      %1673 = vmatprep.subr.mxu0 0.0
      %1674 = vmatpush1.msra.mxu0 %v1663
      %1675 = vmatprep.subr.mxu0 0.0
      %1676 = vmatpush1.msra.mxu0 %v1662
      %1677 = vmatprep.subr.mxu0 0.0
      %1678 = vmatpush1.msra.mxu0 %v1661
      %1679 = vmatprep.subr.mxu0 0.0
      %1680 = vmatpush1.msra.mxu0 %v1660
      %1681 = vmatprep.subr.mxu0 0.0
      %1682 = vmatpush1.msra.mxu0 %v1659
      %1683 = vmatprep.subr.mxu0 0.0
      %1684 = vmatpush1.msra.mxu0 %v1658
      %1685 = vmatprep.subr.mxu0 0.0
      %1686 = vmatpush1.msra.mxu0 %v1657
      %1687 = vmatprep.subr.mxu0 0.0
      %1688 = vmatpush1.msra.mxu0 %v1656
      %1689 = vmatprep.subr.mxu0 0.0
      %1690 = vmatpush1.msra.mxu0 %v1655
      %1691 = vmatprep.subr.mxu0 0.0
      %1692 = vmatpush1.msra.mxu0 %v1654
      %1693 = vmatprep.subr.mxu0 0.0
      %1694 = vmatpush1.msra.mxu0 %v1653
      %1695 = vmatprep.subr.mxu0 0.0
      %1696 = vmatpush1.msra.mxu0 %v1652
      %1697 = vmatprep.subr.mxu0 0.0
      %1698 = vmatpush1.msra.mxu0 %v1651
      %1699 = vmatprep.subr.mxu0 0.0
      %1700 = vmatpush2.msra.mxu0 0.0
      %1701 = vmatprep.subr.mxu0 0.0
      %1702 = vmatpush2.msra.mxu0 0.0
      %1703 = vmatprep.subr.mxu0 0.0
      %1704 = vmatpush2.msra.mxu0 0.0
      %1705 = vmatprep.subr.mxu0 0.0
      %1706 = vmatpush2.msra.mxu0 0.0
      %1707 = vmatprep.subr.mxu0 0.0
      %1708 = vmatpush2.msra.mxu0 0.0
      %1709 = vmatprep.subr.mxu0 0.0
      %1710 = vmatpush2.msra.mxu0 0.0
      %1711 = vmatprep.subr.mxu0 0.0
      %1712 = vmatpush2.msra.mxu0 0.0
      %1713 = vmatprep.subr.mxu0 0.0
      %1714 = vmatpush2.msra.mxu0 0.0
      %1715 = vmatprep.subr.mxu0 0.0
      %1716 = vmatpush2.msra.mxu0 0.0
      %1717 = vmatprep.subr.mxu0 0.0
      %1718 = vmatpush2.msra.mxu0 0.0
      %1719 = vmatprep.subr.mxu0 0.0
      %1720 = vmatpush2.msra.mxu0 0.0
      %1721 = vmatprep.subr.mxu0 0.0
      %1722 = vmatpush2.msra.mxu0 0.0
      %1723 = vmatprep.subr.mxu0 0.0
      %1724 = vmatpush2.msra.mxu0 0.0
      %1725 = vmatprep.subr.mxu0 0.0
      %1726 = vmatpush2.msra.mxu0 0.0
      %1727 = vmatprep.subr.mxu0 0.0
      %1728 = vmatpush2.msra.mxu0 0.0
      %1729 = vmatprep.subr.mxu0 0.0
      %1730 = vmatpush2.msra.mxu0 0.0
      %1731 = vmatprep.mubr.f32.mxu0 0.0
      %1732 = vmatmul.mubr.f32.gmra.mxu0 %v1647
      %v1733 = vpop.f32.mrf.mxu0
      %v1734 = vadd.f32 0.0, %v1733
      %v1735 = vpop.f32.mrf.mxu0
      %1736 = vmatprep.mubr.f32.mxu0 0.0
      %1737 = vmatmul.mubr.f32.gmra.mxu0 %v1648
      %v1738 = vpop.f32.mrf.mxu0
      %v1739 = vadd.f32 0.0, %v1738
      %v1740 = vpop.f32.mrf.mxu0
      %1741 = vmatprep.mubr.f32.mxu0 0.0
      %1742 = vmatmul.mubr.f32.gmra.mxu0 %v1649
      %v1743 = vpop.f32.mrf.mxu0
      %v1744 = vadd.f32 0.0, %v1743
      %v1745 = vpop.f32.mrf.mxu0
      %1746 = vdwg.mxu0
      %v1747 = vadd.f32 %v1642, %v1734
      %v1748 = vadd.f32 %v1643, %v1739
      %v1749 = vadd.f32 %v1644, %v1744
      %s1750 = sadd.s32 %s287, 20
      %s1751 = scalar_lea.vmem %s264, %s1750
      %v1752 = vld [vmem:[%s1751] sm:$0xff]
      %v1753 = vld [vmem:[%s1751 + $0x8] sm:$0xff]
      %v1754 = vld [vmem:[%s1751 + $0x10] sm:$0xff]
      %s1755 = scalar_lea.vmem %s1, 1792
      %v1756 = vld [vmem:[%s1755] sm:$0xff]
      %v1757 = vld [vmem:[%s1755 + $0x8] sm:$0xff]
      %v1758 = vld [vmem:[%s1755 + $0x10] sm:$0xff]
      %v1759 = vld [vmem:[%s1755 + $0x18] sm:$0xff]
      %v1760 = vld [vmem:[%s1755 + $0x20] sm:$0xff]
      %v1761 = vld [vmem:[%s1755 + $0x28] sm:$0xff]
      %v1762 = vld [vmem:[%s1755 + $0x30] sm:$0xff]
      %v1763 = vld [vmem:[%s1755 + $0x38] sm:$0xff]
      %v1764 = vld [vmem:[%s1755 + $0x40] sm:$0xff]
      %v1765 = vld [vmem:[%s1755 + $0x48] sm:$0xff]
      %v1766 = vld [vmem:[%s1755 + $0x50] sm:$0xff]
      %v1767 = vld [vmem:[%s1755 + $0x58] sm:$0xff]
      %v1768 = vld [vmem:[%s1755 + $0x60] sm:$0xff]
      %v1769 = vld [vmem:[%s1755 + $0x68] sm:$0xff]
      %v1770 = vld [vmem:[%s1755 + $0x70] sm:$0xff]
      %v1771 = vld [vmem:[%s1755 + $0x78] sm:$0xff]
      %1772 = vmatprep.subr.mxu0 0.0
      %1773 = vmatpush1.msra.mxu0 %v1771
      %1774 = vmatprep.subr.mxu0 0.0
      %1775 = vmatpush1.msra.mxu0 %v1770
      %1776 = vmatprep.subr.mxu0 0.0
      %1777 = vmatpush1.msra.mxu0 %v1769
      %1778 = vmatprep.subr.mxu0 0.0
      %1779 = vmatpush1.msra.mxu0 %v1768
      %1780 = vmatprep.subr.mxu0 0.0
      %1781 = vmatpush1.msra.mxu0 %v1767
      %1782 = vmatprep.subr.mxu0 0.0
      %1783 = vmatpush1.msra.mxu0 %v1766
      %1784 = vmatprep.subr.mxu0 0.0
      %1785 = vmatpush1.msra.mxu0 %v1765
      %1786 = vmatprep.subr.mxu0 0.0
      %1787 = vmatpush1.msra.mxu0 %v1764
      %1788 = vmatprep.subr.mxu0 0.0
      %1789 = vmatpush1.msra.mxu0 %v1763
      %1790 = vmatprep.subr.mxu0 0.0
      %1791 = vmatpush1.msra.mxu0 %v1762
      %1792 = vmatprep.subr.mxu0 0.0
      %1793 = vmatpush1.msra.mxu0 %v1761
      %1794 = vmatprep.subr.mxu0 0.0
      %1795 = vmatpush1.msra.mxu0 %v1760
      %1796 = vmatprep.subr.mxu0 0.0
      %1797 = vmatpush1.msra.mxu0 %v1759
      %1798 = vmatprep.subr.mxu0 0.0
      %1799 = vmatpush1.msra.mxu0 %v1758
      %1800 = vmatprep.subr.mxu0 0.0
      %1801 = vmatpush1.msra.mxu0 %v1757
      %1802 = vmatprep.subr.mxu0 0.0
      %1803 = vmatpush1.msra.mxu0 %v1756
      %1804 = vmatprep.subr.mxu0 0.0
      %1805 = vmatpush2.msra.mxu0 0.0
      %1806 = vmatprep.subr.mxu0 0.0
      %1807 = vmatpush2.msra.mxu0 0.0
      %1808 = vmatprep.subr.mxu0 0.0
      %1809 = vmatpush2.msra.mxu0 0.0
      %1810 = vmatprep.subr.mxu0 0.0
      %1811 = vmatpush2.msra.mxu0 0.0
      %1812 = vmatprep.subr.mxu0 0.0
      %1813 = vmatpush2.msra.mxu0 0.0
      %1814 = vmatprep.subr.mxu0 0.0
      %1815 = vmatpush2.msra.mxu0 0.0
      %1816 = vmatprep.subr.mxu0 0.0
      %1817 = vmatpush2.msra.mxu0 0.0
      %1818 = vmatprep.subr.mxu0 0.0
      %1819 = vmatpush2.msra.mxu0 0.0
      %1820 = vmatprep.subr.mxu0 0.0
      %1821 = vmatpush2.msra.mxu0 0.0
      %1822 = vmatprep.subr.mxu0 0.0
      %1823 = vmatpush2.msra.mxu0 0.0
      %1824 = vmatprep.subr.mxu0 0.0
      %1825 = vmatpush2.msra.mxu0 0.0
      %1826 = vmatprep.subr.mxu0 0.0
      %1827 = vmatpush2.msra.mxu0 0.0
      %1828 = vmatprep.subr.mxu0 0.0
      %1829 = vmatpush2.msra.mxu0 0.0
      %1830 = vmatprep.subr.mxu0 0.0
      %1831 = vmatpush2.msra.mxu0 0.0
      %1832 = vmatprep.subr.mxu0 0.0
      %1833 = vmatpush2.msra.mxu0 0.0
      %1834 = vmatprep.subr.mxu0 0.0
      %1835 = vmatpush2.msra.mxu0 0.0
      %1836 = vmatprep.mubr.f32.mxu0 0.0
      %1837 = vmatmul.mubr.f32.gmra.mxu0 %v1752
      %v1838 = vpop.f32.mrf.mxu0
      %v1839 = vadd.f32 0.0, %v1838
      %v1840 = vpop.f32.mrf.mxu0
      %1841 = vmatprep.mubr.f32.mxu0 0.0
      %1842 = vmatmul.mubr.f32.gmra.mxu0 %v1753
      %v1843 = vpop.f32.mrf.mxu0
      %v1844 = vadd.f32 0.0, %v1843
      %v1845 = vpop.f32.mrf.mxu0
      %1846 = vmatprep.mubr.f32.mxu0 0.0
      %1847 = vmatmul.mubr.f32.gmra.mxu0 %v1754
      %v1848 = vpop.f32.mrf.mxu0
      %v1849 = vadd.f32 0.0, %v1848
      %v1850 = vpop.f32.mrf.mxu0
      %1851 = vdwg.mxu0
      %v1852 = vadd.f32 %v1747, %v1839
      %v1853 = vadd.f32 %v1748, %v1844
      %v1854 = vadd.f32 %v1749, %v1849
      %s1855 = sadd.s32 %s287, 21
      %s1856 = scalar_lea.vmem %s264, %s1855
      %v1857 = vld [vmem:[%s1856] sm:$0xff]
      %v1858 = vld [vmem:[%s1856 + $0x8] sm:$0xff]
      %v1859 = vld [vmem:[%s1856 + $0x10] sm:$0xff]
      %s1860 = scalar_lea.vmem %s1, 1920
      %v1861 = vld [vmem:[%s1860] sm:$0xff]
      %v1862 = vld [vmem:[%s1860 + $0x8] sm:$0xff]
      %v1863 = vld [vmem:[%s1860 + $0x10] sm:$0xff]
      %v1864 = vld [vmem:[%s1860 + $0x18] sm:$0xff]
      %v1865 = vld [vmem:[%s1860 + $0x20] sm:$0xff]
      %v1866 = vld [vmem:[%s1860 + $0x28] sm:$0xff]
      %v1867 = vld [vmem:[%s1860 + $0x30] sm:$0xff]
      %v1868 = vld [vmem:[%s1860 + $0x38] sm:$0xff]
      %v1869 = vld [vmem:[%s1860 + $0x40] sm:$0xff]
      %v1870 = vld [vmem:[%s1860 + $0x48] sm:$0xff]
      %v1871 = vld [vmem:[%s1860 + $0x50] sm:$0xff]
      %v1872 = vld [vmem:[%s1860 + $0x58] sm:$0xff]
      %v1873 = vld [vmem:[%s1860 + $0x60] sm:$0xff]
      %v1874 = vld [vmem:[%s1860 + $0x68] sm:$0xff]
      %v1875 = vld [vmem:[%s1860 + $0x70] sm:$0xff]
      %v1876 = vld [vmem:[%s1860 + $0x78] sm:$0xff]
      %1877 = vmatprep.subr.mxu0 0.0
      %1878 = vmatpush1.msra.mxu0 %v1876
      %1879 = vmatprep.subr.mxu0 0.0
      %1880 = vmatpush1.msra.mxu0 %v1875
      %1881 = vmatprep.subr.mxu0 0.0
      %1882 = vmatpush1.msra.mxu0 %v1874
      %1883 = vmatprep.subr.mxu0 0.0
      %1884 = vmatpush1.msra.mxu0 %v1873
      %1885 = vmatprep.subr.mxu0 0.0
      %1886 = vmatpush1.msra.mxu0 %v1872
      %1887 = vmatprep.subr.mxu0 0.0
      %1888 = vmatpush1.msra.mxu0 %v1871
      %1889 = vmatprep.subr.mxu0 0.0
      %1890 = vmatpush1.msra.mxu0 %v1870
      %1891 = vmatprep.subr.mxu0 0.0
      %1892 = vmatpush1.msra.mxu0 %v1869
      %1893 = vmatprep.subr.mxu0 0.0
      %1894 = vmatpush1.msra.mxu0 %v1868
      %1895 = vmatprep.subr.mxu0 0.0
      %1896 = vmatpush1.msra.mxu0 %v1867
      %1897 = vmatprep.subr.mxu0 0.0
      %1898 = vmatpush1.msra.mxu0 %v1866
      %1899 = vmatprep.subr.mxu0 0.0
      %1900 = vmatpush1.msra.mxu0 %v1865
      %1901 = vmatprep.subr.mxu0 0.0
      %1902 = vmatpush1.msra.mxu0 %v1864
      %1903 = vmatprep.subr.mxu0 0.0
      %1904 = vmatpush1.msra.mxu0 %v1863
      %1905 = vmatprep.subr.mxu0 0.0
      %1906 = vmatpush1.msra.mxu0 %v1862
      %1907 = vmatprep.subr.mxu0 0.0
      %1908 = vmatpush1.msra.mxu0 %v1861
      %1909 = vmatprep.subr.mxu0 0.0
      %1910 = vmatpush2.msra.mxu0 0.0
      %1911 = vmatprep.subr.mxu0 0.0
      %1912 = vmatpush2.msra.mxu0 0.0
      %1913 = vmatprep.subr.mxu0 0.0
      %1914 = vmatpush2.msra.mxu0 0.0
      %1915 = vmatprep.subr.mxu0 0.0
      %1916 = vmatpush2.msra.mxu0 0.0
      %1917 = vmatprep.subr.mxu0 0.0
      %1918 = vmatpush2.msra.mxu0 0.0
      %1919 = vmatprep.subr.mxu0 0.0
      %1920 = vmatpush2.msra.mxu0 0.0
      %1921 = vmatprep.subr.mxu0 0.0
      %1922 = vmatpush2.msra.mxu0 0.0
      %1923 = vmatprep.subr.mxu0 0.0
      %1924 = vmatpush2.msra.mxu0 0.0
      %1925 = vmatprep.subr.mxu0 0.0
      %1926 = vmatpush2.msra.mxu0 0.0
      %1927 = vmatprep.subr.mxu0 0.0
      %1928 = vmatpush2.msra.mxu0 0.0
      %1929 = vmatprep.subr.mxu0 0.0
      %1930 = vmatpush2.msra.mxu0 0.0
      %1931 = vmatprep.subr.mxu0 0.0
      %1932 = vmatpush2.msra.mxu0 0.0
      %1933 = vmatprep.subr.mxu0 0.0
      %1934 = vmatpush2.msra.mxu0 0.0
      %1935 = vmatprep.subr.mxu0 0.0
      %1936 = vmatpush2.msra.mxu0 0.0
      %1937 = vmatprep.subr.mxu0 0.0
      %1938 = vmatpush2.msra.mxu0 0.0
      %1939 = vmatprep.subr.mxu0 0.0
      %1940 = vmatpush2.msra.mxu0 0.0
      %1941 = vmatprep.mubr.f32.mxu0 0.0
      %1942 = vmatmul.mubr.f32.gmra.mxu0 %v1857
      %v1943 = vpop.f32.mrf.mxu0
      %v1944 = vadd.f32 0.0, %v1943
      %v1945 = vpop.f32.mrf.mxu0
      %1946 = vmatprep.mubr.f32.mxu0 0.0
      %1947 = vmatmul.mubr.f32.gmra.mxu0 %v1858
      %v1948 = vpop.f32.mrf.mxu0
      %v1949 = vadd.f32 0.0, %v1948
      %v1950 = vpop.f32.mrf.mxu0
      %1951 = vmatprep.mubr.f32.mxu0 0.0
      %1952 = vmatmul.mubr.f32.gmra.mxu0 %v1859
      %v1953 = vpop.f32.mrf.mxu0
      %v1954 = vadd.f32 0.0, %v1953
      %v1955 = vpop.f32.mrf.mxu0
      %1956 = vdwg.mxu0
      %v1957 = vadd.f32 %v1852, %v1944
      %v1958 = vadd.f32 %v1853, %v1949
      %v1959 = vadd.f32 %v1854, %v1954
      %1960 = vst [vmem:[%s279] sm:$0xff] %v1957
      %1961 = vst [vmem:[%s279 + $0x8] sm:$0xff] %v1958
      %1962 = vst [vmem:[%s279 + $0x10] sm:$0xff] %v1959
      %v1963 = vld [vmem:[%s269] sm:$0xff]
      %v1964 = vld [vmem:[%s269 + $0x8] sm:$0xff]
      %v1965 = vld [vmem:[%s269 + $0x10] sm:$0xff]
      %1967 = vset.pattern.permute.xlu0 0
      %1968 = vperm.xlu0 %1967, %v1963
      %v1969 = vpop.permute.xlu0 %1968
      %1972 = vset.pattern.permute.xlu0 0
      %1973 = vperm.xlu0 %1972, %v1964
      %v1974 = vpop.permute.xlu0 %1973
      %1977 = vset.pattern.permute.xlu0 0
      %1978 = vperm.xlu0 %1977, %v1965
      %v1979 = vpop.permute.xlu0 %1978
      %v1981 = vmul.f32 %v1957, %v1969
      %v1982 = vmul.f32 %v1958, %v1974
      %v1983 = vmul.f32 %v1959, %v1979
      %v1984 = vadd.f32 %v1981, %v1982
      %v1985 = vadd.f32 %v1984, %v1983
      %v1986 = vrot.slane %v1985, 4
      %v1987 = vadd.f32 %v1985, %v1986
      %v1988 = vrot.slane %v1987, 2
      %v1989 = vadd.f32 %v1987, %v1988
      %v1990 = vrot.slane %v1989, 1
      %v1991 = vadd.f32 %v1989, %v1990
      %v1992 = vmul.f32 %v1981, %v1957
      %v1993 = vmul.f32 %v1982, %v1958
      %v1994 = vmul.f32 %v1983, %v1959
      %v1995 = vadd.f32 %v1992, %v1993
      %v1996 = vadd.f32 %v1995, %v1994
      %v1997 = vrot.slane %v1996, 4
      %v1998 = vadd.f32 %v1996, %v1997
      %v1999 = vrot.slane %v1998, 2
      %v2000 = vadd.f32 %v1998, %v1999
      %v2001 = vrot.slane %v2000, 1
      %v2002 = vadd.f32 %v2000, %v2001
      %p2003 = scmp.eq.s32.totalorder %s22, 0
      // Predicated region
      $region33: #{_lambda_.13} parent=31 // pred_check
        %p2004 = pneg %p2003
      $region34: #{_lambda_.13} parent=31 // pred_check_branch
        %2006 = sbr.rel (%p2004) target = $region36
      $region35: #{_lambda_.13} parent=31 // pred_region
        %2007 = vst [vmem:[%s283] sm:$0x1] 0.0
        %2008 = vst [vmem:[%s286] sm:$0x1] 0.0
      $region36: #{_lambda_.13} parent=31 // pred_fallthru
        _
      %v2009 = vld [vmem:[%s283] sm:$0x1]
      %v2010 = vadd.f32 %v2009, %v1991
      %2011 = vst [vmem:[%s283] sm:$0x1] %v2010
      %v2012 = vld [vmem:[%s286] sm:$0x1]
      %v2013 = vadd.f32 %v2012, %v2002
      %2014 = vst [vmem:[%s286] sm:$0x1] %v2013
      %s2015 = smul.u32 3, %s22
      %p2016 = scmp.lt.s32.totalorder %s21, 1
      %s2017 = scalar_select %p2016, %s21, 1
      %p2018 = scmp.lt.s32.totalorder %s2015, 2
      %s2019 = scalar_select %p2018, %s2015, 2
      %s2020 = smul.addr %s2017, 3
      %s2021 = sadd.s32 %s2019, %s2020
      %s2022 = smul.addr %s2021, 8
      %s2023 = scalar_lea.vmem %s3, %s2022
      %p2024 = scmp.lt.s32.totalorder %s21, 1
      %s2025 = scalar_select %p2024, %s21, 1
      %s2026 = scalar_lea.vmem %s4, %s2025
      %p2027 = scmp.lt.s32.totalorder %s21, 1
      %s2028 = scalar_select %p2027, %s21, 1
      %s2029 = scalar_lea.vmem %s5, %s2028
      // Predicated region
      $region37: #{_lambda_.13} parent=31 // pred_check
        %p2030 = pneg %p122
      $region38: #{_lambda_.13} parent=31 // pred_check_branch
        %2032 = sbr.rel (%p2030) target = $region40
      $region39: #{_lambda_.13} parent=31 // pred_region
        %s2033 = smul.u32 3, %s22
      $region40: #{_lambda_.13} parent=31 // pred_fallthru
        _
      // Predicated region
      $region41: #{_lambda_.13} parent=31 // pred_check
        %p2034 = pneg %p148
      $region42: #{_lambda_.13} parent=31 // pred_check_branch
        %2036 = sbr.rel (%p2034) target = $region44
      $region43: #{_lambda_.13} parent=31 // pred_region
        _
      $region44: #{_lambda_.13} parent=31 // pred_fallthru
        _
      // Predicated region
      $region45: #{_lambda_.13} parent=31 // pred_check
        %p2037 = pneg %p174
      $region46: #{_lambda_.13} parent=31 // pred_check_branch
        %2039 = sbr.rel (%p2037) target = $region48
      $region47: #{_lambda_.13} parent=31 // pred_region
        _
      $region48: #{_lambda_.13} parent=31 // pred_fallthru
        _
    $region32: #{_lambda_.13} parent=5 // pred_fallthru
      _
    %p2040 = scmp.le.s32.totalorder 2, %s12
    // Predicated region
    $region49: #{_lambda_.13} parent=5 // pred_check
      %p2041 = pneg %p2040
    $region50: #{_lambda_.13} parent=5 // pred_check_branch
      %2043 = sbr.rel (%p2041) target = $region52
    $region51: #{_lambda_.13} parent=5 // pred_region
      %s2044 = ssub.s32 %s12, 2
      // Predicated region
      $region53: #{_lambda_.13} parent=51 // pred_check
        %p2045 = pneg %p128
      $region54: #{_lambda_.13} parent=51 // pred_check_branch
        %2047 = sbr.rel (%p2045) target = $region56
      $region55: #{_lambda_.13} parent=51 // pred_region
        %s2048 = smul.u32 3, %s24
        %p2049 = scmp.lt.s32.totalorder %s23, 1
        %s2050 = scalar_select %p2049, %s23, 1
        %p2051 = scmp.lt.s32.totalorder %s2048, 2
        %s2052 = scalar_select %p2051, %s2048, 2
        %s2053 = smul.addr %s2050, 3
        %s2054 = sadd.s32 %s2052, %s2053
        %s2055 = smul.addr %s2054, 8
        %s2056 = scalar_lea.vmem %s3, %s2055
      $region56: #{_lambda_.13} parent=51 // pred_fallthru
        _
      // Predicated region
      $region57: #{_lambda_.13} parent=51 // pred_check
        %p2057 = pneg %p154
      $region58: #{_lambda_.13} parent=51 // pred_check_branch
        %2059 = sbr.rel (%p2057) target = $region60
      $region59: #{_lambda_.13} parent=51 // pred_region
        %p2060 = scmp.lt.s32.totalorder %s23, 1
        %s2061 = scalar_select %p2060, %s23, 1
        %s2062 = scalar_lea.vmem %s4, %s2061
      $region60: #{_lambda_.13} parent=51 // pred_fallthru
        _
      // Predicated region
      $region61: #{_lambda_.13} parent=51 // pred_check
        %p2063 = pneg %p180
      $region62: #{_lambda_.13} parent=51 // pred_check_branch
        %2065 = sbr.rel (%p2063) target = $region64
      $region63: #{_lambda_.13} parent=51 // pred_region
        %p2066 = scmp.lt.s32.totalorder %s23, 1
        %s2067 = scalar_select %p2066, %s23, 1
        %s2068 = scalar_lea.vmem %s5, %s2067
      $region64: #{_lambda_.13} parent=51 // pred_fallthru
        _
    $region52: #{_lambda_.13} parent=5 // pred_fallthru
      _
  $region6: #{_lambda_.13} parent=0 // loop_footer
    %s16 = sadd.s32 1, %s12
  $region7: #{_lambda_.13} parent=0 // loop_footer_branch
    %11 = sbr.rel target = $region3
  $region8: #{_lambda_.13} parent=0 // loop_exit
    _

</llo_original>
